<compile_context>
chip_gen: v6e
topology: v6e:2x2x1
jax: 0.10.0
libtpu: 0.0.40
codegen_flags: <defaults>
</compile_context>

<pallas_src>
import functools

import jax
import jax.numpy as jnp
from jax.experimental import pallas as pl
from jax.experimental.pallas import tpu as pltpu

# Padded scratch buffers put 8 zero columns left of W (instead of 1) so the interior
# store lands on an (8,128)-aligned sublane offset; conv taps read at offsets W_OFF-1+dx.
W_OFF = 8


# ----------------------------------------------------------------------------- kernels

def convnet_fused_kernel(x_ref, w1_ref, b1_ref, g1_ref, be1_ref,
                         w2_ref, b2_ref,
                         w3_ref, b3_ref, g3_ref, be3_ref,
                         o_ref,
                         xpad, rmax_s, pad2, pad3,
                         *, N, H, W, eps):
    """conv1 -> bn1 -> relu -> pool -> conv2 -> relu -> conv3 -> bn3 -> relu, all in VMEM.

    Output: NHWC-flattened features [N, H2*W2, C3]; the FC weight is pre-permuted so the
    flatten needs no NCHW transpose afterwards.
    """
    f32 = jnp.float32
    C1 = w1_ref.shape[-1]
    C2 = w2_ref.shape[-1]
    C3 = w3_ref.shape[-1]
    H2, W2 = H // 2, W // 2
    M1 = N * H * W
    M2 = N * H2 * W2

    def conv3x3(pad_ref, x_nhwc, hh, ww, w2d_ref, b_ref):
        # zero-pad into scratch (tile-aligned interior store), im2col, ONE matmul.
        cin = x_nhwc.shape[-1]
        pad_ref[...] = jnp.zeros(pad_ref.shape, f32)
        pad_ref[:, 1:hh + 1, W_OFF:W_OFF + ww, :] = x_nhwc
        taps = [pad_ref[:, dy:dy + hh, W_OFF - 1 + dx:W_OFF - 1 + dx + ww, :]
                for dy in range(3) for dx in range(3)]
        patches = jnp.concatenate(taps, axis=-1).reshape(N * hh * ww, 9 * cin)
        return jnp.dot(patches, w2d_ref[...],
                       preferred_element_type=f32) + b_ref[...]

    def batchnorm_relu(x2d, m, g_ref, be_ref):
        # training-mode BN: biased batch stats over rows (= N*H*W), two-pass variance.
        mean = jnp.sum(x2d, axis=0, keepdims=True) / m
        cen = x2d - mean
        var = jnp.sum(cen * cen, axis=0, keepdims=True) / m
        y = cen * (g_ref[...] * jax.lax.rsqrt(var + eps)) + be_ref[...]
        return jnp.maximum(y, 0.0)

    # ---- conv1 + bn1 + relu1 ------------------------------------------------
    c1 = conv3x3(xpad, x_ref[...].astype(f32), H, W, w1_ref, b1_ref)        # [M1, C1]
    y1 = batchnorm_relu(c1, M1, g1_ref, be1_ref)                            # [M1, C1]

    # ---- 2x2 max pool (stride 2) ---------------------------------------------
    y1r = y1.reshape(N, H2, 2, W, C1)                   # split leading dims only
    rmax_s[...] = jnp.maximum(y1r[:, :, 0, :, :], y1r[:, :, 1, :, :])       # pool over H
    pooled = jnp.maximum(rmax_s[:, :, pl.ds(0, W2, stride=2), :],           # pool over W
                         rmax_s[:, :, pl.ds(1, W2, stride=2), :])           # [N,H2,W2,C1]

    # ---- conv2 + relu2 --------------------------------------------------------
    a2 = jnp.maximum(conv3x3(pad2, pooled, H2, W2, w2_ref, b2_ref), 0.0)    # [M2, C2]

    # ---- conv3 + bn3 + relu3 --------------------------------------------------
    c3 = conv3x3(pad3, a2.reshape(N, H2, W2, C2), H2, W2, w3_ref, b3_ref)   # [M2, C3]
    y3 = batchnorm_relu(c3, M2, g3_ref, be3_ref)                            # [M2, C3]

    # ---- NHWC-flattened features ---------------------------------------------
    o_ref[...] = y3.reshape(N, H2 * W2, C3)


def _fc_kernel(x_ref, w_ref, b_ref, o_ref, acc_ref):
    # FC tiled over the reduction axis: accumulate in f32 VMEM, add bias at the end.
    @pl.when(pl.program_id(0) == 0)
    def _():
        acc_ref[...] = jnp.zeros_like(acc_ref)

    acc_ref[...] += jnp.dot(x_ref[...], w_ref[...],
                            preferred_element_type=jnp.float32)

    @pl.when(pl.program_id(0) == pl.num_programs(0) - 1)
    def _():
        o_ref[...] = acc_ref[...] + b_ref[...]


# ----------------------------------------------------------------------------- wrappers

def fc_tiled(x_flat, w, b, *, tf=512):
    # Reduction-tiled FC (required at the real 75*75*32 feature size where the weight
    # does not fit VMEM); grid axis is a reduction -> "arbitrary".
    N, F = x_flat.shape
    K = w.shape[-1]
    tf = min(tf, F)
    assert F % tf == 0, (F, tf)
    return pl.pallas_call(
        _fc_kernel,
        out_shape=jax.ShapeDtypeStruct((N, K), jnp.float32),
        grid=(F // tf,),
        in_specs=[pl.BlockSpec((N, tf), lambda k: (0, k)),
                  pl.BlockSpec((tf, K), lambda k: (k, 0)),
                  pl.BlockSpec((1, K), lambda k: (0, 0))],
        out_specs=pl.BlockSpec((N, K), lambda k: (0, 0)),
        scratch_shapes=[pltpu.VMEM((N, K), jnp.float32)],
        compiler_params=pltpu.CompilerParams(dimension_semantics=("arbitrary",)),
    )(x_flat, w, b.reshape(1, K))


@jax.jit
def convnet_forward(x_nchw, p):
    x = jnp.transpose(x_nchw, (0, 2, 3, 1)).astype(jnp.float32)   # NCHW -> NHWC (input only)
    N, H, W, Cin = x.shape
    H2, W2 = H // 2, W // 2
    C1 = p['w1_2d'].shape[-1]
    C2 = p['w2_2d'].shape[-1]
    C3 = p['w3_2d'].shape[-1]

    feats = pl.pallas_call(
        functools.partial(convnet_fused_kernel, N=N, H=H, W=W, eps=1e-5),
        out_shape=jax.ShapeDtypeStruct((N, H2 * W2, C3), jnp.float32),
        scratch_shapes=[
            pltpu.VMEM((N, H + 2, W_OFF + W + 1, Cin), jnp.float32),     # xpad
            pltpu.VMEM((N, H2, W, C1), jnp.float32),                     # rmax_s
            pltpu.VMEM((N, H2 + 2, W_OFF + W2 + 1, C1), jnp.float32),    # pad2
            pltpu.VMEM((N, H2 + 2, W_OFF + W2 + 1, C2), jnp.float32),    # pad3
        ],
    )(x,
      p['w1_2d'], p['b1'].reshape(1, C1), p['g1'].reshape(1, C1), p['be1'].reshape(1, C1),
      p['w2_2d'], p['b2'].reshape(1, C2),
      p['w3_2d'], p['b3'].reshape(1, C3), p['g3'].reshape(1, C3), p['be3'].reshape(1, C3))

    x_flat = feats.reshape(N, H2 * W2 * C3)      # free row-major collapse (NHWC order)
    return fc_tiled(x_flat, p['wfc_nhwc'], p['bfc'])


# ----------------------------------------------------------------------------- reference

def reference_forward(x_nchw, p, eps=1e-5):
    x = jnp.transpose(x_nchw, (0, 2, 3, 1)).astype(jnp.float32)

    def conv(x, w, b):
        return jax.lax.conv_general_dilated(
            x, w, (1, 1), 'SAME',
            dimension_numbers=('NHWC', 'HWIO', 'NHWC')) + b

    def bn(x, g, be):
        mean = x.mean(axis=(0, 1, 2))
        var = x.var(axis=(0, 1, 2))
        return (x - mean) * jax.lax.rsqrt(var + eps) * g + be

    y = jax.nn.relu(bn(conv(x, p['w1'], p['b1']), p['g1'], p['be1']))
    y = jax.lax.reduce_window(y, -jnp.inf, jax.lax.max, (1, 2, 2, 1), (1, 2, 2, 1), 'VALID')
    y = jax.nn.relu(conv(y, p['w2'], p['b2']))
    y = jax.nn.relu(bn(conv(y, p['w3'], p['b3']), p['g3'], p['be3']))
    N = y.shape[0]
    y = jnp.transpose(y, (0, 3, 1, 2)).reshape(N, -1)              # PyTorch NCHW flatten
    return y @ p['wfc'] + p['bfc']


# ----------------------------------------------------------------------------- params

def init_params(key, num_classes=95, h=16, w=16):
    ks = jax.random.split(key, 8)
    f = 32 * (h // 2) * (w // 2)
    return {
        'w1': 0.1 * jax.random.normal(ks[0], (3, 3, 3, 12), jnp.float32),
        'b1': 0.1 * jax.random.normal(ks[1], (12,), jnp.float32),
        'g1': jnp.ones((12,), jnp.float32),     # PyTorch BN default weight
        'be1': jnp.zeros((12,), jnp.float32),   # PyTorch BN default bias
        'w2': 0.1 * jax.random.normal(ks[2], (3, 3, 12, 20), jnp.float32),
        'b2': 0.1 * jax.random.normal(ks[3], (20,), jnp.float32),
        'w3': 0.1 * jax.random.normal(ks[4], (3, 3, 20, 32), jnp.float32),
        'b3': 0.1 * jax.random.normal(ks[5], (32,), jnp.float32),
        'g3': jnp.ones((32,), jnp.float32),
        'be3': jnp.zeros((32,), jnp.float32),
        'wfc': 0.05 * jax.random.normal(ks[6], (f, num_classes), jnp.float32),
        'bfc': 0.05 * jax.random.normal(ks[7], (num_classes,), jnp.float32),
    }


def prepare_params(p, h, w):
    """One-time layout prep: im2col weight reshapes + fold NCHW flatten into the FC weight."""
    h2, w2 = h // 2, w // 2
    c3 = p['w3'].shape[-1]
    q = dict(p)
    q['w1_2d'] = p['w1'].reshape(-1, p['w1'].shape[-1])            # [9*Cin, Cout]
    q['w2_2d'] = p['w2'].reshape(-1, p['w2'].shape[-1])
    q['w3_2d'] = p['w3'].reshape(-1, p['w3'].shape[-1])
    # wfc rows are ordered (c, h, w) (PyTorch .view on NCHW); permute to (h, w, c) so the
    # kernel's NHWC-flattened features feed it directly (no per-forward transpose).
    q['wfc_nhwc'] = (p['wfc'].reshape(c3, h2, w2, -1)
                     .transpose(1, 2, 0, 3)
                     .reshape(h2 * w2 * c3, -1))
    return q


if __name__ == "__main__":
    key = jax.random.PRNGKey(0)
    kx, kp = jax.random.split(key)
    x = jax.random.normal(kx, (2, 3, 16, 16), jnp.float32)   # NCHW, like PyTorch input
    raw = init_params(kp, num_classes=95, h=16, w=16)
    params = prepare_params(raw, h=16, w=16)

    out = jax.block_until_ready(convnet_forward(x, params))
    assert out.shape == (2, 95), out.shape

    ref = jax.block_until_ready(reference_forward(x, raw))
    err = float(jnp.max(jnp.abs(out - ref)))
    assert jnp.allclose(out, ref, atol=1e-3, rtol=1e-3), f"max abs err {err}"

    # TODO(synk): BatchNorm running-stat updates (training-time side effect) are not
    # modeled; they do not affect the forward output.
    print("KERNEL_OK")
</pallas_src>

<mosaic_0001>
module attributes {stable_mosaic.version = 11 : i64} {
  func.func @_fc_kernel(%arg0: i32, %arg1: memref<2x512xf32, #tpu.memory_space<vmem>>, %arg2: memref<512x95xf32, #tpu.memory_space<vmem>>, %arg3: memref<1x95xf32, #tpu.memory_space<vmem>>, %arg4: memref<2x95xf32, #tpu.memory_space<vmem>>, %arg5: memref<2x95xf32, #tpu.memory_space<vmem>>) attributes {dimension_semantics = [#tpu.dimension_semantics<arbitrary>], iteration_bounds = array<i64: 4>, scalar_prefetch = 0 : i64, scratch_operands = 1 : i64, tpu.core_type = #tpu.core_type<tc>, window_params = [{transform_indices = @transform_0, window_bounds = array<i64: 2, 512>}, {transform_indices = @transform_1, window_bounds = array<i64: 512, 95>}, {pipeline_mode = #tpu.pipeline_mode<synchronous>, transform_indices = @transform_2, window_bounds = array<i64: 1, 95>}, {pipeline_mode = #tpu.pipeline_mode<synchronous>, transform_indices = @transform_3, window_bounds = array<i64: 2, 95>}]} {
    %c0_i32 = arith.constant 0 : i32
    %0 = arith.cmpi eq, %arg0, %c0_i32 : i32
    %1 = arith.extui %0 : i1 to i32
    %c0_i32_0 = arith.constant 0 : i32
    %2 = arith.cmpi ne, %1, %c0_i32_0 : i32
    scf.if %2 {
      %cst_9 = arith.constant 0.000000e+00 : f32
      %12 = vector.broadcast %cst_9 : f32 to vector<2x95xf32>
      %c0_10 = arith.constant 0 : index
      %c0_11 = arith.constant 0 : index
      %13 = vector.load %arg5[%c0_10, %c0_11] : memref<2x95xf32, #tpu.memory_space<vmem>>, vector<2x95xf32>
      tpu.vector_store %arg5[%c0_10, %c0_11], %12 {strides = array<i32>} : memref<2x95xf32, #tpu.memory_space<vmem>>, vector<2x95xf32>,
    } else {
    }
    %c0 = arith.constant 0 : index
    %c0_1 = arith.constant 0 : index
    %3 = vector.load %arg5[%c0, %c0_1] : memref<2x95xf32, #tpu.memory_space<vmem>>, vector<2x95xf32>
    %c0_2 = arith.constant 0 : index
    %c0_3 = arith.constant 0 : index
    %4 = vector.load %arg1[%c0_2, %c0_3] : memref<2x512xf32, #tpu.memory_space<vmem>>, vector<2x512xf32>
    %c0_4 = arith.constant 0 : index
    %c0_5 = arith.constant 0 : index
    %5 = vector.load %arg2[%c0_4, %c0_5] : memref<512x95xf32, #tpu.memory_space<vmem>>, vector<512x95xf32>
    %cst = arith.constant dense<0.000000e+00> : vector<2x95xf32>
    %6 = tpu.matmul %4, %5, %cst {dimension_numbers = #tpu.dot_dimension_numbers<[1], [0], [0], [1], [0, 0, 1, 1], [], []>} : vector<2x512xf32>, vector<512x95xf32>, vector<2x95xf32> -> vector<2x95xf32>
    %7 = arith.addf %3, %6 : vector<2x95xf32>
    %c0_6 = arith.constant 0 : index
    %c0_7 = arith.constant 0 : index
    %8 = vector.load %arg5[%c0_6, %c0_7] : memref<2x95xf32, #tpu.memory_space<vmem>>, vector<2x95xf32>
    tpu.vector_store %arg5[%c0_6, %c0_7], %7 {strides = array<i32>} : memref<2x95xf32, #tpu.memory_space<vmem>>, vector<2x95xf32>,
    %c3_i32 = arith.constant 3 : i32
    %9 = arith.cmpi eq, %arg0, %c3_i32 : i32
    %10 = arith.extui %9 : i1 to i32
    %c0_i32_8 = arith.constant 0 : i32
    %11 = arith.cmpi ne, %10, %c0_i32_8 : i32
    scf.if %11 {
      %c0_9 = arith.constant 0 : index
      %c0_10 = arith.constant 0 : index
      %12 = vector.load %arg5[%c0_9, %c0_10] : memref<2x95xf32, #tpu.memory_space<vmem>>, vector<2x95xf32>
      %c0_11 = arith.constant 0 : index
      %c0_12 = arith.constant 0 : index
      %13 = vector.load %arg3[%c0_11, %c0_12] : memref<1x95xf32, #tpu.memory_space<vmem>>, vector<1x95xf32>
      %14 = vector.broadcast %13 : vector<1x95xf32> to vector<2x95xf32>
      %15 = arith.addf %12, %14 : vector<2x95xf32>
      %c0_13 = arith.constant 0 : index
      %c0_14 = arith.constant 0 : index
      %16 = vector.load %arg4[%c0_13, %c0_14] : memref<2x95xf32, #tpu.memory_space<vmem>>, vector<2x95xf32>
      tpu.vector_store %arg4[%c0_13, %c0_14], %15 {strides = array<i32>} : memref<2x95xf32, #tpu.memory_space<vmem>>, vector<2x95xf32>,
    } else {
    }
    return
  }
  func.func @transform_0(%arg0: i32) -> (i32, i32) {
    %c0_i32 = arith.constant 0 : i32
    %c0_i32_0 = arith.constant 0 : i32
    return %c0_i32, %arg0 : i32, i32
  }
  func.func @transform_1(%arg0: i32) -> (i32, i32) {
    %c0_i32 = arith.constant 0 : i32
    %c0_i32_0 = arith.constant 0 : i32
    return %arg0, %c0_i32 : i32, i32
  }
  func.func @transform_2(%arg0: i32) -> (i32, i32) {
    %c0_i32 = arith.constant 0 : i32
    %c0_i32_0 = arith.constant 0 : i32
    %c0_i32_1 = arith.constant 0 : i32
    return %c0_i32, %c0_i32_0 : i32, i32
  }
  func.func @transform_3(%arg0: i32) -> (i32, i32) {
    %c0_i32 = arith.constant 0 : i32
    %c0_i32_0 = arith.constant 0 : i32
    %c0_i32_1 = arith.constant 0 : i32
    return %c0_i32, %c0_i32_0 : i32, i32
  }
}

module attributes {stable_mosaic.version = 11 : i64} {
  func.func @convnet_fused_kernel(%arg0: memref<2x16x16x3xf32, #tpu.memory_space<vmem>>, %arg1: memref<27x12xf32, #tpu.memory_space<vmem>>, %arg2: memref<1x12xf32, #tpu.memory_space<vmem>>, %arg3: memref<1x12xf32, #tpu.memory_space<vmem>>, %arg4: memref<1x12xf32, #tpu.memory_space<vmem>>, %arg5: memref<108x20xf32, #tpu.memory_space<vmem>>, %arg6: memref<1x20xf32, #tpu.memory_space<vmem>>, %arg7: memref<180x32xf32, #tpu.memory_space<vmem>>, %arg8: memref<1x32xf32, #tpu.memory_space<vmem>>, %arg9: memref<1x32xf32, #tpu.memory_space<vmem>>, %arg10: memref<1x32xf32, #tpu.memory_space<vmem>>, %arg11: memref<2x64x32xf32, #tpu.memory_space<vmem>>, %arg12: memref<2x18x25x3xf32, #tpu.memory_space<vmem>>, %arg13: memref<2x8x16x12xf32, #tpu.memory_space<vmem>>, %arg14: memref<2x10x17x12xf32, #tpu.memory_space<vmem>>, %arg15: memref<2x10x17x20xf32, #tpu.memory_space<vmem>>) attributes {dimension_semantics = [], scalar_prefetch = 0 : i64, scratch_operands = 4 : i64, tpu.core_type = #tpu.core_type<tc>} {
    %c0 = arith.constant 0 : index
    %c0_0 = arith.constant 0 : index
    %c0_1 = arith.constant 0 : index
    %c0_2 = arith.constant 0 : index
    %0 = vector.load %arg0[%c0, %c0_0, %c0_1, %c0_2] : memref<2x16x16x3xf32, #tpu.memory_space<vmem>>, vector<2x16x16x3xf32>
    %cst = arith.constant 0.000000e+00 : f32
    %1 = vector.broadcast %cst : f32 to vector<2x18x25x3xf32>
    %c0_3 = arith.constant 0 : index
    %c0_4 = arith.constant 0 : index
    %c0_5 = arith.constant 0 : index
    %c0_6 = arith.constant 0 : index
    %2 = vector.load %arg12[%c0_3, %c0_4, %c0_5, %c0_6] : memref<2x18x25x3xf32, #tpu.memory_space<vmem>>, vector<2x18x25x3xf32>
    tpu.vector_store %arg12[%c0_3, %c0_4, %c0_5, %c0_6], %1 {strides = array<i32>} : memref<2x18x25x3xf32, #tpu.memory_space<vmem>>, vector<2x18x25x3xf32>,
    %c0_7 = arith.constant 0 : index
    %c1 = arith.constant 1 : index
    %c8 = arith.constant 8 : index
    %c0_8 = arith.constant 0 : index
    %3 = vector.load %arg12[%c0_7, %c1, %c8, %c0_8] : memref<2x18x25x3xf32, #tpu.memory_space<vmem>>, vector<2x16x16x3xf32>
    tpu.vector_store %arg12[%c0_7, %c1, %c8, %c0_8], %0 {strides = array<i32>} : memref<2x18x25x3xf32, #tpu.memory_space<vmem>>, vector<2x16x16x3xf32>,
    %c0_9 = arith.constant 0 : index
    %c0_10 = arith.constant 0 : index
    %c7 = arith.constant 7 : index
    %c0_11 = arith.constant 0 : index
    %4 = vector.load %arg12[%c0_9, %c0_10, %c7, %c0_11] : memref<2x18x25x3xf32, #tpu.memory_space<vmem>>, vector<2x16x16x3xf32>
    %c0_12 = arith.constant 0 : index
    %c0_13 = arith.constant 0 : index
    %c8_14 = arith.constant 8 : index
    %c0_15 = arith.constant 0 : index
    %5 = vector.load %arg12[%c0_12, %c0_13, %c8_14, %c0_15] : memref<2x18x25x3xf32, #tpu.memory_space<vmem>>, vector<2x16x16x3xf32>
    %c0_16 = arith.constant 0 : index
    %c0_17 = arith.constant 0 : index
    %c9 = arith.constant 9 : index
    %c0_18 = arith.constant 0 : index
    %6 = vector.load %arg12[%c0_16, %c0_17, %c9, %c0_18] : memref<2x18x25x3xf32, #tpu.memory_space<vmem>>, vector<2x16x16x3xf32>
    %c0_19 = arith.constant 0 : index
    %c1_20 = arith.constant 1 : index
    %c7_21 = arith.constant 7 : index
    %c0_22 = arith.constant 0 : index
    %7 = vector.load %arg12[%c0_19, %c1_20, %c7_21, %c0_22] : memref<2x18x25x3xf32, #tpu.memory_space<vmem>>, vector<2x16x16x3xf32>
    %c0_23 = arith.constant 0 : index
    %c1_24 = arith.constant 1 : index
    %c8_25 = arith.constant 8 : index
    %c0_26 = arith.constant 0 : index
    %8 = vector.load %arg12[%c0_23, %c1_24, %c8_25, %c0_26] : memref<2x18x25x3xf32, #tpu.memory_space<vmem>>, vector<2x16x16x3xf32>
    %c0_27 = arith.constant 0 : index
    %c1_28 = arith.constant 1 : index
    %c9_29 = arith.constant 9 : index
    %c0_30 = arith.constant 0 : index
    %9 = vector.load %arg12[%c0_27, %c1_28, %c9_29, %c0_30] : memref<2x18x25x3xf32, #tpu.memory_space<vmem>>, vector<2x16x16x3xf32>
    %c0_31 = arith.constant 0 : index
    %c2 = arith.constant 2 : index
    %c7_32 = arith.constant 7 : index
    %c0_33 = arith.constant 0 : index
    %10 = vector.load %arg12[%c0_31, %c2, %c7_32, %c0_33] : memref<2x18x25x3xf32, #tpu.memory_space<vmem>>, vector<2x16x16x3xf32>
    %c0_34 = arith.constant 0 : index
    %c2_35 = arith.constant 2 : index
    %c8_36 = arith.constant 8 : index
    %c0_37 = arith.constant 0 : index
    %11 = vector.load %arg12[%c0_34, %c2_35, %c8_36, %c0_37] : memref<2x18x25x3xf32, #tpu.memory_space<vmem>>, vector<2x16x16x3xf32>
    %c0_38 = arith.constant 0 : index
    %c2_39 = arith.constant 2 : index
    %c9_40 = arith.constant 9 : index
    %c0_41 = arith.constant 0 : index
    %12 = vector.load %arg12[%c0_38, %c2_39, %c9_40, %c0_41] : memref<2x18x25x3xf32, #tpu.memory_space<vmem>>, vector<2x16x16x3xf32>
    %13 = tpu.concatenate %4, %5, %6, %7, %8, %9, %10, %11, %12 in 3 : vector<2x16x16x3xf32>, vector<2x16x16x3xf32>, vector<2x16x16x3xf32>, vector<2x16x16x3xf32>, vector<2x16x16x3xf32>, vector<2x16x16x3xf32>, vector<2x16x16x3xf32>, vector<2x16x16x3xf32>, vector<2x16x16x3xf32> -> vector<2x16x16x27xf32>
    %14 = vector.shape_cast %13 : vector<2x16x16x27xf32> to vector<512x27xf32>
    %c0_42 = arith.constant 0 : index
    %c0_43 = arith.constant 0 : index
    %15 = vector.load %arg1[%c0_42, %c0_43] : memref<27x12xf32, #tpu.memory_space<vmem>>, vector<27x12xf32>
    %cst_44 = arith.constant dense<0.000000e+00> : vector<512x12xf32>
    %16 = tpu.matmul %14, %15, %cst_44 {dimension_numbers = #tpu.dot_dimension_numbers<[1], [0], [0], [1], [0, 0, 1, 1], [], []>} : vector<512x27xf32>, vector<27x12xf32>, vector<512x12xf32> -> vector<512x12xf32>
    %c0_45 = arith.constant 0 : index
    %c0_46 = arith.constant 0 : index
    %17 = vector.load %arg2[%c0_45, %c0_46] : memref<1x12xf32, #tpu.memory_space<vmem>>, vector<1x12xf32>
    %18 = vector.broadcast %17 : vector<1x12xf32> to vector<512x12xf32>
    %19 = arith.addf %16, %18 : vector<512x12xf32>
    %cst_47 = arith.constant dense<0.000000e+00> : vector<12xf32>
    %20 = vector.multi_reduction <add>, %19, %cst_47 [0] : vector<512x12xf32> to vector<12xf32>
    %21 = vector.shape_cast %20 : vector<12xf32> to vector<1x12xf32>
    %cst_48 = arith.constant 5.120000e+02 : f32
    %22 = vector.broadcast %cst_48 : f32 to vector<1x12xf32>
    %23 = arith.divf %21, %22 : vector<1x12xf32>
    %24 = vector.broadcast %23 : vector<1x12xf32> to vector<512x12xf32>
    %25 = arith.subf %19, %24 : vector<512x12xf32>
    %26 = arith.mulf %25, %25 : vector<512x12xf32>
    %cst_49 = arith.constant dense<0.000000e+00> : vector<12xf32>
    %27 = vector.multi_reduction <add>, %26, %cst_49 [0] : vector<512x12xf32> to vector<12xf32>
    %28 = vector.shape_cast %27 : vector<12xf32> to vector<1x12xf32>
    %cst_50 = arith.constant 5.120000e+02 : f32
    %29 = vector.broadcast %cst_50 : f32 to vector<1x12xf32>
    %30 = arith.divf %28, %29 : vector<1x12xf32>
    %c0_51 = arith.constant 0 : index
    %c0_52 = arith.constant 0 : index
    %31 = vector.load %arg3[%c0_51, %c0_52] : memref<1x12xf32, #tpu.memory_space<vmem>>, vector<1x12xf32>
    %cst_53 = arith.constant 9.99999974E-6 : f32
    %32 = vector.broadcast %cst_53 : f32 to vector<1x12xf32>
    %33 = arith.addf %30, %32 : vector<1x12xf32>
    %34 = math.rsqrt %33 : vector<1x12xf32>
    %35 = arith.mulf %31, %34 : vector<1x12xf32>
    %36 = vector.broadcast %35 : vector<1x12xf32> to vector<512x12xf32>
    %37 = arith.mulf %25, %36 : vector<512x12xf32>
    %c0_54 = arith.constant 0 : index
    %c0_55 = arith.constant 0 : index
    %38 = vector.load %arg4[%c0_54, %c0_55] : memref<1x12xf32, #tpu.memory_space<vmem>>, vector<1x12xf32>
    %39 = vector.broadcast %38 : vector<1x12xf32> to vector<512x12xf32>
    %40 = arith.addf %37, %39 : vector<512x12xf32>
    %cst_56 = arith.constant 0.000000e+00 : f32
    %41 = vector.broadcast %cst_56 : f32 to vector<512x12xf32>
    %42 = arith.maximumf %40, %41 : vector<512x12xf32>
    %43 = vector.shape_cast %42 : vector<512x12xf32> to vector<2x8x2x16x12xf32>
    %44 = vector.extract_strided_slice %43 {offsets = [0, 0, 0, 0, 0], sizes = [2, 8, 1, 16, 12], strides = [1, 1, 1, 1, 1]} : vector<2x8x2x16x12xf32> to vector<2x8x1x16x12xf32>
    %45 = vector.shape_cast %44 : vector<2x8x1x16x12xf32> to vector<2x8x16x12xf32>
    %46 = vector.extract_strided_slice %43 {offsets = [0, 0, 1, 0, 0], sizes = [2, 8, 1, 16, 12], strides = [1, 1, 1, 1, 1]} : vector<2x8x2x16x12xf32> to vector<2x8x1x16x12xf32>
    %47 = vector.shape_cast %46 : vector<2x8x1x16x12xf32> to vector<2x8x16x12xf32>
    %48 = arith.maximumf %45, %47 : vector<2x8x16x12xf32>
    %c0_57 = arith.constant 0 : index
    %c0_58 = arith.constant 0 : index
    %c0_59 = arith.constant 0 : index
    %c0_60 = arith.constant 0 : index
    %49 = vector.load %arg13[%c0_57, %c0_58, %c0_59, %c0_60] : memref<2x8x16x12xf32, #tpu.memory_space<vmem>>, vector<2x8x16x12xf32>
    tpu.vector_store %arg13[%c0_57, %c0_58, %c0_59, %c0_60], %48 {strides = array<i32>} : memref<2x8x16x12xf32, #tpu.memory_space<vmem>>, vector<2x8x16x12xf32>,
    %c0_61 = arith.constant 0 : index
    %c0_62 = arith.constant 0 : index
    %c0_63 = arith.constant 0 : index
    %c0_64 = arith.constant 0 : index
    %50 = tpu.strided_load %arg13[%c0_61, %c0_62, %c0_63, %c0_64] {strides = array<i32: 1, 1, 2, 1>} : memref<2x8x16x12xf32, #tpu.memory_space<vmem>>, vector<2x8x8x12xf32>
    %c0_65 = arith.constant 0 : index
    %c0_66 = arith.constant 0 : index
    %c1_67 = arith.constant 1 : index
    %c0_68 = arith.constant 0 : index
    %51 = tpu.strided_load %arg13[%c0_65, %c0_66, %c1_67, %c0_68] {strides = array<i32: 1, 1, 2, 1>} : memref<2x8x16x12xf32, #tpu.memory_space<vmem>>, vector<2x8x8x12xf32>
    %52 = arith.maximumf %50, %51 : vector<2x8x8x12xf32>
    %cst_69 = arith.constant 0.000000e+00 : f32
    %53 = vector.broadcast %cst_69 : f32 to vector<2x10x17x12xf32>
    %c0_70 = arith.constant 0 : index
    %c0_71 = arith.constant 0 : index
    %c0_72 = arith.constant 0 : index
    %c0_73 = arith.constant 0 : index
    %54 = vector.load %arg14[%c0_70, %c0_71, %c0_72, %c0_73] : memref<2x10x17x12xf32, #tpu.memory_space<vmem>>, vector<2x10x17x12xf32>
    tpu.vector_store %arg14[%c0_70, %c0_71, %c0_72, %c0_73], %53 {strides = array<i32>} : memref<2x10x17x12xf32, #tpu.memory_space<vmem>>, vector<2x10x17x12xf32>,
    %c0_74 = arith.constant 0 : index
    %c1_75 = arith.constant 1 : index
    %c8_76 = arith.constant 8 : index
    %c0_77 = arith.constant 0 : index
    %55 = vector.load %arg14[%c0_74, %c1_75, %c8_76, %c0_77] : memref<2x10x17x12xf32, #tpu.memory_space<vmem>>, vector<2x8x8x12xf32>
    tpu.vector_store %arg14[%c0_74, %c1_75, %c8_76, %c0_77], %52 {strides = array<i32>} : memref<2x10x17x12xf32, #tpu.memory_space<vmem>>, vector<2x8x8x12xf32>,
    %c0_78 = arith.constant 0 : index
    %c0_79 = arith.constant 0 : index
    %c7_80 = arith.constant 7 : index
    %c0_81 = arith.constant 0 : index
    %56 = vector.load %arg14[%c0_78, %c0_79, %c7_80, %c0_81] : memref<2x10x17x12xf32, #tpu.memory_space<vmem>>, vector<2x8x8x12xf32>
    %c0_82 = arith.constant 0 : index
    %c0_83 = arith.constant 0 : index
    %c8_84 = arith.constant 8 : index
    %c0_85 = arith.constant 0 : index
    %57 = vector.load %arg14[%c0_82, %c0_83, %c8_84, %c0_85] : memref<2x10x17x12xf32, #tpu.memory_space<vmem>>, vector<2x8x8x12xf32>
    %c0_86 = arith.constant 0 : index
    %c0_87 = arith.constant 0 : index
    %c9_88 = arith.constant 9 : index
    %c0_89 = arith.constant 0 : index
    %58 = vector.load %arg14[%c0_86, %c0_87, %c9_88, %c0_89] : memref<2x10x17x12xf32, #tpu.memory_space<vmem>>, vector<2x8x8x12xf32>
    %c0_90 = arith.constant 0 : index
    %c1_91 = arith.constant 1 : index
    %c7_92 = arith.constant 7 : index
    %c0_93 = arith.constant 0 : index
    %59 = vector.load %arg14[%c0_90, %c1_91, %c7_92, %c0_93] : memref<2x10x17x12xf32, #tpu.memory_space<vmem>>, vector<2x8x8x12xf32>
    %c0_94 = arith.constant 0 : index
    %c1_95 = arith.constant 1 : index
    %c8_96 = arith.constant 8 : index
    %c0_97 = arith.constant 0 : index
    %60 = vector.load %arg14[%c0_94, %c1_95, %c8_96, %c0_97] : memref<2x10x17x12xf32, #tpu.memory_space<vmem>>, vector<2x8x8x12xf32>
    %c0_98 = arith.constant 0 : index
    %c1_99 = arith.constant 1 : index
    %c9_100 = arith.constant 9 : index
    %c0_101 = arith.constant 0 : index
    %61 = vector.load %arg14[%c0_98, %c1_99, %c9_100, %c0_101] : memref<2x10x17x12xf32, #tpu.memory_space<vmem>>, vector<2x8x8x12xf32>
    %c0_102 = arith.constant 0 : index
    %c2_103 = arith.constant 2 : index
    %c7_104 = arith.constant 7 : index
    %c0_105 = arith.constant 0 : index
    %62 = vector.load %arg14[%c0_102, %c2_103, %c7_104, %c0_105] : memref<2x10x17x12xf32, #tpu.memory_space<vmem>>, vector<2x8x8x12xf32>
    %c0_106 = arith.constant 0 : index
    %c2_107 = arith.constant 2 : index
    %c8_108 = arith.constant 8 : index
    %c0_109 = arith.constant 0 : index
    %63 = vector.load %arg14[%c0_106, %c2_107, %c8_108, %c0_109] : memref<2x10x17x12xf32, #tpu.memory_space<vmem>>, vector<2x8x8x12xf32>
    %c0_110 = arith.constant 0 : index
    %c2_111 = arith.constant 2 : index
    %c9_112 = arith.constant 9 : index
    %c0_113 = arith.constant 0 : index
    %64 = vector.load %arg14[%c0_110, %c2_111, %c9_112, %c0_113] : memref<2x10x17x12xf32, #tpu.memory_space<vmem>>, vector<2x8x8x12xf32>
    %65 = tpu.concatenate %56, %57, %58, %59, %60, %61, %62, %63, %64 in 3 : vector<2x8x8x12xf32>, vector<2x8x8x12xf32>, vector<2x8x8x12xf32>, vector<2x8x8x12xf32>, vector<2x8x8x12xf32>, vector<2x8x8x12xf32>, vector<2x8x8x12xf32>, vector<2x8x8x12xf32>, vector<2x8x8x12xf32> -> vector<2x8x8x108xf32>
    %66 = vector.shape_cast %65 : vector<2x8x8x108xf32> to vector<128x108xf32>
    %c0_114 = arith.constant 0 : index
    %c0_115 = arith.constant 0 : index
    %67 = vector.load %arg5[%c0_114, %c0_115] : memref<108x20xf32, #tpu.memory_space<vmem>>, vector<108x20xf32>
    %cst_116 = arith.constant dense<0.000000e+00> : vector<128x20xf32>
    %68 = tpu.matmul %66, %67, %cst_116 {dimension_numbers = #tpu.dot_dimension_numbers<[1], [0], [0], [1], [0, 0, 1, 1], [], []>} : vector<128x108xf32>, vector<108x20xf32>, vector<128x20xf32> -> vector<128x20xf32>
    %c0_117 = arith.constant 0 : index
    %c0_118 = arith.constant 0 : index
    %69 = vector.load %arg6[%c0_117, %c0_118] : memref<1x20xf32, #tpu.memory_space<vmem>>, vector<1x20xf32>
    %70 = vector.broadcast %69 : vector<1x20xf32> to vector<128x20xf32>
    %71 = arith.addf %68, %70 : vector<128x20xf32>
    %cst_119 = arith.constant 0.000000e+00 : f32
    %72 = vector.broadcast %cst_119 : f32 to vector<128x20xf32>
    %73 = arith.maximumf %71, %72 : vector<128x20xf32>
    %74 = vector.shape_cast %73 : vector<128x20xf32> to vector<2x8x8x20xf32>
    %cst_120 = arith.constant 0.000000e+00 : f32
    %75 = vector.broadcast %cst_120 : f32 to vector<2x10x17x20xf32>
    %c0_121 = arith.constant 0 : index
    %c0_122 = arith.constant 0 : index
    %c0_123 = arith.constant 0 : index
    %c0_124 = arith.constant 0 : index
    %76 = vector.load %arg15[%c0_121, %c0_122, %c0_123, %c0_124] : memref<2x10x17x20xf32, #tpu.memory_space<vmem>>, vector<2x10x17x20xf32>
    tpu.vector_store %arg15[%c0_121, %c0_122, %c0_123, %c0_124], %75 {strides = array<i32>} : memref<2x10x17x20xf32, #tpu.memory_space<vmem>>, vector<2x10x17x20xf32>,
    %c0_125 = arith.constant 0 : index
    %c1_126 = arith.constant 1 : index
    %c8_127 = arith.constant 8 : index
    %c0_128 = arith.constant 0 : index
    %77 = vector.load %arg15[%c0_125, %c1_126, %c8_127, %c0_128] : memref<2x10x17x20xf32, #tpu.memory_space<vmem>>, vector<2x8x8x20xf32>
    tpu.vector_store %arg15[%c0_125, %c1_126, %c8_127, %c0_128], %74 {strides = array<i32>} : memref<2x10x17x20xf32, #tpu.memory_space<vmem>>, vector<2x8x8x20xf32>,
    %c0_129 = arith.constant 0 : index
    %c0_130 = arith.constant 0 : index
    %c7_131 = arith.constant 7 : index
    %c0_132 = arith.constant 0 : index
    %78 = vector.load %arg15[%c0_129, %c0_130, %c7_131, %c0_132] : memref<2x10x17x20xf32, #tpu.memory_space<vmem>>, vector<2x8x8x20xf32>
    %c0_133 = arith.constant 0 : index
    %c0_134 = arith.constant 0 : index
    %c8_135 = arith.constant 8 : index
    %c0_136 = arith.constant 0 : index
    %79 = vector.load %arg15[%c0_133, %c0_134, %c8_135, %c0_136] : memref<2x10x17x20xf32, #tpu.memory_space<vmem>>, vector<2x8x8x20xf32>
    %c0_137 = arith.constant 0 : index
    %c0_138 = arith.constant 0 : index
    %c9_139 = arith.constant 9 : index
    %c0_140 = arith.constant 0 : index
    %80 = vector.load %arg15[%c0_137, %c0_138, %c9_139, %c0_140] : memref<2x10x17x20xf32, #tpu.memory_space<vmem>>, vector<2x8x8x20xf32>
    %c0_141 = arith.constant 0 : index
    %c1_142 = arith.constant 1 : index
    %c7_143 = arith.constant 7 : index
    %c0_144 = arith.constant 0 : index
    %81 = vector.load %arg15[%c0_141, %c1_142, %c7_143, %c0_144] : memref<2x10x17x20xf32, #tpu.memory_space<vmem>>, vector<2x8x8x20xf32>
    %c0_145 = arith.constant 0 : index
    %c1_146 = arith.constant 1 : index
    %c8_147 = arith.constant 8 : index
    %c0_148 = arith.constant 0 : index
    %82 = vector.load %arg15[%c0_145, %c1_146, %c8_147, %c0_148] : memref<2x10x17x20xf32, #tpu.memory_space<vmem>>, vector<2x8x8x20xf32>
    %c0_149 = arith.constant 0 : index
    %c1_150 = arith.constant 1 : index
    %c9_151 = arith.constant 9 : index
    %c0_152 = arith.constant 0 : index
    %83 = vector.load %arg15[%c0_149, %c1_150, %c9_151, %c0_152] : memref<2x10x17x20xf32, #tpu.memory_space<vmem>>, vector<2x8x8x20xf32>
    %c0_153 = arith.constant 0 : index
    %c2_154 = arith.constant 2 : index
    %c7_155 = arith.constant 7 : index
    %c0_156 = arith.constant 0 : index
    %84 = vector.load %arg15[%c0_153, %c2_154, %c7_155, %c0_156] : memref<2x10x17x20xf32, #tpu.memory_space<vmem>>, vector<2x8x8x20xf32>
    %c0_157 = arith.constant 0 : index
    %c2_158 = arith.constant 2 : index
    %c8_159 = arith.constant 8 : index
    %c0_160 = arith.constant 0 : index
    %85 = vector.load %arg15[%c0_157, %c2_158, %c8_159, %c0_160] : memref<2x10x17x20xf32, #tpu.memory_space<vmem>>, vector<2x8x8x20xf32>
    %c0_161 = arith.constant 0 : index
    %c2_162 = arith.constant 2 : index
    %c9_163 = arith.constant 9 : index
    %c0_164 = arith.constant 0 : index
    %86 = vector.load %arg15[%c0_161, %c2_162, %c9_163, %c0_164] : memref<2x10x17x20xf32, #tpu.memory_space<vmem>>, vector<2x8x8x20xf32>
    %87 = tpu.concatenate %78, %79, %80, %81, %82, %83, %84, %85, %86 in 3 : vector<2x8x8x20xf32>, vector<2x8x8x20xf32>, vector<2x8x8x20xf32>, vector<2x8x8x20xf32>, vector<2x8x8x20xf32>, vector<2x8x8x20xf32>, vector<2x8x8x20xf32>, vector<2x8x8x20xf32>, vector<2x8x8x20xf32> -> vector<2x8x8x180xf32>
    %88 = vector.shape_cast %87 : vector<2x8x8x180xf32> to vector<128x180xf32>
    %c0_165 = arith.constant 0 : index
    %c0_166 = arith.constant 0 : index
    %89 = vector.load %arg7[%c0_165, %c0_166] : memref<180x32xf32, #tpu.memory_space<vmem>>, vector<180x32xf32>
    %cst_167 = arith.constant dense<0.000000e+00> : vector<128x32xf32>
    %90 = tpu.matmul %88, %89, %cst_167 {dimension_numbers = #tpu.dot_dimension_numbers<[1], [0], [0], [1], [0, 0, 1, 1], [], []>} : vector<128x180xf32>, vector<180x32xf32>, vector<128x32xf32> -> vector<128x32xf32>
    %c0_168 = arith.constant 0 : index
    %c0_169 = arith.constant 0 : index
    %91 = vector.load %arg8[%c0_168, %c0_169] : memref<1x32xf32, #tpu.memory_space<vmem>>, vector<1x32xf32>
    %92 = vector.broadcast %91 : vector<1x32xf32> to vector<128x32xf32>
    %93 = arith.addf %90, %92 : vector<128x32xf32>
    %cst_170 = arith.constant dense<0.000000e+00> : vector<32xf32>
    %94 = vector.multi_reduction <add>, %93, %cst_170 [0] : vector<128x32xf32> to vector<32xf32>
    %95 = vector.shape_cast %94 : vector<32xf32> to vector<1x32xf32>
    %cst_171 = arith.constant 1.280000e+02 : f32
    %96 = vector.broadcast %cst_171 : f32 to vector<1x32xf32>
    %97 = arith.divf %95, %96 : vector<1x32xf32>
    %98 = vector.broadcast %97 : vector<1x32xf32> to vector<128x32xf32>
    %99 = arith.subf %93, %98 : vector<128x32xf32>
    %100 = arith.mulf %99, %99 : vector<128x32xf32>
    %cst_172 = arith.constant dense<0.000000e+00> : vector<32xf32>
    %101 = vector.multi_reduction <add>, %100, %cst_172 [0] : vector<128x32xf32> to vector<32xf32>
    %102 = vector.shape_cast %101 : vector<32xf32> to vector<1x32xf32>
    %cst_173 = arith.constant 1.280000e+02 : f32
    %103 = vector.broadcast %cst_173 : f32 to vector<1x32xf32>
    %104 = arith.divf %102, %103 : vector<1x32xf32>
    %c0_174 = arith.constant 0 : index
    %c0_175 = arith.constant 0 : index
    %105 = vector.load %arg9[%c0_174, %c0_175] : memref<1x32xf32, #tpu.memory_space<vmem>>, vector<1x32xf32>
    %cst_176 = arith.constant 9.99999974E-6 : f32
    %106 = vector.broadcast %cst_176 : f32 to vector<1x32xf32>
    %107 = arith.addf %104, %106 : vector<1x32xf32>
    %108 = math.rsqrt %107 : vector<1x32xf32>
    %109 = arith.mulf %105, %108 : vector<1x32xf32>
    %110 = vector.broadcast %109 : vector<1x32xf32> to vector<128x32xf32>
    %111 = arith.mulf %99, %110 : vector<128x32xf32>
    %c0_177 = arith.constant 0 : index
    %c0_178 = arith.constant 0 : index
    %112 = vector.load %arg10[%c0_177, %c0_178] : memref<1x32xf32, #tpu.memory_space<vmem>>, vector<1x32xf32>
    %113 = vector.broadcast %112 : vector<1x32xf32> to vector<128x32xf32>
    %114 = arith.addf %111, %113 : vector<128x32xf32>
    %cst_179 = arith.constant 0.000000e+00 : f32
    %115 = vector.broadcast %cst_179 : f32 to vector<128x32xf32>
    %116 = arith.maximumf %114, %115 : vector<128x32xf32>
    %117 = vector.shape_cast %116 : vector<128x32xf32> to vector<2x64x32xf32>
    %c0_180 = arith.constant 0 : index
    %c0_181 = arith.constant 0 : index
    %c0_182 = arith.constant 0 : index
    %118 = vector.load %arg11[%c0_180, %c0_181, %c0_182] : memref<2x64x32xf32, #tpu.memory_space<vmem>>, vector<2x64x32xf32>
    tpu.vector_store %arg11[%c0_180, %c0_181, %c0_182], %117 {strides = array<i32>} : memref<2x64x32xf32, #tpu.memory_space<vmem>>, vector<2x64x32xf32>,
    return
  }
}

</mosaic_0001>

<llo_original>
// kernel: convnet_forward.3
$region0: #{convnet_forward.3}
  #allocation0 [shape = 'u32[]', space=smem, size = 0x4, offset = 0x4, fixed_abs, tag = 'smem constant byte address 0x4 - core index']
  #allocation1 [shape = 'u32[144,128]{1,0:T(1,128)}', space=vmem, size = 0x12000, scoped, tag = 'internal scratch']
  #allocation2 [shape = 'f32[2,95]{1,0:T(2,128)}', space=vmem, size = 0x400, scoped, tag = 'scratch operand']
  %s0 = inlined_call_operand.vmem [shape: f32[2,2048], index: 0, kind: input, shape index: {}]
  %s1 = inlined_call_operand.vmem [shape: f32[2048,95], index: 1, kind: input, shape index: {}]
  %s2 = inlined_call_operand.vmem [shape: f32[1,95], index: 2, kind: input, shape index: {}]
  %s3 = inlined_call_operand.hbm [shape: f32[2,95], index: 3, kind: output, shape index: {}]
  %s4 = sld [smem:[#allocation0]]
  $region53: #{convnet_forward.3} parent=0
    _
  %s6 = ssub.s32 1, %s4
  %s7 = scalar_select 0, %s6, %s4
  $region1: #{convnet_forward.3} parent=0
    #allocation3 [shape = 'u8[1024]{0}', space=vmem, size = 0x400, scoped, tag = 'output window, operand 0, single buffered']
    #allocation4 [shape = 's32[2]{0}', space=sflag, size = 0x8, scoped, tag = 'scoped memory for convnet_forward.3']
    %8 = vsyncpa [#allocation4], 0
    loop: start=0, step=1, limit=6
    $region2: #{convnet_forward.3} parent=1 // loop_pre_header
      _
    $region3: #{convnet_forward.3} parent=1 // loop_header
      %s10 = sphi 0, %s14
      %p11 = scmp.ge.s32.totalorder %s10, 6
      %s20 = sphi 0, %s22
      %s23 = sphi 0, %s20
      %s24 = sphi 0, %s23
      %s40 = sphi 0, %s24
      %s46 = sphi 0, %s48
      %s49 = sphi 0, %s46
      %s50 = sphi 0, %s49
      %s66 = sphi 0, %s50
      %s70 = sphi 0, %s70
      %s72 = sphi 0, %s70
      %s73 = sphi 0, %s72
      %s87 = sphi 0, %s73
      %s91 = sphi 0, %s91
      %s93 = sphi 0, %s91
      %s94 = sphi 0, %s93
      %s108 = sphi 0, %s94
    $region4: #{convnet_forward.3} parent=1 // loop_header_branch
      %13 = sbr.rel (%p11) target = $region8
    $region5: #{convnet_forward.3} parent=1 // loop_body
      %s15 = ssub.s32 %s10, 1
      %s16 = ssub.s32 %s10, 2
      %s17 = sadd.s32 %s10, 1
      %s18 = ssub.s32 %s10, %s17
      %p19 = scmp.eq.s32.totalorder %s18, 0
      %s21 = sadd.s32 %s20, 1
      %s22 = scalar_select %p19, %s20, %s21
      %p25 = pneg %p19
      %p26 = scmp.eq.s32.totalorder %s10, 3
      %p27 = por %p25, %p26
      %p28 = scmp.ne.s32.totalorder %s20, %s23
      %p29 = scmp.eq.s32.totalorder %s10, 0
      %p30 = por %p28, %p29
      %p31 = scmp.ne.s32.totalorder %s20, %s23
      %p32 = scmp.eq.s32.totalorder %s15, 3
      %p33 = por %p31, %p32
      %p34 = scmp.ne.s32.totalorder %s23, %s24
      %p35 = scmp.eq.s32.totalorder %s15, 0
      %p36 = por %p34, %p35
      %p37 = scmp.ne.s32.totalorder %s23, %s24
      %p38 = scmp.eq.s32.totalorder %s16, 3
      %p39 = por %p37, %p38
      %p41 = scmp.ne.s32.totalorder %s24, %s40
      %p42 = scmp.eq.s32.totalorder %s16, 0
      %p43 = por %p41, %p42
      %s44 = ssub.s32 %s10, %s17
      %p45 = scmp.eq.s32.totalorder %s44, 0
      %s47 = sadd.s32 %s46, 1
      %s48 = scalar_select %p45, %s46, %s47
      %p51 = pneg %p45
      %p52 = scmp.eq.s32.totalorder %s10, 3
      %p53 = por %p51, %p52
      %p54 = scmp.ne.s32.totalorder %s46, %s49
      %p55 = scmp.eq.s32.totalorder %s10, 0
      %p56 = por %p54, %p55
      %p57 = scmp.ne.s32.totalorder %s46, %s49
      %p58 = scmp.eq.s32.totalorder %s15, 3
      %p59 = por %p57, %p58
      %p60 = scmp.ne.s32.totalorder %s49, %s50
      %p61 = scmp.eq.s32.totalorder %s15, 0
      %p62 = por %p60, %p61
      %p63 = scmp.ne.s32.totalorder %s49, %s50
      %p64 = scmp.eq.s32.totalorder %s16, 3
      %p65 = por %p63, %p64
      %p67 = scmp.ne.s32.totalorder %s50, %s66
      %p68 = scmp.eq.s32.totalorder %s16, 0
      %p69 = por %p67, %p68
      %s71 = sadd.s32 %s70, 1
      %p74 = scmp.eq.s32.totalorder %s10, 3
      %p75 = scmp.ne.s32.totalorder %s70, %s72
      %p76 = scmp.eq.s32.totalorder %s10, 0
      %p77 = por %p75, %p76
      %p78 = scmp.ne.s32.totalorder %s70, %s72
      %p79 = scmp.eq.s32.totalorder %s15, 3
      %p80 = por %p78, %p79
      %p81 = scmp.ne.s32.totalorder %s72, %s73
      %p82 = scmp.eq.s32.totalorder %s15, 0
      %p83 = por %p81, %p82
      %p84 = scmp.ne.s32.totalorder %s72, %s73
      %p85 = scmp.eq.s32.totalorder %s16, 3
      %p86 = por %p84, %p85
      %p88 = scmp.ne.s32.totalorder %s73, %s87
      %p89 = scmp.eq.s32.totalorder %s16, 0
      %p90 = por %p88, %p89
      %s92 = sadd.s32 %s91, 1
      %p95 = scmp.eq.s32.totalorder %s10, 3
      %p96 = scmp.ne.s32.totalorder %s91, %s93
      %p97 = scmp.eq.s32.totalorder %s10, 0
      %p98 = por %p96, %p97
      %p99 = scmp.ne.s32.totalorder %s91, %s93
      %p100 = scmp.eq.s32.totalorder %s15, 3
      %p101 = por %p99, %p100
      %p102 = scmp.ne.s32.totalorder %s93, %s94
      %p103 = scmp.eq.s32.totalorder %s15, 0
      %p104 = por %p102, %p103
      %p105 = scmp.ne.s32.totalorder %s93, %s94
      %p106 = scmp.eq.s32.totalorder %s16, 3
      %p107 = por %p105, %p106
      %p109 = scmp.ne.s32.totalorder %s94, %s108
      %p110 = scmp.eq.s32.totalorder %s16, 0
      %p111 = por %p109, %p110
      %p112 = scmp.le.s32.totalorder 1, %s10
      %p113 = scmp.lt.s32.totalorder %s10, 5
      %p114 = pnand %p112, %p113
      %p115 = pneg %p114
      // Predicated region
      $region9: #{convnet_forward.3} parent=5 // pred_check
        _
      $region10: #{convnet_forward.3} parent=5 // pred_check_branch
        %117 = sbr.rel (%p114) target = $region12
      $region11: #{convnet_forward.3} parent=5 // pred_region
        %s118 = ssub.s32 %s10, 1
        // Predicated region
        $region13: #{convnet_forward.3} parent=11 // pred_check
          %p119 = pneg %p83
        $region14: #{convnet_forward.3} parent=11 // pred_check_branch
          %121 = sbr.rel (%p119) target = $region16
        $region15: #{convnet_forward.3} parent=11 // pred_region
          _
        $region16: #{convnet_forward.3} parent=11 // pred_fallthru
          _
      $region12: #{convnet_forward.3} parent=5 // pred_fallthru
        _
      %p122 = scmp.lt.s32.totalorder %s10, 4
      // Predicated region
      $region17: #{convnet_forward.3} parent=5 // pred_check
        %p123 = pneg %p122
      $region18: #{convnet_forward.3} parent=5 // pred_check_branch
        %125 = sbr.rel (%p123) target = $region20
      $region19: #{convnet_forward.3} parent=5 // pred_region
        // Predicated region
        $region21: #{convnet_forward.3} parent=19 // pred_check
          %p126 = pneg %p30
        $region22: #{convnet_forward.3} parent=19 // pred_check_branch
          %128 = sbr.rel (%p126) target = $region24
        $region23: #{convnet_forward.3} parent=19 // pred_region
          %s129 = smul.u32 4, %s10
          %p130 = scmp.lt.s32.totalorder %s129, 15
          %s131 = scalar_select %p130, %s129, 15
          %s132 = smul.addr %s131, 2
          %s133 = scalar_lea.vmem %s0, %s132
          %s134 = smul.u32 4, %s10
        $region24: #{convnet_forward.3} parent=19 // pred_fallthru
          _
        // Predicated region
        $region25: #{convnet_forward.3} parent=19 // pred_check
          %p135 = pneg %p56
        $region26: #{convnet_forward.3} parent=19 // pred_check_branch
          %137 = sbr.rel (%p135) target = $region28
        $region27: #{convnet_forward.3} parent=19 // pred_region
          %s138 = smul.u32 64, %s10
          %p139 = scmp.lt.s32.totalorder %s138, 255
          %s140 = scalar_select %p139, %s138, 255
          %s141 = smul.addr %s140, 8
          %s142 = scalar_lea.vmem %s1, %s141
          %s143 = smul.u32 64, %s10
        $region28: #{convnet_forward.3} parent=19 // pred_fallthru
          _
      $region20: #{convnet_forward.3} parent=5 // pred_fallthru
        _
      %p144 = scmp.le.s32.totalorder 1, %s10
      %p145 = scmp.lt.s32.totalorder %s10, 5
      %p146 = pnand %p144, %p145
      %p147 = pneg %p146
      // Predicated region
      $region29: #{convnet_forward.3} parent=5 // pred_check
        _
      $region30: #{convnet_forward.3} parent=5 // pred_check_branch
        %149 = sbr.rel (%p146) target = $region32
      $region31: #{convnet_forward.3} parent=5 // pred_region
        %s150 = ssub.s32 %s10, 1
        %s151 = smul.u32 4, %s15
        %p152 = scmp.lt.s32.totalorder %s151, 15
        %s153 = scalar_select %p152, %s151, 15
        %s154 = smul.addr %s153, 2
        %s155 = scalar_lea.vmem %s0, %s154
        %p156 = pneg %p36
        %p157 = pneg %p33
        %s158 = smul.u32 64, %s15
        %p159 = scmp.lt.s32.totalorder %s158, 255
        %s160 = scalar_select %p159, %s158, 255
        %s161 = smul.addr %s160, 8
        %s162 = scalar_lea.vmem %s1, %s161
        %p163 = pneg %p62
        %p164 = pneg %p59
        %p165 = pneg %p83
        %p166 = pneg %p80
        %p167 = pneg %p104
        %p168 = pneg %p101
        %s169 = smul.u32 4, %s15
        %p170 = scmp.lt.s32.totalorder %s169, 15
        %s171 = scalar_select %p170, %s169, 15
        %s172 = smul.addr %s171, 2
        %s173 = scalar_lea.vmem %s0, %s172
        %s174 = smul.u32 4, %s15
        %s175 = smul.u32 64, %s15
        %p176 = scmp.lt.s32.totalorder %s175, 255
        %s177 = scalar_select %p176, %s175, 255
        %s178 = smul.addr %s177, 8
        %s179 = scalar_lea.vmem %s1, %s178
        %s180 = smul.u32 64, %s15
        %p181 = scmp.eq.s32.totalorder %s15, 0
        // Predicated region
        $region33: #{convnet_forward.3} parent=31 // pred_check
          %p182 = pneg %p181
        $region34: #{convnet_forward.3} parent=31 // pred_check_branch
          %184 = sbr.rel (%p182) target = $region36
        $region35: #{convnet_forward.3} parent=31 // pred_region
          %vm185 = vcmask 771072
          %186 = vst.msk [vmem:[#allocation2] sm:$0x3] %vm185, 0.0
        $region36: #{convnet_forward.3} parent=31 // pred_fallthru
          _
        %v187 = vld [vmem:[#allocation2] sm:$0x3]
        %v188 = vld [vmem:[%s173] sm:$0xff]
        %v189 = vld [vmem:[%s179] sm:$0xff]
        %v190 = vld [vmem:[%s179 + $0x8] sm:$0xff]
        %v191 = vld [vmem:[%s179 + $0x10] sm:$0xff]
        %v192 = vld [vmem:[%s179 + $0x18] sm:$0xff]
        %v193 = vld [vmem:[%s179 + $0x20] sm:$0xff]
        %v194 = vld [vmem:[%s179 + $0x28] sm:$0xff]
        %v195 = vld [vmem:[%s179 + $0x30] sm:$0xff]
        %v196 = vld [vmem:[%s179 + $0x38] sm:$0xff]
        %v197 = vld [vmem:[%s179 + $0x40] sm:$0xff]
        %v198 = vld [vmem:[%s179 + $0x48] sm:$0xff]
        %v199 = vld [vmem:[%s179 + $0x50] sm:$0xff]
        %v200 = vld [vmem:[%s179 + $0x58] sm:$0xff]
        %v201 = vld [vmem:[%s179 + $0x60] sm:$0xff]
        %v202 = vld [vmem:[%s179 + $0x68] sm:$0xff]
        %v203 = vld [vmem:[%s179 + $0x70] sm:$0xff]
        %v204 = vld [vmem:[%s179 + $0x78] sm:$0xff]
        %v205 = vld [vmem:[%s179 + $0x80] sm:$0xff]
        %v206 = vld [vmem:[%s179 + $0x88] sm:$0xff]
        %v207 = vld [vmem:[%s179 + $0x90] sm:$0xff]
        %v208 = vld [vmem:[%s179 + $0x98] sm:$0xff]
        %v209 = vld [vmem:[%s179 + $0xa0] sm:$0xff]
        %v210 = vld [vmem:[%s179 + $0xa8] sm:$0xff]
        %v211 = vld [vmem:[%s179 + $0xb0] sm:$0xff]
        %v212 = vld [vmem:[%s179 + $0xb8] sm:$0xff]
        %v213 = vld [vmem:[%s179 + $0xc0] sm:$0xff]
        %v214 = vld [vmem:[%s179 + $0xc8] sm:$0xff]
        %v215 = vld [vmem:[%s179 + $0xd0] sm:$0xff]
        %v216 = vld [vmem:[%s179 + $0xd8] sm:$0xff]
        %v217 = vld [vmem:[%s179 + $0xe0] sm:$0xff]
        %v218 = vld [vmem:[%s179 + $0xe8] sm:$0xff]
        %v219 = vld [vmem:[%s179 + $0xf0] sm:$0xff]
        %v220 = vld [vmem:[%s179 + $0xf8] sm:$0xff]
        %v221 = vld [vmem:[%s179 + $0x100] sm:$0xff]
        %v222 = vld [vmem:[%s179 + $0x108] sm:$0xff]
        %v223 = vld [vmem:[%s179 + $0x110] sm:$0xff]
        %v224 = vld [vmem:[%s179 + $0x118] sm:$0xff]
        %v225 = vld [vmem:[%s179 + $0x120] sm:$0xff]
        %v226 = vld [vmem:[%s179 + $0x128] sm:$0xff]
        %v227 = vld [vmem:[%s179 + $0x130] sm:$0xff]
        %v228 = vld [vmem:[%s179 + $0x138] sm:$0xff]
        %v229 = vld [vmem:[%s179 + $0x140] sm:$0xff]
        %v230 = vld [vmem:[%s179 + $0x148] sm:$0xff]
        %v231 = vld [vmem:[%s179 + $0x150] sm:$0xff]
        %v232 = vld [vmem:[%s179 + $0x158] sm:$0xff]
        %v233 = vld [vmem:[%s179 + $0x160] sm:$0xff]
        %v234 = vld [vmem:[%s179 + $0x168] sm:$0xff]
        %v235 = vld [vmem:[%s179 + $0x170] sm:$0xff]
        %v236 = vld [vmem:[%s179 + $0x178] sm:$0xff]
        %v237 = vld [vmem:[%s179 + $0x180] sm:$0xff]
        %v238 = vld [vmem:[%s179 + $0x188] sm:$0xff]
        %v239 = vld [vmem:[%s179 + $0x190] sm:$0xff]
        %v240 = vld [vmem:[%s179 + $0x198] sm:$0xff]
        %v241 = vld [vmem:[%s179 + $0x1a0] sm:$0xff]
        %v242 = vld [vmem:[%s179 + $0x1a8] sm:$0xff]
        %v243 = vld [vmem:[%s179 + $0x1b0] sm:$0xff]
        %v244 = vld [vmem:[%s179 + $0x1b8] sm:$0xff]
        %v245 = vld [vmem:[%s179 + $0x1c0] sm:$0xff]
        %v246 = vld [vmem:[%s179 + $0x1c8] sm:$0xff]
        %v247 = vld [vmem:[%s179 + $0x1d0] sm:$0xff]
        %v248 = vld [vmem:[%s179 + $0x1d8] sm:$0xff]
        %v249 = vld [vmem:[%s179 + $0x1e0] sm:$0xff]
        %v250 = vld [vmem:[%s179 + $0x1e8] sm:$0xff]
        %v251 = vld [vmem:[%s179 + $0x1f0] sm:$0xff]
        %v252 = vld [vmem:[%s179 + $0x1f8] sm:$0xff]
        %v254 = vcombine.high %v188, %v188
        %v256 = vunpack.c.l.s4 1983009808
        %v257 = vunpack.c.0.s8 %v256
        %v258 = vlaneseq
        %v259 = vshrl.u32 %v258, 7
        %v260 = vsub.s32 %v257, %v259
        %v261 = vrot.slane %v188, %v260
        %v263 = vunpack.c.l.s4 1983009808
        %v264 = vunpack.c.0.s8 %v263
        %v265 = vlaneseq
        %v266 = vshrl.u32 %v265, 7
        %v267 = vsub.s32 %v264, %v266
        %v268 = vrot.slane %v254, %v267
        %v269 = vcombine.high %v261, %v261
        %v270 = vcombine.high %v268, %v268
        %275 = vmatprep.subr.mxu0 0.0
        %276 = vmatpush1.msra.mxu0 %v204
        %277 = vmatprep.subr.mxu0 0.0
        %278 = vmatpush1.msra.mxu0 %v203
        %279 = vmatprep.subr.mxu0 0.0
        %280 = vmatpush1.msra.mxu0 %v202
        %281 = vmatprep.subr.mxu0 0.0
        %282 = vmatpush1.msra.mxu0 %v201
        %283 = vmatprep.subr.mxu0 0.0
        %284 = vmatpush1.msra.mxu0 %v200
        %285 = vmatprep.subr.mxu0 0.0
        %286 = vmatpush1.msra.mxu0 %v199
        %287 = vmatprep.subr.mxu0 0.0
        %288 = vmatpush1.msra.mxu0 %v198
        %289 = vmatprep.subr.mxu0 0.0
        %290 = vmatpush1.msra.mxu0 %v197
        %291 = vmatprep.subr.mxu0 0.0
        %292 = vmatpush1.msra.mxu0 %v196
        %293 = vmatprep.subr.mxu0 0.0
        %294 = vmatpush1.msra.mxu0 %v195
        %295 = vmatprep.subr.mxu0 0.0
        %296 = vmatpush1.msra.mxu0 %v194
        %297 = vmatprep.subr.mxu0 0.0
        %298 = vmatpush1.msra.mxu0 %v193
        %299 = vmatprep.subr.mxu0 0.0
        %300 = vmatpush1.msra.mxu0 %v192
        %301 = vmatprep.subr.mxu0 0.0
        %302 = vmatpush1.msra.mxu0 %v191
        %303 = vmatprep.subr.mxu0 0.0
        %304 = vmatpush1.msra.mxu0 %v190
        %305 = vmatprep.subr.mxu0 0.0
        %306 = vmatpush1.msra.mxu0 %v189
        %307 = vmatprep.subr.mxu0 0.0
        %308 = vmatpush2.msra.mxu0 %v220
        %309 = vmatprep.subr.mxu0 0.0
        %310 = vmatpush2.msra.mxu0 %v219
        %311 = vmatprep.subr.mxu0 0.0
        %312 = vmatpush2.msra.mxu0 %v218
        %313 = vmatprep.subr.mxu0 0.0
        %314 = vmatpush2.msra.mxu0 %v217
        %315 = vmatprep.subr.mxu0 0.0
        %316 = vmatpush2.msra.mxu0 %v216
        %317 = vmatprep.subr.mxu0 0.0
        %318 = vmatpush2.msra.mxu0 %v215
        %319 = vmatprep.subr.mxu0 0.0
        %320 = vmatpush2.msra.mxu0 %v214
        %321 = vmatprep.subr.mxu0 0.0
        %322 = vmatpush2.msra.mxu0 %v213
        %323 = vmatprep.subr.mxu0 0.0
        %324 = vmatpush2.msra.mxu0 %v212
        %325 = vmatprep.subr.mxu0 0.0
        %326 = vmatpush2.msra.mxu0 %v211
        %327 = vmatprep.subr.mxu0 0.0
        %328 = vmatpush2.msra.mxu0 %v210
        %329 = vmatprep.subr.mxu0 0.0
        %330 = vmatpush2.msra.mxu0 %v209
        %331 = vmatprep.subr.mxu0 0.0
        %332 = vmatpush2.msra.mxu0 %v208
        %333 = vmatprep.subr.mxu0 0.0
        %334 = vmatpush2.msra.mxu0 %v207
        %335 = vmatprep.subr.mxu0 0.0
        %336 = vmatpush2.msra.mxu0 %v206
        %337 = vmatprep.subr.mxu0 0.0
        %338 = vmatpush2.msra.mxu0 %v205
        %339 = vmatprep.mubr.f32.mxu0 %v269
        %340 = vmatmul.mubr.f32.gmra.mxu0 %v261
        %v341 = vpop.f32.mrf.mxu0
        %v342 = vadd.f32 0.0, %v341
        %v343 = vpop.f32.mrf.mxu0
        %344 = vdwg.mxu0
        %345 = vmatprep.subr.mxu0 0.0
        %346 = vmatpush1.msra.mxu0 %v236
        %347 = vmatprep.subr.mxu0 0.0
        %348 = vmatpush1.msra.mxu0 %v235
        %349 = vmatprep.subr.mxu0 0.0
        %350 = vmatpush1.msra.mxu0 %v234
        %351 = vmatprep.subr.mxu0 0.0
        %352 = vmatpush1.msra.mxu0 %v233
        %353 = vmatprep.subr.mxu0 0.0
        %354 = vmatpush1.msra.mxu0 %v232
        %355 = vmatprep.subr.mxu0 0.0
        %356 = vmatpush1.msra.mxu0 %v231
        %357 = vmatprep.subr.mxu0 0.0
        %358 = vmatpush1.msra.mxu0 %v230
        %359 = vmatprep.subr.mxu0 0.0
        %360 = vmatpush1.msra.mxu0 %v229
        %361 = vmatprep.subr.mxu0 0.0
        %362 = vmatpush1.msra.mxu0 %v228
        %363 = vmatprep.subr.mxu0 0.0
        %364 = vmatpush1.msra.mxu0 %v227
        %365 = vmatprep.subr.mxu0 0.0
        %366 = vmatpush1.msra.mxu0 %v226
        %367 = vmatprep.subr.mxu0 0.0
        %368 = vmatpush1.msra.mxu0 %v225
        %369 = vmatprep.subr.mxu0 0.0
        %370 = vmatpush1.msra.mxu0 %v224
        %371 = vmatprep.subr.mxu0 0.0
        %372 = vmatpush1.msra.mxu0 %v223
        %373 = vmatprep.subr.mxu0 0.0
        %374 = vmatpush1.msra.mxu0 %v222
        %375 = vmatprep.subr.mxu0 0.0
        %376 = vmatpush1.msra.mxu0 %v221
        %377 = vmatprep.subr.mxu0 0.0
        %378 = vmatpush2.msra.mxu0 %v252
        %379 = vmatprep.subr.mxu0 0.0
        %380 = vmatpush2.msra.mxu0 %v251
        %381 = vmatprep.subr.mxu0 0.0
        %382 = vmatpush2.msra.mxu0 %v250
        %383 = vmatprep.subr.mxu0 0.0
        %384 = vmatpush2.msra.mxu0 %v249
        %385 = vmatprep.subr.mxu0 0.0
        %386 = vmatpush2.msra.mxu0 %v248
        %387 = vmatprep.subr.mxu0 0.0
        %388 = vmatpush2.msra.mxu0 %v247
        %389 = vmatprep.subr.mxu0 0.0
        %390 = vmatpush2.msra.mxu0 %v246
        %391 = vmatprep.subr.mxu0 0.0
        %392 = vmatpush2.msra.mxu0 %v245
        %393 = vmatprep.subr.mxu0 0.0
        %394 = vmatpush2.msra.mxu0 %v244
        %395 = vmatprep.subr.mxu0 0.0
        %396 = vmatpush2.msra.mxu0 %v243
        %397 = vmatprep.subr.mxu0 0.0
        %398 = vmatpush2.msra.mxu0 %v242
        %399 = vmatprep.subr.mxu0 0.0
        %400 = vmatpush2.msra.mxu0 %v241
        %401 = vmatprep.subr.mxu0 0.0
        %402 = vmatpush2.msra.mxu0 %v240
        %403 = vmatprep.subr.mxu0 0.0
        %404 = vmatpush2.msra.mxu0 %v239
        %405 = vmatprep.subr.mxu0 0.0
        %406 = vmatpush2.msra.mxu0 %v238
        %407 = vmatprep.subr.mxu0 0.0
        %408 = vmatpush2.msra.mxu0 %v237
        %409 = vmatprep.mubr.f32.mxu0 %v270
        %410 = vmatmul.mubr.f32.gmra.mxu0 %v268
        %v411 = vpop.f32.mrf.mxu0
        %v412 = vadd.f32 %v342, %v411
        %v413 = vpop.f32.mrf.mxu0
        %414 = vdwg.mxu0
        %v415 = vadd.f32 %v187, %v412
        %vm416 = vcmask 771072
        %417 = vst.msk [vmem:[#allocation2] sm:$0x3] %vm416, %v415
        %p418 = scmp.eq.s32.totalorder %s15, 3
        // Predicated region
        $region37: #{convnet_forward.3} parent=31 // pred_check
          %p419 = pneg %p418
        $region38: #{convnet_forward.3} parent=31 // pred_check_branch
          %421 = sbr.rel (%p419) target = $region40
        $region39: #{convnet_forward.3} parent=31 // pred_region
          %v422 = vld [vmem:[#allocation2] sm:$0x3]
          %v423 = vld [vmem:[%s2] sm:$0x1]
          %v425 = vlaneseq
          %v426 = vshrl.u32 %v425, 7
          %v427 = vsub.s32 0, %v426
          %v428 = vrot.slane %v423, %v427
          %v430 = vadd.f32 %v422, %v428
          %431 = vst.msk [vmem:[#allocation3] sm:$0x3] %vm416, %v430
        $region40: #{convnet_forward.3} parent=31 // pred_fallthru
          _
        // Predicated region
        $region41: #{convnet_forward.3} parent=31 // pred_check
          %p432 = pneg %p101
        $region42: #{convnet_forward.3} parent=31 // pred_check_branch
          %434 = sbr.rel (%p432) target = $region44
        $region43: #{convnet_forward.3} parent=31 // pred_region
          %s436 = ssub.s32 32, 32
          %437 = vsyncadd [#allocation4], %s436
          %s439 = sshll.u32 [#allocation3], 4
          %s440 = int_to_ptr.vmem [resolvable:$true] %s439
          %442 = dma.vmem_to_hbm [thread:$0]  %s440, 32, %s3, [#allocation4]
        $region44: #{convnet_forward.3} parent=31 // pred_fallthru
          _
        // Predicated region
        $region45: #{convnet_forward.3} parent=31 // pred_check
          %p443 = pneg %p101
        $region46: #{convnet_forward.3} parent=31 // pred_check_branch
          %445 = sbr.rel (%p443) target = $region48
        $region47: #{convnet_forward.3} parent=31 // pred_region
          %446 = dma.done [#allocation4], 32
        $region48: #{convnet_forward.3} parent=31 // pred_fallthru
          _
      $region32: #{convnet_forward.3} parent=5 // pred_fallthru
        _
      %p447 = scmp.le.s32.totalorder 2, %s10
      // Predicated region
      $region49: #{convnet_forward.3} parent=5 // pred_check
        %p448 = pneg %p447
      $region50: #{convnet_forward.3} parent=5 // pred_check_branch
        %450 = sbr.rel (%p448) target = $region52
      $region51: #{convnet_forward.3} parent=5 // pred_region
        %s451 = ssub.s32 %s10, 2
      $region52: #{convnet_forward.3} parent=5 // pred_fallthru
        _
    $region6: #{convnet_forward.3} parent=1 // loop_footer
      %s14 = sadd.s32 1, %s10
    $region7: #{convnet_forward.3} parent=1 // loop_footer_branch
      %9 = sbr.rel target = $region3
    $region8: #{convnet_forward.3} parent=1 // loop_exit
      _
    %452 = vsyncpa [#allocation4], 1
    %s453 = scalar_lea.sflag [#allocation4], 1
    %454 = vsyncpa %s453, 1

// kernel: convnet_forward.2
$region0: #{convnet_forward.2}
  #allocation0 [shape = 'u32[]', space=smem, size = 0x4, offset = 0x4, fixed_abs, tag = 'smem constant byte address 0x4 - core index']
  #allocation1 [shape = 'u32[144,128]{1,0:T(1,128)}', space=vmem, size = 0x12000, scoped, tag = 'internal scratch']
  #allocation2 [shape = 'f32[2,18,25,3]{3,2,1,0:T(8,128)}', space=vmem, size = 0x90000, scoped, tag = 'scratch operand']
  #allocation3 [shape = 'f32[2,8,16,12]{3,2,1,0:T(8,128)}', space=vmem, size = 0x20000, scoped, tag = 'scratch operand']
  #allocation4 [shape = 'f32[2,10,17,12]{3,2,1,0:T(8,128)}', space=vmem, size = 0x3c000, scoped, tag = 'scratch operand']
  #allocation5 [shape = 'f32[2,10,17,20]{3,2,1,0:T(8,128)}', space=vmem, size = 0x3c000, scoped, tag = 'scratch operand']
  %s0 = inlined_call_operand.vmem [shape: f32[2,16,16,3], index: 0, kind: input, shape index: {}]
  %s1 = inlined_call_operand.vmem [shape: f32[27,12], index: 1, kind: input, shape index: {}]
  %s2 = inlined_call_operand.hbm [shape: f32[1,12], index: 2, kind: input, shape index: {}]
  %s3 = inlined_call_operand.hbm [shape: f32[1,12], index: 3, kind: input, shape index: {}]
  %s4 = inlined_call_operand.hbm [shape: f32[1,12], index: 4, kind: input, shape index: {}]
  %s5 = inlined_call_operand.vmem [shape: f32[108,20], index: 5, kind: input, shape index: {}]
  %s6 = inlined_call_operand.hbm [shape: f32[1,20], index: 6, kind: input, shape index: {}]
  %s7 = inlined_call_operand.vmem [shape: f32[180,32], index: 7, kind: input, shape index: {}]
  %s8 = inlined_call_operand.hbm [shape: f32[1,32], index: 8, kind: input, shape index: {}]
  %s9 = inlined_call_operand.hbm [shape: f32[1,32], index: 9, kind: input, shape index: {}]
  %s10 = inlined_call_operand.hbm [shape: f32[1,32], index: 10, kind: input, shape index: {}]
  %s11 = inlined_call_operand.vmem [shape: f32[2,64,32], index: 11, kind: output, shape index: {}]
  %s12 = sld [smem:[#allocation0]]
  $region82: #{convnet_forward.2} parent=0
    _
  %s14 = ssub.s32 1, %s12
  %s15 = scalar_select 0, %s14, %s12
  $region1: #{convnet_forward.2} parent=0
    #allocation6 [shape = 'u8[512]{0}', space=vmem, size = 0x400, scoped, tag = 'input window, operand 2, single buffered']
    #allocation7 [shape = 's32[1]{0}', space=sflag, size = 0x4, scoped, tag = 'scoped memory for convnet_forward.2']
    #allocation8 [shape = 'u8[512]{0}', space=vmem, size = 0x400, scoped, tag = 'input window, operand 3, single buffered']
    #allocation9 [shape = 's32[1]{0}', space=sflag, size = 0x4, scoped, tag = 'scoped memory for convnet_forward.2']
    #allocation10 [shape = 'u8[512]{0}', space=vmem, size = 0x400, scoped, tag = 'input window, operand 4, single buffered']
    #allocation11 [shape = 'u8[512]{0}', space=vmem, size = 0x400, scoped, tag = 'input window, operand 6, single buffered']
    #allocation12 [shape = 's32[1]{0}', space=sflag, size = 0x4, scoped, tag = 'scoped memory for convnet_forward.2']
    #allocation13 [shape = 'u8[512]{0}', space=vmem, size = 0x400, scoped, tag = 'input window, operand 8, single buffered']
    #allocation14 [shape = 'u8[512]{0}', space=vmem, size = 0x400, scoped, tag = 'input window, operand 9, single buffered']
    #allocation15 [shape = 's32[1]{0}', space=sflag, size = 0x4, scoped, tag = 'scoped memory for convnet_forward.2']
    #allocation16 [shape = 'u8[512]{0}', space=vmem, size = 0x400, scoped, tag = 'input window, operand 10, single buffered']
    %16 = vsyncpa [#allocation7], 0
    %17 = vsyncpa [#allocation9], 0
    %18 = vsyncpa [#allocation12], 0
    %19 = vsyncpa [#allocation15], 0
    // Predicated region
    $region2: #{convnet_forward.2} parent=1 // pred_check
      _
    $region3: #{convnet_forward.2} parent=1 // pred_check_branch
      %21 = sbr.rel (0) target = $region5
    $region4: #{convnet_forward.2} parent=1 // pred_region
      _
    $region5: #{convnet_forward.2} parent=1 // pred_fallthru
      _
    // Predicated region
    $region6: #{convnet_forward.2} parent=1 // pred_check
      _
    $region7: #{convnet_forward.2} parent=1 // pred_check_branch
      %23 = sbr.rel (0) target = $region9
    $region8: #{convnet_forward.2} parent=1 // pred_region
      _
    $region9: #{convnet_forward.2} parent=1 // pred_fallthru
      _
    // Predicated region
    $region10: #{convnet_forward.2} parent=1 // pred_check
      _
    $region11: #{convnet_forward.2} parent=1 // pred_check_branch
      %25 = sbr.rel (0) target = $region13
    $region12: #{convnet_forward.2} parent=1 // pred_region
      %s27 = ssub.s32 16, 16
      %28 = vsyncadd [#allocation7], %s27
      %s30 = sshll.u32 [#allocation6], 4
      %s31 = int_to_ptr.vmem [resolvable:$true] %s30
      %33 = dma.hbm_to_vmem [thread:$0]  %s2, 16, %s31, [#allocation7]
    $region13: #{convnet_forward.2} parent=1 // pred_fallthru
      _
    // Predicated region
    $region14: #{convnet_forward.2} parent=1 // pred_check
      _
    $region15: #{convnet_forward.2} parent=1 // pred_check_branch
      %35 = sbr.rel (0) target = $region17
    $region16: #{convnet_forward.2} parent=1 // pred_region
      %s37 = ssub.s32 16, 16
      %38 = vsyncadd [#allocation9], %s37
      %s40 = sshll.u32 [#allocation8], 4
      %s41 = int_to_ptr.vmem [resolvable:$true] %s40
      %43 = dma.hbm_to_vmem [thread:$0]  %s3, 16, %s41, [#allocation9]
    $region17: #{convnet_forward.2} parent=1 // pred_fallthru
      _
    // Predicated region
    $region18: #{convnet_forward.2} parent=1 // pred_check
      _
    $region19: #{convnet_forward.2} parent=1 // pred_check_branch
      %45 = sbr.rel (0) target = $region21
    $region20: #{convnet_forward.2} parent=1 // pred_region
      %s47 = ssub.s32 16, 16
      %48 = vsyncadd [#allocation9], %s47
      %s50 = sshll.u32 [#allocation10], 4
      %s51 = int_to_ptr.vmem [resolvable:$true] %s50
      %53 = dma.hbm_to_vmem [thread:$0]  %s4, 16, %s51, [#allocation9]
    $region21: #{convnet_forward.2} parent=1 // pred_fallthru
      _
    // Predicated region
    $region22: #{convnet_forward.2} parent=1 // pred_check
      _
    $region23: #{convnet_forward.2} parent=1 // pred_check_branch
      %55 = sbr.rel (0) target = $region25
    $region24: #{convnet_forward.2} parent=1 // pred_region
      _
    $region25: #{convnet_forward.2} parent=1 // pred_fallthru
      _
    // Predicated region
    $region26: #{convnet_forward.2} parent=1 // pred_check
      _
    $region27: #{convnet_forward.2} parent=1 // pred_check_branch
      %57 = sbr.rel (0) target = $region29
    $region28: #{convnet_forward.2} parent=1 // pred_region
      %s59 = ssub.s32 16, 16
      %60 = vsyncadd [#allocation12], %s59
      %s62 = sshll.u32 [#allocation11], 4
      %s63 = int_to_ptr.vmem [resolvable:$true] %s62
      %65 = dma.hbm_to_vmem [thread:$0]  %s6, 16, %s63, [#allocation12]
    $region29: #{convnet_forward.2} parent=1 // pred_fallthru
      _
    // Predicated region
    $region30: #{convnet_forward.2} parent=1 // pred_check
      _
    $region31: #{convnet_forward.2} parent=1 // pred_check_branch
      %67 = sbr.rel (0) target = $region33
    $region32: #{convnet_forward.2} parent=1 // pred_region
      _
    $region33: #{convnet_forward.2} parent=1 // pred_fallthru
      _
    // Predicated region
    $region34: #{convnet_forward.2} parent=1 // pred_check
      _
    $region35: #{convnet_forward.2} parent=1 // pred_check_branch
      %69 = sbr.rel (0) target = $region37
    $region36: #{convnet_forward.2} parent=1 // pred_region
      %s71 = ssub.s32 16, 16
      %72 = vsyncadd [#allocation12], %s71
      %s74 = sshll.u32 [#allocation13], 4
      %s75 = int_to_ptr.vmem [resolvable:$true] %s74
      %77 = dma.hbm_to_vmem [thread:$0]  %s8, 16, %s75, [#allocation12]
    $region37: #{convnet_forward.2} parent=1 // pred_fallthru
      _
    // Predicated region
    $region38: #{convnet_forward.2} parent=1 // pred_check
      _
    $region39: #{convnet_forward.2} parent=1 // pred_check_branch
      %79 = sbr.rel (0) target = $region41
    $region40: #{convnet_forward.2} parent=1 // pred_region
      %s81 = ssub.s32 16, 16
      %82 = vsyncadd [#allocation15], %s81
      %s84 = sshll.u32 [#allocation14], 4
      %s85 = int_to_ptr.vmem [resolvable:$true] %s84
      %87 = dma.hbm_to_vmem [thread:$0]  %s9, 16, %s85, [#allocation15]
    $region41: #{convnet_forward.2} parent=1 // pred_fallthru
      _
    // Predicated region
    $region42: #{convnet_forward.2} parent=1 // pred_check
      _
    $region43: #{convnet_forward.2} parent=1 // pred_check_branch
      %89 = sbr.rel (0) target = $region45
    $region44: #{convnet_forward.2} parent=1 // pred_region
      %s91 = ssub.s32 16, 16
      %92 = vsyncadd [#allocation15], %s91
      %s94 = sshll.u32 [#allocation16], 4
      %s95 = int_to_ptr.vmem [resolvable:$true] %s94
      %97 = dma.hbm_to_vmem [thread:$0]  %s10, 16, %s95, [#allocation15]
    $region45: #{convnet_forward.2} parent=1 // pred_fallthru
      _
    // Predicated region
    $region46: #{convnet_forward.2} parent=1 // pred_check
      _
    $region47: #{convnet_forward.2} parent=1 // pred_check_branch
      %99 = sbr.rel (0) target = $region49
    $region48: #{convnet_forward.2} parent=1 // pred_region
      %100 = dma.done [#allocation7], 16
    $region49: #{convnet_forward.2} parent=1 // pred_fallthru
      _
    // Predicated region
    $region50: #{convnet_forward.2} parent=1 // pred_check
      _
    $region51: #{convnet_forward.2} parent=1 // pred_check_branch
      %102 = sbr.rel (0) target = $region53
    $region52: #{convnet_forward.2} parent=1 // pred_region
      %103 = dma.done [#allocation9], 16
    $region53: #{convnet_forward.2} parent=1 // pred_fallthru
      _
    // Predicated region
    $region54: #{convnet_forward.2} parent=1 // pred_check
      _
    $region55: #{convnet_forward.2} parent=1 // pred_check_branch
      %105 = sbr.rel (0) target = $region57
    $region56: #{convnet_forward.2} parent=1 // pred_region
      %106 = dma.done [#allocation9], 16
    $region57: #{convnet_forward.2} parent=1 // pred_fallthru
      _
    // Predicated region
    $region58: #{convnet_forward.2} parent=1 // pred_check
      _
    $region59: #{convnet_forward.2} parent=1 // pred_check_branch
      %108 = sbr.rel (0) target = $region61
    $region60: #{convnet_forward.2} parent=1 // pred_region
      %109 = dma.done [#allocation12], 16
    $region61: #{convnet_forward.2} parent=1 // pred_fallthru
      _
    // Predicated region
    $region62: #{convnet_forward.2} parent=1 // pred_check
      _
    $region63: #{convnet_forward.2} parent=1 // pred_check_branch
      %111 = sbr.rel (0) target = $region65
    $region64: #{convnet_forward.2} parent=1 // pred_region
      %112 = dma.done [#allocation12], 16
    $region65: #{convnet_forward.2} parent=1 // pred_fallthru
      _
    // Predicated region
    $region66: #{convnet_forward.2} parent=1 // pred_check
      _
    $region67: #{convnet_forward.2} parent=1 // pred_check_branch
      %114 = sbr.rel (0) target = $region69
    $region68: #{convnet_forward.2} parent=1 // pred_region
      %115 = dma.done [#allocation15], 16
    $region69: #{convnet_forward.2} parent=1 // pred_fallthru
      _
    // Predicated region
    $region70: #{convnet_forward.2} parent=1 // pred_check
      _
    $region71: #{convnet_forward.2} parent=1 // pred_check_branch
      %117 = sbr.rel (0) target = $region73
    $region72: #{convnet_forward.2} parent=1 // pred_region
      %118 = dma.done [#allocation15], 16
    $region73: #{convnet_forward.2} parent=1 // pred_fallthru
      _
    %v119 = vld [vmem:[%s0] sm:$0xff]
    %v120 = vld [vmem:[%s0 + $0x8] sm:$0xff]
    %v121 = vld [vmem:[%s0 + $0x10] sm:$0xff]
    %v122 = vld [vmem:[%s0 + $0x18] sm:$0xff]
    %v123 = vld [vmem:[%s0 + $0x20] sm:$0xff]
    %v124 = vld [vmem:[%s0 + $0x28] sm:$0xff]
    %v125 = vld [vmem:[%s0 + $0x30] sm:$0xff]
    %v126 = vld [vmem:[%s0 + $0x38] sm:$0xff]
    %v127 = vld [vmem:[%s0 + $0x40] sm:$0xff]
    %v128 = vld [vmem:[%s0 + $0x48] sm:$0xff]
    %v129 = vld [vmem:[%s0 + $0x50] sm:$0xff]
    %v130 = vld [vmem:[%s0 + $0x58] sm:$0xff]
    %v131 = vld [vmem:[%s0 + $0x60] sm:$0xff]
    %v132 = vld [vmem:[%s0 + $0x68] sm:$0xff]
    %v133 = vld [vmem:[%s0 + $0x70] sm:$0xff]
    %v134 = vld [vmem:[%s0 + $0x78] sm:$0xff]
    %v135 = vld [vmem:[%s0 + $0x80] sm:$0xff]
    %v136 = vld [vmem:[%s0 + $0x88] sm:$0xff]
    %v137 = vld [vmem:[%s0 + $0x90] sm:$0xff]
    %v138 = vld [vmem:[%s0 + $0x98] sm:$0xff]
    %v139 = vld [vmem:[%s0 + $0xa0] sm:$0xff]
    %v140 = vld [vmem:[%s0 + $0xa8] sm:$0xff]
    %v141 = vld [vmem:[%s0 + $0xb0] sm:$0xff]
    %v142 = vld [vmem:[%s0 + $0xb8] sm:$0xff]
    %v143 = vld [vmem:[%s0 + $0xc0] sm:$0xff]
    %v144 = vld [vmem:[%s0 + $0xc8] sm:$0xff]
    %v145 = vld [vmem:[%s0 + $0xd0] sm:$0xff]
    %v146 = vld [vmem:[%s0 + $0xd8] sm:$0xff]
    %v147 = vld [vmem:[%s0 + $0xe0] sm:$0xff]
    %v148 = vld [vmem:[%s0 + $0xe8] sm:$0xff]
    %v149 = vld [vmem:[%s0 + $0xf0] sm:$0xff]
    %v150 = vld [vmem:[%s0 + $0xf8] sm:$0xff]
    %v151 = vld [vmem:[%s0 + $0x100] sm:$0xff]
    %v152 = vld [vmem:[%s0 + $0x108] sm:$0xff]
    %v153 = vld [vmem:[%s0 + $0x110] sm:$0xff]
    %v154 = vld [vmem:[%s0 + $0x118] sm:$0xff]
    %v155 = vld [vmem:[%s0 + $0x120] sm:$0xff]
    %v156 = vld [vmem:[%s0 + $0x128] sm:$0xff]
    %v157 = vld [vmem:[%s0 + $0x130] sm:$0xff]
    %v158 = vld [vmem:[%s0 + $0x138] sm:$0xff]
    %v159 = vld [vmem:[%s0 + $0x140] sm:$0xff]
    %v160 = vld [vmem:[%s0 + $0x148] sm:$0xff]
    %v161 = vld [vmem:[%s0 + $0x150] sm:$0xff]
    %v162 = vld [vmem:[%s0 + $0x158] sm:$0xff]
    %v163 = vld [vmem:[%s0 + $0x160] sm:$0xff]
    %v164 = vld [vmem:[%s0 + $0x168] sm:$0xff]
    %v165 = vld [vmem:[%s0 + $0x170] sm:$0xff]
    %v166 = vld [vmem:[%s0 + $0x178] sm:$0xff]
    %v167 = vld [vmem:[%s0 + $0x180] sm:$0xff]
    %v168 = vld [vmem:[%s0 + $0x188] sm:$0xff]
    %v169 = vld [vmem:[%s0 + $0x190] sm:$0xff]
    %v170 = vld [vmem:[%s0 + $0x198] sm:$0xff]
    %v171 = vld [vmem:[%s0 + $0x1a0] sm:$0xff]
    %v172 = vld [vmem:[%s0 + $0x1a8] sm:$0xff]
    %v173 = vld [vmem:[%s0 + $0x1b0] sm:$0xff]
    %v174 = vld [vmem:[%s0 + $0x1b8] sm:$0xff]
    %v175 = vld [vmem:[%s0 + $0x1c0] sm:$0xff]
    %v176 = vld [vmem:[%s0 + $0x1c8] sm:$0xff]
    %v177 = vld [vmem:[%s0 + $0x1d0] sm:$0xff]
    %v178 = vld [vmem:[%s0 + $0x1d8] sm:$0xff]
    %v179 = vld [vmem:[%s0 + $0x1e0] sm:$0xff]
    %v180 = vld [vmem:[%s0 + $0x1e8] sm:$0xff]
    %v181 = vld [vmem:[%s0 + $0x1f0] sm:$0xff]
    %v182 = vld [vmem:[%s0 + $0x1f8] sm:$0xff]
    %vm183 = vcmask 23552
    %184 = vst.msk [vmem:[#allocation2] sm:$0xff] %vm183, 0.0
    %185 = vst.msk [vmem:[#allocation2 + $0x8] sm:$0xff] %vm183, 0.0
    %186 = vst.msk [vmem:[#allocation2 + $0x10] sm:$0xff] %vm183, 0.0
    %vm187 = vcmask 16384
    %188 = vst.msk [vmem:[#allocation2 + $0x18] sm:$0x1] %vm187, 0.0
    %189 = vst.msk [vmem:[#allocation2 + $0x20] sm:$0xff] %vm183, 0.0
    %190 = vst.msk [vmem:[#allocation2 + $0x28] sm:$0xff] %vm183, 0.0
    %191 = vst.msk [vmem:[#allocation2 + $0x30] sm:$0xff] %vm183, 0.0
    %192 = vst.msk [vmem:[#allocation2 + $0x38] sm:$0x1] %vm187, 0.0
    %193 = vst.msk [vmem:[#allocation2 + $0x40] sm:$0xff] %vm183, 0.0
    %194 = vst.msk [vmem:[#allocation2 + $0x48] sm:$0xff] %vm183, 0.0
    %195 = vst.msk [vmem:[#allocation2 + $0x50] sm:$0xff] %vm183, 0.0
    %196 = vst.msk [vmem:[#allocation2 + $0x58] sm:$0x1] %vm187, 0.0
    %197 = vst.msk [vmem:[#allocation2 + $0x60] sm:$0xff] %vm183, 0.0
    %198 = vst.msk [vmem:[#allocation2 + $0x68] sm:$0xff] %vm183, 0.0
    %199 = vst.msk [vmem:[#allocation2 + $0x70] sm:$0xff] %vm183, 0.0
    %200 = vst.msk [vmem:[#allocation2 + $0x78] sm:$0x1] %vm187, 0.0
    %201 = vst.msk [vmem:[#allocation2 + $0x80] sm:$0xff] %vm183, 0.0
    %202 = vst.msk [vmem:[#allocation2 + $0x88] sm:$0xff] %vm183, 0.0
    %203 = vst.msk [vmem:[#allocation2 + $0x90] sm:$0xff] %vm183, 0.0
    %204 = vst.msk [vmem:[#allocation2 + $0x98] sm:$0x1] %vm187, 0.0
    %205 = vst.msk [vmem:[#allocation2 + $0xa0] sm:$0xff] %vm183, 0.0
    %206 = vst.msk [vmem:[#allocation2 + $0xa8] sm:$0xff] %vm183, 0.0
    %207 = vst.msk [vmem:[#allocation2 + $0xb0] sm:$0xff] %vm183, 0.0
    %208 = vst.msk [vmem:[#allocation2 + $0xb8] sm:$0x1] %vm187, 0.0
    %209 = vst.msk [vmem:[#allocation2 + $0xc0] sm:$0xff] %vm183, 0.0
    %210 = vst.msk [vmem:[#allocation2 + $0xc8] sm:$0xff] %vm183, 0.0
    %211 = vst.msk [vmem:[#allocation2 + $0xd0] sm:$0xff] %vm183, 0.0
    %212 = vst.msk [vmem:[#allocation2 + $0xd8] sm:$0x1] %vm187, 0.0
    %213 = vst.msk [vmem:[#allocation2 + $0xe0] sm:$0xff] %vm183, 0.0
    %214 = vst.msk [vmem:[#allocation2 + $0xe8] sm:$0xff] %vm183, 0.0
    %215 = vst.msk [vmem:[#allocation2 + $0xf0] sm:$0xff] %vm183, 0.0
    %216 = vst.msk [vmem:[#allocation2 + $0xf8] sm:$0x1] %vm187, 0.0
    %217 = vst.msk [vmem:[#allocation2 + $0x100] sm:$0xff] %vm183, 0.0
    %218 = vst.msk [vmem:[#allocation2 + $0x108] sm:$0xff] %vm183, 0.0
    %219 = vst.msk [vmem:[#allocation2 + $0x110] sm:$0xff] %vm183, 0.0
    %220 = vst.msk [vmem:[#allocation2 + $0x118] sm:$0x1] %vm187, 0.0
    %221 = vst.msk [vmem:[#allocation2 + $0x120] sm:$0xff] %vm183, 0.0
    %222 = vst.msk [vmem:[#allocation2 + $0x128] sm:$0xff] %vm183, 0.0
    %223 = vst.msk [vmem:[#allocation2 + $0x130] sm:$0xff] %vm183, 0.0
    %224 = vst.msk [vmem:[#allocation2 + $0x138] sm:$0x1] %vm187, 0.0
    %225 = vst.msk [vmem:[#allocation2 + $0x140] sm:$0xff] %vm183, 0.0
    %226 = vst.msk [vmem:[#allocation2 + $0x148] sm:$0xff] %vm183, 0.0
    %227 = vst.msk [vmem:[#allocation2 + $0x150] sm:$0xff] %vm183, 0.0
    %228 = vst.msk [vmem:[#allocation2 + $0x158] sm:$0x1] %vm187, 0.0
    %229 = vst.msk [vmem:[#allocation2 + $0x160] sm:$0xff] %vm183, 0.0
    %230 = vst.msk [vmem:[#allocation2 + $0x168] sm:$0xff] %vm183, 0.0
    %231 = vst.msk [vmem:[#allocation2 + $0x170] sm:$0xff] %vm183, 0.0
    %232 = vst.msk [vmem:[#allocation2 + $0x178] sm:$0x1] %vm187, 0.0
    %233 = vst.msk [vmem:[#allocation2 + $0x180] sm:$0xff] %vm183, 0.0
    %234 = vst.msk [vmem:[#allocation2 + $0x188] sm:$0xff] %vm183, 0.0
    %235 = vst.msk [vmem:[#allocation2 + $0x190] sm:$0xff] %vm183, 0.0
    %236 = vst.msk [vmem:[#allocation2 + $0x198] sm:$0x1] %vm187, 0.0
    %237 = vst.msk [vmem:[#allocation2 + $0x1a0] sm:$0xff] %vm183, 0.0
    %238 = vst.msk [vmem:[#allocation2 + $0x1a8] sm:$0xff] %vm183, 0.0
    %239 = vst.msk [vmem:[#allocation2 + $0x1b0] sm:$0xff] %vm183, 0.0
    %240 = vst.msk [vmem:[#allocation2 + $0x1b8] sm:$0x1] %vm187, 0.0
    %241 = vst.msk [vmem:[#allocation2 + $0x1c0] sm:$0xff] %vm183, 0.0
    %242 = vst.msk [vmem:[#allocation2 + $0x1c8] sm:$0xff] %vm183, 0.0
    %243 = vst.msk [vmem:[#allocation2 + $0x1d0] sm:$0xff] %vm183, 0.0
    %244 = vst.msk [vmem:[#allocation2 + $0x1d8] sm:$0x1] %vm187, 0.0
    %245 = vst.msk [vmem:[#allocation2 + $0x1e0] sm:$0xff] %vm183, 0.0
    %246 = vst.msk [vmem:[#allocation2 + $0x1e8] sm:$0xff] %vm183, 0.0
    %247 = vst.msk [vmem:[#allocation2 + $0x1f0] sm:$0xff] %vm183, 0.0
    %248 = vst.msk [vmem:[#allocation2 + $0x1f8] sm:$0x1] %vm187, 0.0
    %249 = vst.msk [vmem:[#allocation2 + $0x200] sm:$0xff] %vm183, 0.0
    %250 = vst.msk [vmem:[#allocation2 + $0x208] sm:$0xff] %vm183, 0.0
    %251 = vst.msk [vmem:[#allocation2 + $0x210] sm:$0xff] %vm183, 0.0
    %252 = vst.msk [vmem:[#allocation2 + $0x218] sm:$0x1] %vm187, 0.0
    %253 = vst.msk [vmem:[#allocation2 + $0x220] sm:$0xff] %vm183, 0.0
    %254 = vst.msk [vmem:[#allocation2 + $0x228] sm:$0xff] %vm183, 0.0
    %255 = vst.msk [vmem:[#allocation2 + $0x230] sm:$0xff] %vm183, 0.0
    %256 = vst.msk [vmem:[#allocation2 + $0x238] sm:$0x1] %vm187, 0.0
    %257 = vst.msk [vmem:[#allocation2 + $0x240] sm:$0xff] %vm183, 0.0
    %258 = vst.msk [vmem:[#allocation2 + $0x248] sm:$0xff] %vm183, 0.0
    %259 = vst.msk [vmem:[#allocation2 + $0x250] sm:$0xff] %vm183, 0.0
    %260 = vst.msk [vmem:[#allocation2 + $0x258] sm:$0x1] %vm187, 0.0
    %261 = vst.msk [vmem:[#allocation2 + $0x260] sm:$0xff] %vm183, 0.0
    %262 = vst.msk [vmem:[#allocation2 + $0x268] sm:$0xff] %vm183, 0.0
    %263 = vst.msk [vmem:[#allocation2 + $0x270] sm:$0xff] %vm183, 0.0
    %264 = vst.msk [vmem:[#allocation2 + $0x278] sm:$0x1] %vm187, 0.0
    %265 = vst.msk [vmem:[#allocation2 + $0x280] sm:$0xff] %vm183, 0.0
    %266 = vst.msk [vmem:[#allocation2 + $0x288] sm:$0xff] %vm183, 0.0
    %267 = vst.msk [vmem:[#allocation2 + $0x290] sm:$0xff] %vm183, 0.0
    %268 = vst.msk [vmem:[#allocation2 + $0x298] sm:$0x1] %vm187, 0.0
    %269 = vst.msk [vmem:[#allocation2 + $0x2a0] sm:$0xff] %vm183, 0.0
    %270 = vst.msk [vmem:[#allocation2 + $0x2a8] sm:$0xff] %vm183, 0.0
    %271 = vst.msk [vmem:[#allocation2 + $0x2b0] sm:$0xff] %vm183, 0.0
    %272 = vst.msk [vmem:[#allocation2 + $0x2b8] sm:$0x1] %vm187, 0.0
    %273 = vst.msk [vmem:[#allocation2 + $0x2c0] sm:$0xff] %vm183, 0.0
    %274 = vst.msk [vmem:[#allocation2 + $0x2c8] sm:$0xff] %vm183, 0.0
    %275 = vst.msk [vmem:[#allocation2 + $0x2d0] sm:$0xff] %vm183, 0.0
    %276 = vst.msk [vmem:[#allocation2 + $0x2d8] sm:$0x1] %vm187, 0.0
    %277 = vst.msk [vmem:[#allocation2 + $0x2e0] sm:$0xff] %vm183, 0.0
    %278 = vst.msk [vmem:[#allocation2 + $0x2e8] sm:$0xff] %vm183, 0.0
    %279 = vst.msk [vmem:[#allocation2 + $0x2f0] sm:$0xff] %vm183, 0.0
    %280 = vst.msk [vmem:[#allocation2 + $0x2f8] sm:$0x1] %vm187, 0.0
    %281 = vst.msk [vmem:[#allocation2 + $0x300] sm:$0xff] %vm183, 0.0
    %282 = vst.msk [vmem:[#allocation2 + $0x308] sm:$0xff] %vm183, 0.0
    %283 = vst.msk [vmem:[#allocation2 + $0x310] sm:$0xff] %vm183, 0.0
    %284 = vst.msk [vmem:[#allocation2 + $0x318] sm:$0x1] %vm187, 0.0
    %285 = vst.msk [vmem:[#allocation2 + $0x320] sm:$0xff] %vm183, 0.0
    %286 = vst.msk [vmem:[#allocation2 + $0x328] sm:$0xff] %vm183, 0.0
    %287 = vst.msk [vmem:[#allocation2 + $0x330] sm:$0xff] %vm183, 0.0
    %288 = vst.msk [vmem:[#allocation2 + $0x338] sm:$0x1] %vm187, 0.0
    %289 = vst.msk [vmem:[#allocation2 + $0x340] sm:$0xff] %vm183, 0.0
    %290 = vst.msk [vmem:[#allocation2 + $0x348] sm:$0xff] %vm183, 0.0
    %291 = vst.msk [vmem:[#allocation2 + $0x350] sm:$0xff] %vm183, 0.0
    %292 = vst.msk [vmem:[#allocation2 + $0x358] sm:$0x1] %vm187, 0.0
    %293 = vst.msk [vmem:[#allocation2 + $0x360] sm:$0xff] %vm183, 0.0
    %294 = vst.msk [vmem:[#allocation2 + $0x368] sm:$0xff] %vm183, 0.0
    %295 = vst.msk [vmem:[#allocation2 + $0x370] sm:$0xff] %vm183, 0.0
    %296 = vst.msk [vmem:[#allocation2 + $0x378] sm:$0x1] %vm187, 0.0
    %297 = vst.msk [vmem:[#allocation2 + $0x380] sm:$0xff] %vm183, 0.0
    %298 = vst.msk [vmem:[#allocation2 + $0x388] sm:$0xff] %vm183, 0.0
    %299 = vst.msk [vmem:[#allocation2 + $0x390] sm:$0xff] %vm183, 0.0
    %300 = vst.msk [vmem:[#allocation2 + $0x398] sm:$0x1] %vm187, 0.0
    %301 = vst.msk [vmem:[#allocation2 + $0x3a0] sm:$0xff] %vm183, 0.0
    %302 = vst.msk [vmem:[#allocation2 + $0x3a8] sm:$0xff] %vm183, 0.0
    %303 = vst.msk [vmem:[#allocation2 + $0x3b0] sm:$0xff] %vm183, 0.0
    %304 = vst.msk [vmem:[#allocation2 + $0x3b8] sm:$0x1] %vm187, 0.0
    %305 = vst.msk [vmem:[#allocation2 + $0x3c0] sm:$0xff] %vm183, 0.0
    %306 = vst.msk [vmem:[#allocation2 + $0x3c8] sm:$0xff] %vm183, 0.0
    %307 = vst.msk [vmem:[#allocation2 + $0x3d0] sm:$0xff] %vm183, 0.0
    %308 = vst.msk [vmem:[#allocation2 + $0x3d8] sm:$0x1] %vm187, 0.0
    %309 = vst.msk [vmem:[#allocation2 + $0x3e0] sm:$0xff] %vm183, 0.0
    %310 = vst.msk [vmem:[#allocation2 + $0x3e8] sm:$0xff] %vm183, 0.0
    %311 = vst.msk [vmem:[#allocation2 + $0x3f0] sm:$0xff] %vm183, 0.0
    %312 = vst.msk [vmem:[#allocation2 + $0x3f8] sm:$0x1] %vm187, 0.0
    %313 = vst.msk [vmem:[#allocation2 + $0x400] sm:$0xff] %vm183, 0.0
    %314 = vst.msk [vmem:[#allocation2 + $0x408] sm:$0xff] %vm183, 0.0
    %315 = vst.msk [vmem:[#allocation2 + $0x410] sm:$0xff] %vm183, 0.0
    %316 = vst.msk [vmem:[#allocation2 + $0x418] sm:$0x1] %vm187, 0.0
    %317 = vst.msk [vmem:[#allocation2 + $0x420] sm:$0xff] %vm183, 0.0
    %318 = vst.msk [vmem:[#allocation2 + $0x428] sm:$0xff] %vm183, 0.0
    %319 = vst.msk [vmem:[#allocation2 + $0x430] sm:$0xff] %vm183, 0.0
    %320 = vst.msk [vmem:[#allocation2 + $0x438] sm:$0x1] %vm187, 0.0
    %321 = vst.msk [vmem:[#allocation2 + $0x440] sm:$0xff] %vm183, 0.0
    %322 = vst.msk [vmem:[#allocation2 + $0x448] sm:$0xff] %vm183, 0.0
    %323 = vst.msk [vmem:[#allocation2 + $0x450] sm:$0xff] %vm183, 0.0
    %324 = vst.msk [vmem:[#allocation2 + $0x458] sm:$0x1] %vm187, 0.0
    %325 = vst.msk [vmem:[#allocation2 + $0x460] sm:$0xff] %vm183, 0.0
    %326 = vst.msk [vmem:[#allocation2 + $0x468] sm:$0xff] %vm183, 0.0
    %327 = vst.msk [vmem:[#allocation2 + $0x470] sm:$0xff] %vm183, 0.0
    %328 = vst.msk [vmem:[#allocation2 + $0x478] sm:$0x1] %vm187, 0.0
    %s329 = scalar_lea.vmem [#allocation2], 32
    %330 = vst.msk [vmem:[%s329 + $0x8] sm:$0xff] %vm183, %v119
    %331 = vst.msk [vmem:[%s329 + $0x10] sm:$0xff] %vm183, %v120
    %332 = vst.msk [vmem:[%s329 + $0x28] sm:$0xff] %vm183, %v121
    %333 = vst.msk [vmem:[%s329 + $0x30] sm:$0xff] %vm183, %v122
    %334 = vst.msk [vmem:[%s329 + $0x48] sm:$0xff] %vm183, %v123
    %335 = vst.msk [vmem:[%s329 + $0x50] sm:$0xff] %vm183, %v124
    %336 = vst.msk [vmem:[%s329 + $0x68] sm:$0xff] %vm183, %v125
    %337 = vst.msk [vmem:[%s329 + $0x70] sm:$0xff] %vm183, %v126
    %338 = vst.msk [vmem:[%s329 + $0x88] sm:$0xff] %vm183, %v127
    %339 = vst.msk [vmem:[%s329 + $0x90] sm:$0xff] %vm183, %v128
    %340 = vst.msk [vmem:[%s329 + $0xa8] sm:$0xff] %vm183, %v129
    %341 = vst.msk [vmem:[%s329 + $0xb0] sm:$0xff] %vm183, %v130
    %342 = vst.msk [vmem:[%s329 + $0xc8] sm:$0xff] %vm183, %v131
    %343 = vst.msk [vmem:[%s329 + $0xd0] sm:$0xff] %vm183, %v132
    %344 = vst.msk [vmem:[%s329 + $0xe8] sm:$0xff] %vm183, %v133
    %345 = vst.msk [vmem:[%s329 + $0xf0] sm:$0xff] %vm183, %v134
    %346 = vst.msk [vmem:[%s329 + $0x108] sm:$0xff] %vm183, %v135
    %347 = vst.msk [vmem:[%s329 + $0x110] sm:$0xff] %vm183, %v136
    %348 = vst.msk [vmem:[%s329 + $0x128] sm:$0xff] %vm183, %v137
    %349 = vst.msk [vmem:[%s329 + $0x130] sm:$0xff] %vm183, %v138
    %350 = vst.msk [vmem:[%s329 + $0x148] sm:$0xff] %vm183, %v139
    %351 = vst.msk [vmem:[%s329 + $0x150] sm:$0xff] %vm183, %v140
    %352 = vst.msk [vmem:[%s329 + $0x168] sm:$0xff] %vm183, %v141
    %353 = vst.msk [vmem:[%s329 + $0x170] sm:$0xff] %vm183, %v142
    %354 = vst.msk [vmem:[%s329 + $0x188] sm:$0xff] %vm183, %v143
    %355 = vst.msk [vmem:[%s329 + $0x190] sm:$0xff] %vm183, %v144
    %356 = vst.msk [vmem:[%s329 + $0x1a8] sm:$0xff] %vm183, %v145
    %357 = vst.msk [vmem:[%s329 + $0x1b0] sm:$0xff] %vm183, %v146
    %358 = vst.msk [vmem:[%s329 + $0x1c8] sm:$0xff] %vm183, %v147
    %359 = vst.msk [vmem:[%s329 + $0x1d0] sm:$0xff] %vm183, %v148
    %360 = vst.msk [vmem:[%s329 + $0x1e8] sm:$0xff] %vm183, %v149
    %361 = vst.msk [vmem:[%s329 + $0x1f0] sm:$0xff] %vm183, %v150
    %362 = vst.msk [vmem:[%s329 + $0x248] sm:$0xff] %vm183, %v151
    %363 = vst.msk [vmem:[%s329 + $0x250] sm:$0xff] %vm183, %v152
    %364 = vst.msk [vmem:[%s329 + $0x268] sm:$0xff] %vm183, %v153
    %365 = vst.msk [vmem:[%s329 + $0x270] sm:$0xff] %vm183, %v154
    %366 = vst.msk [vmem:[%s329 + $0x288] sm:$0xff] %vm183, %v155
    %367 = vst.msk [vmem:[%s329 + $0x290] sm:$0xff] %vm183, %v156
    %368 = vst.msk [vmem:[%s329 + $0x2a8] sm:$0xff] %vm183, %v157
    %369 = vst.msk [vmem:[%s329 + $0x2b0] sm:$0xff] %vm183, %v158
    %370 = vst.msk [vmem:[%s329 + $0x2c8] sm:$0xff] %vm183, %v159
    %371 = vst.msk [vmem:[%s329 + $0x2d0] sm:$0xff] %vm183, %v160
    %372 = vst.msk [vmem:[%s329 + $0x2e8] sm:$0xff] %vm183, %v161
    %373 = vst.msk [vmem:[%s329 + $0x2f0] sm:$0xff] %vm183, %v162
    %374 = vst.msk [vmem:[%s329 + $0x308] sm:$0xff] %vm183, %v163
    %375 = vst.msk [vmem:[%s329 + $0x310] sm:$0xff] %vm183, %v164
    %376 = vst.msk [vmem:[%s329 + $0x328] sm:$0xff] %vm183, %v165
    %377 = vst.msk [vmem:[%s329 + $0x330] sm:$0xff] %vm183, %v166
    %378 = vst.msk [vmem:[%s329 + $0x348] sm:$0xff] %vm183, %v167
    %379 = vst.msk [vmem:[%s329 + $0x350] sm:$0xff] %vm183, %v168
    %380 = vst.msk [vmem:[%s329 + $0x368] sm:$0xff] %vm183, %v169
    %381 = vst.msk [vmem:[%s329 + $0x370] sm:$0xff] %vm183, %v170
    %382 = vst.msk [vmem:[%s329 + $0x388] sm:$0xff] %vm183, %v171
    %383 = vst.msk [vmem:[%s329 + $0x390] sm:$0xff] %vm183, %v172
    %384 = vst.msk [vmem:[%s329 + $0x3a8] sm:$0xff] %vm183, %v173
    %385 = vst.msk [vmem:[%s329 + $0x3b0] sm:$0xff] %vm183, %v174
    %386 = vst.msk [vmem:[%s329 + $0x3c8] sm:$0xff] %vm183, %v175
    %387 = vst.msk [vmem:[%s329 + $0x3d0] sm:$0xff] %vm183, %v176
    %388 = vst.msk [vmem:[%s329 + $0x3e8] sm:$0xff] %vm183, %v177
    %389 = vst.msk [vmem:[%s329 + $0x3f0] sm:$0xff] %vm183, %v178
    %390 = vst.msk [vmem:[%s329 + $0x408] sm:$0xff] %vm183, %v179
    %391 = vst.msk [vmem:[%s329 + $0x410] sm:$0xff] %vm183, %v180
    %392 = vst.msk [vmem:[%s329 + $0x428] sm:$0xff] %vm183, %v181
    %393 = vst.msk [vmem:[%s329 + $0x430] sm:$0xff] %vm183, %v182
    %v394 = vld [vmem:[#allocation2 + $0x7] sm:$0xff]
    %v395 = vld [vmem:[#allocation2 + $0xf] sm:$0xff]
    %v396 = vld [vmem:[#allocation2 + $0x27] sm:$0xff]
    %v397 = vld [vmem:[#allocation2 + $0x2f] sm:$0xff]
    %v398 = vld [vmem:[#allocation2 + $0x47] sm:$0xff]
    %v399 = vld [vmem:[#allocation2 + $0x4f] sm:$0xff]
    %v400 = vld [vmem:[#allocation2 + $0x67] sm:$0xff]
    %v401 = vld [vmem:[#allocation2 + $0x6f] sm:$0xff]
    %v402 = vld [vmem:[#allocation2 + $0x87] sm:$0xff]
    %v403 = vld [vmem:[#allocation2 + $0x8f] sm:$0xff]
    %v404 = vld [vmem:[#allocation2 + $0xa7] sm:$0xff]
    %v405 = vld [vmem:[#allocation2 + $0xaf] sm:$0xff]
    %v406 = vld [vmem:[#allocation2 + $0xc7] sm:$0xff]
    %v407 = vld [vmem:[#allocation2 + $0xcf] sm:$0xff]
    %v408 = vld [vmem:[#allocation2 + $0xe7] sm:$0xff]
    %v409 = vld [vmem:[#allocation2 + $0xef] sm:$0xff]
    %v410 = vld [vmem:[#allocation2 + $0x107] sm:$0xff]
    %v411 = vld [vmem:[#allocation2 + $0x10f] sm:$0xff]
    %v412 = vld [vmem:[#allocation2 + $0x127] sm:$0xff]
    %v413 = vld [vmem:[#allocation2 + $0x12f] sm:$0xff]
    %v414 = vld [vmem:[#allocation2 + $0x147] sm:$0xff]
    %v415 = vld [vmem:[#allocation2 + $0x14f] sm:$0xff]
    %v416 = vld [vmem:[#allocation2 + $0x167] sm:$0xff]
    %v417 = vld [vmem:[#allocation2 + $0x16f] sm:$0xff]
    %v418 = vld [vmem:[#allocation2 + $0x187] sm:$0xff]
    %v419 = vld [vmem:[#allocation2 + $0x18f] sm:$0xff]
    %v420 = vld [vmem:[#allocation2 + $0x1a7] sm:$0xff]
    %v421 = vld [vmem:[#allocation2 + $0x1af] sm:$0xff]
    %v422 = vld [vmem:[#allocation2 + $0x1c7] sm:$0xff]
    %v423 = vld [vmem:[#allocation2 + $0x1cf] sm:$0xff]
    %v424 = vld [vmem:[#allocation2 + $0x1e7] sm:$0xff]
    %v425 = vld [vmem:[#allocation2 + $0x1ef] sm:$0xff]
    %v426 = vld [vmem:[#allocation2 + $0x247] sm:$0xff]
    %v427 = vld [vmem:[#allocation2 + $0x24f] sm:$0xff]
    %v428 = vld [vmem:[#allocation2 + $0x267] sm:$0xff]
    %v429 = vld [vmem:[#allocation2 + $0x26f] sm:$0xff]
    %v430 = vld [vmem:[#allocation2 + $0x287] sm:$0xff]
    %v431 = vld [vmem:[#allocation2 + $0x28f] sm:$0xff]
    %v432 = vld [vmem:[#allocation2 + $0x2a7] sm:$0xff]
    %v433 = vld [vmem:[#allocation2 + $0x2af] sm:$0xff]
    %v434 = vld [vmem:[#allocation2 + $0x2c7] sm:$0xff]
    %v435 = vld [vmem:[#allocation2 + $0x2cf] sm:$0xff]
    %v436 = vld [vmem:[#allocation2 + $0x2e7] sm:$0xff]
    %v437 = vld [vmem:[#allocation2 + $0x2ef] sm:$0xff]
    %v438 = vld [vmem:[#allocation2 + $0x307] sm:$0xff]
    %v439 = vld [vmem:[#allocation2 + $0x30f] sm:$0xff]
    %v440 = vld [vmem:[#allocation2 + $0x327] sm:$0xff]
    %v441 = vld [vmem:[#allocation2 + $0x32f] sm:$0xff]
    %v442 = vld [vmem:[#allocation2 + $0x347] sm:$0xff]
    %v443 = vld [vmem:[#allocation2 + $0x34f] sm:$0xff]
    %v444 = vld [vmem:[#allocation2 + $0x367] sm:$0xff]
    %v445 = vld [vmem:[#allocation2 + $0x36f] sm:$0xff]
    %v446 = vld [vmem:[#allocation2 + $0x387] sm:$0xff]
    %v447 = vld [vmem:[#allocation2 + $0x38f] sm:$0xff]
    %v448 = vld [vmem:[#allocation2 + $0x3a7] sm:$0xff]
    %v449 = vld [vmem:[#allocation2 + $0x3af] sm:$0xff]
    %v450 = vld [vmem:[#allocation2 + $0x3c7] sm:$0xff]
    %v451 = vld [vmem:[#allocation2 + $0x3cf] sm:$0xff]
    %v452 = vld [vmem:[#allocation2 + $0x3e7] sm:$0xff]
    %v453 = vld [vmem:[#allocation2 + $0x3ef] sm:$0xff]
    %v454 = vld [vmem:[#allocation2 + $0x407] sm:$0xff]
    %v455 = vld [vmem:[#allocation2 + $0x40f] sm:$0xff]
    %v456 = vld [vmem:[#allocation2 + $0x427] sm:$0xff]
    %v457 = vld [vmem:[#allocation2 + $0x42f] sm:$0xff]
    %v458 = vld [vmem:[#allocation2 + $0x8] sm:$0xff]
    %v459 = vld [vmem:[#allocation2 + $0x10] sm:$0xff]
    %v460 = vld [vmem:[#allocation2 + $0x28] sm:$0xff]
    %v461 = vld [vmem:[#allocation2 + $0x30] sm:$0xff]
    %v462 = vld [vmem:[#allocation2 + $0x48] sm:$0xff]
    %v463 = vld [vmem:[#allocation2 + $0x50] sm:$0xff]
    %v464 = vld [vmem:[#allocation2 + $0x68] sm:$0xff]
    %v465 = vld [vmem:[#allocation2 + $0x70] sm:$0xff]
    %v466 = vld [vmem:[#allocation2 + $0x88] sm:$0xff]
    %v467 = vld [vmem:[#allocation2 + $0x90] sm:$0xff]
    %v468 = vld [vmem:[#allocation2 + $0xa8] sm:$0xff]
    %v469 = vld [vmem:[#allocation2 + $0xb0] sm:$0xff]
    %v470 = vld [vmem:[#allocation2 + $0xc8] sm:$0xff]
    %v471 = vld [vmem:[#allocation2 + $0xd0] sm:$0xff]
    %v472 = vld [vmem:[#allocation2 + $0xe8] sm:$0xff]
    %v473 = vld [vmem:[#allocation2 + $0xf0] sm:$0xff]
    %v474 = vld [vmem:[#allocation2 + $0x108] sm:$0xff]
    %v475 = vld [vmem:[#allocation2 + $0x110] sm:$0xff]
    %v476 = vld [vmem:[#allocation2 + $0x128] sm:$0xff]
    %v477 = vld [vmem:[#allocation2 + $0x130] sm:$0xff]
    %v478 = vld [vmem:[#allocation2 + $0x148] sm:$0xff]
    %v479 = vld [vmem:[#allocation2 + $0x150] sm:$0xff]
    %v480 = vld [vmem:[#allocation2 + $0x168] sm:$0xff]
    %v481 = vld [vmem:[#allocation2 + $0x170] sm:$0xff]
    %v482 = vld [vmem:[#allocation2 + $0x188] sm:$0xff]
    %v483 = vld [vmem:[#allocation2 + $0x190] sm:$0xff]
    %v484 = vld [vmem:[#allocation2 + $0x1a8] sm:$0xff]
    %v485 = vld [vmem:[#allocation2 + $0x1b0] sm:$0xff]
    %v486 = vld [vmem:[#allocation2 + $0x1c8] sm:$0xff]
    %v487 = vld [vmem:[#allocation2 + $0x1d0] sm:$0xff]
    %v488 = vld [vmem:[#allocation2 + $0x1e8] sm:$0xff]
    %v489 = vld [vmem:[#allocation2 + $0x1f0] sm:$0xff]
    %v490 = vld [vmem:[#allocation2 + $0x248] sm:$0xff]
    %v491 = vld [vmem:[#allocation2 + $0x250] sm:$0xff]
    %v492 = vld [vmem:[#allocation2 + $0x268] sm:$0xff]
    %v493 = vld [vmem:[#allocation2 + $0x270] sm:$0xff]
    %v494 = vld [vmem:[#allocation2 + $0x288] sm:$0xff]
    %v495 = vld [vmem:[#allocation2 + $0x290] sm:$0xff]
    %v496 = vld [vmem:[#allocation2 + $0x2a8] sm:$0xff]
    %v497 = vld [vmem:[#allocation2 + $0x2b0] sm:$0xff]
    %v498 = vld [vmem:[#allocation2 + $0x2c8] sm:$0xff]
    %v499 = vld [vmem:[#allocation2 + $0x2d0] sm:$0xff]
    %v500 = vld [vmem:[#allocation2 + $0x2e8] sm:$0xff]
    %v501 = vld [vmem:[#allocation2 + $0x2f0] sm:$0xff]
    %v502 = vld [vmem:[#allocation2 + $0x308] sm:$0xff]
    %v503 = vld [vmem:[#allocation2 + $0x310] sm:$0xff]
    %v504 = vld [vmem:[#allocation2 + $0x328] sm:$0xff]
    %v505 = vld [vmem:[#allocation2 + $0x330] sm:$0xff]
    %v506 = vld [vmem:[#allocation2 + $0x348] sm:$0xff]
    %v507 = vld [vmem:[#allocation2 + $0x350] sm:$0xff]
    %v508 = vld [vmem:[#allocation2 + $0x368] sm:$0xff]
    %v509 = vld [vmem:[#allocation2 + $0x370] sm:$0xff]
    %v510 = vld [vmem:[#allocation2 + $0x388] sm:$0xff]
    %v511 = vld [vmem:[#allocation2 + $0x390] sm:$0xff]
    %v512 = vld [vmem:[#allocation2 + $0x3a8] sm:$0xff]
    %v513 = vld [vmem:[#allocation2 + $0x3b0] sm:$0xff]
    %v514 = vld [vmem:[#allocation2 + $0x3c8] sm:$0xff]
    %v515 = vld [vmem:[#allocation2 + $0x3d0] sm:$0xff]
    %v516 = vld [vmem:[#allocation2 + $0x3e8] sm:$0xff]
    %v517 = vld [vmem:[#allocation2 + $0x3f0] sm:$0xff]
    %v518 = vld [vmem:[#allocation2 + $0x408] sm:$0xff]
    %v519 = vld [vmem:[#allocation2 + $0x410] sm:$0xff]
    %v520 = vld [vmem:[#allocation2 + $0x428] sm:$0xff]
    %v521 = vld [vmem:[#allocation2 + $0x430] sm:$0xff]
    %v522 = vld [vmem:[#allocation2 + $0x9] sm:$0xff]
    %v523 = vld [vmem:[#allocation2 + $0x11] sm:$0xff]
    %v524 = vld [vmem:[#allocation2 + $0x29] sm:$0xff]
    %v525 = vld [vmem:[#allocation2 + $0x31] sm:$0xff]
    %v526 = vld [vmem:[#allocation2 + $0x49] sm:$0xff]
    %v527 = vld [vmem:[#allocation2 + $0x51] sm:$0xff]
    %v528 = vld [vmem:[#allocation2 + $0x69] sm:$0xff]
    %v529 = vld [vmem:[#allocation2 + $0x71] sm:$0xff]
    %v530 = vld [vmem:[#allocation2 + $0x89] sm:$0xff]
    %v531 = vld [vmem:[#allocation2 + $0x91] sm:$0xff]
    %v532 = vld [vmem:[#allocation2 + $0xa9] sm:$0xff]
    %v533 = vld [vmem:[#allocation2 + $0xb1] sm:$0xff]
    %v534 = vld [vmem:[#allocation2 + $0xc9] sm:$0xff]
    %v535 = vld [vmem:[#allocation2 + $0xd1] sm:$0xff]
    %v536 = vld [vmem:[#allocation2 + $0xe9] sm:$0xff]
    %v537 = vld [vmem:[#allocation2 + $0xf1] sm:$0xff]
    %v538 = vld [vmem:[#allocation2 + $0x109] sm:$0xff]
    %v539 = vld [vmem:[#allocation2 + $0x111] sm:$0xff]
    %v540 = vld [vmem:[#allocation2 + $0x129] sm:$0xff]
    %v541 = vld [vmem:[#allocation2 + $0x131] sm:$0xff]
    %v542 = vld [vmem:[#allocation2 + $0x149] sm:$0xff]
    %v543 = vld [vmem:[#allocation2 + $0x151] sm:$0xff]
    %v544 = vld [vmem:[#allocation2 + $0x169] sm:$0xff]
    %v545 = vld [vmem:[#allocation2 + $0x171] sm:$0xff]
    %v546 = vld [vmem:[#allocation2 + $0x189] sm:$0xff]
    %v547 = vld [vmem:[#allocation2 + $0x191] sm:$0xff]
    %v548 = vld [vmem:[#allocation2 + $0x1a9] sm:$0xff]
    %v549 = vld [vmem:[#allocation2 + $0x1b1] sm:$0xff]
    %v550 = vld [vmem:[#allocation2 + $0x1c9] sm:$0xff]
    %v551 = vld [vmem:[#allocation2 + $0x1d1] sm:$0xff]
    %v552 = vld [vmem:[#allocation2 + $0x1e9] sm:$0xff]
    %v553 = vld [vmem:[#allocation2 + $0x1f1] sm:$0xff]
    %v554 = vld [vmem:[#allocation2 + $0x249] sm:$0xff]
    %v555 = vld [vmem:[#allocation2 + $0x251] sm:$0xff]
    %v556 = vld [vmem:[#allocation2 + $0x269] sm:$0xff]
    %v557 = vld [vmem:[#allocation2 + $0x271] sm:$0xff]
    %v558 = vld [vmem:[#allocation2 + $0x289] sm:$0xff]
    %v559 = vld [vmem:[#allocation2 + $0x291] sm:$0xff]
    %v560 = vld [vmem:[#allocation2 + $0x2a9] sm:$0xff]
    %v561 = vld [vmem:[#allocation2 + $0x2b1] sm:$0xff]
    %v562 = vld [vmem:[#allocation2 + $0x2c9] sm:$0xff]
    %v563 = vld [vmem:[#allocation2 + $0x2d1] sm:$0xff]
    %v564 = vld [vmem:[#allocation2 + $0x2e9] sm:$0xff]
    %v565 = vld [vmem:[#allocation2 + $0x2f1] sm:$0xff]
    %v566 = vld [vmem:[#allocation2 + $0x309] sm:$0xff]
    %v567 = vld [vmem:[#allocation2 + $0x311] sm:$0xff]
    %v568 = vld [vmem:[#allocation2 + $0x329] sm:$0xff]
    %v569 = vld [vmem:[#allocation2 + $0x331] sm:$0xff]
    %v570 = vld [vmem:[#allocation2 + $0x349] sm:$0xff]
    %v571 = vld [vmem:[#allocation2 + $0x351] sm:$0xff]
    %v572 = vld [vmem:[#allocation2 + $0x369] sm:$0xff]
    %v573 = vld [vmem:[#allocation2 + $0x371] sm:$0xff]
    %v574 = vld [vmem:[#allocation2 + $0x389] sm:$0xff]
    %v575 = vld [vmem:[#allocation2 + $0x391] sm:$0xff]
    %v576 = vld [vmem:[#allocation2 + $0x3a9] sm:$0xff]
    %v577 = vld [vmem:[#allocation2 + $0x3b1] sm:$0xff]
    %v578 = vld [vmem:[#allocation2 + $0x3c9] sm:$0xff]
    %v579 = vld [vmem:[#allocation2 + $0x3d1] sm:$0xff]
    %v580 = vld [vmem:[#allocation2 + $0x3e9] sm:$0xff]
    %v581 = vld [vmem:[#allocation2 + $0x3f1] sm:$0xff]
    %v582 = vld [vmem:[#allocation2 + $0x409] sm:$0xff]
    %v583 = vld [vmem:[#allocation2 + $0x411] sm:$0xff]
    %v584 = vld [vmem:[#allocation2 + $0x429] sm:$0xff]
    %v585 = vld [vmem:[#allocation2 + $0x431] sm:$0xff]
    %v586 = vld [vmem:[%s329 + $0x7] sm:$0xff]
    %v587 = vld [vmem:[%s329 + $0xf] sm:$0xff]
    %v588 = vld [vmem:[%s329 + $0x27] sm:$0xff]
    %v589 = vld [vmem:[%s329 + $0x2f] sm:$0xff]
    %v590 = vld [vmem:[%s329 + $0x47] sm:$0xff]
    %v591 = vld [vmem:[%s329 + $0x4f] sm:$0xff]
    %v592 = vld [vmem:[%s329 + $0x67] sm:$0xff]
    %v593 = vld [vmem:[%s329 + $0x6f] sm:$0xff]
    %v594 = vld [vmem:[%s329 + $0x87] sm:$0xff]
    %v595 = vld [vmem:[%s329 + $0x8f] sm:$0xff]
    %v596 = vld [vmem:[%s329 + $0xa7] sm:$0xff]
    %v597 = vld [vmem:[%s329 + $0xaf] sm:$0xff]
    %v598 = vld [vmem:[%s329 + $0xc7] sm:$0xff]
    %v599 = vld [vmem:[%s329 + $0xcf] sm:$0xff]
    %v600 = vld [vmem:[%s329 + $0xe7] sm:$0xff]
    %v601 = vld [vmem:[%s329 + $0xef] sm:$0xff]
    %v602 = vld [vmem:[%s329 + $0x107] sm:$0xff]
    %v603 = vld [vmem:[%s329 + $0x10f] sm:$0xff]
    %v604 = vld [vmem:[%s329 + $0x127] sm:$0xff]
    %v605 = vld [vmem:[%s329 + $0x12f] sm:$0xff]
    %v606 = vld [vmem:[%s329 + $0x147] sm:$0xff]
    %v607 = vld [vmem:[%s329 + $0x14f] sm:$0xff]
    %v608 = vld [vmem:[%s329 + $0x167] sm:$0xff]
    %v609 = vld [vmem:[%s329 + $0x16f] sm:$0xff]
    %v610 = vld [vmem:[%s329 + $0x187] sm:$0xff]
    %v611 = vld [vmem:[%s329 + $0x18f] sm:$0xff]
    %v612 = vld [vmem:[%s329 + $0x1a7] sm:$0xff]
    %v613 = vld [vmem:[%s329 + $0x1af] sm:$0xff]
    %v614 = vld [vmem:[%s329 + $0x1c7] sm:$0xff]
    %v615 = vld [vmem:[%s329 + $0x1cf] sm:$0xff]
    %v616 = vld [vmem:[%s329 + $0x1e7] sm:$0xff]
    %v617 = vld [vmem:[%s329 + $0x1ef] sm:$0xff]
    %v618 = vld [vmem:[%s329 + $0x247] sm:$0xff]
    %v619 = vld [vmem:[%s329 + $0x24f] sm:$0xff]
    %v620 = vld [vmem:[%s329 + $0x267] sm:$0xff]
    %v621 = vld [vmem:[%s329 + $0x26f] sm:$0xff]
    %v622 = vld [vmem:[%s329 + $0x287] sm:$0xff]
    %v623 = vld [vmem:[%s329 + $0x28f] sm:$0xff]
    %v624 = vld [vmem:[%s329 + $0x2a7] sm:$0xff]
    %v625 = vld [vmem:[%s329 + $0x2af] sm:$0xff]
    %v626 = vld [vmem:[%s329 + $0x2c7] sm:$0xff]
    %v627 = vld [vmem:[%s329 + $0x2cf] sm:$0xff]
    %v628 = vld [vmem:[%s329 + $0x2e7] sm:$0xff]
    %v629 = vld [vmem:[%s329 + $0x2ef] sm:$0xff]
    %v630 = vld [vmem:[%s329 + $0x307] sm:$0xff]
    %v631 = vld [vmem:[%s329 + $0x30f] sm:$0xff]
    %v632 = vld [vmem:[%s329 + $0x327] sm:$0xff]
    %v633 = vld [vmem:[%s329 + $0x32f] sm:$0xff]
    %v634 = vld [vmem:[%s329 + $0x347] sm:$0xff]
    %v635 = vld [vmem:[%s329 + $0x34f] sm:$0xff]
    %v636 = vld [vmem:[%s329 + $0x367] sm:$0xff]
    %v637 = vld [vmem:[%s329 + $0x36f] sm:$0xff]
    %v638 = vld [vmem:[%s329 + $0x387] sm:$0xff]
    %v639 = vld [vmem:[%s329 + $0x38f] sm:$0xff]
    %v640 = vld [vmem:[%s329 + $0x3a7] sm:$0xff]
    %v641 = vld [vmem:[%s329 + $0x3af] sm:$0xff]
    %v642 = vld [vmem:[%s329 + $0x3c7] sm:$0xff]
    %v643 = vld [vmem:[%s329 + $0x3cf] sm:$0xff]
    %v644 = vld [vmem:[%s329 + $0x3e7] sm:$0xff]
    %v645 = vld [vmem:[%s329 + $0x3ef] sm:$0xff]
    %v646 = vld [vmem:[%s329 + $0x407] sm:$0xff]
    %v647 = vld [vmem:[%s329 + $0x40f] sm:$0xff]
    %v648 = vld [vmem:[%s329 + $0x427] sm:$0xff]
    %v649 = vld [vmem:[%s329 + $0x42f] sm:$0xff]
    %v650 = vld [vmem:[%s329 + $0x8] sm:$0xff]
    %v651 = vld [vmem:[%s329 + $0x10] sm:$0xff]
    %v652 = vld [vmem:[%s329 + $0x28] sm:$0xff]
    %v653 = vld [vmem:[%s329 + $0x30] sm:$0xff]
    %v654 = vld [vmem:[%s329 + $0x48] sm:$0xff]
    %v655 = vld [vmem:[%s329 + $0x50] sm:$0xff]
    %v656 = vld [vmem:[%s329 + $0x68] sm:$0xff]
    %v657 = vld [vmem:[%s329 + $0x70] sm:$0xff]
    %v658 = vld [vmem:[%s329 + $0x88] sm:$0xff]
    %v659 = vld [vmem:[%s329 + $0x90] sm:$0xff]
    %v660 = vld [vmem:[%s329 + $0xa8] sm:$0xff]
    %v661 = vld [vmem:[%s329 + $0xb0] sm:$0xff]
    %v662 = vld [vmem:[%s329 + $0xc8] sm:$0xff]
    %v663 = vld [vmem:[%s329 + $0xd0] sm:$0xff]
    %v664 = vld [vmem:[%s329 + $0xe8] sm:$0xff]
    %v665 = vld [vmem:[%s329 + $0xf0] sm:$0xff]
    %v666 = vld [vmem:[%s329 + $0x108] sm:$0xff]
    %v667 = vld [vmem:[%s329 + $0x110] sm:$0xff]
    %v668 = vld [vmem:[%s329 + $0x128] sm:$0xff]
    %v669 = vld [vmem:[%s329 + $0x130] sm:$0xff]
    %v670 = vld [vmem:[%s329 + $0x148] sm:$0xff]
    %v671 = vld [vmem:[%s329 + $0x150] sm:$0xff]
    %v672 = vld [vmem:[%s329 + $0x168] sm:$0xff]
    %v673 = vld [vmem:[%s329 + $0x170] sm:$0xff]
    %v674 = vld [vmem:[%s329 + $0x188] sm:$0xff]
    %v675 = vld [vmem:[%s329 + $0x190] sm:$0xff]
    %v676 = vld [vmem:[%s329 + $0x1a8] sm:$0xff]
    %v677 = vld [vmem:[%s329 + $0x1b0] sm:$0xff]
    %v678 = vld [vmem:[%s329 + $0x1c8] sm:$0xff]
    %v679 = vld [vmem:[%s329 + $0x1d0] sm:$0xff]
    %v680 = vld [vmem:[%s329 + $0x1e8] sm:$0xff]
    %v681 = vld [vmem:[%s329 + $0x1f0] sm:$0xff]
    %v682 = vld [vmem:[%s329 + $0x248] sm:$0xff]
    %v683 = vld [vmem:[%s329 + $0x250] sm:$0xff]
    %v684 = vld [vmem:[%s329 + $0x268] sm:$0xff]
    %v685 = vld [vmem:[%s329 + $0x270] sm:$0xff]
    %v686 = vld [vmem:[%s329 + $0x288] sm:$0xff]
    %v687 = vld [vmem:[%s329 + $0x290] sm:$0xff]
    %v688 = vld [vmem:[%s329 + $0x2a8] sm:$0xff]
    %v689 = vld [vmem:[%s329 + $0x2b0] sm:$0xff]
    %v690 = vld [vmem:[%s329 + $0x2c8] sm:$0xff]
    %v691 = vld [vmem:[%s329 + $0x2d0] sm:$0xff]
    %v692 = vld [vmem:[%s329 + $0x2e8] sm:$0xff]
    %v693 = vld [vmem:[%s329 + $0x2f0] sm:$0xff]
    %v694 = vld [vmem:[%s329 + $0x308] sm:$0xff]
    %v695 = vld [vmem:[%s329 + $0x310] sm:$0xff]
    %v696 = vld [vmem:[%s329 + $0x328] sm:$0xff]
    %v697 = vld [vmem:[%s329 + $0x330] sm:$0xff]
    %v698 = vld [vmem:[%s329 + $0x348] sm:$0xff]
    %v699 = vld [vmem:[%s329 + $0x350] sm:$0xff]
    %v700 = vld [vmem:[%s329 + $0x368] sm:$0xff]
    %v701 = vld [vmem:[%s329 + $0x370] sm:$0xff]
    %v702 = vld [vmem:[%s329 + $0x388] sm:$0xff]
    %v703 = vld [vmem:[%s329 + $0x390] sm:$0xff]
    %v704 = vld [vmem:[%s329 + $0x3a8] sm:$0xff]
    %v705 = vld [vmem:[%s329 + $0x3b0] sm:$0xff]
    %v706 = vld [vmem:[%s329 + $0x3c8] sm:$0xff]
    %v707 = vld [vmem:[%s329 + $0x3d0] sm:$0xff]
    %v708 = vld [vmem:[%s329 + $0x3e8] sm:$0xff]
    %v709 = vld [vmem:[%s329 + $0x3f0] sm:$0xff]
    %v710 = vld [vmem:[%s329 + $0x408] sm:$0xff]
    %v711 = vld [vmem:[%s329 + $0x410] sm:$0xff]
    %v712 = vld [vmem:[%s329 + $0x428] sm:$0xff]
    %v713 = vld [vmem:[%s329 + $0x430] sm:$0xff]
    %v714 = vld [vmem:[%s329 + $0x9] sm:$0xff]
    %v715 = vld [vmem:[%s329 + $0x11] sm:$0xff]
    %v716 = vld [vmem:[%s329 + $0x29] sm:$0xff]
    %v717 = vld [vmem:[%s329 + $0x31] sm:$0xff]
    %v718 = vld [vmem:[%s329 + $0x49] sm:$0xff]
    %v719 = vld [vmem:[%s329 + $0x51] sm:$0xff]
    %v720 = vld [vmem:[%s329 + $0x69] sm:$0xff]
    %v721 = vld [vmem:[%s329 + $0x71] sm:$0xff]
    %v722 = vld [vmem:[%s329 + $0x89] sm:$0xff]
    %v723 = vld [vmem:[%s329 + $0x91] sm:$0xff]
    %v724 = vld [vmem:[%s329 + $0xa9] sm:$0xff]
    %v725 = vld [vmem:[%s329 + $0xb1] sm:$0xff]
    %v726 = vld [vmem:[%s329 + $0xc9] sm:$0xff]
    %v727 = vld [vmem:[%s329 + $0xd1] sm:$0xff]
    %v728 = vld [vmem:[%s329 + $0xe9] sm:$0xff]
    %v729 = vld [vmem:[%s329 + $0xf1] sm:$0xff]
    %v730 = vld [vmem:[%s329 + $0x109] sm:$0xff]
    %v731 = vld [vmem:[%s329 + $0x111] sm:$0xff]
    %v732 = vld [vmem:[%s329 + $0x129] sm:$0xff]
    %v733 = vld [vmem:[%s329 + $0x131] sm:$0xff]
    %v734 = vld [vmem:[%s329 + $0x149] sm:$0xff]
    %v735 = vld [vmem:[%s329 + $0x151] sm:$0xff]
    %v736 = vld [vmem:[%s329 + $0x169] sm:$0xff]
    %v737 = vld [vmem:[%s329 + $0x171] sm:$0xff]
    %v738 = vld [vmem:[%s329 + $0x189] sm:$0xff]
    %v739 = vld [vmem:[%s329 + $0x191] sm:$0xff]
    %v740 = vld [vmem:[%s329 + $0x1a9] sm:$0xff]
    %v741 = vld [vmem:[%s329 + $0x1b1] sm:$0xff]
    %v742 = vld [vmem:[%s329 + $0x1c9] sm:$0xff]
    %v743 = vld [vmem:[%s329 + $0x1d1] sm:$0xff]
    %v744 = vld [vmem:[%s329 + $0x1e9] sm:$0xff]
    %v745 = vld [vmem:[%s329 + $0x1f1] sm:$0xff]
    %v746 = vld [vmem:[%s329 + $0x249] sm:$0xff]
    %v747 = vld [vmem:[%s329 + $0x251] sm:$0xff]
    %v748 = vld [vmem:[%s329 + $0x269] sm:$0xff]
    %v749 = vld [vmem:[%s329 + $0x271] sm:$0xff]
    %v750 = vld [vmem:[%s329 + $0x289] sm:$0xff]
    %v751 = vld [vmem:[%s329 + $0x291] sm:$0xff]
    %v752 = vld [vmem:[%s329 + $0x2a9] sm:$0xff]
    %v753 = vld [vmem:[%s329 + $0x2b1] sm:$0xff]
    %v754 = vld [vmem:[%s329 + $0x2c9] sm:$0xff]
    %v755 = vld [vmem:[%s329 + $0x2d1] sm:$0xff]
    %v756 = vld [vmem:[%s329 + $0x2e9] sm:$0xff]
    %v757 = vld [vmem:[%s329 + $0x2f1] sm:$0xff]
    %v758 = vld [vmem:[%s329 + $0x309] sm:$0xff]
    %v759 = vld [vmem:[%s329 + $0x311] sm:$0xff]
    %v760 = vld [vmem:[%s329 + $0x329] sm:$0xff]
    %v761 = vld [vmem:[%s329 + $0x331] sm:$0xff]
    %v762 = vld [vmem:[%s329 + $0x349] sm:$0xff]
    %v763 = vld [vmem:[%s329 + $0x351] sm:$0xff]
    %v764 = vld [vmem:[%s329 + $0x369] sm:$0xff]
    %v765 = vld [vmem:[%s329 + $0x371] sm:$0xff]
    %v766 = vld [vmem:[%s329 + $0x389] sm:$0xff]
    %v767 = vld [vmem:[%s329 + $0x391] sm:$0xff]
    %v768 = vld [vmem:[%s329 + $0x3a9] sm:$0xff]
    %v769 = vld [vmem:[%s329 + $0x3b1] sm:$0xff]
    %v770 = vld [vmem:[%s329 + $0x3c9] sm:$0xff]
    %v771 = vld [vmem:[%s329 + $0x3d1] sm:$0xff]
    %v772 = vld [vmem:[%s329 + $0x3e9] sm:$0xff]
    %v773 = vld [vmem:[%s329 + $0x3f1] sm:$0xff]
    %v774 = vld [vmem:[%s329 + $0x409] sm:$0xff]
    %v775 = vld [vmem:[%s329 + $0x411] sm:$0xff]
    %v776 = vld [vmem:[%s329 + $0x429] sm:$0xff]
    %v777 = vld [vmem:[%s329 + $0x431] sm:$0xff]
    %s778 = scalar_lea.vmem [#allocation2], 64
    %v779 = vld [vmem:[%s778 + $0x7] sm:$0xff]
    %v780 = vld [vmem:[%s778 + $0xf] sm:$0xff]
    %v781 = vld [vmem:[%s778 + $0x27] sm:$0xff]
    %v782 = vld [vmem:[%s778 + $0x2f] sm:$0xff]
    %v783 = vld [vmem:[%s778 + $0x47] sm:$0xff]
    %v784 = vld [vmem:[%s778 + $0x4f] sm:$0xff]
    %v785 = vld [vmem:[%s778 + $0x67] sm:$0xff]
    %v786 = vld [vmem:[%s778 + $0x6f] sm:$0xff]
    %v787 = vld [vmem:[%s778 + $0x87] sm:$0xff]
    %v788 = vld [vmem:[%s778 + $0x8f] sm:$0xff]
    %v789 = vld [vmem:[%s778 + $0xa7] sm:$0xff]
    %v790 = vld [vmem:[%s778 + $0xaf] sm:$0xff]
    %v791 = vld [vmem:[%s778 + $0xc7] sm:$0xff]
    %v792 = vld [vmem:[%s778 + $0xcf] sm:$0xff]
    %v793 = vld [vmem:[%s778 + $0xe7] sm:$0xff]
    %v794 = vld [vmem:[%s778 + $0xef] sm:$0xff]
    %v795 = vld [vmem:[%s778 + $0x107] sm:$0xff]
    %v796 = vld [vmem:[%s778 + $0x10f] sm:$0xff]
    %v797 = vld [vmem:[%s778 + $0x127] sm:$0xff]
    %v798 = vld [vmem:[%s778 + $0x12f] sm:$0xff]
    %v799 = vld [vmem:[%s778 + $0x147] sm:$0xff]
    %v800 = vld [vmem:[%s778 + $0x14f] sm:$0xff]
    %v801 = vld [vmem:[%s778 + $0x167] sm:$0xff]
    %v802 = vld [vmem:[%s778 + $0x16f] sm:$0xff]
    %v803 = vld [vmem:[%s778 + $0x187] sm:$0xff]
    %v804 = vld [vmem:[%s778 + $0x18f] sm:$0xff]
    %v805 = vld [vmem:[%s778 + $0x1a7] sm:$0xff]
    %v806 = vld [vmem:[%s778 + $0x1af] sm:$0xff]
    %v807 = vld [vmem:[%s778 + $0x1c7] sm:$0xff]
    %v808 = vld [vmem:[%s778 + $0x1cf] sm:$0xff]
    %v809 = vld [vmem:[%s778 + $0x1e7] sm:$0xff]
    %v810 = vld [vmem:[%s778 + $0x1ef] sm:$0xff]
    %v811 = vld [vmem:[%s778 + $0x247] sm:$0xff]
    %v812 = vld [vmem:[%s778 + $0x24f] sm:$0xff]
    %v813 = vld [vmem:[%s778 + $0x267] sm:$0xff]
    %v814 = vld [vmem:[%s778 + $0x26f] sm:$0xff]
    %v815 = vld [vmem:[%s778 + $0x287] sm:$0xff]
    %v816 = vld [vmem:[%s778 + $0x28f] sm:$0xff]
    %v817 = vld [vmem:[%s778 + $0x2a7] sm:$0xff]
    %v818 = vld [vmem:[%s778 + $0x2af] sm:$0xff]
    %v819 = vld [vmem:[%s778 + $0x2c7] sm:$0xff]
    %v820 = vld [vmem:[%s778 + $0x2cf] sm:$0xff]
    %v821 = vld [vmem:[%s778 + $0x2e7] sm:$0xff]
    %v822 = vld [vmem:[%s778 + $0x2ef] sm:$0xff]
    %v823 = vld [vmem:[%s778 + $0x307] sm:$0xff]
    %v824 = vld [vmem:[%s778 + $0x30f] sm:$0xff]
    %v825 = vld [vmem:[%s778 + $0x327] sm:$0xff]
    %v826 = vld [vmem:[%s778 + $0x32f] sm:$0xff]
    %v827 = vld [vmem:[%s778 + $0x347] sm:$0xff]
    %v828 = vld [vmem:[%s778 + $0x34f] sm:$0xff]
    %v829 = vld [vmem:[%s778 + $0x367] sm:$0xff]
    %v830 = vld [vmem:[%s778 + $0x36f] sm:$0xff]
    %v831 = vld [vmem:[%s778 + $0x387] sm:$0xff]
    %v832 = vld [vmem:[%s778 + $0x38f] sm:$0xff]
    %v833 = vld [vmem:[%s778 + $0x3a7] sm:$0xff]
    %v834 = vld [vmem:[%s778 + $0x3af] sm:$0xff]
    %v835 = vld [vmem:[%s778 + $0x3c7] sm:$0xff]
    %v836 = vld [vmem:[%s778 + $0x3cf] sm:$0xff]
    %v837 = vld [vmem:[%s778 + $0x3e7] sm:$0xff]
    %v838 = vld [vmem:[%s778 + $0x3ef] sm:$0xff]
    %v839 = vld [vmem:[%s778 + $0x407] sm:$0xff]
    %v840 = vld [vmem:[%s778 + $0x40f] sm:$0xff]
    %v841 = vld [vmem:[%s778 + $0x427] sm:$0xff]
    %v842 = vld [vmem:[%s778 + $0x42f] sm:$0xff]
    %v843 = vld [vmem:[%s778 + $0x8] sm:$0xff]
    %v844 = vld [vmem:[%s778 + $0x10] sm:$0xff]
    %v845 = vld [vmem:[%s778 + $0x28] sm:$0xff]
    %v846 = vld [vmem:[%s778 + $0x30] sm:$0xff]
    %v847 = vld [vmem:[%s778 + $0x48] sm:$0xff]
    %v848 = vld [vmem:[%s778 + $0x50] sm:$0xff]
    %v849 = vld [vmem:[%s778 + $0x68] sm:$0xff]
    %v850 = vld [vmem:[%s778 + $0x70] sm:$0xff]
    %v851 = vld [vmem:[%s778 + $0x88] sm:$0xff]
    %v852 = vld [vmem:[%s778 + $0x90] sm:$0xff]
    %v853 = vld [vmem:[%s778 + $0xa8] sm:$0xff]
    %v854 = vld [vmem:[%s778 + $0xb0] sm:$0xff]
    %v855 = vld [vmem:[%s778 + $0xc8] sm:$0xff]
    %v856 = vld [vmem:[%s778 + $0xd0] sm:$0xff]
    %v857 = vld [vmem:[%s778 + $0xe8] sm:$0xff]
    %v858 = vld [vmem:[%s778 + $0xf0] sm:$0xff]
    %v859 = vld [vmem:[%s778 + $0x108] sm:$0xff]
    %v860 = vld [vmem:[%s778 + $0x110] sm:$0xff]
    %v861 = vld [vmem:[%s778 + $0x128] sm:$0xff]
    %v862 = vld [vmem:[%s778 + $0x130] sm:$0xff]
    %v863 = vld [vmem:[%s778 + $0x148] sm:$0xff]
    %v864 = vld [vmem:[%s778 + $0x150] sm:$0xff]
    %v865 = vld [vmem:[%s778 + $0x168] sm:$0xff]
    %v866 = vld [vmem:[%s778 + $0x170] sm:$0xff]
    %v867 = vld [vmem:[%s778 + $0x188] sm:$0xff]
    %v868 = vld [vmem:[%s778 + $0x190] sm:$0xff]
    %v869 = vld [vmem:[%s778 + $0x1a8] sm:$0xff]
    %v870 = vld [vmem:[%s778 + $0x1b0] sm:$0xff]
    %v871 = vld [vmem:[%s778 + $0x1c8] sm:$0xff]
    %v872 = vld [vmem:[%s778 + $0x1d0] sm:$0xff]
    %v873 = vld [vmem:[%s778 + $0x1e8] sm:$0xff]
    %v874 = vld [vmem:[%s778 + $0x1f0] sm:$0xff]
    %v875 = vld [vmem:[%s778 + $0x248] sm:$0xff]
    %v876 = vld [vmem:[%s778 + $0x250] sm:$0xff]
    %v877 = vld [vmem:[%s778 + $0x268] sm:$0xff]
    %v878 = vld [vmem:[%s778 + $0x270] sm:$0xff]
    %v879 = vld [vmem:[%s778 + $0x288] sm:$0xff]
    %v880 = vld [vmem:[%s778 + $0x290] sm:$0xff]
    %v881 = vld [vmem:[%s778 + $0x2a8] sm:$0xff]
    %v882 = vld [vmem:[%s778 + $0x2b0] sm:$0xff]
    %v883 = vld [vmem:[%s778 + $0x2c8] sm:$0xff]
    %v884 = vld [vmem:[%s778 + $0x2d0] sm:$0xff]
    %v885 = vld [vmem:[%s778 + $0x2e8] sm:$0xff]
    %v886 = vld [vmem:[%s778 + $0x2f0] sm:$0xff]
    %v887 = vld [vmem:[%s778 + $0x308] sm:$0xff]
    %v888 = vld [vmem:[%s778 + $0x310] sm:$0xff]
    %v889 = vld [vmem:[%s778 + $0x328] sm:$0xff]
    %v890 = vld [vmem:[%s778 + $0x330] sm:$0xff]
    %v891 = vld [vmem:[%s778 + $0x348] sm:$0xff]
    %v892 = vld [vmem:[%s778 + $0x350] sm:$0xff]
    %v893 = vld [vmem:[%s778 + $0x368] sm:$0xff]
    %v894 = vld [vmem:[%s778 + $0x370] sm:$0xff]
    %v895 = vld [vmem:[%s778 + $0x388] sm:$0xff]
    %v896 = vld [vmem:[%s778 + $0x390] sm:$0xff]
    %v897 = vld [vmem:[%s778 + $0x3a8] sm:$0xff]
    %v898 = vld [vmem:[%s778 + $0x3b0] sm:$0xff]
    %v899 = vld [vmem:[%s778 + $0x3c8] sm:$0xff]
    %v900 = vld [vmem:[%s778 + $0x3d0] sm:$0xff]
    %v901 = vld [vmem:[%s778 + $0x3e8] sm:$0xff]
    %v902 = vld [vmem:[%s778 + $0x3f0] sm:$0xff]
    %v903 = vld [vmem:[%s778 + $0x408] sm:$0xff]
    %v904 = vld [vmem:[%s778 + $0x410] sm:$0xff]
    %v905 = vld [vmem:[%s778 + $0x428] sm:$0xff]
    %v906 = vld [vmem:[%s778 + $0x430] sm:$0xff]
    %v907 = vld [vmem:[%s778 + $0x9] sm:$0xff]
    %v908 = vld [vmem:[%s778 + $0x11] sm:$0xff]
    %v909 = vld [vmem:[%s778 + $0x29] sm:$0xff]
    %v910 = vld [vmem:[%s778 + $0x31] sm:$0xff]
    %v911 = vld [vmem:[%s778 + $0x49] sm:$0xff]
    %v912 = vld [vmem:[%s778 + $0x51] sm:$0xff]
    %v913 = vld [vmem:[%s778 + $0x69] sm:$0xff]
    %v914 = vld [vmem:[%s778 + $0x71] sm:$0xff]
    %v915 = vld [vmem:[%s778 + $0x89] sm:$0xff]
    %v916 = vld [vmem:[%s778 + $0x91] sm:$0xff]
    %v917 = vld [vmem:[%s778 + $0xa9] sm:$0xff]
    %v918 = vld [vmem:[%s778 + $0xb1] sm:$0xff]
    %v919 = vld [vmem:[%s778 + $0xc9] sm:$0xff]
    %v920 = vld [vmem:[%s778 + $0xd1] sm:$0xff]
    %v921 = vld [vmem:[%s778 + $0xe9] sm:$0xff]
    %v922 = vld [vmem:[%s778 + $0xf1] sm:$0xff]
    %v923 = vld [vmem:[%s778 + $0x109] sm:$0xff]
    %v924 = vld [vmem:[%s778 + $0x111] sm:$0xff]
    %v925 = vld [vmem:[%s778 + $0x129] sm:$0xff]
    %v926 = vld [vmem:[%s778 + $0x131] sm:$0xff]
    %v927 = vld [vmem:[%s778 + $0x149] sm:$0xff]
    %v928 = vld [vmem:[%s778 + $0x151] sm:$0xff]
    %v929 = vld [vmem:[%s778 + $0x169] sm:$0xff]
    %v930 = vld [vmem:[%s778 + $0x171] sm:$0xff]
    %v931 = vld [vmem:[%s778 + $0x189] sm:$0xff]
    %v932 = vld [vmem:[%s778 + $0x191] sm:$0xff]
    %v933 = vld [vmem:[%s778 + $0x1a9] sm:$0xff]
    %v934 = vld [vmem:[%s778 + $0x1b1] sm:$0xff]
    %v935 = vld [vmem:[%s778 + $0x1c9] sm:$0xff]
    %v936 = vld [vmem:[%s778 + $0x1d1] sm:$0xff]
    %v937 = vld [vmem:[%s778 + $0x1e9] sm:$0xff]
    %v938 = vld [vmem:[%s778 + $0x1f1] sm:$0xff]
    %v939 = vld [vmem:[%s778 + $0x249] sm:$0xff]
    %v940 = vld [vmem:[%s778 + $0x251] sm:$0xff]
    %v941 = vld [vmem:[%s778 + $0x269] sm:$0xff]
    %v942 = vld [vmem:[%s778 + $0x271] sm:$0xff]
    %v943 = vld [vmem:[%s778 + $0x289] sm:$0xff]
    %v944 = vld [vmem:[%s778 + $0x291] sm:$0xff]
    %v945 = vld [vmem:[%s778 + $0x2a9] sm:$0xff]
    %v946 = vld [vmem:[%s778 + $0x2b1] sm:$0xff]
    %v947 = vld [vmem:[%s778 + $0x2c9] sm:$0xff]
    %v948 = vld [vmem:[%s778 + $0x2d1] sm:$0xff]
    %v949 = vld [vmem:[%s778 + $0x2e9] sm:$0xff]
    %v950 = vld [vmem:[%s778 + $0x2f1] sm:$0xff]
    %v951 = vld [vmem:[%s778 + $0x309] sm:$0xff]
    %v952 = vld [vmem:[%s778 + $0x311] sm:$0xff]
    %v953 = vld [vmem:[%s778 + $0x329] sm:$0xff]
    %v954 = vld [vmem:[%s778 + $0x331] sm:$0xff]
    %v955 = vld [vmem:[%s778 + $0x349] sm:$0xff]
    %v956 = vld [vmem:[%s778 + $0x351] sm:$0xff]
    %v957 = vld [vmem:[%s778 + $0x369] sm:$0xff]
    %v958 = vld [vmem:[%s778 + $0x371] sm:$0xff]
    %v959 = vld [vmem:[%s778 + $0x389] sm:$0xff]
    %v960 = vld [vmem:[%s778 + $0x391] sm:$0xff]
    %v961 = vld [vmem:[%s778 + $0x3a9] sm:$0xff]
    %v962 = vld [vmem:[%s778 + $0x3b1] sm:$0xff]
    %v963 = vld [vmem:[%s778 + $0x3c9] sm:$0xff]
    %v964 = vld [vmem:[%s778 + $0x3d1] sm:$0xff]
    %v965 = vld [vmem:[%s778 + $0x3e9] sm:$0xff]
    %v966 = vld [vmem:[%s778 + $0x3f1] sm:$0xff]
    %v967 = vld [vmem:[%s778 + $0x409] sm:$0xff]
    %v968 = vld [vmem:[%s778 + $0x411] sm:$0xff]
    %v969 = vld [vmem:[%s778 + $0x429] sm:$0xff]
    %v970 = vld [vmem:[%s778 + $0x431] sm:$0xff]
    %1035 = vrot.lane.b32.xlu0 %v458, 3
    %v1036 = vpop.permute.xlu0 %1035
    %1037 = vrot.lane.b32.xlu0 %v459, 3
    %v1038 = vpop.permute.xlu0 %1037
    %1039 = vrot.lane.b32.xlu0 %v460, 3
    %v1040 = vpop.permute.xlu0 %1039
    %1041 = vrot.lane.b32.xlu0 %v461, 3
    %v1042 = vpop.permute.xlu0 %1041
    %1043 = vrot.lane.b32.xlu0 %v462, 3
    %v1044 = vpop.permute.xlu0 %1043
    %1045 = vrot.lane.b32.xlu0 %v463, 3
    %v1046 = vpop.permute.xlu0 %1045
    %1047 = vrot.lane.b32.xlu0 %v464, 3
    %v1048 = vpop.permute.xlu0 %1047
    %1049 = vrot.lane.b32.xlu0 %v465, 3
    %v1050 = vpop.permute.xlu0 %1049
    %1051 = vrot.lane.b32.xlu0 %v466, 3
    %v1052 = vpop.permute.xlu0 %1051
    %1053 = vrot.lane.b32.xlu0 %v467, 3
    %v1054 = vpop.permute.xlu0 %1053
    %1055 = vrot.lane.b32.xlu0 %v468, 3
    %v1056 = vpop.permute.xlu0 %1055
    %1057 = vrot.lane.b32.xlu0 %v469, 3
    %v1058 = vpop.permute.xlu0 %1057
    %1059 = vrot.lane.b32.xlu0 %v470, 3
    %v1060 = vpop.permute.xlu0 %1059
    %1061 = vrot.lane.b32.xlu0 %v471, 3
    %v1062 = vpop.permute.xlu0 %1061
    %1063 = vrot.lane.b32.xlu0 %v472, 3
    %v1064 = vpop.permute.xlu0 %1063
    %1065 = vrot.lane.b32.xlu0 %v473, 3
    %v1066 = vpop.permute.xlu0 %1065
    %1067 = vrot.lane.b32.xlu0 %v474, 3
    %v1068 = vpop.permute.xlu0 %1067
    %1069 = vrot.lane.b32.xlu0 %v475, 3
    %v1070 = vpop.permute.xlu0 %1069
    %1071 = vrot.lane.b32.xlu0 %v476, 3
    %v1072 = vpop.permute.xlu0 %1071
    %1073 = vrot.lane.b32.xlu0 %v477, 3
    %v1074 = vpop.permute.xlu0 %1073
    %1075 = vrot.lane.b32.xlu0 %v478, 3
    %v1076 = vpop.permute.xlu0 %1075
    %1077 = vrot.lane.b32.xlu0 %v479, 3
    %v1078 = vpop.permute.xlu0 %1077
    %1079 = vrot.lane.b32.xlu0 %v480, 3
    %v1080 = vpop.permute.xlu0 %1079
    %1081 = vrot.lane.b32.xlu0 %v481, 3
    %v1082 = vpop.permute.xlu0 %1081
    %1083 = vrot.lane.b32.xlu0 %v482, 3
    %v1084 = vpop.permute.xlu0 %1083
    %1085 = vrot.lane.b32.xlu0 %v483, 3
    %v1086 = vpop.permute.xlu0 %1085
    %1087 = vrot.lane.b32.xlu0 %v484, 3
    %v1088 = vpop.permute.xlu0 %1087
    %1089 = vrot.lane.b32.xlu0 %v485, 3
    %v1090 = vpop.permute.xlu0 %1089
    %1091 = vrot.lane.b32.xlu0 %v486, 3
    %v1092 = vpop.permute.xlu0 %1091
    %1093 = vrot.lane.b32.xlu0 %v487, 3
    %v1094 = vpop.permute.xlu0 %1093
    %1095 = vrot.lane.b32.xlu0 %v488, 3
    %v1096 = vpop.permute.xlu0 %1095
    %1097 = vrot.lane.b32.xlu0 %v489, 3
    %v1098 = vpop.permute.xlu0 %1097
    %1099 = vrot.lane.b32.xlu0 %v490, 3
    %v1100 = vpop.permute.xlu0 %1099
    %1101 = vrot.lane.b32.xlu0 %v491, 3
    %v1102 = vpop.permute.xlu0 %1101
    %1103 = vrot.lane.b32.xlu0 %v492, 3
    %v1104 = vpop.permute.xlu0 %1103
    %1105 = vrot.lane.b32.xlu0 %v493, 3
    %v1106 = vpop.permute.xlu0 %1105
    %1107 = vrot.lane.b32.xlu0 %v494, 3
    %v1108 = vpop.permute.xlu0 %1107
    %1109 = vrot.lane.b32.xlu0 %v495, 3
    %v1110 = vpop.permute.xlu0 %1109
    %1111 = vrot.lane.b32.xlu0 %v496, 3
    %v1112 = vpop.permute.xlu0 %1111
    %1113 = vrot.lane.b32.xlu0 %v497, 3
    %v1114 = vpop.permute.xlu0 %1113
    %1115 = vrot.lane.b32.xlu0 %v498, 3
    %v1116 = vpop.permute.xlu0 %1115
    %1117 = vrot.lane.b32.xlu0 %v499, 3
    %v1118 = vpop.permute.xlu0 %1117
    %1119 = vrot.lane.b32.xlu0 %v500, 3
    %v1120 = vpop.permute.xlu0 %1119
    %1121 = vrot.lane.b32.xlu0 %v501, 3
    %v1122 = vpop.permute.xlu0 %1121
    %1123 = vrot.lane.b32.xlu0 %v502, 3
    %v1124 = vpop.permute.xlu0 %1123
    %1125 = vrot.lane.b32.xlu0 %v503, 3
    %v1126 = vpop.permute.xlu0 %1125
    %1127 = vrot.lane.b32.xlu0 %v504, 3
    %v1128 = vpop.permute.xlu0 %1127
    %1129 = vrot.lane.b32.xlu0 %v505, 3
    %v1130 = vpop.permute.xlu0 %1129
    %1131 = vrot.lane.b32.xlu0 %v506, 3
    %v1132 = vpop.permute.xlu0 %1131
    %1133 = vrot.lane.b32.xlu0 %v507, 3
    %v1134 = vpop.permute.xlu0 %1133
    %1135 = vrot.lane.b32.xlu0 %v508, 3
    %v1136 = vpop.permute.xlu0 %1135
    %1137 = vrot.lane.b32.xlu0 %v509, 3
    %v1138 = vpop.permute.xlu0 %1137
    %1139 = vrot.lane.b32.xlu0 %v510, 3
    %v1140 = vpop.permute.xlu0 %1139
    %1141 = vrot.lane.b32.xlu0 %v511, 3
    %v1142 = vpop.permute.xlu0 %1141
    %1143 = vrot.lane.b32.xlu0 %v512, 3
    %v1144 = vpop.permute.xlu0 %1143
    %1145 = vrot.lane.b32.xlu0 %v513, 3
    %v1146 = vpop.permute.xlu0 %1145
    %1147 = vrot.lane.b32.xlu0 %v514, 3
    %v1148 = vpop.permute.xlu0 %1147
    %1149 = vrot.lane.b32.xlu0 %v515, 3
    %v1150 = vpop.permute.xlu0 %1149
    %1151 = vrot.lane.b32.xlu0 %v516, 3
    %v1152 = vpop.permute.xlu0 %1151
    %1153 = vrot.lane.b32.xlu0 %v517, 3
    %v1154 = vpop.permute.xlu0 %1153
    %1155 = vrot.lane.b32.xlu0 %v518, 3
    %v1156 = vpop.permute.xlu0 %1155
    %1157 = vrot.lane.b32.xlu0 %v519, 3
    %v1158 = vpop.permute.xlu0 %1157
    %1159 = vrot.lane.b32.xlu0 %v520, 3
    %v1160 = vpop.permute.xlu0 %1159
    %1161 = vrot.lane.b32.xlu0 %v521, 3
    %v1162 = vpop.permute.xlu0 %1161
    %1291 = vrot.lane.b32.xlu0 %v522, 6
    %v1292 = vpop.permute.xlu0 %1291
    %1293 = vrot.lane.b32.xlu0 %v523, 6
    %v1294 = vpop.permute.xlu0 %1293
    %1295 = vrot.lane.b32.xlu0 %v524, 6
    %v1296 = vpop.permute.xlu0 %1295
    %1297 = vrot.lane.b32.xlu0 %v525, 6
    %v1298 = vpop.permute.xlu0 %1297
    %1299 = vrot.lane.b32.xlu0 %v526, 6
    %v1300 = vpop.permute.xlu0 %1299
    %1301 = vrot.lane.b32.xlu0 %v527, 6
    %v1302 = vpop.permute.xlu0 %1301
    %1303 = vrot.lane.b32.xlu0 %v528, 6
    %v1304 = vpop.permute.xlu0 %1303
    %1305 = vrot.lane.b32.xlu0 %v529, 6
    %v1306 = vpop.permute.xlu0 %1305
    %1307 = vrot.lane.b32.xlu0 %v530, 6
    %v1308 = vpop.permute.xlu0 %1307
    %1309 = vrot.lane.b32.xlu0 %v531, 6
    %v1310 = vpop.permute.xlu0 %1309
    %1311 = vrot.lane.b32.xlu0 %v532, 6
    %v1312 = vpop.permute.xlu0 %1311
    %1313 = vrot.lane.b32.xlu0 %v533, 6
    %v1314 = vpop.permute.xlu0 %1313
    %1315 = vrot.lane.b32.xlu0 %v534, 6
    %v1316 = vpop.permute.xlu0 %1315
    %1317 = vrot.lane.b32.xlu0 %v535, 6
    %v1318 = vpop.permute.xlu0 %1317
    %1319 = vrot.lane.b32.xlu0 %v536, 6
    %v1320 = vpop.permute.xlu0 %1319
    %1321 = vrot.lane.b32.xlu0 %v537, 6
    %v1322 = vpop.permute.xlu0 %1321
    %1323 = vrot.lane.b32.xlu0 %v538, 6
    %v1324 = vpop.permute.xlu0 %1323
    %1325 = vrot.lane.b32.xlu0 %v539, 6
    %v1326 = vpop.permute.xlu0 %1325
    %1327 = vrot.lane.b32.xlu0 %v540, 6
    %v1328 = vpop.permute.xlu0 %1327
    %1329 = vrot.lane.b32.xlu0 %v541, 6
    %v1330 = vpop.permute.xlu0 %1329
    %1331 = vrot.lane.b32.xlu0 %v542, 6
    %v1332 = vpop.permute.xlu0 %1331
    %1333 = vrot.lane.b32.xlu0 %v543, 6
    %v1334 = vpop.permute.xlu0 %1333
    %1335 = vrot.lane.b32.xlu0 %v544, 6
    %v1336 = vpop.permute.xlu0 %1335
    %1337 = vrot.lane.b32.xlu0 %v545, 6
    %v1338 = vpop.permute.xlu0 %1337
    %1339 = vrot.lane.b32.xlu0 %v546, 6
    %v1340 = vpop.permute.xlu0 %1339
    %1341 = vrot.lane.b32.xlu0 %v547, 6
    %v1342 = vpop.permute.xlu0 %1341
    %1343 = vrot.lane.b32.xlu0 %v548, 6
    %v1344 = vpop.permute.xlu0 %1343
    %1345 = vrot.lane.b32.xlu0 %v549, 6
    %v1346 = vpop.permute.xlu0 %1345
    %1347 = vrot.lane.b32.xlu0 %v550, 6
    %v1348 = vpop.permute.xlu0 %1347
    %1349 = vrot.lane.b32.xlu0 %v551, 6
    %v1350 = vpop.permute.xlu0 %1349
    %1351 = vrot.lane.b32.xlu0 %v552, 6
    %v1352 = vpop.permute.xlu0 %1351
    %1353 = vrot.lane.b32.xlu0 %v553, 6
    %v1354 = vpop.permute.xlu0 %1353
    %1355 = vrot.lane.b32.xlu0 %v554, 6
    %v1356 = vpop.permute.xlu0 %1355
    %1357 = vrot.lane.b32.xlu0 %v555, 6
    %v1358 = vpop.permute.xlu0 %1357
    %1359 = vrot.lane.b32.xlu0 %v556, 6
    %v1360 = vpop.permute.xlu0 %1359
    %1361 = vrot.lane.b32.xlu0 %v557, 6
    %v1362 = vpop.permute.xlu0 %1361
    %1363 = vrot.lane.b32.xlu0 %v558, 6
    %v1364 = vpop.permute.xlu0 %1363
    %1365 = vrot.lane.b32.xlu0 %v559, 6
    %v1366 = vpop.permute.xlu0 %1365
    %1367 = vrot.lane.b32.xlu0 %v560, 6
    %v1368 = vpop.permute.xlu0 %1367
    %1369 = vrot.lane.b32.xlu0 %v561, 6
    %v1370 = vpop.permute.xlu0 %1369
    %1371 = vrot.lane.b32.xlu0 %v562, 6
    %v1372 = vpop.permute.xlu0 %1371
    %1373 = vrot.lane.b32.xlu0 %v563, 6
    %v1374 = vpop.permute.xlu0 %1373
    %1375 = vrot.lane.b32.xlu0 %v564, 6
    %v1376 = vpop.permute.xlu0 %1375
    %1377 = vrot.lane.b32.xlu0 %v565, 6
    %v1378 = vpop.permute.xlu0 %1377
    %1379 = vrot.lane.b32.xlu0 %v566, 6
    %v1380 = vpop.permute.xlu0 %1379
    %1381 = vrot.lane.b32.xlu0 %v567, 6
    %v1382 = vpop.permute.xlu0 %1381
    %1383 = vrot.lane.b32.xlu0 %v568, 6
    %v1384 = vpop.permute.xlu0 %1383
    %1385 = vrot.lane.b32.xlu0 %v569, 6
    %v1386 = vpop.permute.xlu0 %1385
    %1387 = vrot.lane.b32.xlu0 %v570, 6
    %v1388 = vpop.permute.xlu0 %1387
    %1389 = vrot.lane.b32.xlu0 %v571, 6
    %v1390 = vpop.permute.xlu0 %1389
    %1391 = vrot.lane.b32.xlu0 %v572, 6
    %v1392 = vpop.permute.xlu0 %1391
    %1393 = vrot.lane.b32.xlu0 %v573, 6
    %v1394 = vpop.permute.xlu0 %1393
    %1395 = vrot.lane.b32.xlu0 %v574, 6
    %v1396 = vpop.permute.xlu0 %1395
    %1397 = vrot.lane.b32.xlu0 %v575, 6
    %v1398 = vpop.permute.xlu0 %1397
    %1399 = vrot.lane.b32.xlu0 %v576, 6
    %v1400 = vpop.permute.xlu0 %1399
    %1401 = vrot.lane.b32.xlu0 %v577, 6
    %v1402 = vpop.permute.xlu0 %1401
    %1403 = vrot.lane.b32.xlu0 %v578, 6
    %v1404 = vpop.permute.xlu0 %1403
    %1405 = vrot.lane.b32.xlu0 %v579, 6
    %v1406 = vpop.permute.xlu0 %1405
    %1407 = vrot.lane.b32.xlu0 %v580, 6
    %v1408 = vpop.permute.xlu0 %1407
    %1409 = vrot.lane.b32.xlu0 %v581, 6
    %v1410 = vpop.permute.xlu0 %1409
    %1411 = vrot.lane.b32.xlu0 %v582, 6
    %v1412 = vpop.permute.xlu0 %1411
    %1413 = vrot.lane.b32.xlu0 %v583, 6
    %v1414 = vpop.permute.xlu0 %1413
    %1415 = vrot.lane.b32.xlu0 %v584, 6
    %v1416 = vpop.permute.xlu0 %1415
    %1417 = vrot.lane.b32.xlu0 %v585, 6
    %v1418 = vpop.permute.xlu0 %1417
    %1547 = vrot.lane.b32.xlu0 %v586, 9
    %v1548 = vpop.permute.xlu0 %1547
    %1549 = vrot.lane.b32.xlu0 %v587, 9
    %v1550 = vpop.permute.xlu0 %1549
    %1551 = vrot.lane.b32.xlu0 %v588, 9
    %v1552 = vpop.permute.xlu0 %1551
    %1553 = vrot.lane.b32.xlu0 %v589, 9
    %v1554 = vpop.permute.xlu0 %1553
    %1555 = vrot.lane.b32.xlu0 %v590, 9
    %v1556 = vpop.permute.xlu0 %1555
    %1557 = vrot.lane.b32.xlu0 %v591, 9
    %v1558 = vpop.permute.xlu0 %1557
    %1559 = vrot.lane.b32.xlu0 %v592, 9
    %v1560 = vpop.permute.xlu0 %1559
    %1561 = vrot.lane.b32.xlu0 %v593, 9
    %v1562 = vpop.permute.xlu0 %1561
    %1563 = vrot.lane.b32.xlu0 %v594, 9
    %v1564 = vpop.permute.xlu0 %1563
    %1565 = vrot.lane.b32.xlu0 %v595, 9
    %v1566 = vpop.permute.xlu0 %1565
    %1567 = vrot.lane.b32.xlu0 %v596, 9
    %v1568 = vpop.permute.xlu0 %1567
    %1569 = vrot.lane.b32.xlu0 %v597, 9
    %v1570 = vpop.permute.xlu0 %1569
    %1571 = vrot.lane.b32.xlu0 %v598, 9
    %v1572 = vpop.permute.xlu0 %1571
    %1573 = vrot.lane.b32.xlu0 %v599, 9
    %v1574 = vpop.permute.xlu0 %1573
    %1575 = vrot.lane.b32.xlu0 %v600, 9
    %v1576 = vpop.permute.xlu0 %1575
    %1577 = vrot.lane.b32.xlu0 %v601, 9
    %v1578 = vpop.permute.xlu0 %1577
    %1579 = vrot.lane.b32.xlu0 %v602, 9
    %v1580 = vpop.permute.xlu0 %1579
    %1581 = vrot.lane.b32.xlu0 %v603, 9
    %v1582 = vpop.permute.xlu0 %1581
    %1583 = vrot.lane.b32.xlu0 %v604, 9
    %v1584 = vpop.permute.xlu0 %1583
    %1585 = vrot.lane.b32.xlu0 %v605, 9
    %v1586 = vpop.permute.xlu0 %1585
    %1587 = vrot.lane.b32.xlu0 %v606, 9
    %v1588 = vpop.permute.xlu0 %1587
    %1589 = vrot.lane.b32.xlu0 %v607, 9
    %v1590 = vpop.permute.xlu0 %1589
    %1591 = vrot.lane.b32.xlu0 %v608, 9
    %v1592 = vpop.permute.xlu0 %1591
    %1593 = vrot.lane.b32.xlu0 %v609, 9
    %v1594 = vpop.permute.xlu0 %1593
    %1595 = vrot.lane.b32.xlu0 %v610, 9
    %v1596 = vpop.permute.xlu0 %1595
    %1597 = vrot.lane.b32.xlu0 %v611, 9
    %v1598 = vpop.permute.xlu0 %1597
    %1599 = vrot.lane.b32.xlu0 %v612, 9
    %v1600 = vpop.permute.xlu0 %1599
    %1601 = vrot.lane.b32.xlu0 %v613, 9
    %v1602 = vpop.permute.xlu0 %1601
    %1603 = vrot.lane.b32.xlu0 %v614, 9
    %v1604 = vpop.permute.xlu0 %1603
    %1605 = vrot.lane.b32.xlu0 %v615, 9
    %v1606 = vpop.permute.xlu0 %1605
    %1607 = vrot.lane.b32.xlu0 %v616, 9
    %v1608 = vpop.permute.xlu0 %1607
    %1609 = vrot.lane.b32.xlu0 %v617, 9
    %v1610 = vpop.permute.xlu0 %1609
    %1611 = vrot.lane.b32.xlu0 %v618, 9
    %v1612 = vpop.permute.xlu0 %1611
    %1613 = vrot.lane.b32.xlu0 %v619, 9
    %v1614 = vpop.permute.xlu0 %1613
    %1615 = vrot.lane.b32.xlu0 %v620, 9
    %v1616 = vpop.permute.xlu0 %1615
    %1617 = vrot.lane.b32.xlu0 %v621, 9
    %v1618 = vpop.permute.xlu0 %1617
    %1619 = vrot.lane.b32.xlu0 %v622, 9
    %v1620 = vpop.permute.xlu0 %1619
    %1621 = vrot.lane.b32.xlu0 %v623, 9
    %v1622 = vpop.permute.xlu0 %1621
    %1623 = vrot.lane.b32.xlu0 %v624, 9
    %v1624 = vpop.permute.xlu0 %1623
    %1625 = vrot.lane.b32.xlu0 %v625, 9
    %v1626 = vpop.permute.xlu0 %1625
    %1627 = vrot.lane.b32.xlu0 %v626, 9
    %v1628 = vpop.permute.xlu0 %1627
    %1629 = vrot.lane.b32.xlu0 %v627, 9
    %v1630 = vpop.permute.xlu0 %1629
    %1631 = vrot.lane.b32.xlu0 %v628, 9
    %v1632 = vpop.permute.xlu0 %1631
    %1633 = vrot.lane.b32.xlu0 %v629, 9
    %v1634 = vpop.permute.xlu0 %1633
    %1635 = vrot.lane.b32.xlu0 %v630, 9
    %v1636 = vpop.permute.xlu0 %1635
    %1637 = vrot.lane.b32.xlu0 %v631, 9
    %v1638 = vpop.permute.xlu0 %1637
    %1639 = vrot.lane.b32.xlu0 %v632, 9
    %v1640 = vpop.permute.xlu0 %1639
    %1641 = vrot.lane.b32.xlu0 %v633, 9
    %v1642 = vpop.permute.xlu0 %1641
    %1643 = vrot.lane.b32.xlu0 %v634, 9
    %v1644 = vpop.permute.xlu0 %1643
    %1645 = vrot.lane.b32.xlu0 %v635, 9
    %v1646 = vpop.permute.xlu0 %1645
    %1647 = vrot.lane.b32.xlu0 %v636, 9
    %v1648 = vpop.permute.xlu0 %1647
    %1649 = vrot.lane.b32.xlu0 %v637, 9
    %v1650 = vpop.permute.xlu0 %1649
    %1651 = vrot.lane.b32.xlu0 %v638, 9
    %v1652 = vpop.permute.xlu0 %1651
    %1653 = vrot.lane.b32.xlu0 %v639, 9
    %v1654 = vpop.permute.xlu0 %1653
    %1655 = vrot.lane.b32.xlu0 %v640, 9
    %v1656 = vpop.permute.xlu0 %1655
    %1657 = vrot.lane.b32.xlu0 %v641, 9
    %v1658 = vpop.permute.xlu0 %1657
    %1659 = vrot.lane.b32.xlu0 %v642, 9
    %v1660 = vpop.permute.xlu0 %1659
    %1661 = vrot.lane.b32.xlu0 %v643, 9
    %v1662 = vpop.permute.xlu0 %1661
    %1663 = vrot.lane.b32.xlu0 %v644, 9
    %v1664 = vpop.permute.xlu0 %1663
    %1665 = vrot.lane.b32.xlu0 %v645, 9
    %v1666 = vpop.permute.xlu0 %1665
    %1667 = vrot.lane.b32.xlu0 %v646, 9
    %v1668 = vpop.permute.xlu0 %1667
    %1669 = vrot.lane.b32.xlu0 %v647, 9
    %v1670 = vpop.permute.xlu0 %1669
    %1671 = vrot.lane.b32.xlu0 %v648, 9
    %v1672 = vpop.permute.xlu0 %1671
    %1673 = vrot.lane.b32.xlu0 %v649, 9
    %v1674 = vpop.permute.xlu0 %1673
    %1803 = vrot.lane.b32.xlu0 %v650, 12
    %v1804 = vpop.permute.xlu0 %1803
    %1805 = vrot.lane.b32.xlu0 %v651, 12
    %v1806 = vpop.permute.xlu0 %1805
    %1807 = vrot.lane.b32.xlu0 %v652, 12
    %v1808 = vpop.permute.xlu0 %1807
    %1809 = vrot.lane.b32.xlu0 %v653, 12
    %v1810 = vpop.permute.xlu0 %1809
    %1811 = vrot.lane.b32.xlu0 %v654, 12
    %v1812 = vpop.permute.xlu0 %1811
    %1813 = vrot.lane.b32.xlu0 %v655, 12
    %v1814 = vpop.permute.xlu0 %1813
    %1815 = vrot.lane.b32.xlu0 %v656, 12
    %v1816 = vpop.permute.xlu0 %1815
    %1817 = vrot.lane.b32.xlu0 %v657, 12
    %v1818 = vpop.permute.xlu0 %1817
    %1819 = vrot.lane.b32.xlu0 %v658, 12
    %v1820 = vpop.permute.xlu0 %1819
    %1821 = vrot.lane.b32.xlu0 %v659, 12
    %v1822 = vpop.permute.xlu0 %1821
    %1823 = vrot.lane.b32.xlu0 %v660, 12
    %v1824 = vpop.permute.xlu0 %1823
    %1825 = vrot.lane.b32.xlu0 %v661, 12
    %v1826 = vpop.permute.xlu0 %1825
    %1827 = vrot.lane.b32.xlu0 %v662, 12
    %v1828 = vpop.permute.xlu0 %1827
    %1829 = vrot.lane.b32.xlu0 %v663, 12
    %v1830 = vpop.permute.xlu0 %1829
    %1831 = vrot.lane.b32.xlu0 %v664, 12
    %v1832 = vpop.permute.xlu0 %1831
    %1833 = vrot.lane.b32.xlu0 %v665, 12
    %v1834 = vpop.permute.xlu0 %1833
    %1835 = vrot.lane.b32.xlu0 %v666, 12
    %v1836 = vpop.permute.xlu0 %1835
    %1837 = vrot.lane.b32.xlu0 %v667, 12
    %v1838 = vpop.permute.xlu0 %1837
    %1839 = vrot.lane.b32.xlu0 %v668, 12
    %v1840 = vpop.permute.xlu0 %1839
    %1841 = vrot.lane.b32.xlu0 %v669, 12
    %v1842 = vpop.permute.xlu0 %1841
    %1843 = vrot.lane.b32.xlu0 %v670, 12
    %v1844 = vpop.permute.xlu0 %1843
    %1845 = vrot.lane.b32.xlu0 %v671, 12
    %v1846 = vpop.permute.xlu0 %1845
    %1847 = vrot.lane.b32.xlu0 %v672, 12
    %v1848 = vpop.permute.xlu0 %1847
    %1849 = vrot.lane.b32.xlu0 %v673, 12
    %v1850 = vpop.permute.xlu0 %1849
    %1851 = vrot.lane.b32.xlu0 %v674, 12
    %v1852 = vpop.permute.xlu0 %1851
    %1853 = vrot.lane.b32.xlu0 %v675, 12
    %v1854 = vpop.permute.xlu0 %1853
    %1855 = vrot.lane.b32.xlu0 %v676, 12
    %v1856 = vpop.permute.xlu0 %1855
    %1857 = vrot.lane.b32.xlu0 %v677, 12
    %v1858 = vpop.permute.xlu0 %1857
    %1859 = vrot.lane.b32.xlu0 %v678, 12
    %v1860 = vpop.permute.xlu0 %1859
    %1861 = vrot.lane.b32.xlu0 %v679, 12
    %v1862 = vpop.permute.xlu0 %1861
    %1863 = vrot.lane.b32.xlu0 %v680, 12
    %v1864 = vpop.permute.xlu0 %1863
    %1865 = vrot.lane.b32.xlu0 %v681, 12
    %v1866 = vpop.permute.xlu0 %1865
    %1867 = vrot.lane.b32.xlu0 %v682, 12
    %v1868 = vpop.permute.xlu0 %1867
    %1869 = vrot.lane.b32.xlu0 %v683, 12
    %v1870 = vpop.permute.xlu0 %1869
    %1871 = vrot.lane.b32.xlu0 %v684, 12
    %v1872 = vpop.permute.xlu0 %1871
    %1873 = vrot.lane.b32.xlu0 %v685, 12
    %v1874 = vpop.permute.xlu0 %1873
    %1875 = vrot.lane.b32.xlu0 %v686, 12
    %v1876 = vpop.permute.xlu0 %1875
    %1877 = vrot.lane.b32.xlu0 %v687, 12
    %v1878 = vpop.permute.xlu0 %1877
    %1879 = vrot.lane.b32.xlu0 %v688, 12
    %v1880 = vpop.permute.xlu0 %1879
    %1881 = vrot.lane.b32.xlu0 %v689, 12
    %v1882 = vpop.permute.xlu0 %1881
    %1883 = vrot.lane.b32.xlu0 %v690, 12
    %v1884 = vpop.permute.xlu0 %1883
    %1885 = vrot.lane.b32.xlu0 %v691, 12
    %v1886 = vpop.permute.xlu0 %1885
    %1887 = vrot.lane.b32.xlu0 %v692, 12
    %v1888 = vpop.permute.xlu0 %1887
    %1889 = vrot.lane.b32.xlu0 %v693, 12
    %v1890 = vpop.permute.xlu0 %1889
    %1891 = vrot.lane.b32.xlu0 %v694, 12
    %v1892 = vpop.permute.xlu0 %1891
    %1893 = vrot.lane.b32.xlu0 %v695, 12
    %v1894 = vpop.permute.xlu0 %1893
    %1895 = vrot.lane.b32.xlu0 %v696, 12
    %v1896 = vpop.permute.xlu0 %1895
    %1897 = vrot.lane.b32.xlu0 %v697, 12
    %v1898 = vpop.permute.xlu0 %1897
    %1899 = vrot.lane.b32.xlu0 %v698, 12
    %v1900 = vpop.permute.xlu0 %1899
    %1901 = vrot.lane.b32.xlu0 %v699, 12
    %v1902 = vpop.permute.xlu0 %1901
    %1903 = vrot.lane.b32.xlu0 %v700, 12
    %v1904 = vpop.permute.xlu0 %1903
    %1905 = vrot.lane.b32.xlu0 %v701, 12
    %v1906 = vpop.permute.xlu0 %1905
    %1907 = vrot.lane.b32.xlu0 %v702, 12
    %v1908 = vpop.permute.xlu0 %1907
    %1909 = vrot.lane.b32.xlu0 %v703, 12
    %v1910 = vpop.permute.xlu0 %1909
    %1911 = vrot.lane.b32.xlu0 %v704, 12
    %v1912 = vpop.permute.xlu0 %1911
    %1913 = vrot.lane.b32.xlu0 %v705, 12
    %v1914 = vpop.permute.xlu0 %1913
    %1915 = vrot.lane.b32.xlu0 %v706, 12
    %v1916 = vpop.permute.xlu0 %1915
    %1917 = vrot.lane.b32.xlu0 %v707, 12
    %v1918 = vpop.permute.xlu0 %1917
    %1919 = vrot.lane.b32.xlu0 %v708, 12
    %v1920 = vpop.permute.xlu0 %1919
    %1921 = vrot.lane.b32.xlu0 %v709, 12
    %v1922 = vpop.permute.xlu0 %1921
    %1923 = vrot.lane.b32.xlu0 %v710, 12
    %v1924 = vpop.permute.xlu0 %1923
    %1925 = vrot.lane.b32.xlu0 %v711, 12
    %v1926 = vpop.permute.xlu0 %1925
    %1927 = vrot.lane.b32.xlu0 %v712, 12
    %v1928 = vpop.permute.xlu0 %1927
    %1929 = vrot.lane.b32.xlu0 %v713, 12
    %v1930 = vpop.permute.xlu0 %1929
    %2059 = vrot.lane.b32.xlu0 %v714, 15
    %v2060 = vpop.permute.xlu0 %2059
    %2061 = vrot.lane.b32.xlu0 %v715, 15
    %v2062 = vpop.permute.xlu0 %2061
    %2063 = vrot.lane.b32.xlu0 %v716, 15
    %v2064 = vpop.permute.xlu0 %2063
    %2065 = vrot.lane.b32.xlu0 %v717, 15
    %v2066 = vpop.permute.xlu0 %2065
    %2067 = vrot.lane.b32.xlu0 %v718, 15
    %v2068 = vpop.permute.xlu0 %2067
    %2069 = vrot.lane.b32.xlu0 %v719, 15
    %v2070 = vpop.permute.xlu0 %2069
    %2071 = vrot.lane.b32.xlu0 %v720, 15
    %v2072 = vpop.permute.xlu0 %2071
    %2073 = vrot.lane.b32.xlu0 %v721, 15
    %v2074 = vpop.permute.xlu0 %2073
    %2075 = vrot.lane.b32.xlu0 %v722, 15
    %v2076 = vpop.permute.xlu0 %2075
    %2077 = vrot.lane.b32.xlu0 %v723, 15
    %v2078 = vpop.permute.xlu0 %2077
    %2079 = vrot.lane.b32.xlu0 %v724, 15
    %v2080 = vpop.permute.xlu0 %2079
    %2081 = vrot.lane.b32.xlu0 %v725, 15
    %v2082 = vpop.permute.xlu0 %2081
    %2083 = vrot.lane.b32.xlu0 %v726, 15
    %v2084 = vpop.permute.xlu0 %2083
    %2085 = vrot.lane.b32.xlu0 %v727, 15
    %v2086 = vpop.permute.xlu0 %2085
    %2087 = vrot.lane.b32.xlu0 %v728, 15
    %v2088 = vpop.permute.xlu0 %2087
    %2089 = vrot.lane.b32.xlu0 %v729, 15
    %v2090 = vpop.permute.xlu0 %2089
    %2091 = vrot.lane.b32.xlu0 %v730, 15
    %v2092 = vpop.permute.xlu0 %2091
    %2093 = vrot.lane.b32.xlu0 %v731, 15
    %v2094 = vpop.permute.xlu0 %2093
    %2095 = vrot.lane.b32.xlu0 %v732, 15
    %v2096 = vpop.permute.xlu0 %2095
    %2097 = vrot.lane.b32.xlu0 %v733, 15
    %v2098 = vpop.permute.xlu0 %2097
    %2099 = vrot.lane.b32.xlu0 %v734, 15
    %v2100 = vpop.permute.xlu0 %2099
    %2101 = vrot.lane.b32.xlu0 %v735, 15
    %v2102 = vpop.permute.xlu0 %2101
    %2103 = vrot.lane.b32.xlu0 %v736, 15
    %v2104 = vpop.permute.xlu0 %2103
    %2105 = vrot.lane.b32.xlu0 %v737, 15
    %v2106 = vpop.permute.xlu0 %2105
    %2107 = vrot.lane.b32.xlu0 %v738, 15
    %v2108 = vpop.permute.xlu0 %2107
    %2109 = vrot.lane.b32.xlu0 %v739, 15
    %v2110 = vpop.permute.xlu0 %2109
    %2111 = vrot.lane.b32.xlu0 %v740, 15
    %v2112 = vpop.permute.xlu0 %2111
    %2113 = vrot.lane.b32.xlu0 %v741, 15
    %v2114 = vpop.permute.xlu0 %2113
    %2115 = vrot.lane.b32.xlu0 %v742, 15
    %v2116 = vpop.permute.xlu0 %2115
    %2117 = vrot.lane.b32.xlu0 %v743, 15
    %v2118 = vpop.permute.xlu0 %2117
    %2119 = vrot.lane.b32.xlu0 %v744, 15
    %v2120 = vpop.permute.xlu0 %2119
    %2121 = vrot.lane.b32.xlu0 %v745, 15
    %v2122 = vpop.permute.xlu0 %2121
    %2123 = vrot.lane.b32.xlu0 %v746, 15
    %v2124 = vpop.permute.xlu0 %2123
    %2125 = vrot.lane.b32.xlu0 %v747, 15
    %v2126 = vpop.permute.xlu0 %2125
    %2127 = vrot.lane.b32.xlu0 %v748, 15
    %v2128 = vpop.permute.xlu0 %2127
    %2129 = vrot.lane.b32.xlu0 %v749, 15
    %v2130 = vpop.permute.xlu0 %2129
    %2131 = vrot.lane.b32.xlu0 %v750, 15
    %v2132 = vpop.permute.xlu0 %2131
    %2133 = vrot.lane.b32.xlu0 %v751, 15
    %v2134 = vpop.permute.xlu0 %2133
    %2135 = vrot.lane.b32.xlu0 %v752, 15
    %v2136 = vpop.permute.xlu0 %2135
    %2137 = vrot.lane.b32.xlu0 %v753, 15
    %v2138 = vpop.permute.xlu0 %2137
    %2139 = vrot.lane.b32.xlu0 %v754, 15
    %v2140 = vpop.permute.xlu0 %2139
    %2141 = vrot.lane.b32.xlu0 %v755, 15
    %v2142 = vpop.permute.xlu0 %2141
    %2143 = vrot.lane.b32.xlu0 %v756, 15
    %v2144 = vpop.permute.xlu0 %2143
    %2145 = vrot.lane.b32.xlu0 %v757, 15
    %v2146 = vpop.permute.xlu0 %2145
    %2147 = vrot.lane.b32.xlu0 %v758, 15
    %v2148 = vpop.permute.xlu0 %2147
    %2149 = vrot.lane.b32.xlu0 %v759, 15
    %v2150 = vpop.permute.xlu0 %2149
    %2151 = vrot.lane.b32.xlu0 %v760, 15
    %v2152 = vpop.permute.xlu0 %2151
    %2153 = vrot.lane.b32.xlu0 %v761, 15
    %v2154 = vpop.permute.xlu0 %2153
    %2155 = vrot.lane.b32.xlu0 %v762, 15
    %v2156 = vpop.permute.xlu0 %2155
    %2157 = vrot.lane.b32.xlu0 %v763, 15
    %v2158 = vpop.permute.xlu0 %2157
    %2159 = vrot.lane.b32.xlu0 %v764, 15
    %v2160 = vpop.permute.xlu0 %2159
    %2161 = vrot.lane.b32.xlu0 %v765, 15
    %v2162 = vpop.permute.xlu0 %2161
    %2163 = vrot.lane.b32.xlu0 %v766, 15
    %v2164 = vpop.permute.xlu0 %2163
    %2165 = vrot.lane.b32.xlu0 %v767, 15
    %v2166 = vpop.permute.xlu0 %2165
    %2167 = vrot.lane.b32.xlu0 %v768, 15
    %v2168 = vpop.permute.xlu0 %2167
    %2169 = vrot.lane.b32.xlu0 %v769, 15
    %v2170 = vpop.permute.xlu0 %2169
    %2171 = vrot.lane.b32.xlu0 %v770, 15
    %v2172 = vpop.permute.xlu0 %2171
    %2173 = vrot.lane.b32.xlu0 %v771, 15
    %v2174 = vpop.permute.xlu0 %2173
    %2175 = vrot.lane.b32.xlu0 %v772, 15
    %v2176 = vpop.permute.xlu0 %2175
    %2177 = vrot.lane.b32.xlu0 %v773, 15
    %v2178 = vpop.permute.xlu0 %2177
    %2179 = vrot.lane.b32.xlu0 %v774, 15
    %v2180 = vpop.permute.xlu0 %2179
    %2181 = vrot.lane.b32.xlu0 %v775, 15
    %v2182 = vpop.permute.xlu0 %2181
    %2183 = vrot.lane.b32.xlu0 %v776, 15
    %v2184 = vpop.permute.xlu0 %2183
    %2185 = vrot.lane.b32.xlu0 %v777, 15
    %v2186 = vpop.permute.xlu0 %2185
    %2315 = vrot.lane.b32.xlu0 %v779, 18
    %v2316 = vpop.permute.xlu0 %2315
    %2317 = vrot.lane.b32.xlu0 %v780, 18
    %v2318 = vpop.permute.xlu0 %2317
    %2319 = vrot.lane.b32.xlu0 %v781, 18
    %v2320 = vpop.permute.xlu0 %2319
    %2321 = vrot.lane.b32.xlu0 %v782, 18
    %v2322 = vpop.permute.xlu0 %2321
    %2323 = vrot.lane.b32.xlu0 %v783, 18
    %v2324 = vpop.permute.xlu0 %2323
    %2325 = vrot.lane.b32.xlu0 %v784, 18
    %v2326 = vpop.permute.xlu0 %2325
    %2327 = vrot.lane.b32.xlu0 %v785, 18
    %v2328 = vpop.permute.xlu0 %2327
    %2329 = vrot.lane.b32.xlu0 %v786, 18
    %v2330 = vpop.permute.xlu0 %2329
    %2331 = vrot.lane.b32.xlu0 %v787, 18
    %v2332 = vpop.permute.xlu0 %2331
    %2333 = vrot.lane.b32.xlu0 %v788, 18
    %v2334 = vpop.permute.xlu0 %2333
    %2335 = vrot.lane.b32.xlu0 %v789, 18
    %v2336 = vpop.permute.xlu0 %2335
    %2337 = vrot.lane.b32.xlu0 %v790, 18
    %v2338 = vpop.permute.xlu0 %2337
    %2339 = vrot.lane.b32.xlu0 %v791, 18
    %v2340 = vpop.permute.xlu0 %2339
    %2341 = vrot.lane.b32.xlu0 %v792, 18
    %v2342 = vpop.permute.xlu0 %2341
    %2343 = vrot.lane.b32.xlu0 %v793, 18
    %v2344 = vpop.permute.xlu0 %2343
    %2345 = vrot.lane.b32.xlu0 %v794, 18
    %v2346 = vpop.permute.xlu0 %2345
    %2347 = vrot.lane.b32.xlu0 %v795, 18
    %v2348 = vpop.permute.xlu0 %2347
    %2349 = vrot.lane.b32.xlu0 %v796, 18
    %v2350 = vpop.permute.xlu0 %2349
    %2351 = vrot.lane.b32.xlu0 %v797, 18
    %v2352 = vpop.permute.xlu0 %2351
    %2353 = vrot.lane.b32.xlu0 %v798, 18
    %v2354 = vpop.permute.xlu0 %2353
    %2355 = vrot.lane.b32.xlu0 %v799, 18
    %v2356 = vpop.permute.xlu0 %2355
    %2357 = vrot.lane.b32.xlu0 %v800, 18
    %v2358 = vpop.permute.xlu0 %2357
    %2359 = vrot.lane.b32.xlu0 %v801, 18
    %v2360 = vpop.permute.xlu0 %2359
    %2361 = vrot.lane.b32.xlu0 %v802, 18
    %v2362 = vpop.permute.xlu0 %2361
    %2363 = vrot.lane.b32.xlu0 %v803, 18
    %v2364 = vpop.permute.xlu0 %2363
    %2365 = vrot.lane.b32.xlu0 %v804, 18
    %v2366 = vpop.permute.xlu0 %2365
    %2367 = vrot.lane.b32.xlu0 %v805, 18
    %v2368 = vpop.permute.xlu0 %2367
    %2369 = vrot.lane.b32.xlu0 %v806, 18
    %v2370 = vpop.permute.xlu0 %2369
    %2371 = vrot.lane.b32.xlu0 %v807, 18
    %v2372 = vpop.permute.xlu0 %2371
    %2373 = vrot.lane.b32.xlu0 %v808, 18
    %v2374 = vpop.permute.xlu0 %2373
    %2375 = vrot.lane.b32.xlu0 %v809, 18
    %v2376 = vpop.permute.xlu0 %2375
    %2377 = vrot.lane.b32.xlu0 %v810, 18
    %v2378 = vpop.permute.xlu0 %2377
    %2379 = vrot.lane.b32.xlu0 %v811, 18
    %v2380 = vpop.permute.xlu0 %2379
    %2381 = vrot.lane.b32.xlu0 %v812, 18
    %v2382 = vpop.permute.xlu0 %2381
    %2383 = vrot.lane.b32.xlu0 %v813, 18
    %v2384 = vpop.permute.xlu0 %2383
    %2385 = vrot.lane.b32.xlu0 %v814, 18
    %v2386 = vpop.permute.xlu0 %2385
    %2387 = vrot.lane.b32.xlu0 %v815, 18
    %v2388 = vpop.permute.xlu0 %2387
    %2389 = vrot.lane.b32.xlu0 %v816, 18
    %v2390 = vpop.permute.xlu0 %2389
    %2391 = vrot.lane.b32.xlu0 %v817, 18
    %v2392 = vpop.permute.xlu0 %2391
    %2393 = vrot.lane.b32.xlu0 %v818, 18
    %v2394 = vpop.permute.xlu0 %2393
    %2395 = vrot.lane.b32.xlu0 %v819, 18
    %v2396 = vpop.permute.xlu0 %2395
    %2397 = vrot.lane.b32.xlu0 %v820, 18
    %v2398 = vpop.permute.xlu0 %2397
    %2399 = vrot.lane.b32.xlu0 %v821, 18
    %v2400 = vpop.permute.xlu0 %2399
    %2401 = vrot.lane.b32.xlu0 %v822, 18
    %v2402 = vpop.permute.xlu0 %2401
    %2403 = vrot.lane.b32.xlu0 %v823, 18
    %v2404 = vpop.permute.xlu0 %2403
    %2405 = vrot.lane.b32.xlu0 %v824, 18
    %v2406 = vpop.permute.xlu0 %2405
    %2407 = vrot.lane.b32.xlu0 %v825, 18
    %v2408 = vpop.permute.xlu0 %2407
    %2409 = vrot.lane.b32.xlu0 %v826, 18
    %v2410 = vpop.permute.xlu0 %2409
    %2411 = vrot.lane.b32.xlu0 %v827, 18
    %v2412 = vpop.permute.xlu0 %2411
    %2413 = vrot.lane.b32.xlu0 %v828, 18
    %v2414 = vpop.permute.xlu0 %2413
    %2415 = vrot.lane.b32.xlu0 %v829, 18
    %v2416 = vpop.permute.xlu0 %2415
    %2417 = vrot.lane.b32.xlu0 %v830, 18
    %v2418 = vpop.permute.xlu0 %2417
    %2419 = vrot.lane.b32.xlu0 %v831, 18
    %v2420 = vpop.permute.xlu0 %2419
    %2421 = vrot.lane.b32.xlu0 %v832, 18
    %v2422 = vpop.permute.xlu0 %2421
    %2423 = vrot.lane.b32.xlu0 %v833, 18
    %v2424 = vpop.permute.xlu0 %2423
    %2425 = vrot.lane.b32.xlu0 %v834, 18
    %v2426 = vpop.permute.xlu0 %2425
    %2427 = vrot.lane.b32.xlu0 %v835, 18
    %v2428 = vpop.permute.xlu0 %2427
    %2429 = vrot.lane.b32.xlu0 %v836, 18
    %v2430 = vpop.permute.xlu0 %2429
    %2431 = vrot.lane.b32.xlu0 %v837, 18
    %v2432 = vpop.permute.xlu0 %2431
    %2433 = vrot.lane.b32.xlu0 %v838, 18
    %v2434 = vpop.permute.xlu0 %2433
    %2435 = vrot.lane.b32.xlu0 %v839, 18
    %v2436 = vpop.permute.xlu0 %2435
    %2437 = vrot.lane.b32.xlu0 %v840, 18
    %v2438 = vpop.permute.xlu0 %2437
    %2439 = vrot.lane.b32.xlu0 %v841, 18
    %v2440 = vpop.permute.xlu0 %2439
    %2441 = vrot.lane.b32.xlu0 %v842, 18
    %v2442 = vpop.permute.xlu0 %2441
    %2571 = vrot.lane.b32.xlu0 %v843, 21
    %v2572 = vpop.permute.xlu0 %2571
    %2573 = vrot.lane.b32.xlu0 %v844, 21
    %v2574 = vpop.permute.xlu0 %2573
    %2575 = vrot.lane.b32.xlu0 %v845, 21
    %v2576 = vpop.permute.xlu0 %2575
    %2577 = vrot.lane.b32.xlu0 %v846, 21
    %v2578 = vpop.permute.xlu0 %2577
    %2579 = vrot.lane.b32.xlu0 %v847, 21
    %v2580 = vpop.permute.xlu0 %2579
    %2581 = vrot.lane.b32.xlu0 %v848, 21
    %v2582 = vpop.permute.xlu0 %2581
    %2583 = vrot.lane.b32.xlu0 %v849, 21
    %v2584 = vpop.permute.xlu0 %2583
    %2585 = vrot.lane.b32.xlu0 %v850, 21
    %v2586 = vpop.permute.xlu0 %2585
    %2587 = vrot.lane.b32.xlu0 %v851, 21
    %v2588 = vpop.permute.xlu0 %2587
    %2589 = vrot.lane.b32.xlu0 %v852, 21
    %v2590 = vpop.permute.xlu0 %2589
    %2591 = vrot.lane.b32.xlu0 %v853, 21
    %v2592 = vpop.permute.xlu0 %2591
    %2593 = vrot.lane.b32.xlu0 %v854, 21
    %v2594 = vpop.permute.xlu0 %2593
    %2595 = vrot.lane.b32.xlu0 %v855, 21
    %v2596 = vpop.permute.xlu0 %2595
    %2597 = vrot.lane.b32.xlu0 %v856, 21
    %v2598 = vpop.permute.xlu0 %2597
    %2599 = vrot.lane.b32.xlu0 %v857, 21
    %v2600 = vpop.permute.xlu0 %2599
    %2601 = vrot.lane.b32.xlu0 %v858, 21
    %v2602 = vpop.permute.xlu0 %2601
    %2603 = vrot.lane.b32.xlu0 %v859, 21
    %v2604 = vpop.permute.xlu0 %2603
    %2605 = vrot.lane.b32.xlu0 %v860, 21
    %v2606 = vpop.permute.xlu0 %2605
    %2607 = vrot.lane.b32.xlu0 %v861, 21
    %v2608 = vpop.permute.xlu0 %2607
    %2609 = vrot.lane.b32.xlu0 %v862, 21
    %v2610 = vpop.permute.xlu0 %2609
    %2611 = vrot.lane.b32.xlu0 %v863, 21
    %v2612 = vpop.permute.xlu0 %2611
    %2613 = vrot.lane.b32.xlu0 %v864, 21
    %v2614 = vpop.permute.xlu0 %2613
    %2615 = vrot.lane.b32.xlu0 %v865, 21
    %v2616 = vpop.permute.xlu0 %2615
    %2617 = vrot.lane.b32.xlu0 %v866, 21
    %v2618 = vpop.permute.xlu0 %2617
    %2619 = vrot.lane.b32.xlu0 %v867, 21
    %v2620 = vpop.permute.xlu0 %2619
    %2621 = vrot.lane.b32.xlu0 %v868, 21
    %v2622 = vpop.permute.xlu0 %2621
    %2623 = vrot.lane.b32.xlu0 %v869, 21
    %v2624 = vpop.permute.xlu0 %2623
    %2625 = vrot.lane.b32.xlu0 %v870, 21
    %v2626 = vpop.permute.xlu0 %2625
    %2627 = vrot.lane.b32.xlu0 %v871, 21
    %v2628 = vpop.permute.xlu0 %2627
    %2629 = vrot.lane.b32.xlu0 %v872, 21
    %v2630 = vpop.permute.xlu0 %2629
    %2631 = vrot.lane.b32.xlu0 %v873, 21
    %v2632 = vpop.permute.xlu0 %2631
    %2633 = vrot.lane.b32.xlu0 %v874, 21
    %v2634 = vpop.permute.xlu0 %2633
    %2635 = vrot.lane.b32.xlu0 %v875, 21
    %v2636 = vpop.permute.xlu0 %2635
    %2637 = vrot.lane.b32.xlu0 %v876, 21
    %v2638 = vpop.permute.xlu0 %2637
    %2639 = vrot.lane.b32.xlu0 %v877, 21
    %v2640 = vpop.permute.xlu0 %2639
    %2641 = vrot.lane.b32.xlu0 %v878, 21
    %v2642 = vpop.permute.xlu0 %2641
    %2643 = vrot.lane.b32.xlu0 %v879, 21
    %v2644 = vpop.permute.xlu0 %2643
    %2645 = vrot.lane.b32.xlu0 %v880, 21
    %v2646 = vpop.permute.xlu0 %2645
    %2647 = vrot.lane.b32.xlu0 %v881, 21
    %v2648 = vpop.permute.xlu0 %2647
    %2649 = vrot.lane.b32.xlu0 %v882, 21
    %v2650 = vpop.permute.xlu0 %2649
    %2651 = vrot.lane.b32.xlu0 %v883, 21
    %v2652 = vpop.permute.xlu0 %2651
    %2653 = vrot.lane.b32.xlu0 %v884, 21
    %v2654 = vpop.permute.xlu0 %2653
    %2655 = vrot.lane.b32.xlu0 %v885, 21
    %v2656 = vpop.permute.xlu0 %2655
    %2657 = vrot.lane.b32.xlu0 %v886, 21
    %v2658 = vpop.permute.xlu0 %2657
    %2659 = vrot.lane.b32.xlu0 %v887, 21
    %v2660 = vpop.permute.xlu0 %2659
    %2661 = vrot.lane.b32.xlu0 %v888, 21
    %v2662 = vpop.permute.xlu0 %2661
    %2663 = vrot.lane.b32.xlu0 %v889, 21
    %v2664 = vpop.permute.xlu0 %2663
    %2665 = vrot.lane.b32.xlu0 %v890, 21
    %v2666 = vpop.permute.xlu0 %2665
    %2667 = vrot.lane.b32.xlu0 %v891, 21
    %v2668 = vpop.permute.xlu0 %2667
    %2669 = vrot.lane.b32.xlu0 %v892, 21
    %v2670 = vpop.permute.xlu0 %2669
    %2671 = vrot.lane.b32.xlu0 %v893, 21
    %v2672 = vpop.permute.xlu0 %2671
    %2673 = vrot.lane.b32.xlu0 %v894, 21
    %v2674 = vpop.permute.xlu0 %2673
    %2675 = vrot.lane.b32.xlu0 %v895, 21
    %v2676 = vpop.permute.xlu0 %2675
    %2677 = vrot.lane.b32.xlu0 %v896, 21
    %v2678 = vpop.permute.xlu0 %2677
    %2679 = vrot.lane.b32.xlu0 %v897, 21
    %v2680 = vpop.permute.xlu0 %2679
    %2681 = vrot.lane.b32.xlu0 %v898, 21
    %v2682 = vpop.permute.xlu0 %2681
    %2683 = vrot.lane.b32.xlu0 %v899, 21
    %v2684 = vpop.permute.xlu0 %2683
    %2685 = vrot.lane.b32.xlu0 %v900, 21
    %v2686 = vpop.permute.xlu0 %2685
    %2687 = vrot.lane.b32.xlu0 %v901, 21
    %v2688 = vpop.permute.xlu0 %2687
    %2689 = vrot.lane.b32.xlu0 %v902, 21
    %v2690 = vpop.permute.xlu0 %2689
    %2691 = vrot.lane.b32.xlu0 %v903, 21
    %v2692 = vpop.permute.xlu0 %2691
    %2693 = vrot.lane.b32.xlu0 %v904, 21
    %v2694 = vpop.permute.xlu0 %2693
    %2695 = vrot.lane.b32.xlu0 %v905, 21
    %v2696 = vpop.permute.xlu0 %2695
    %2697 = vrot.lane.b32.xlu0 %v906, 21
    %v2698 = vpop.permute.xlu0 %2697
    %2827 = vrot.lane.b32.xlu0 %v907, 24
    %v2828 = vpop.permute.xlu0 %2827
    %2829 = vrot.lane.b32.xlu0 %v908, 24
    %v2830 = vpop.permute.xlu0 %2829
    %2831 = vrot.lane.b32.xlu0 %v909, 24
    %v2832 = vpop.permute.xlu0 %2831
    %2833 = vrot.lane.b32.xlu0 %v910, 24
    %v2834 = vpop.permute.xlu0 %2833
    %2835 = vrot.lane.b32.xlu0 %v911, 24
    %v2836 = vpop.permute.xlu0 %2835
    %2837 = vrot.lane.b32.xlu0 %v912, 24
    %v2838 = vpop.permute.xlu0 %2837
    %2839 = vrot.lane.b32.xlu0 %v913, 24
    %v2840 = vpop.permute.xlu0 %2839
    %2841 = vrot.lane.b32.xlu0 %v914, 24
    %v2842 = vpop.permute.xlu0 %2841
    %2843 = vrot.lane.b32.xlu0 %v915, 24
    %v2844 = vpop.permute.xlu0 %2843
    %2845 = vrot.lane.b32.xlu0 %v916, 24
    %v2846 = vpop.permute.xlu0 %2845
    %2847 = vrot.lane.b32.xlu0 %v917, 24
    %v2848 = vpop.permute.xlu0 %2847
    %2849 = vrot.lane.b32.xlu0 %v918, 24
    %v2850 = vpop.permute.xlu0 %2849
    %2851 = vrot.lane.b32.xlu0 %v919, 24
    %v2852 = vpop.permute.xlu0 %2851
    %2853 = vrot.lane.b32.xlu0 %v920, 24
    %v2854 = vpop.permute.xlu0 %2853
    %2855 = vrot.lane.b32.xlu0 %v921, 24
    %v2856 = vpop.permute.xlu0 %2855
    %2857 = vrot.lane.b32.xlu0 %v922, 24
    %v2858 = vpop.permute.xlu0 %2857
    %2859 = vrot.lane.b32.xlu0 %v923, 24
    %v2860 = vpop.permute.xlu0 %2859
    %2861 = vrot.lane.b32.xlu0 %v924, 24
    %v2862 = vpop.permute.xlu0 %2861
    %2863 = vrot.lane.b32.xlu0 %v925, 24
    %v2864 = vpop.permute.xlu0 %2863
    %2865 = vrot.lane.b32.xlu0 %v926, 24
    %v2866 = vpop.permute.xlu0 %2865
    %2867 = vrot.lane.b32.xlu0 %v927, 24
    %v2868 = vpop.permute.xlu0 %2867
    %2869 = vrot.lane.b32.xlu0 %v928, 24
    %v2870 = vpop.permute.xlu0 %2869
    %2871 = vrot.lane.b32.xlu0 %v929, 24
    %v2872 = vpop.permute.xlu0 %2871
    %2873 = vrot.lane.b32.xlu0 %v930, 24
    %v2874 = vpop.permute.xlu0 %2873
    %2875 = vrot.lane.b32.xlu0 %v931, 24
    %v2876 = vpop.permute.xlu0 %2875
    %2877 = vrot.lane.b32.xlu0 %v932, 24
    %v2878 = vpop.permute.xlu0 %2877
    %2879 = vrot.lane.b32.xlu0 %v933, 24
    %v2880 = vpop.permute.xlu0 %2879
    %2881 = vrot.lane.b32.xlu0 %v934, 24
    %v2882 = vpop.permute.xlu0 %2881
    %2883 = vrot.lane.b32.xlu0 %v935, 24
    %v2884 = vpop.permute.xlu0 %2883
    %2885 = vrot.lane.b32.xlu0 %v936, 24
    %v2886 = vpop.permute.xlu0 %2885
    %2887 = vrot.lane.b32.xlu0 %v937, 24
    %v2888 = vpop.permute.xlu0 %2887
    %2889 = vrot.lane.b32.xlu0 %v938, 24
    %v2890 = vpop.permute.xlu0 %2889
    %2891 = vrot.lane.b32.xlu0 %v939, 24
    %v2892 = vpop.permute.xlu0 %2891
    %2893 = vrot.lane.b32.xlu0 %v940, 24
    %v2894 = vpop.permute.xlu0 %2893
    %2895 = vrot.lane.b32.xlu0 %v941, 24
    %v2896 = vpop.permute.xlu0 %2895
    %2897 = vrot.lane.b32.xlu0 %v942, 24
    %v2898 = vpop.permute.xlu0 %2897
    %2899 = vrot.lane.b32.xlu0 %v943, 24
    %v2900 = vpop.permute.xlu0 %2899
    %2901 = vrot.lane.b32.xlu0 %v944, 24
    %v2902 = vpop.permute.xlu0 %2901
    %2903 = vrot.lane.b32.xlu0 %v945, 24
    %v2904 = vpop.permute.xlu0 %2903
    %2905 = vrot.lane.b32.xlu0 %v946, 24
    %v2906 = vpop.permute.xlu0 %2905
    %2907 = vrot.lane.b32.xlu0 %v947, 24
    %v2908 = vpop.permute.xlu0 %2907
    %2909 = vrot.lane.b32.xlu0 %v948, 24
    %v2910 = vpop.permute.xlu0 %2909
    %2911 = vrot.lane.b32.xlu0 %v949, 24
    %v2912 = vpop.permute.xlu0 %2911
    %2913 = vrot.lane.b32.xlu0 %v950, 24
    %v2914 = vpop.permute.xlu0 %2913
    %2915 = vrot.lane.b32.xlu0 %v951, 24
    %v2916 = vpop.permute.xlu0 %2915
    %2917 = vrot.lane.b32.xlu0 %v952, 24
    %v2918 = vpop.permute.xlu0 %2917
    %2919 = vrot.lane.b32.xlu0 %v953, 24
    %v2920 = vpop.permute.xlu0 %2919
    %2921 = vrot.lane.b32.xlu0 %v954, 24
    %v2922 = vpop.permute.xlu0 %2921
    %2923 = vrot.lane.b32.xlu0 %v955, 24
    %v2924 = vpop.permute.xlu0 %2923
    %2925 = vrot.lane.b32.xlu0 %v956, 24
    %v2926 = vpop.permute.xlu0 %2925
    %2927 = vrot.lane.b32.xlu0 %v957, 24
    %v2928 = vpop.permute.xlu0 %2927
    %2929 = vrot.lane.b32.xlu0 %v958, 24
    %v2930 = vpop.permute.xlu0 %2929
    %2931 = vrot.lane.b32.xlu0 %v959, 24
    %v2932 = vpop.permute.xlu0 %2931
    %2933 = vrot.lane.b32.xlu0 %v960, 24
    %v2934 = vpop.permute.xlu0 %2933
    %2935 = vrot.lane.b32.xlu0 %v961, 24
    %v2936 = vpop.permute.xlu0 %2935
    %2937 = vrot.lane.b32.xlu0 %v962, 24
    %v2938 = vpop.permute.xlu0 %2937
    %2939 = vrot.lane.b32.xlu0 %v963, 24
    %v2940 = vpop.permute.xlu0 %2939
    %2941 = vrot.lane.b32.xlu0 %v964, 24
    %v2942 = vpop.permute.xlu0 %2941
    %2943 = vrot.lane.b32.xlu0 %v965, 24
    %v2944 = vpop.permute.xlu0 %2943
    %2945 = vrot.lane.b32.xlu0 %v966, 24
    %v2946 = vpop.permute.xlu0 %2945
    %2947 = vrot.lane.b32.xlu0 %v967, 24
    %v2948 = vpop.permute.xlu0 %2947
    %2949 = vrot.lane.b32.xlu0 %v968, 24
    %v2950 = vpop.permute.xlu0 %2949
    %2951 = vrot.lane.b32.xlu0 %v969, 24
    %v2952 = vpop.permute.xlu0 %2951
    %2953 = vrot.lane.b32.xlu0 %v970, 24
    %v2954 = vpop.permute.xlu0 %2953
    %v3019 = vsel %vm183, %v394, %v1036
    %v3020 = vsel %vm183, %v395, %v1038
    %v3021 = vsel %vm183, %v396, %v1040
    %v3022 = vsel %vm183, %v397, %v1042
    %v3023 = vsel %vm183, %v398, %v1044
    %v3024 = vsel %vm183, %v399, %v1046
    %v3025 = vsel %vm183, %v400, %v1048
    %v3026 = vsel %vm183, %v401, %v1050
    %v3027 = vsel %vm183, %v402, %v1052
    %v3028 = vsel %vm183, %v403, %v1054
    %v3029 = vsel %vm183, %v404, %v1056
    %v3030 = vsel %vm183, %v405, %v1058
    %v3031 = vsel %vm183, %v406, %v1060
    %v3032 = vsel %vm183, %v407, %v1062
    %v3033 = vsel %vm183, %v408, %v1064
    %v3034 = vsel %vm183, %v409, %v1066
    %v3035 = vsel %vm183, %v410, %v1068
    %v3036 = vsel %vm183, %v411, %v1070
    %v3037 = vsel %vm183, %v412, %v1072
    %v3038 = vsel %vm183, %v413, %v1074
    %v3039 = vsel %vm183, %v414, %v1076
    %v3040 = vsel %vm183, %v415, %v1078
    %v3041 = vsel %vm183, %v416, %v1080
    %v3042 = vsel %vm183, %v417, %v1082
    %v3043 = vsel %vm183, %v418, %v1084
    %v3044 = vsel %vm183, %v419, %v1086
    %v3045 = vsel %vm183, %v420, %v1088
    %v3046 = vsel %vm183, %v421, %v1090
    %v3047 = vsel %vm183, %v422, %v1092
    %v3048 = vsel %vm183, %v423, %v1094
    %v3049 = vsel %vm183, %v424, %v1096
    %v3050 = vsel %vm183, %v425, %v1098
    %v3051 = vsel %vm183, %v426, %v1100
    %v3052 = vsel %vm183, %v427, %v1102
    %v3053 = vsel %vm183, %v428, %v1104
    %v3054 = vsel %vm183, %v429, %v1106
    %v3055 = vsel %vm183, %v430, %v1108
    %v3056 = vsel %vm183, %v431, %v1110
    %v3057 = vsel %vm183, %v432, %v1112
    %v3058 = vsel %vm183, %v433, %v1114
    %v3059 = vsel %vm183, %v434, %v1116
    %v3060 = vsel %vm183, %v435, %v1118
    %v3061 = vsel %vm183, %v436, %v1120
    %v3062 = vsel %vm183, %v437, %v1122
    %v3063 = vsel %vm183, %v438, %v1124
    %v3064 = vsel %vm183, %v439, %v1126
    %v3065 = vsel %vm183, %v440, %v1128
    %v3066 = vsel %vm183, %v441, %v1130
    %v3067 = vsel %vm183, %v442, %v1132
    %v3068 = vsel %vm183, %v443, %v1134
    %v3069 = vsel %vm183, %v444, %v1136
    %v3070 = vsel %vm183, %v445, %v1138
    %v3071 = vsel %vm183, %v446, %v1140
    %v3072 = vsel %vm183, %v447, %v1142
    %v3073 = vsel %vm183, %v448, %v1144
    %v3074 = vsel %vm183, %v449, %v1146
    %v3075 = vsel %vm183, %v450, %v1148
    %v3076 = vsel %vm183, %v451, %v1150
    %v3077 = vsel %vm183, %v452, %v1152
    %v3078 = vsel %vm183, %v453, %v1154
    %v3079 = vsel %vm183, %v454, %v1156
    %v3080 = vsel %vm183, %v455, %v1158
    %v3081 = vsel %vm183, %v456, %v1160
    %v3082 = vsel %vm183, %v457, %v1162
    %vm3083 = vcmask 48128
    %v3084 = vsel %vm3083, %v3019, %v1292
    %v3085 = vsel %vm3083, %v3020, %v1294
    %v3086 = vsel %vm3083, %v3021, %v1296
    %v3087 = vsel %vm3083, %v3022, %v1298
    %v3088 = vsel %vm3083, %v3023, %v1300
    %v3089 = vsel %vm3083, %v3024, %v1302
    %v3090 = vsel %vm3083, %v3025, %v1304
    %v3091 = vsel %vm3083, %v3026, %v1306
    %v3092 = vsel %vm3083, %v3027, %v1308
    %v3093 = vsel %vm3083, %v3028, %v1310
    %v3094 = vsel %vm3083, %v3029, %v1312
    %v3095 = vsel %vm3083, %v3030, %v1314
    %v3096 = vsel %vm3083, %v3031, %v1316
    %v3097 = vsel %vm3083, %v3032, %v1318
    %v3098 = vsel %vm3083, %v3033, %v1320
    %v3099 = vsel %vm3083, %v3034, %v1322
    %v3100 = vsel %vm3083, %v3035, %v1324
    %v3101 = vsel %vm3083, %v3036, %v1326
    %v3102 = vsel %vm3083, %v3037, %v1328
    %v3103 = vsel %vm3083, %v3038, %v1330
    %v3104 = vsel %vm3083, %v3039, %v1332
    %v3105 = vsel %vm3083, %v3040, %v1334
    %v3106 = vsel %vm3083, %v3041, %v1336
    %v3107 = vsel %vm3083, %v3042, %v1338
    %v3108 = vsel %vm3083, %v3043, %v1340
    %v3109 = vsel %vm3083, %v3044, %v1342
    %v3110 = vsel %vm3083, %v3045, %v1344
    %v3111 = vsel %vm3083, %v3046, %v1346
    %v3112 = vsel %vm3083, %v3047, %v1348
    %v3113 = vsel %vm3083, %v3048, %v1350
    %v3114 = vsel %vm3083, %v3049, %v1352
    %v3115 = vsel %vm3083, %v3050, %v1354
    %v3116 = vsel %vm3083, %v3051, %v1356
    %v3117 = vsel %vm3083, %v3052, %v1358
    %v3118 = vsel %vm3083, %v3053, %v1360
    %v3119 = vsel %vm3083, %v3054, %v1362
    %v3120 = vsel %vm3083, %v3055, %v1364
    %v3121 = vsel %vm3083, %v3056, %v1366
    %v3122 = vsel %vm3083, %v3057, %v1368
    %v3123 = vsel %vm3083, %v3058, %v1370
    %v3124 = vsel %vm3083, %v3059, %v1372
    %v3125 = vsel %vm3083, %v3060, %v1374
    %v3126 = vsel %vm3083, %v3061, %v1376
    %v3127 = vsel %vm3083, %v3062, %v1378
    %v3128 = vsel %vm3083, %v3063, %v1380
    %v3129 = vsel %vm3083, %v3064, %v1382
    %v3130 = vsel %vm3083, %v3065, %v1384
    %v3131 = vsel %vm3083, %v3066, %v1386
    %v3132 = vsel %vm3083, %v3067, %v1388
    %v3133 = vsel %vm3083, %v3068, %v1390
    %v3134 = vsel %vm3083, %v3069, %v1392
    %v3135 = vsel %vm3083, %v3070, %v1394
    %v3136 = vsel %vm3083, %v3071, %v1396
    %v3137 = vsel %vm3083, %v3072, %v1398
    %v3138 = vsel %vm3083, %v3073, %v1400
    %v3139 = vsel %vm3083, %v3074, %v1402
    %v3140 = vsel %vm3083, %v3075, %v1404
    %v3141 = vsel %vm3083, %v3076, %v1406
    %v3142 = vsel %vm3083, %v3077, %v1408
    %v3143 = vsel %vm3083, %v3078, %v1410
    %v3144 = vsel %vm3083, %v3079, %v1412
    %v3145 = vsel %vm3083, %v3080, %v1414
    %v3146 = vsel %vm3083, %v3081, %v1416
    %v3147 = vsel %vm3083, %v3082, %v1418
    %vm3148 = vcmask 72704
    %v3149 = vsel %vm3148, %v3084, %v1548
    %v3150 = vsel %vm3148, %v3085, %v1550
    %v3151 = vsel %vm3148, %v3086, %v1552
    %v3152 = vsel %vm3148, %v3087, %v1554
    %v3153 = vsel %vm3148, %v3088, %v1556
    %v3154 = vsel %vm3148, %v3089, %v1558
    %v3155 = vsel %vm3148, %v3090, %v1560
    %v3156 = vsel %vm3148, %v3091, %v1562
    %v3157 = vsel %vm3148, %v3092, %v1564
    %v3158 = vsel %vm3148, %v3093, %v1566
    %v3159 = vsel %vm3148, %v3094, %v1568
    %v3160 = vsel %vm3148, %v3095, %v1570
    %v3161 = vsel %vm3148, %v3096, %v1572
    %v3162 = vsel %vm3148, %v3097, %v1574
    %v3163 = vsel %vm3148, %v3098, %v1576
    %v3164 = vsel %vm3148, %v3099, %v1578
    %v3165 = vsel %vm3148, %v3100, %v1580
    %v3166 = vsel %vm3148, %v3101, %v1582
    %v3167 = vsel %vm3148, %v3102, %v1584
    %v3168 = vsel %vm3148, %v3103, %v1586
    %v3169 = vsel %vm3148, %v3104, %v1588
    %v3170 = vsel %vm3148, %v3105, %v1590
    %v3171 = vsel %vm3148, %v3106, %v1592
    %v3172 = vsel %vm3148, %v3107, %v1594
    %v3173 = vsel %vm3148, %v3108, %v1596
    %v3174 = vsel %vm3148, %v3109, %v1598
    %v3175 = vsel %vm3148, %v3110, %v1600
    %v3176 = vsel %vm3148, %v3111, %v1602
    %v3177 = vsel %vm3148, %v3112, %v1604
    %v3178 = vsel %vm3148, %v3113, %v1606
    %v3179 = vsel %vm3148, %v3114, %v1608
    %v3180 = vsel %vm3148, %v3115, %v1610
    %v3181 = vsel %vm3148, %v3116, %v1612
    %v3182 = vsel %vm3148, %v3117, %v1614
    %v3183 = vsel %vm3148, %v3118, %v1616
    %v3184 = vsel %vm3148, %v3119, %v1618
    %v3185 = vsel %vm3148, %v3120, %v1620
    %v3186 = vsel %vm3148, %v3121, %v1622
    %v3187 = vsel %vm3148, %v3122, %v1624
    %v3188 = vsel %vm3148, %v3123, %v1626
    %v3189 = vsel %vm3148, %v3124, %v1628
    %v3190 = vsel %vm3148, %v3125, %v1630
    %v3191 = vsel %vm3148, %v3126, %v1632
    %v3192 = vsel %vm3148, %v3127, %v1634
    %v3193 = vsel %vm3148, %v3128, %v1636
    %v3194 = vsel %vm3148, %v3129, %v1638
    %v3195 = vsel %vm3148, %v3130, %v1640
    %v3196 = vsel %vm3148, %v3131, %v1642
    %v3197 = vsel %vm3148, %v3132, %v1644
    %v3198 = vsel %vm3148, %v3133, %v1646
    %v3199 = vsel %vm3148, %v3134, %v1648
    %v3200 = vsel %vm3148, %v3135, %v1650
    %v3201 = vsel %vm3148, %v3136, %v1652
    %v3202 = vsel %vm3148, %v3137, %v1654
    %v3203 = vsel %vm3148, %v3138, %v1656
    %v3204 = vsel %vm3148, %v3139, %v1658
    %v3205 = vsel %vm3148, %v3140, %v1660
    %v3206 = vsel %vm3148, %v3141, %v1662
    %v3207 = vsel %vm3148, %v3142, %v1664
    %v3208 = vsel %vm3148, %v3143, %v1666
    %v3209 = vsel %vm3148, %v3144, %v1668
    %v3210 = vsel %vm3148, %v3145, %v1670
    %v3211 = vsel %vm3148, %v3146, %v1672
    %v3212 = vsel %vm3148, %v3147, %v1674
    %vm3213 = vcmask 97280
    %v3214 = vsel %vm3213, %v3149, %v1804
    %v3215 = vsel %vm3213, %v3150, %v1806
    %v3216 = vsel %vm3213, %v3151, %v1808
    %v3217 = vsel %vm3213, %v3152, %v1810
    %v3218 = vsel %vm3213, %v3153, %v1812
    %v3219 = vsel %vm3213, %v3154, %v1814
    %v3220 = vsel %vm3213, %v3155, %v1816
    %v3221 = vsel %vm3213, %v3156, %v1818
    %v3222 = vsel %vm3213, %v3157, %v1820
    %v3223 = vsel %vm3213, %v3158, %v1822
    %v3224 = vsel %vm3213, %v3159, %v1824
    %v3225 = vsel %vm3213, %v3160, %v1826
    %v3226 = vsel %vm3213, %v3161, %v1828
    %v3227 = vsel %vm3213, %v3162, %v1830
    %v3228 = vsel %vm3213, %v3163, %v1832
    %v3229 = vsel %vm3213, %v3164, %v1834
    %v3230 = vsel %vm3213, %v3165, %v1836
    %v3231 = vsel %vm3213, %v3166, %v1838
    %v3232 = vsel %vm3213, %v3167, %v1840
    %v3233 = vsel %vm3213, %v3168, %v1842
    %v3234 = vsel %vm3213, %v3169, %v1844
    %v3235 = vsel %vm3213, %v3170, %v1846
    %v3236 = vsel %vm3213, %v3171, %v1848
    %v3237 = vsel %vm3213, %v3172, %v1850
    %v3238 = vsel %vm3213, %v3173, %v1852
    %v3239 = vsel %vm3213, %v3174, %v1854
    %v3240 = vsel %vm3213, %v3175, %v1856
    %v3241 = vsel %vm3213, %v3176, %v1858
    %v3242 = vsel %vm3213, %v3177, %v1860
    %v3243 = vsel %vm3213, %v3178, %v1862
    %v3244 = vsel %vm3213, %v3179, %v1864
    %v3245 = vsel %vm3213, %v3180, %v1866
    %v3246 = vsel %vm3213, %v3181, %v1868
    %v3247 = vsel %vm3213, %v3182, %v1870
    %v3248 = vsel %vm3213, %v3183, %v1872
    %v3249 = vsel %vm3213, %v3184, %v1874
    %v3250 = vsel %vm3213, %v3185, %v1876
    %v3251 = vsel %vm3213, %v3186, %v1878
    %v3252 = vsel %vm3213, %v3187, %v1880
    %v3253 = vsel %vm3213, %v3188, %v1882
    %v3254 = vsel %vm3213, %v3189, %v1884
    %v3255 = vsel %vm3213, %v3190, %v1886
    %v3256 = vsel %vm3213, %v3191, %v1888
    %v3257 = vsel %vm3213, %v3192, %v1890
    %v3258 = vsel %vm3213, %v3193, %v1892
    %v3259 = vsel %vm3213, %v3194, %v1894
    %v3260 = vsel %vm3213, %v3195, %v1896
    %v3261 = vsel %vm3213, %v3196, %v1898
    %v3262 = vsel %vm3213, %v3197, %v1900
    %v3263 = vsel %vm3213, %v3198, %v1902
    %v3264 = vsel %vm3213, %v3199, %v1904
    %v3265 = vsel %vm3213, %v3200, %v1906
    %v3266 = vsel %vm3213, %v3201, %v1908
    %v3267 = vsel %vm3213, %v3202, %v1910
    %v3268 = vsel %vm3213, %v3203, %v1912
    %v3269 = vsel %vm3213, %v3204, %v1914
    %v3270 = vsel %vm3213, %v3205, %v1916
    %v3271 = vsel %vm3213, %v3206, %v1918
    %v3272 = vsel %vm3213, %v3207, %v1920
    %v3273 = vsel %vm3213, %v3208, %v1922
    %v3274 = vsel %vm3213, %v3209, %v1924
    %v3275 = vsel %vm3213, %v3210, %v1926
    %v3276 = vsel %vm3213, %v3211, %v1928
    %v3277 = vsel %vm3213, %v3212, %v1930
    %vm3278 = vcmask 121856
    %v3279 = vsel %vm3278, %v3214, %v2060
    %v3280 = vsel %vm3278, %v3215, %v2062
    %v3281 = vsel %vm3278, %v3216, %v2064
    %v3282 = vsel %vm3278, %v3217, %v2066
    %v3283 = vsel %vm3278, %v3218, %v2068
    %v3284 = vsel %vm3278, %v3219, %v2070
    %v3285 = vsel %vm3278, %v3220, %v2072
    %v3286 = vsel %vm3278, %v3221, %v2074
    %v3287 = vsel %vm3278, %v3222, %v2076
    %v3288 = vsel %vm3278, %v3223, %v2078
    %v3289 = vsel %vm3278, %v3224, %v2080
    %v3290 = vsel %vm3278, %v3225, %v2082
    %v3291 = vsel %vm3278, %v3226, %v2084
    %v3292 = vsel %vm3278, %v3227, %v2086
    %v3293 = vsel %vm3278, %v3228, %v2088
    %v3294 = vsel %vm3278, %v3229, %v2090
    %v3295 = vsel %vm3278, %v3230, %v2092
    %v3296 = vsel %vm3278, %v3231, %v2094
    %v3297 = vsel %vm3278, %v3232, %v2096
    %v3298 = vsel %vm3278, %v3233, %v2098
    %v3299 = vsel %vm3278, %v3234, %v2100
    %v3300 = vsel %vm3278, %v3235, %v2102
    %v3301 = vsel %vm3278, %v3236, %v2104
    %v3302 = vsel %vm3278, %v3237, %v2106
    %v3303 = vsel %vm3278, %v3238, %v2108
    %v3304 = vsel %vm3278, %v3239, %v2110
    %v3305 = vsel %vm3278, %v3240, %v2112
    %v3306 = vsel %vm3278, %v3241, %v2114
    %v3307 = vsel %vm3278, %v3242, %v2116
    %v3308 = vsel %vm3278, %v3243, %v2118
    %v3309 = vsel %vm3278, %v3244, %v2120
    %v3310 = vsel %vm3278, %v3245, %v2122
    %v3311 = vsel %vm3278, %v3246, %v2124
    %v3312 = vsel %vm3278, %v3247, %v2126
    %v3313 = vsel %vm3278, %v3248, %v2128
    %v3314 = vsel %vm3278, %v3249, %v2130
    %v3315 = vsel %vm3278, %v3250, %v2132
    %v3316 = vsel %vm3278, %v3251, %v2134
    %v3317 = vsel %vm3278, %v3252, %v2136
    %v3318 = vsel %vm3278, %v3253, %v2138
    %v3319 = vsel %vm3278, %v3254, %v2140
    %v3320 = vsel %vm3278, %v3255, %v2142
    %v3321 = vsel %vm3278, %v3256, %v2144
    %v3322 = vsel %vm3278, %v3257, %v2146
    %v3323 = vsel %vm3278, %v3258, %v2148
    %v3324 = vsel %vm3278, %v3259, %v2150
    %v3325 = vsel %vm3278, %v3260, %v2152
    %v3326 = vsel %vm3278, %v3261, %v2154
    %v3327 = vsel %vm3278, %v3262, %v2156
    %v3328 = vsel %vm3278, %v3263, %v2158
    %v3329 = vsel %vm3278, %v3264, %v2160
    %v3330 = vsel %vm3278, %v3265, %v2162
    %v3331 = vsel %vm3278, %v3266, %v2164
    %v3332 = vsel %vm3278, %v3267, %v2166
    %v3333 = vsel %vm3278, %v3268, %v2168
    %v3334 = vsel %vm3278, %v3269, %v2170
    %v3335 = vsel %vm3278, %v3270, %v2172
    %v3336 = vsel %vm3278, %v3271, %v2174
    %v3337 = vsel %vm3278, %v3272, %v2176
    %v3338 = vsel %vm3278, %v3273, %v2178
    %v3339 = vsel %vm3278, %v3274, %v2180
    %v3340 = vsel %vm3278, %v3275, %v2182
    %v3341 = vsel %vm3278, %v3276, %v2184
    %v3342 = vsel %vm3278, %v3277, %v2186
    %vm3343 = vcmask 146432
    %v3344 = vsel %vm3343, %v3279, %v2316
    %v3345 = vsel %vm3343, %v3280, %v2318
    %v3346 = vsel %vm3343, %v3281, %v2320
    %v3347 = vsel %vm3343, %v3282, %v2322
    %v3348 = vsel %vm3343, %v3283, %v2324
    %v3349 = vsel %vm3343, %v3284, %v2326
    %v3350 = vsel %vm3343, %v3285, %v2328
    %v3351 = vsel %vm3343, %v3286, %v2330
    %v3352 = vsel %vm3343, %v3287, %v2332
    %v3353 = vsel %vm3343, %v3288, %v2334
    %v3354 = vsel %vm3343, %v3289, %v2336
    %v3355 = vsel %vm3343, %v3290, %v2338
    %v3356 = vsel %vm3343, %v3291, %v2340
    %v3357 = vsel %vm3343, %v3292, %v2342
    %v3358 = vsel %vm3343, %v3293, %v2344
    %v3359 = vsel %vm3343, %v3294, %v2346
    %v3360 = vsel %vm3343, %v3295, %v2348
    %v3361 = vsel %vm3343, %v3296, %v2350
    %v3362 = vsel %vm3343, %v3297, %v2352
    %v3363 = vsel %vm3343, %v3298, %v2354
    %v3364 = vsel %vm3343, %v3299, %v2356
    %v3365 = vsel %vm3343, %v3300, %v2358
    %v3366 = vsel %vm3343, %v3301, %v2360
    %v3367 = vsel %vm3343, %v3302, %v2362
    %v3368 = vsel %vm3343, %v3303, %v2364
    %v3369 = vsel %vm3343, %v3304, %v2366
    %v3370 = vsel %vm3343, %v3305, %v2368
    %v3371 = vsel %vm3343, %v3306, %v2370
    %v3372 = vsel %vm3343, %v3307, %v2372
    %v3373 = vsel %vm3343, %v3308, %v2374
    %v3374 = vsel %vm3343, %v3309, %v2376
    %v3375 = vsel %vm3343, %v3310, %v2378
    %v3376 = vsel %vm3343, %v3311, %v2380
    %v3377 = vsel %vm3343, %v3312, %v2382
    %v3378 = vsel %vm3343, %v3313, %v2384
    %v3379 = vsel %vm3343, %v3314, %v2386
    %v3380 = vsel %vm3343, %v3315, %v2388
    %v3381 = vsel %vm3343, %v3316, %v2390
    %v3382 = vsel %vm3343, %v3317, %v2392
    %v3383 = vsel %vm3343, %v3318, %v2394
    %v3384 = vsel %vm3343, %v3319, %v2396
    %v3385 = vsel %vm3343, %v3320, %v2398
    %v3386 = vsel %vm3343, %v3321, %v2400
    %v3387 = vsel %vm3343, %v3322, %v2402
    %v3388 = vsel %vm3343, %v3323, %v2404
    %v3389 = vsel %vm3343, %v3324, %v2406
    %v3390 = vsel %vm3343, %v3325, %v2408
    %v3391 = vsel %vm3343, %v3326, %v2410
    %v3392 = vsel %vm3343, %v3327, %v2412
    %v3393 = vsel %vm3343, %v3328, %v2414
    %v3394 = vsel %vm3343, %v3329, %v2416
    %v3395 = vsel %vm3343, %v3330, %v2418
    %v3396 = vsel %vm3343, %v3331, %v2420
    %v3397 = vsel %vm3343, %v3332, %v2422
    %v3398 = vsel %vm3343, %v3333, %v2424
    %v3399 = vsel %vm3343, %v3334, %v2426
    %v3400 = vsel %vm3343, %v3335, %v2428
    %v3401 = vsel %vm3343, %v3336, %v2430
    %v3402 = vsel %vm3343, %v3337, %v2432
    %v3403 = vsel %vm3343, %v3338, %v2434
    %v3404 = vsel %vm3343, %v3339, %v2436
    %v3405 = vsel %vm3343, %v3340, %v2438
    %v3406 = vsel %vm3343, %v3341, %v2440
    %v3407 = vsel %vm3343, %v3342, %v2442
    %vm3408 = vcmask 171008
    %v3409 = vsel %vm3408, %v3344, %v2572
    %v3410 = vsel %vm3408, %v3345, %v2574
    %v3411 = vsel %vm3408, %v3346, %v2576
    %v3412 = vsel %vm3408, %v3347, %v2578
    %v3413 = vsel %vm3408, %v3348, %v2580
    %v3414 = vsel %vm3408, %v3349, %v2582
    %v3415 = vsel %vm3408, %v3350, %v2584
    %v3416 = vsel %vm3408, %v3351, %v2586
    %v3417 = vsel %vm3408, %v3352, %v2588
    %v3418 = vsel %vm3408, %v3353, %v2590
    %v3419 = vsel %vm3408, %v3354, %v2592
    %v3420 = vsel %vm3408, %v3355, %v2594
    %v3421 = vsel %vm3408, %v3356, %v2596
    %v3422 = vsel %vm3408, %v3357, %v2598
    %v3423 = vsel %vm3408, %v3358, %v2600
    %v3424 = vsel %vm3408, %v3359, %v2602
    %v3425 = vsel %vm3408, %v3360, %v2604
    %v3426 = vsel %vm3408, %v3361, %v2606
    %v3427 = vsel %vm3408, %v3362, %v2608
    %v3428 = vsel %vm3408, %v3363, %v2610
    %v3429 = vsel %vm3408, %v3364, %v2612
    %v3430 = vsel %vm3408, %v3365, %v2614
    %v3431 = vsel %vm3408, %v3366, %v2616
    %v3432 = vsel %vm3408, %v3367, %v2618
    %v3433 = vsel %vm3408, %v3368, %v2620
    %v3434 = vsel %vm3408, %v3369, %v2622
    %v3435 = vsel %vm3408, %v3370, %v2624
    %v3436 = vsel %vm3408, %v3371, %v2626
    %v3437 = vsel %vm3408, %v3372, %v2628
    %v3438 = vsel %vm3408, %v3373, %v2630
    %v3439 = vsel %vm3408, %v3374, %v2632
    %v3440 = vsel %vm3408, %v3375, %v2634
    %v3441 = vsel %vm3408, %v3376, %v2636
    %v3442 = vsel %vm3408, %v3377, %v2638
    %v3443 = vsel %vm3408, %v3378, %v2640
    %v3444 = vsel %vm3408, %v3379, %v2642
    %v3445 = vsel %vm3408, %v3380, %v2644
    %v3446 = vsel %vm3408, %v3381, %v2646
    %v3447 = vsel %vm3408, %v3382, %v2648
    %v3448 = vsel %vm3408, %v3383, %v2650
    %v3449 = vsel %vm3408, %v3384, %v2652
    %v3450 = vsel %vm3408, %v3385, %v2654
    %v3451 = vsel %vm3408, %v3386, %v2656
    %v3452 = vsel %vm3408, %v3387, %v2658
    %v3453 = vsel %vm3408, %v3388, %v2660
    %v3454 = vsel %vm3408, %v3389, %v2662
    %v3455 = vsel %vm3408, %v3390, %v2664
    %v3456 = vsel %vm3408, %v3391, %v2666
    %v3457 = vsel %vm3408, %v3392, %v2668
    %v3458 = vsel %vm3408, %v3393, %v2670
    %v3459 = vsel %vm3408, %v3394, %v2672
    %v3460 = vsel %vm3408, %v3395, %v2674
    %v3461 = vsel %vm3408, %v3396, %v2676
    %v3462 = vsel %vm3408, %v3397, %v2678
    %v3463 = vsel %vm3408, %v3398, %v2680
    %v3464 = vsel %vm3408, %v3399, %v2682
    %v3465 = vsel %vm3408, %v3400, %v2684
    %v3466 = vsel %vm3408, %v3401, %v2686
    %v3467 = vsel %vm3408, %v3402, %v2688
    %v3468 = vsel %vm3408, %v3403, %v2690
    %v3469 = vsel %vm3408, %v3404, %v2692
    %v3470 = vsel %vm3408, %v3405, %v2694
    %v3471 = vsel %vm3408, %v3406, %v2696
    %v3472 = vsel %vm3408, %v3407, %v2698
    %vm3473 = vcmask 195584
    %v3474 = vsel %vm3473, %v3409, %v2828
    %v3475 = vsel %vm3473, %v3410, %v2830
    %v3476 = vsel %vm3473, %v3411, %v2832
    %v3477 = vsel %vm3473, %v3412, %v2834
    %v3478 = vsel %vm3473, %v3413, %v2836
    %v3479 = vsel %vm3473, %v3414, %v2838
    %v3480 = vsel %vm3473, %v3415, %v2840
    %v3481 = vsel %vm3473, %v3416, %v2842
    %v3482 = vsel %vm3473, %v3417, %v2844
    %v3483 = vsel %vm3473, %v3418, %v2846
    %v3484 = vsel %vm3473, %v3419, %v2848
    %v3485 = vsel %vm3473, %v3420, %v2850
    %v3486 = vsel %vm3473, %v3421, %v2852
    %v3487 = vsel %vm3473, %v3422, %v2854
    %v3488 = vsel %vm3473, %v3423, %v2856
    %v3489 = vsel %vm3473, %v3424, %v2858
    %v3490 = vsel %vm3473, %v3425, %v2860
    %v3491 = vsel %vm3473, %v3426, %v2862
    %v3492 = vsel %vm3473, %v3427, %v2864
    %v3493 = vsel %vm3473, %v3428, %v2866
    %v3494 = vsel %vm3473, %v3429, %v2868
    %v3495 = vsel %vm3473, %v3430, %v2870
    %v3496 = vsel %vm3473, %v3431, %v2872
    %v3497 = vsel %vm3473, %v3432, %v2874
    %v3498 = vsel %vm3473, %v3433, %v2876
    %v3499 = vsel %vm3473, %v3434, %v2878
    %v3500 = vsel %vm3473, %v3435, %v2880
    %v3501 = vsel %vm3473, %v3436, %v2882
    %v3502 = vsel %vm3473, %v3437, %v2884
    %v3503 = vsel %vm3473, %v3438, %v2886
    %v3504 = vsel %vm3473, %v3439, %v2888
    %v3505 = vsel %vm3473, %v3440, %v2890
    %v3506 = vsel %vm3473, %v3441, %v2892
    %v3507 = vsel %vm3473, %v3442, %v2894
    %v3508 = vsel %vm3473, %v3443, %v2896
    %v3509 = vsel %vm3473, %v3444, %v2898
    %v3510 = vsel %vm3473, %v3445, %v2900
    %v3511 = vsel %vm3473, %v3446, %v2902
    %v3512 = vsel %vm3473, %v3447, %v2904
    %v3513 = vsel %vm3473, %v3448, %v2906
    %v3514 = vsel %vm3473, %v3449, %v2908
    %v3515 = vsel %vm3473, %v3450, %v2910
    %v3516 = vsel %vm3473, %v3451, %v2912
    %v3517 = vsel %vm3473, %v3452, %v2914
    %v3518 = vsel %vm3473, %v3453, %v2916
    %v3519 = vsel %vm3473, %v3454, %v2918
    %v3520 = vsel %vm3473, %v3455, %v2920
    %v3521 = vsel %vm3473, %v3456, %v2922
    %v3522 = vsel %vm3473, %v3457, %v2924
    %v3523 = vsel %vm3473, %v3458, %v2926
    %v3524 = vsel %vm3473, %v3459, %v2928
    %v3525 = vsel %vm3473, %v3460, %v2930
    %v3526 = vsel %vm3473, %v3461, %v2932
    %v3527 = vsel %vm3473, %v3462, %v2934
    %v3528 = vsel %vm3473, %v3463, %v2936
    %v3529 = vsel %vm3473, %v3464, %v2938
    %v3530 = vsel %vm3473, %v3465, %v2940
    %v3531 = vsel %vm3473, %v3466, %v2942
    %v3532 = vsel %vm3473, %v3467, %v2944
    %v3533 = vsel %vm3473, %v3468, %v2946
    %v3534 = vsel %vm3473, %v3469, %v2948
    %v3535 = vsel %vm3473, %v3470, %v2950
    %v3536 = vsel %vm3473, %v3471, %v2952
    %v3537 = vsel %vm3473, %v3472, %v2954
    %v3538 = vld [vmem:[%s1] sm:$0xff]
    %v3539 = vld [vmem:[%s1 + $0x8] sm:$0xff]
    %v3540 = vld [vmem:[%s1 + $0x10] sm:$0xff]
    %v3541 = vld [vmem:[%s1 + $0x18] sm:$0x7]
    %v3542 = vld [vmem:[#allocation6] sm:$0x1]
    %v3544 = vlaneseq
    %v3545 = vshrl.u32 %v3544, 7
    %v3546 = vsub.s32 0, %v3545
    %v3547 = vrot.slane %v3542, %v3546
    %vm3549 = vcmask 220160
    %v3551 = vsel %vm3549, %v3474, 0
    %v3554 = vsel %vm3549, %v3475, 0
    %v3557 = vsel %vm3549, %v3476, 0
    %v3560 = vsel %vm3549, %v3477, 0
    %v3563 = vsel %vm3549, %v3478, 0
    %v3566 = vsel %vm3549, %v3479, 0
    %v3569 = vsel %vm3549, %v3480, 0
    %v3572 = vsel %vm3549, %v3481, 0
    %v3575 = vsel %vm3549, %v3482, 0
    %v3578 = vsel %vm3549, %v3483, 0
    %v3581 = vsel %vm3549, %v3484, 0
    %v3584 = vsel %vm3549, %v3485, 0
    %v3587 = vsel %vm3549, %v3486, 0
    %v3590 = vsel %vm3549, %v3487, 0
    %v3593 = vsel %vm3549, %v3488, 0
    %v3596 = vsel %vm3549, %v3489, 0
    %v3599 = vsel %vm3549, %v3490, 0
    %v3602 = vsel %vm3549, %v3491, 0
    %v3605 = vsel %vm3549, %v3492, 0
    %v3608 = vsel %vm3549, %v3493, 0
    %v3611 = vsel %vm3549, %v3494, 0
    %v3614 = vsel %vm3549, %v3495, 0
    %v3617 = vsel %vm3549, %v3496, 0
    %v3620 = vsel %vm3549, %v3497, 0
    %v3623 = vsel %vm3549, %v3498, 0
    %v3626 = vsel %vm3549, %v3499, 0
    %v3629 = vsel %vm3549, %v3500, 0
    %v3632 = vsel %vm3549, %v3501, 0
    %v3635 = vsel %vm3549, %v3502, 0
    %v3638 = vsel %vm3549, %v3503, 0
    %v3641 = vsel %vm3549, %v3504, 0
    %v3644 = vsel %vm3549, %v3505, 0
    %v3647 = vsel %vm3549, %v3506, 0
    %v3650 = vsel %vm3549, %v3507, 0
    %v3653 = vsel %vm3549, %v3508, 0
    %v3656 = vsel %vm3549, %v3509, 0
    %v3659 = vsel %vm3549, %v3510, 0
    %v3662 = vsel %vm3549, %v3511, 0
    %v3665 = vsel %vm3549, %v3512, 0
    %v3668 = vsel %vm3549, %v3513, 0
    %v3671 = vsel %vm3549, %v3514, 0
    %v3674 = vsel %vm3549, %v3515, 0
    %v3677 = vsel %vm3549, %v3516, 0
    %v3680 = vsel %vm3549, %v3517, 0
    %v3683 = vsel %vm3549, %v3518, 0
    %v3686 = vsel %vm3549, %v3519, 0
    %v3689 = vsel %vm3549, %v3520, 0
    %v3692 = vsel %vm3549, %v3521, 0
    %v3695 = vsel %vm3549, %v3522, 0
    %v3698 = vsel %vm3549, %v3523, 0
    %v3701 = vsel %vm3549, %v3524, 0
    %v3704 = vsel %vm3549, %v3525, 0
    %v3707 = vsel %vm3549, %v3526, 0
    %v3710 = vsel %vm3549, %v3527, 0
    %v3713 = vsel %vm3549, %v3528, 0
    %v3716 = vsel %vm3549, %v3529, 0
    %v3719 = vsel %vm3549, %v3530, 0
    %v3722 = vsel %vm3549, %v3531, 0
    %v3725 = vsel %vm3549, %v3532, 0
    %v3728 = vsel %vm3549, %v3533, 0
    %v3731 = vsel %vm3549, %v3534, 0
    %v3734 = vsel %vm3549, %v3535, 0
    %v3737 = vsel %vm3549, %v3536, 0
    %v3740 = vsel %vm3549, %v3537, 0
    %vm3742 = vcmask 1042432
    %v3744 = vsel %vm3742, %v3541, 0
    %3746 = vmatprep.subr.mxu0 0.0
    %3747 = vmatpush1.msra.mxu0 0.0
    %3748 = vmatprep.subr.mxu0 0.0
    %3749 = vmatpush1.msra.mxu0 0.0
    %3750 = vmatprep.subr.mxu0 0.0
    %3751 = vmatpush1.msra.mxu0 0.0
    %3752 = vmatprep.subr.mxu0 0.0
    %3753 = vmatpush1.msra.mxu0 0.0
    %3754 = vmatprep.subr.mxu0 0.0
    %3755 = vmatpush1.msra.mxu0 0.0
    %3756 = vmatprep.subr.mxu0 0.0
    %3757 = vmatpush1.msra.mxu0 0.0
    %3758 = vmatprep.subr.mxu0 0.0
    %3759 = vmatpush1.msra.mxu0 0.0
    %3760 = vmatprep.subr.mxu0 0.0
    %3761 = vmatpush1.msra.mxu0 0.0
    %3762 = vmatprep.subr.mxu0 0.0
    %3763 = vmatpush1.msra.mxu0 0.0
    %3764 = vmatprep.subr.mxu0 0.0
    %3765 = vmatpush1.msra.mxu0 0.0
    %3766 = vmatprep.subr.mxu0 0.0
    %3767 = vmatpush1.msra.mxu0 0.0
    %3768 = vmatprep.subr.mxu0 0.0
    %3769 = vmatpush1.msra.mxu0 0.0
    %3770 = vmatprep.subr.mxu0 0.0
    %3771 = vmatpush1.msra.mxu0 %v3744
    %3772 = vmatprep.subr.mxu0 0.0
    %3773 = vmatpush1.msra.mxu0 %v3540
    %3774 = vmatprep.subr.mxu0 0.0
    %3775 = vmatpush1.msra.mxu0 %v3539
    %3776 = vmatprep.subr.mxu0 0.0
    %3777 = vmatpush1.msra.mxu0 %v3538
    %3778 = vmatprep.subr.mxu0 0.0
    %3779 = vmatpush2.msra.mxu0 0.0
    %3780 = vmatprep.subr.mxu0 0.0
    %3781 = vmatpush2.msra.mxu0 0.0
    %3782 = vmatprep.subr.mxu0 0.0
    %3783 = vmatpush2.msra.mxu0 0.0
    %3784 = vmatprep.subr.mxu0 0.0
    %3785 = vmatpush2.msra.mxu0 0.0
    %3786 = vmatprep.subr.mxu0 0.0
    %3787 = vmatpush2.msra.mxu0 0.0
    %3788 = vmatprep.subr.mxu0 0.0
    %3789 = vmatpush2.msra.mxu0 0.0
    %3790 = vmatprep.subr.mxu0 0.0
    %3791 = vmatpush2.msra.mxu0 0.0
    %3792 = vmatprep.subr.mxu0 0.0
    %3793 = vmatpush2.msra.mxu0 0.0
    %3794 = vmatprep.subr.mxu0 0.0
    %3795 = vmatpush2.msra.mxu0 0.0
    %3796 = vmatprep.subr.mxu0 0.0
    %3797 = vmatpush2.msra.mxu0 0.0
    %3798 = vmatprep.subr.mxu0 0.0
    %3799 = vmatpush2.msra.mxu0 0.0
    %3800 = vmatprep.subr.mxu0 0.0
    %3801 = vmatpush2.msra.mxu0 0.0
    %3802 = vmatprep.subr.mxu0 0.0
    %3803 = vmatpush2.msra.mxu0 0.0
    %3804 = vmatprep.subr.mxu0 0.0
    %3805 = vmatpush2.msra.mxu0 0.0
    %3806 = vmatprep.subr.mxu0 0.0
    %3807 = vmatpush2.msra.mxu0 0.0
    %3808 = vmatprep.subr.mxu0 0.0
    %3809 = vmatpush2.msra.mxu0 0.0
    %3810 = vmatprep.mubr.f32.mxu0 0.0
    %3811 = vmatmul.mubr.f32.gmra.mxu0 %v3551
    %v3812 = vpop.f32.mrf.mxu0
    %v3813 = vadd.f32 %v3547, %v3812
    %v3814 = vpop.f32.mrf.mxu0
    %3815 = vmatprep.mubr.f32.mxu0 0.0
    %3816 = vmatmul.mubr.f32.gmra.mxu0 %v3554
    %v3817 = vpop.f32.mrf.mxu0
    %v3818 = vadd.f32 %v3547, %v3817
    %v3819 = vpop.f32.mrf.mxu0
    %3820 = vmatprep.mubr.f32.mxu0 0.0
    %3821 = vmatmul.mubr.f32.gmra.mxu0 %v3557
    %v3822 = vpop.f32.mrf.mxu0
    %v3823 = vadd.f32 %v3547, %v3822
    %v3824 = vpop.f32.mrf.mxu0
    %3825 = vmatprep.mubr.f32.mxu0 0.0
    %3826 = vmatmul.mubr.f32.gmra.mxu0 %v3560
    %v3827 = vpop.f32.mrf.mxu0
    %v3828 = vadd.f32 %v3547, %v3827
    %v3829 = vpop.f32.mrf.mxu0
    %3830 = vmatprep.mubr.f32.mxu0 0.0
    %3831 = vmatmul.mubr.f32.gmra.mxu0 %v3563
    %v3832 = vpop.f32.mrf.mxu0
    %v3833 = vadd.f32 %v3547, %v3832
    %v3834 = vpop.f32.mrf.mxu0
    %3835 = vmatprep.mubr.f32.mxu0 0.0
    %3836 = vmatmul.mubr.f32.gmra.mxu0 %v3566
    %v3837 = vpop.f32.mrf.mxu0
    %v3838 = vadd.f32 %v3547, %v3837
    %v3839 = vpop.f32.mrf.mxu0
    %3840 = vmatprep.mubr.f32.mxu0 0.0
    %3841 = vmatmul.mubr.f32.gmra.mxu0 %v3569
    %v3842 = vpop.f32.mrf.mxu0
    %v3843 = vadd.f32 %v3547, %v3842
    %v3844 = vpop.f32.mrf.mxu0
    %3845 = vmatprep.mubr.f32.mxu0 0.0
    %3846 = vmatmul.mubr.f32.gmra.mxu0 %v3572
    %v3847 = vpop.f32.mrf.mxu0
    %v3848 = vadd.f32 %v3547, %v3847
    %v3849 = vpop.f32.mrf.mxu0
    %3850 = vmatprep.mubr.f32.mxu0 0.0
    %3851 = vmatmul.mubr.f32.gmra.mxu0 %v3575
    %v3852 = vpop.f32.mrf.mxu0
    %v3853 = vadd.f32 %v3547, %v3852
    %v3854 = vpop.f32.mrf.mxu0
    %3855 = vmatprep.mubr.f32.mxu0 0.0
    %3856 = vmatmul.mubr.f32.gmra.mxu0 %v3578
    %v3857 = vpop.f32.mrf.mxu0
    %v3858 = vadd.f32 %v3547, %v3857
    %v3859 = vpop.f32.mrf.mxu0
    %3860 = vmatprep.mubr.f32.mxu0 0.0
    %3861 = vmatmul.mubr.f32.gmra.mxu0 %v3581
    %v3862 = vpop.f32.mrf.mxu0
    %v3863 = vadd.f32 %v3547, %v3862
    %v3864 = vpop.f32.mrf.mxu0
    %3865 = vmatprep.mubr.f32.mxu0 0.0
    %3866 = vmatmul.mubr.f32.gmra.mxu0 %v3584
    %v3867 = vpop.f32.mrf.mxu0
    %v3868 = vadd.f32 %v3547, %v3867
    %v3869 = vpop.f32.mrf.mxu0
    %3870 = vmatprep.mubr.f32.mxu0 0.0
    %3871 = vmatmul.mubr.f32.gmra.mxu0 %v3587
    %v3872 = vpop.f32.mrf.mxu0
    %v3873 = vadd.f32 %v3547, %v3872
    %v3874 = vpop.f32.mrf.mxu0
    %3875 = vmatprep.mubr.f32.mxu0 0.0
    %3876 = vmatmul.mubr.f32.gmra.mxu0 %v3590
    %v3877 = vpop.f32.mrf.mxu0
    %v3878 = vadd.f32 %v3547, %v3877
    %v3879 = vpop.f32.mrf.mxu0
    %3880 = vmatprep.mubr.f32.mxu0 0.0
    %3881 = vmatmul.mubr.f32.gmra.mxu0 %v3593
    %v3882 = vpop.f32.mrf.mxu0
    %v3883 = vadd.f32 %v3547, %v3882
    %v3884 = vpop.f32.mrf.mxu0
    %3885 = vmatprep.mubr.f32.mxu0 0.0
    %3886 = vmatmul.mubr.f32.gmra.mxu0 %v3596
    %v3887 = vpop.f32.mrf.mxu0
    %v3888 = vadd.f32 %v3547, %v3887
    %v3889 = vpop.f32.mrf.mxu0
    %3890 = vmatprep.mubr.f32.mxu0 0.0
    %3891 = vmatmul.mubr.f32.gmra.mxu0 %v3599
    %v3892 = vpop.f32.mrf.mxu0
    %v3893 = vadd.f32 %v3547, %v3892
    %v3894 = vpop.f32.mrf.mxu0
    %3895 = vmatprep.mubr.f32.mxu0 0.0
    %3896 = vmatmul.mubr.f32.gmra.mxu0 %v3602
    %v3897 = vpop.f32.mrf.mxu0
    %v3898 = vadd.f32 %v3547, %v3897
    %v3899 = vpop.f32.mrf.mxu0
    %3900 = vmatprep.mubr.f32.mxu0 0.0
    %3901 = vmatmul.mubr.f32.gmra.mxu0 %v3605
    %v3902 = vpop.f32.mrf.mxu0
    %v3903 = vadd.f32 %v3547, %v3902
    %v3904 = vpop.f32.mrf.mxu0
    %3905 = vmatprep.mubr.f32.mxu0 0.0
    %3906 = vmatmul.mubr.f32.gmra.mxu0 %v3608
    %v3907 = vpop.f32.mrf.mxu0
    %v3908 = vadd.f32 %v3547, %v3907
    %v3909 = vpop.f32.mrf.mxu0
    %3910 = vmatprep.mubr.f32.mxu0 0.0
    %3911 = vmatmul.mubr.f32.gmra.mxu0 %v3611
    %v3912 = vpop.f32.mrf.mxu0
    %v3913 = vadd.f32 %v3547, %v3912
    %v3914 = vpop.f32.mrf.mxu0
    %3915 = vmatprep.mubr.f32.mxu0 0.0
    %3916 = vmatmul.mubr.f32.gmra.mxu0 %v3614
    %v3917 = vpop.f32.mrf.mxu0
    %v3918 = vadd.f32 %v3547, %v3917
    %v3919 = vpop.f32.mrf.mxu0
    %3920 = vmatprep.mubr.f32.mxu0 0.0
    %3921 = vmatmul.mubr.f32.gmra.mxu0 %v3617
    %v3922 = vpop.f32.mrf.mxu0
    %v3923 = vadd.f32 %v3547, %v3922
    %v3924 = vpop.f32.mrf.mxu0
    %3925 = vmatprep.mubr.f32.mxu0 0.0
    %3926 = vmatmul.mubr.f32.gmra.mxu0 %v3620
    %v3927 = vpop.f32.mrf.mxu0
    %v3928 = vadd.f32 %v3547, %v3927
    %v3929 = vpop.f32.mrf.mxu0
    %3930 = vmatprep.mubr.f32.mxu0 0.0
    %3931 = vmatmul.mubr.f32.gmra.mxu0 %v3623
    %v3932 = vpop.f32.mrf.mxu0
    %v3933 = vadd.f32 %v3547, %v3932
    %v3934 = vpop.f32.mrf.mxu0
    %3935 = vmatprep.mubr.f32.mxu0 0.0
    %3936 = vmatmul.mubr.f32.gmra.mxu0 %v3626
    %v3937 = vpop.f32.mrf.mxu0
    %v3938 = vadd.f32 %v3547, %v3937
    %v3939 = vpop.f32.mrf.mxu0
    %3940 = vmatprep.mubr.f32.mxu0 0.0
    %3941 = vmatmul.mubr.f32.gmra.mxu0 %v3629
    %v3942 = vpop.f32.mrf.mxu0
    %v3943 = vadd.f32 %v3547, %v3942
    %v3944 = vpop.f32.mrf.mxu0
    %3945 = vmatprep.mubr.f32.mxu0 0.0
    %3946 = vmatmul.mubr.f32.gmra.mxu0 %v3632
    %v3947 = vpop.f32.mrf.mxu0
    %v3948 = vadd.f32 %v3547, %v3947
    %v3949 = vpop.f32.mrf.mxu0
    %3950 = vmatprep.mubr.f32.mxu0 0.0
    %3951 = vmatmul.mubr.f32.gmra.mxu0 %v3635
    %v3952 = vpop.f32.mrf.mxu0
    %v3953 = vadd.f32 %v3547, %v3952
    %v3954 = vpop.f32.mrf.mxu0
    %3955 = vmatprep.mubr.f32.mxu0 0.0
    %3956 = vmatmul.mubr.f32.gmra.mxu0 %v3638
    %v3957 = vpop.f32.mrf.mxu0
    %v3958 = vadd.f32 %v3547, %v3957
    %v3959 = vpop.f32.mrf.mxu0
    %3960 = vmatprep.mubr.f32.mxu0 0.0
    %3961 = vmatmul.mubr.f32.gmra.mxu0 %v3641
    %v3962 = vpop.f32.mrf.mxu0
    %v3963 = vadd.f32 %v3547, %v3962
    %v3964 = vpop.f32.mrf.mxu0
    %3965 = vmatprep.mubr.f32.mxu0 0.0
    %3966 = vmatmul.mubr.f32.gmra.mxu0 %v3644
    %v3967 = vpop.f32.mrf.mxu0
    %v3968 = vadd.f32 %v3547, %v3967
    %v3969 = vpop.f32.mrf.mxu0
    %3970 = vmatprep.mubr.f32.mxu0 0.0
    %3971 = vmatmul.mubr.f32.gmra.mxu0 %v3647
    %v3972 = vpop.f32.mrf.mxu0
    %v3973 = vadd.f32 %v3547, %v3972
    %v3974 = vpop.f32.mrf.mxu0
    %3975 = vmatprep.mubr.f32.mxu0 0.0
    %3976 = vmatmul.mubr.f32.gmra.mxu0 %v3650
    %v3977 = vpop.f32.mrf.mxu0
    %v3978 = vadd.f32 %v3547, %v3977
    %v3979 = vpop.f32.mrf.mxu0
    %3980 = vmatprep.mubr.f32.mxu0 0.0
    %3981 = vmatmul.mubr.f32.gmra.mxu0 %v3653
    %v3982 = vpop.f32.mrf.mxu0
    %v3983 = vadd.f32 %v3547, %v3982
    %v3984 = vpop.f32.mrf.mxu0
    %3985 = vmatprep.mubr.f32.mxu0 0.0
    %3986 = vmatmul.mubr.f32.gmra.mxu0 %v3656
    %v3987 = vpop.f32.mrf.mxu0
    %v3988 = vadd.f32 %v3547, %v3987
    %v3989 = vpop.f32.mrf.mxu0
    %3990 = vmatprep.mubr.f32.mxu0 0.0
    %3991 = vmatmul.mubr.f32.gmra.mxu0 %v3659
    %v3992 = vpop.f32.mrf.mxu0
    %v3993 = vadd.f32 %v3547, %v3992
    %v3994 = vpop.f32.mrf.mxu0
    %3995 = vmatprep.mubr.f32.mxu0 0.0
    %3996 = vmatmul.mubr.f32.gmra.mxu0 %v3662
    %v3997 = vpop.f32.mrf.mxu0
    %v3998 = vadd.f32 %v3547, %v3997
    %v3999 = vpop.f32.mrf.mxu0
    %4000 = vmatprep.mubr.f32.mxu0 0.0
    %4001 = vmatmul.mubr.f32.gmra.mxu0 %v3665
    %v4002 = vpop.f32.mrf.mxu0
    %v4003 = vadd.f32 %v3547, %v4002
    %v4004 = vpop.f32.mrf.mxu0
    %4005 = vmatprep.mubr.f32.mxu0 0.0
    %4006 = vmatmul.mubr.f32.gmra.mxu0 %v3668
    %v4007 = vpop.f32.mrf.mxu0
    %v4008 = vadd.f32 %v3547, %v4007
    %v4009 = vpop.f32.mrf.mxu0
    %4010 = vmatprep.mubr.f32.mxu0 0.0
    %4011 = vmatmul.mubr.f32.gmra.mxu0 %v3671
    %v4012 = vpop.f32.mrf.mxu0
    %v4013 = vadd.f32 %v3547, %v4012
    %v4014 = vpop.f32.mrf.mxu0
    %4015 = vmatprep.mubr.f32.mxu0 0.0
    %4016 = vmatmul.mubr.f32.gmra.mxu0 %v3674
    %v4017 = vpop.f32.mrf.mxu0
    %v4018 = vadd.f32 %v3547, %v4017
    %v4019 = vpop.f32.mrf.mxu0
    %4020 = vmatprep.mubr.f32.mxu0 0.0
    %4021 = vmatmul.mubr.f32.gmra.mxu0 %v3677
    %v4022 = vpop.f32.mrf.mxu0
    %v4023 = vadd.f32 %v3547, %v4022
    %v4024 = vpop.f32.mrf.mxu0
    %4025 = vmatprep.mubr.f32.mxu0 0.0
    %4026 = vmatmul.mubr.f32.gmra.mxu0 %v3680
    %v4027 = vpop.f32.mrf.mxu0
    %v4028 = vadd.f32 %v3547, %v4027
    %v4029 = vpop.f32.mrf.mxu0
    %4030 = vmatprep.mubr.f32.mxu0 0.0
    %4031 = vmatmul.mubr.f32.gmra.mxu0 %v3683
    %v4032 = vpop.f32.mrf.mxu0
    %v4033 = vadd.f32 %v3547, %v4032
    %v4034 = vpop.f32.mrf.mxu0
    %4035 = vmatprep.mubr.f32.mxu0 0.0
    %4036 = vmatmul.mubr.f32.gmra.mxu0 %v3686
    %v4037 = vpop.f32.mrf.mxu0
    %v4038 = vadd.f32 %v3547, %v4037
    %v4039 = vpop.f32.mrf.mxu0
    %4040 = vmatprep.mubr.f32.mxu0 0.0
    %4041 = vmatmul.mubr.f32.gmra.mxu0 %v3689
    %v4042 = vpop.f32.mrf.mxu0
    %v4043 = vadd.f32 %v3547, %v4042
    %v4044 = vpop.f32.mrf.mxu0
    %4045 = vmatprep.mubr.f32.mxu0 0.0
    %4046 = vmatmul.mubr.f32.gmra.mxu0 %v3692
    %v4047 = vpop.f32.mrf.mxu0
    %v4048 = vadd.f32 %v3547, %v4047
    %v4049 = vpop.f32.mrf.mxu0
    %4050 = vmatprep.mubr.f32.mxu0 0.0
    %4051 = vmatmul.mubr.f32.gmra.mxu0 %v3695
    %v4052 = vpop.f32.mrf.mxu0
    %v4053 = vadd.f32 %v3547, %v4052
    %v4054 = vpop.f32.mrf.mxu0
    %4055 = vmatprep.mubr.f32.mxu0 0.0
    %4056 = vmatmul.mubr.f32.gmra.mxu0 %v3698
    %v4057 = vpop.f32.mrf.mxu0
    %v4058 = vadd.f32 %v3547, %v4057
    %v4059 = vpop.f32.mrf.mxu0
    %4060 = vmatprep.mubr.f32.mxu0 0.0
    %4061 = vmatmul.mubr.f32.gmra.mxu0 %v3701
    %v4062 = vpop.f32.mrf.mxu0
    %v4063 = vadd.f32 %v3547, %v4062
    %v4064 = vpop.f32.mrf.mxu0
    %4065 = vmatprep.mubr.f32.mxu0 0.0
    %4066 = vmatmul.mubr.f32.gmra.mxu0 %v3704
    %v4067 = vpop.f32.mrf.mxu0
    %v4068 = vadd.f32 %v3547, %v4067
    %v4069 = vpop.f32.mrf.mxu0
    %4070 = vmatprep.mubr.f32.mxu0 0.0
    %4071 = vmatmul.mubr.f32.gmra.mxu0 %v3707
    %v4072 = vpop.f32.mrf.mxu0
    %v4073 = vadd.f32 %v3547, %v4072
    %v4074 = vpop.f32.mrf.mxu0
    %4075 = vmatprep.mubr.f32.mxu0 0.0
    %4076 = vmatmul.mubr.f32.gmra.mxu0 %v3710
    %v4077 = vpop.f32.mrf.mxu0
    %v4078 = vadd.f32 %v3547, %v4077
    %v4079 = vpop.f32.mrf.mxu0
    %4080 = vmatprep.mubr.f32.mxu0 0.0
    %4081 = vmatmul.mubr.f32.gmra.mxu0 %v3713
    %v4082 = vpop.f32.mrf.mxu0
    %v4083 = vadd.f32 %v3547, %v4082
    %v4084 = vpop.f32.mrf.mxu0
    %4085 = vmatprep.mubr.f32.mxu0 0.0
    %4086 = vmatmul.mubr.f32.gmra.mxu0 %v3716
    %v4087 = vpop.f32.mrf.mxu0
    %v4088 = vadd.f32 %v3547, %v4087
    %v4089 = vpop.f32.mrf.mxu0
    %4090 = vmatprep.mubr.f32.mxu0 0.0
    %4091 = vmatmul.mubr.f32.gmra.mxu0 %v3719
    %v4092 = vpop.f32.mrf.mxu0
    %v4093 = vadd.f32 %v3547, %v4092
    %v4094 = vpop.f32.mrf.mxu0
    %4095 = vmatprep.mubr.f32.mxu0 0.0
    %4096 = vmatmul.mubr.f32.gmra.mxu0 %v3722
    %v4097 = vpop.f32.mrf.mxu0
    %v4098 = vadd.f32 %v3547, %v4097
    %v4099 = vpop.f32.mrf.mxu0
    %4100 = vmatprep.mubr.f32.mxu0 0.0
    %4101 = vmatmul.mubr.f32.gmra.mxu0 %v3725
    %v4102 = vpop.f32.mrf.mxu0
    %v4103 = vadd.f32 %v3547, %v4102
    %v4104 = vpop.f32.mrf.mxu0
    %4105 = vmatprep.mubr.f32.mxu0 0.0
    %4106 = vmatmul.mubr.f32.gmra.mxu0 %v3728
    %v4107 = vpop.f32.mrf.mxu0
    %v4108 = vadd.f32 %v3547, %v4107
    %v4109 = vpop.f32.mrf.mxu0
    %4110 = vmatprep.mubr.f32.mxu0 0.0
    %4111 = vmatmul.mubr.f32.gmra.mxu0 %v3731
    %v4112 = vpop.f32.mrf.mxu0
    %v4113 = vadd.f32 %v3547, %v4112
    %v4114 = vpop.f32.mrf.mxu0
    %4115 = vmatprep.mubr.f32.mxu0 0.0
    %4116 = vmatmul.mubr.f32.gmra.mxu0 %v3734
    %v4117 = vpop.f32.mrf.mxu0
    %v4118 = vadd.f32 %v3547, %v4117
    %v4119 = vpop.f32.mrf.mxu0
    %4120 = vmatprep.mubr.f32.mxu0 0.0
    %4121 = vmatmul.mubr.f32.gmra.mxu0 %v3737
    %v4122 = vpop.f32.mrf.mxu0
    %v4123 = vadd.f32 %v3547, %v4122
    %v4124 = vpop.f32.mrf.mxu0
    %4125 = vmatprep.mubr.f32.mxu0 0.0
    %4126 = vmatmul.mubr.f32.gmra.mxu0 %v3740
    %v4127 = vpop.f32.mrf.mxu0
    %v4128 = vadd.f32 %v3547, %v4127
    %v4129 = vpop.f32.mrf.mxu0
    %4130 = vdwg.mxu0
    %v4131 = vsel %vm3213, %v3813, 0.0
    %v4132 = vsel %vm3213, %v3818, 0.0
    %v4133 = vadd.f32 %v4131, %v4132
    %v4134 = vsel %vm3213, %v3823, 0.0
    %v4135 = vadd.f32 %v4133, %v4134
    %v4136 = vsel %vm3213, %v3828, 0.0
    %v4137 = vadd.f32 %v4135, %v4136
    %v4138 = vsel %vm3213, %v3833, 0.0
    %v4139 = vadd.f32 %v4137, %v4138
    %v4140 = vsel %vm3213, %v3838, 0.0
    %v4141 = vadd.f32 %v4139, %v4140
    %v4142 = vsel %vm3213, %v3843, 0.0
    %v4143 = vadd.f32 %v4141, %v4142
    %v4144 = vsel %vm3213, %v3848, 0.0
    %v4145 = vadd.f32 %v4143, %v4144
    %v4146 = vsel %vm3213, %v3853, 0.0
    %v4147 = vadd.f32 %v4145, %v4146
    %v4148 = vsel %vm3213, %v3858, 0.0
    %v4149 = vadd.f32 %v4147, %v4148
    %v4150 = vsel %vm3213, %v3863, 0.0
    %v4151 = vadd.f32 %v4149, %v4150
    %v4152 = vsel %vm3213, %v3868, 0.0
    %v4153 = vadd.f32 %v4151, %v4152
    %v4154 = vsel %vm3213, %v3873, 0.0
    %v4155 = vadd.f32 %v4153, %v4154
    %v4156 = vsel %vm3213, %v3878, 0.0
    %v4157 = vadd.f32 %v4155, %v4156
    %v4158 = vsel %vm3213, %v3883, 0.0
    %v4159 = vadd.f32 %v4157, %v4158
    %v4160 = vsel %vm3213, %v3888, 0.0
    %v4161 = vadd.f32 %v4159, %v4160
    %v4162 = vsel %vm3213, %v3893, 0.0
    %v4163 = vadd.f32 %v4161, %v4162
    %v4164 = vsel %vm3213, %v3898, 0.0
    %v4165 = vadd.f32 %v4163, %v4164
    %v4166 = vsel %vm3213, %v3903, 0.0
    %v4167 = vadd.f32 %v4165, %v4166
    %v4168 = vsel %vm3213, %v3908, 0.0
    %v4169 = vadd.f32 %v4167, %v4168
    %v4170 = vsel %vm3213, %v3913, 0.0
    %v4171 = vadd.f32 %v4169, %v4170
    %v4172 = vsel %vm3213, %v3918, 0.0
    %v4173 = vadd.f32 %v4171, %v4172
    %v4174 = vsel %vm3213, %v3923, 0.0
    %v4175 = vadd.f32 %v4173, %v4174
    %v4176 = vsel %vm3213, %v3928, 0.0
    %v4177 = vadd.f32 %v4175, %v4176
    %v4178 = vsel %vm3213, %v3933, 0.0
    %v4179 = vadd.f32 %v4177, %v4178
    %v4180 = vsel %vm3213, %v3938, 0.0
    %v4181 = vadd.f32 %v4179, %v4180
    %v4182 = vsel %vm3213, %v3943, 0.0
    %v4183 = vadd.f32 %v4181, %v4182
    %v4184 = vsel %vm3213, %v3948, 0.0
    %v4185 = vadd.f32 %v4183, %v4184
    %v4186 = vsel %vm3213, %v3953, 0.0
    %v4187 = vadd.f32 %v4185, %v4186
    %v4188 = vsel %vm3213, %v3958, 0.0
    %v4189 = vadd.f32 %v4187, %v4188
    %v4190 = vsel %vm3213, %v3963, 0.0
    %v4191 = vadd.f32 %v4189, %v4190
    %v4192 = vsel %vm3213, %v3968, 0.0
    %v4193 = vadd.f32 %v4191, %v4192
    %v4194 = vsel %vm3213, %v3973, 0.0
    %v4195 = vadd.f32 %v4193, %v4194
    %v4196 = vsel %vm3213, %v3978, 0.0
    %v4197 = vadd.f32 %v4195, %v4196
    %v4198 = vsel %vm3213, %v3983, 0.0
    %v4199 = vadd.f32 %v4197, %v4198
    %v4200 = vsel %vm3213, %v3988, 0.0
    %v4201 = vadd.f32 %v4199, %v4200
    %v4202 = vsel %vm3213, %v3993, 0.0
    %v4203 = vadd.f32 %v4201, %v4202
    %v4204 = vsel %vm3213, %v3998, 0.0
    %v4205 = vadd.f32 %v4203, %v4204
    %v4206 = vsel %vm3213, %v4003, 0.0
    %v4207 = vadd.f32 %v4205, %v4206
    %v4208 = vsel %vm3213, %v4008, 0.0
    %v4209 = vadd.f32 %v4207, %v4208
    %v4210 = vsel %vm3213, %v4013, 0.0
    %v4211 = vadd.f32 %v4209, %v4210
    %v4212 = vsel %vm3213, %v4018, 0.0
    %v4213 = vadd.f32 %v4211, %v4212
    %v4214 = vsel %vm3213, %v4023, 0.0
    %v4215 = vadd.f32 %v4213, %v4214
    %v4216 = vsel %vm3213, %v4028, 0.0
    %v4217 = vadd.f32 %v4215, %v4216
    %v4218 = vsel %vm3213, %v4033, 0.0
    %v4219 = vadd.f32 %v4217, %v4218
    %v4220 = vsel %vm3213, %v4038, 0.0
    %v4221 = vadd.f32 %v4219, %v4220
    %v4222 = vsel %vm3213, %v4043, 0.0
    %v4223 = vadd.f32 %v4221, %v4222
    %v4224 = vsel %vm3213, %v4048, 0.0
    %v4225 = vadd.f32 %v4223, %v4224
    %v4226 = vsel %vm3213, %v4053, 0.0
    %v4227 = vadd.f32 %v4225, %v4226
    %v4228 = vsel %vm3213, %v4058, 0.0
    %v4229 = vadd.f32 %v4227, %v4228
    %v4230 = vsel %vm3213, %v4063, 0.0
    %v4231 = vadd.f32 %v4229, %v4230
    %v4232 = vsel %vm3213, %v4068, 0.0
    %v4233 = vadd.f32 %v4231, %v4232
    %v4234 = vsel %vm3213, %v4073, 0.0
    %v4235 = vadd.f32 %v4233, %v4234
    %v4236 = vsel %vm3213, %v4078, 0.0
    %v4237 = vadd.f32 %v4235, %v4236
    %v4238 = vsel %vm3213, %v4083, 0.0
    %v4239 = vadd.f32 %v4237, %v4238
    %v4240 = vsel %vm3213, %v4088, 0.0
    %v4241 = vadd.f32 %v4239, %v4240
    %v4242 = vsel %vm3213, %v4093, 0.0
    %v4243 = vadd.f32 %v4241, %v4242
    %v4244 = vsel %vm3213, %v4098, 0.0
    %v4245 = vadd.f32 %v4243, %v4244
    %v4246 = vsel %vm3213, %v4103, 0.0
    %v4247 = vadd.f32 %v4245, %v4246
    %v4248 = vsel %vm3213, %v4108, 0.0
    %v4249 = vadd.f32 %v4247, %v4248
    %v4250 = vsel %vm3213, %v4113, 0.0
    %v4251 = vadd.f32 %v4249, %v4250
    %v4252 = vsel %vm3213, %v4118, 0.0
    %v4253 = vadd.f32 %v4251, %v4252
    %v4254 = vsel %vm3213, %v4123, 0.0
    %v4255 = vadd.f32 %v4253, %v4254
    %v4256 = vsel %vm3213, %v4128, 0.0
    %v4257 = vadd.f32 %v4255, %v4256
    %v4258 = vrot.slane %v4257, 4
    %v4259 = vadd.f32 %v4257, %v4258
    %v4260 = vrot.slane %v4259, 2
    %v4261 = vadd.f32 %v4259, %v4260
    %v4262 = vrot.slane %v4261, 1
    %v4263 = vadd.f32 %v4261, %v4262
    %v4264 = vrcp.pop 512.0
    %v4265 = vmul.f32 %v4263, %v4264
    %v4266 = vsub.f32 %v3813, %v4265
    %v4267 = vsub.f32 %v3818, %v4265
    %v4268 = vsub.f32 %v3823, %v4265
    %v4269 = vsub.f32 %v3828, %v4265
    %v4270 = vsub.f32 %v3833, %v4265
    %v4271 = vsub.f32 %v3838, %v4265
    %v4272 = vsub.f32 %v3843, %v4265
    %v4273 = vsub.f32 %v3848, %v4265
    %v4274 = vsub.f32 %v3853, %v4265
    %v4275 = vsub.f32 %v3858, %v4265
    %v4276 = vsub.f32 %v3863, %v4265
    %v4277 = vsub.f32 %v3868, %v4265
    %v4278 = vsub.f32 %v3873, %v4265
    %v4279 = vsub.f32 %v3878, %v4265
    %v4280 = vsub.f32 %v3883, %v4265
    %v4281 = vsub.f32 %v3888, %v4265
    %v4282 = vsub.f32 %v3893, %v4265
    %v4283 = vsub.f32 %v3898, %v4265
    %v4284 = vsub.f32 %v3903, %v4265
    %v4285 = vsub.f32 %v3908, %v4265
    %v4286 = vsub.f32 %v3913, %v4265
    %v4287 = vsub.f32 %v3918, %v4265
    %v4288 = vsub.f32 %v3923, %v4265
    %v4289 = vsub.f32 %v3928, %v4265
    %v4290 = vsub.f32 %v3933, %v4265
    %v4291 = vsub.f32 %v3938, %v4265
    %v4292 = vsub.f32 %v3943, %v4265
    %v4293 = vsub.f32 %v3948, %v4265
    %v4294 = vsub.f32 %v3953, %v4265
    %v4295 = vsub.f32 %v3958, %v4265
    %v4296 = vsub.f32 %v3963, %v4265
    %v4297 = vsub.f32 %v3968, %v4265
    %v4298 = vsub.f32 %v3973, %v4265
    %v4299 = vsub.f32 %v3978, %v4265
    %v4300 = vsub.f32 %v3983, %v4265
    %v4301 = vsub.f32 %v3988, %v4265
    %v4302 = vsub.f32 %v3993, %v4265
    %v4303 = vsub.f32 %v3998, %v4265
    %v4304 = vsub.f32 %v4003, %v4265
    %v4305 = vsub.f32 %v4008, %v4265
    %v4306 = vsub.f32 %v4013, %v4265
    %v4307 = vsub.f32 %v4018, %v4265
    %v4308 = vsub.f32 %v4023, %v4265
    %v4309 = vsub.f32 %v4028, %v4265
    %v4310 = vsub.f32 %v4033, %v4265
    %v4311 = vsub.f32 %v4038, %v4265
    %v4312 = vsub.f32 %v4043, %v4265
    %v4313 = vsub.f32 %v4048, %v4265
    %v4314 = vsub.f32 %v4053, %v4265
    %v4315 = vsub.f32 %v4058, %v4265
    %v4316 = vsub.f32 %v4063, %v4265
    %v4317 = vsub.f32 %v4068, %v4265
    %v4318 = vsub.f32 %v4073, %v4265
    %v4319 = vsub.f32 %v4078, %v4265
    %v4320 = vsub.f32 %v4083, %v4265
    %v4321 = vsub.f32 %v4088, %v4265
    %v4322 = vsub.f32 %v4093, %v4265
    %v4323 = vsub.f32 %v4098, %v4265
    %v4324 = vsub.f32 %v4103, %v4265
    %v4325 = vsub.f32 %v4108, %v4265
    %v4326 = vsub.f32 %v4113, %v4265
    %v4327 = vsub.f32 %v4118, %v4265
    %v4328 = vsub.f32 %v4123, %v4265
    %v4329 = vsub.f32 %v4128, %v4265
    %v4330 = vmul.f32 %v4266, %v4266
    %v4331 = vmul.f32 %v4267, %v4267
    %v4332 = vmul.f32 %v4268, %v4268
    %v4333 = vmul.f32 %v4269, %v4269
    %v4334 = vmul.f32 %v4270, %v4270
    %v4335 = vmul.f32 %v4271, %v4271
    %v4336 = vmul.f32 %v4272, %v4272
    %v4337 = vmul.f32 %v4273, %v4273
    %v4338 = vmul.f32 %v4274, %v4274
    %v4339 = vmul.f32 %v4275, %v4275
    %v4340 = vmul.f32 %v4276, %v4276
    %v4341 = vmul.f32 %v4277, %v4277
    %v4342 = vmul.f32 %v4278, %v4278
    %v4343 = vmul.f32 %v4279, %v4279
    %v4344 = vmul.f32 %v4280, %v4280
    %v4345 = vmul.f32 %v4281, %v4281
    %v4346 = vmul.f32 %v4282, %v4282
    %v4347 = vmul.f32 %v4283, %v4283
    %v4348 = vmul.f32 %v4284, %v4284
    %v4349 = vmul.f32 %v4285, %v4285
    %v4350 = vmul.f32 %v4286, %v4286
    %v4351 = vmul.f32 %v4287, %v4287
    %v4352 = vmul.f32 %v4288, %v4288
    %v4353 = vmul.f32 %v4289, %v4289
    %v4354 = vmul.f32 %v4290, %v4290
    %v4355 = vmul.f32 %v4291, %v4291
    %v4356 = vmul.f32 %v4292, %v4292
    %v4357 = vmul.f32 %v4293, %v4293
    %v4358 = vmul.f32 %v4294, %v4294
    %v4359 = vmul.f32 %v4295, %v4295
    %v4360 = vmul.f32 %v4296, %v4296
    %v4361 = vmul.f32 %v4297, %v4297
    %v4362 = vmul.f32 %v4298, %v4298
    %v4363 = vmul.f32 %v4299, %v4299
    %v4364 = vmul.f32 %v4300, %v4300
    %v4365 = vmul.f32 %v4301, %v4301
    %v4366 = vmul.f32 %v4302, %v4302
    %v4367 = vmul.f32 %v4303, %v4303
    %v4368 = vmul.f32 %v4304, %v4304
    %v4369 = vmul.f32 %v4305, %v4305
    %v4370 = vmul.f32 %v4306, %v4306
    %v4371 = vmul.f32 %v4307, %v4307
    %v4372 = vmul.f32 %v4308, %v4308
    %v4373 = vmul.f32 %v4309, %v4309
    %v4374 = vmul.f32 %v4310, %v4310
    %v4375 = vmul.f32 %v4311, %v4311
    %v4376 = vmul.f32 %v4312, %v4312
    %v4377 = vmul.f32 %v4313, %v4313
    %v4378 = vmul.f32 %v4314, %v4314
    %v4379 = vmul.f32 %v4315, %v4315
    %v4380 = vmul.f32 %v4316, %v4316
    %v4381 = vmul.f32 %v4317, %v4317
    %v4382 = vmul.f32 %v4318, %v4318
    %v4383 = vmul.f32 %v4319, %v4319
    %v4384 = vmul.f32 %v4320, %v4320
    %v4385 = vmul.f32 %v4321, %v4321
    %v4386 = vmul.f32 %v4322, %v4322
    %v4387 = vmul.f32 %v4323, %v4323
    %v4388 = vmul.f32 %v4324, %v4324
    %v4389 = vmul.f32 %v4325, %v4325
    %v4390 = vmul.f32 %v4326, %v4326
    %v4391 = vmul.f32 %v4327, %v4327
    %v4392 = vmul.f32 %v4328, %v4328
    %v4393 = vmul.f32 %v4329, %v4329
    %v4394 = vsel %vm3213, %v4330, 0.0
    %v4395 = vsel %vm3213, %v4331, 0.0
    %v4396 = vadd.f32 %v4394, %v4395
    %v4397 = vsel %vm3213, %v4332, 0.0
    %v4398 = vadd.f32 %v4396, %v4397
    %v4399 = vsel %vm3213, %v4333, 0.0
    %v4400 = vadd.f32 %v4398, %v4399
    %v4401 = vsel %vm3213, %v4334, 0.0
    %v4402 = vadd.f32 %v4400, %v4401
    %v4403 = vsel %vm3213, %v4335, 0.0
    %v4404 = vadd.f32 %v4402, %v4403
    %v4405 = vsel %vm3213, %v4336, 0.0
    %v4406 = vadd.f32 %v4404, %v4405
    %v4407 = vsel %vm3213, %v4337, 0.0
    %v4408 = vadd.f32 %v4406, %v4407
    %v4409 = vsel %vm3213, %v4338, 0.0
    %v4410 = vadd.f32 %v4408, %v4409
    %v4411 = vsel %vm3213, %v4339, 0.0
    %v4412 = vadd.f32 %v4410, %v4411
    %v4413 = vsel %vm3213, %v4340, 0.0
    %v4414 = vadd.f32 %v4412, %v4413
    %v4415 = vsel %vm3213, %v4341, 0.0
    %v4416 = vadd.f32 %v4414, %v4415
    %v4417 = vsel %vm3213, %v4342, 0.0
    %v4418 = vadd.f32 %v4416, %v4417
    %v4419 = vsel %vm3213, %v4343, 0.0
    %v4420 = vadd.f32 %v4418, %v4419
    %v4421 = vsel %vm3213, %v4344, 0.0
    %v4422 = vadd.f32 %v4420, %v4421
    %v4423 = vsel %vm3213, %v4345, 0.0
    %v4424 = vadd.f32 %v4422, %v4423
    %v4425 = vsel %vm3213, %v4346, 0.0
    %v4426 = vadd.f32 %v4424, %v4425
    %v4427 = vsel %vm3213, %v4347, 0.0
    %v4428 = vadd.f32 %v4426, %v4427
    %v4429 = vsel %vm3213, %v4348, 0.0
    %v4430 = vadd.f32 %v4428, %v4429
    %v4431 = vsel %vm3213, %v4349, 0.0
    %v4432 = vadd.f32 %v4430, %v4431
    %v4433 = vsel %vm3213, %v4350, 0.0
    %v4434 = vadd.f32 %v4432, %v4433
    %v4435 = vsel %vm3213, %v4351, 0.0
    %v4436 = vadd.f32 %v4434, %v4435
    %v4437 = vsel %vm3213, %v4352, 0.0
    %v4438 = vadd.f32 %v4436, %v4437
    %v4439 = vsel %vm3213, %v4353, 0.0
    %v4440 = vadd.f32 %v4438, %v4439
    %v4441 = vsel %vm3213, %v4354, 0.0
    %v4442 = vadd.f32 %v4440, %v4441
    %v4443 = vsel %vm3213, %v4355, 0.0
    %v4444 = vadd.f32 %v4442, %v4443
    %v4445 = vsel %vm3213, %v4356, 0.0
    %v4446 = vadd.f32 %v4444, %v4445
    %v4447 = vsel %vm3213, %v4357, 0.0
    %v4448 = vadd.f32 %v4446, %v4447
    %v4449 = vsel %vm3213, %v4358, 0.0
    %v4450 = vadd.f32 %v4448, %v4449
    %v4451 = vsel %vm3213, %v4359, 0.0
    %v4452 = vadd.f32 %v4450, %v4451
    %v4453 = vsel %vm3213, %v4360, 0.0
    %v4454 = vadd.f32 %v4452, %v4453
    %v4455 = vsel %vm3213, %v4361, 0.0
    %v4456 = vadd.f32 %v4454, %v4455
    %v4457 = vsel %vm3213, %v4362, 0.0
    %v4458 = vadd.f32 %v4456, %v4457
    %v4459 = vsel %vm3213, %v4363, 0.0
    %v4460 = vadd.f32 %v4458, %v4459
    %v4461 = vsel %vm3213, %v4364, 0.0
    %v4462 = vadd.f32 %v4460, %v4461
    %v4463 = vsel %vm3213, %v4365, 0.0
    %v4464 = vadd.f32 %v4462, %v4463
    %v4465 = vsel %vm3213, %v4366, 0.0
    %v4466 = vadd.f32 %v4464, %v4465
    %v4467 = vsel %vm3213, %v4367, 0.0
    %v4468 = vadd.f32 %v4466, %v4467
    %v4469 = vsel %vm3213, %v4368, 0.0
    %v4470 = vadd.f32 %v4468, %v4469
    %v4471 = vsel %vm3213, %v4369, 0.0
    %v4472 = vadd.f32 %v4470, %v4471
    %v4473 = vsel %vm3213, %v4370, 0.0
    %v4474 = vadd.f32 %v4472, %v4473
    %v4475 = vsel %vm3213, %v4371, 0.0
    %v4476 = vadd.f32 %v4474, %v4475
    %v4477 = vsel %vm3213, %v4372, 0.0
    %v4478 = vadd.f32 %v4476, %v4477
    %v4479 = vsel %vm3213, %v4373, 0.0
    %v4480 = vadd.f32 %v4478, %v4479
    %v4481 = vsel %vm3213, %v4374, 0.0
    %v4482 = vadd.f32 %v4480, %v4481
    %v4483 = vsel %vm3213, %v4375, 0.0
    %v4484 = vadd.f32 %v4482, %v4483
    %v4485 = vsel %vm3213, %v4376, 0.0
    %v4486 = vadd.f32 %v4484, %v4485
    %v4487 = vsel %vm3213, %v4377, 0.0
    %v4488 = vadd.f32 %v4486, %v4487
    %v4489 = vsel %vm3213, %v4378, 0.0
    %v4490 = vadd.f32 %v4488, %v4489
    %v4491 = vsel %vm3213, %v4379, 0.0
    %v4492 = vadd.f32 %v4490, %v4491
    %v4493 = vsel %vm3213, %v4380, 0.0
    %v4494 = vadd.f32 %v4492, %v4493
    %v4495 = vsel %vm3213, %v4381, 0.0
    %v4496 = vadd.f32 %v4494, %v4495
    %v4497 = vsel %vm3213, %v4382, 0.0
    %v4498 = vadd.f32 %v4496, %v4497
    %v4499 = vsel %vm3213, %v4383, 0.0
    %v4500 = vadd.f32 %v4498, %v4499
    %v4501 = vsel %vm3213, %v4384, 0.0
    %v4502 = vadd.f32 %v4500, %v4501
    %v4503 = vsel %vm3213, %v4385, 0.0
    %v4504 = vadd.f32 %v4502, %v4503
    %v4505 = vsel %vm3213, %v4386, 0.0
    %v4506 = vadd.f32 %v4504, %v4505
    %v4507 = vsel %vm3213, %v4387, 0.0
    %v4508 = vadd.f32 %v4506, %v4507
    %v4509 = vsel %vm3213, %v4388, 0.0
    %v4510 = vadd.f32 %v4508, %v4509
    %v4511 = vsel %vm3213, %v4389, 0.0
    %v4512 = vadd.f32 %v4510, %v4511
    %v4513 = vsel %vm3213, %v4390, 0.0
    %v4514 = vadd.f32 %v4512, %v4513
    %v4515 = vsel %vm3213, %v4391, 0.0
    %v4516 = vadd.f32 %v4514, %v4515
    %v4517 = vsel %vm3213, %v4392, 0.0
    %v4518 = vadd.f32 %v4516, %v4517
    %v4519 = vsel %vm3213, %v4393, 0.0
    %v4520 = vadd.f32 %v4518, %v4519
    %v4521 = vrot.slane %v4520, 4
    %v4522 = vadd.f32 %v4520, %v4521
    %v4523 = vrot.slane %v4522, 2
    %v4524 = vadd.f32 %v4522, %v4523
    %v4525 = vrot.slane %v4524, 1
    %v4526 = vadd.f32 %v4524, %v4525
    %v4527 = vmul.f32 %v4526, %v4264
    %v4528 = vld [vmem:[#allocation8] sm:$0x1]
    %v4529 = vadd.f32 %v4527, 1e-05
    %v4530 = vrsqrt.pop %v4529
    %v4531 = vmul.f32 %v4528, %v4530
    %v4533 = vlaneseq
    %v4534 = vshrl.u32 %v4533, 7
    %v4535 = vsub.s32 0, %v4534
    %v4536 = vrot.slane %v4531, %v4535
    %v4538 = vmul.f32 %v4266, %v4536
    %v4539 = vmul.f32 %v4267, %v4536
    %v4540 = vmul.f32 %v4268, %v4536
    %v4541 = vmul.f32 %v4269, %v4536
    %v4542 = vmul.f32 %v4270, %v4536
    %v4543 = vmul.f32 %v4271, %v4536
    %v4544 = vmul.f32 %v4272, %v4536
    %v4545 = vmul.f32 %v4273, %v4536
    %v4546 = vmul.f32 %v4274, %v4536
    %v4547 = vmul.f32 %v4275, %v4536
    %v4548 = vmul.f32 %v4276, %v4536
    %v4549 = vmul.f32 %v4277, %v4536
    %v4550 = vmul.f32 %v4278, %v4536
    %v4551 = vmul.f32 %v4279, %v4536
    %v4552 = vmul.f32 %v4280, %v4536
    %v4553 = vmul.f32 %v4281, %v4536
    %v4554 = vmul.f32 %v4282, %v4536
    %v4555 = vmul.f32 %v4283, %v4536
    %v4556 = vmul.f32 %v4284, %v4536
    %v4557 = vmul.f32 %v4285, %v4536
    %v4558 = vmul.f32 %v4286, %v4536
    %v4559 = vmul.f32 %v4287, %v4536
    %v4560 = vmul.f32 %v4288, %v4536
    %v4561 = vmul.f32 %v4289, %v4536
    %v4562 = vmul.f32 %v4290, %v4536
    %v4563 = vmul.f32 %v4291, %v4536
    %v4564 = vmul.f32 %v4292, %v4536
    %v4565 = vmul.f32 %v4293, %v4536
    %v4566 = vmul.f32 %v4294, %v4536
    %v4567 = vmul.f32 %v4295, %v4536
    %v4568 = vmul.f32 %v4296, %v4536
    %v4569 = vmul.f32 %v4297, %v4536
    %v4570 = vmul.f32 %v4298, %v4536
    %v4571 = vmul.f32 %v4299, %v4536
    %v4572 = vmul.f32 %v4300, %v4536
    %v4573 = vmul.f32 %v4301, %v4536
    %v4574 = vmul.f32 %v4302, %v4536
    %v4575 = vmul.f32 %v4303, %v4536
    %v4576 = vmul.f32 %v4304, %v4536
    %v4577 = vmul.f32 %v4305, %v4536
    %v4578 = vmul.f32 %v4306, %v4536
    %v4579 = vmul.f32 %v4307, %v4536
    %v4580 = vmul.f32 %v4308, %v4536
    %v4581 = vmul.f32 %v4309, %v4536
    %v4582 = vmul.f32 %v4310, %v4536
    %v4583 = vmul.f32 %v4311, %v4536
    %v4584 = vmul.f32 %v4312, %v4536
    %v4585 = vmul.f32 %v4313, %v4536
    %v4586 = vmul.f32 %v4314, %v4536
    %v4587 = vmul.f32 %v4315, %v4536
    %v4588 = vmul.f32 %v4316, %v4536
    %v4589 = vmul.f32 %v4317, %v4536
    %v4590 = vmul.f32 %v4318, %v4536
    %v4591 = vmul.f32 %v4319, %v4536
    %v4592 = vmul.f32 %v4320, %v4536
    %v4593 = vmul.f32 %v4321, %v4536
    %v4594 = vmul.f32 %v4322, %v4536
    %v4595 = vmul.f32 %v4323, %v4536
    %v4596 = vmul.f32 %v4324, %v4536
    %v4597 = vmul.f32 %v4325, %v4536
    %v4598 = vmul.f32 %v4326, %v4536
    %v4599 = vmul.f32 %v4327, %v4536
    %v4600 = vmul.f32 %v4328, %v4536
    %v4601 = vmul.f32 %v4329, %v4536
    %v4602 = vld [vmem:[#allocation10] sm:$0x1]
    %v4604 = vlaneseq
    %v4605 = vshrl.u32 %v4604, 7
    %v4606 = vsub.s32 0, %v4605
    %v4607 = vrot.slane %v4602, %v4606
    %v4609 = vadd.f32 %v4538, %v4607
    %v4610 = vadd.f32 %v4539, %v4607
    %v4611 = vadd.f32 %v4540, %v4607
    %v4612 = vadd.f32 %v4541, %v4607
    %v4613 = vadd.f32 %v4542, %v4607
    %v4614 = vadd.f32 %v4543, %v4607
    %v4615 = vadd.f32 %v4544, %v4607
    %v4616 = vadd.f32 %v4545, %v4607
    %v4617 = vadd.f32 %v4546, %v4607
    %v4618 = vadd.f32 %v4547, %v4607
    %v4619 = vadd.f32 %v4548, %v4607
    %v4620 = vadd.f32 %v4549, %v4607
    %v4621 = vadd.f32 %v4550, %v4607
    %v4622 = vadd.f32 %v4551, %v4607
    %v4623 = vadd.f32 %v4552, %v4607
    %v4624 = vadd.f32 %v4553, %v4607
    %v4625 = vadd.f32 %v4554, %v4607
    %v4626 = vadd.f32 %v4555, %v4607
    %v4627 = vadd.f32 %v4556, %v4607
    %v4628 = vadd.f32 %v4557, %v4607
    %v4629 = vadd.f32 %v4558, %v4607
    %v4630 = vadd.f32 %v4559, %v4607
    %v4631 = vadd.f32 %v4560, %v4607
    %v4632 = vadd.f32 %v4561, %v4607
    %v4633 = vadd.f32 %v4562, %v4607
    %v4634 = vadd.f32 %v4563, %v4607
    %v4635 = vadd.f32 %v4564, %v4607
    %v4636 = vadd.f32 %v4565, %v4607
    %v4637 = vadd.f32 %v4566, %v4607
    %v4638 = vadd.f32 %v4567, %v4607
    %v4639 = vadd.f32 %v4568, %v4607
    %v4640 = vadd.f32 %v4569, %v4607
    %v4641 = vadd.f32 %v4570, %v4607
    %v4642 = vadd.f32 %v4571, %v4607
    %v4643 = vadd.f32 %v4572, %v4607
    %v4644 = vadd.f32 %v4573, %v4607
    %v4645 = vadd.f32 %v4574, %v4607
    %v4646 = vadd.f32 %v4575, %v4607
    %v4647 = vadd.f32 %v4576, %v4607
    %v4648 = vadd.f32 %v4577, %v4607
    %v4649 = vadd.f32 %v4578, %v4607
    %v4650 = vadd.f32 %v4579, %v4607
    %v4651 = vadd.f32 %v4580, %v4607
    %v4652 = vadd.f32 %v4581, %v4607
    %v4653 = vadd.f32 %v4582, %v4607
    %v4654 = vadd.f32 %v4583, %v4607
    %v4655 = vadd.f32 %v4584, %v4607
    %v4656 = vadd.f32 %v4585, %v4607
    %v4657 = vadd.f32 %v4586, %v4607
    %v4658 = vadd.f32 %v4587, %v4607
    %v4659 = vadd.f32 %v4588, %v4607
    %v4660 = vadd.f32 %v4589, %v4607
    %v4661 = vadd.f32 %v4590, %v4607
    %v4662 = vadd.f32 %v4591, %v4607
    %v4663 = vadd.f32 %v4592, %v4607
    %v4664 = vadd.f32 %v4593, %v4607
    %v4665 = vadd.f32 %v4594, %v4607
    %v4666 = vadd.f32 %v4595, %v4607
    %v4667 = vadd.f32 %v4596, %v4607
    %v4668 = vadd.f32 %v4597, %v4607
    %v4669 = vadd.f32 %v4598, %v4607
    %v4670 = vadd.f32 %v4599, %v4607
    %v4671 = vadd.f32 %v4600, %v4607
    %v4672 = vadd.f32 %v4601, %v4607
    %v4673 = vmax.f32 %v4609, 0.0
    %v4674 = vmax.f32 %v4610, 0.0
    %v4675 = vmax.f32 %v4611, 0.0
    %v4676 = vmax.f32 %v4612, 0.0
    %v4677 = vmax.f32 %v4613, 0.0
    %v4678 = vmax.f32 %v4614, 0.0
    %v4679 = vmax.f32 %v4615, 0.0
    %v4680 = vmax.f32 %v4616, 0.0
    %v4681 = vmax.f32 %v4617, 0.0
    %v4682 = vmax.f32 %v4618, 0.0
    %v4683 = vmax.f32 %v4619, 0.0
    %v4684 = vmax.f32 %v4620, 0.0
    %v4685 = vmax.f32 %v4621, 0.0
    %v4686 = vmax.f32 %v4622, 0.0
    %v4687 = vmax.f32 %v4623, 0.0
    %v4688 = vmax.f32 %v4624, 0.0
    %v4689 = vmax.f32 %v4625, 0.0
    %v4690 = vmax.f32 %v4626, 0.0
    %v4691 = vmax.f32 %v4627, 0.0
    %v4692 = vmax.f32 %v4628, 0.0
    %v4693 = vmax.f32 %v4629, 0.0
    %v4694 = vmax.f32 %v4630, 0.0
    %v4695 = vmax.f32 %v4631, 0.0
    %v4696 = vmax.f32 %v4632, 0.0
    %v4697 = vmax.f32 %v4633, 0.0
    %v4698 = vmax.f32 %v4634, 0.0
    %v4699 = vmax.f32 %v4635, 0.0
    %v4700 = vmax.f32 %v4636, 0.0
    %v4701 = vmax.f32 %v4637, 0.0
    %v4702 = vmax.f32 %v4638, 0.0
    %v4703 = vmax.f32 %v4639, 0.0
    %v4704 = vmax.f32 %v4640, 0.0
    %v4705 = vmax.f32 %v4641, 0.0
    %v4706 = vmax.f32 %v4642, 0.0
    %v4707 = vmax.f32 %v4643, 0.0
    %v4708 = vmax.f32 %v4644, 0.0
    %v4709 = vmax.f32 %v4645, 0.0
    %v4710 = vmax.f32 %v4646, 0.0
    %v4711 = vmax.f32 %v4647, 0.0
    %v4712 = vmax.f32 %v4648, 0.0
    %v4713 = vmax.f32 %v4649, 0.0
    %v4714 = vmax.f32 %v4650, 0.0
    %v4715 = vmax.f32 %v4651, 0.0
    %v4716 = vmax.f32 %v4652, 0.0
    %v4717 = vmax.f32 %v4653, 0.0
    %v4718 = vmax.f32 %v4654, 0.0
    %v4719 = vmax.f32 %v4655, 0.0
    %v4720 = vmax.f32 %v4656, 0.0
    %v4721 = vmax.f32 %v4657, 0.0
    %v4722 = vmax.f32 %v4658, 0.0
    %v4723 = vmax.f32 %v4659, 0.0
    %v4724 = vmax.f32 %v4660, 0.0
    %v4725 = vmax.f32 %v4661, 0.0
    %v4726 = vmax.f32 %v4662, 0.0
    %v4727 = vmax.f32 %v4663, 0.0
    %v4728 = vmax.f32 %v4664, 0.0
    %v4729 = vmax.f32 %v4665, 0.0
    %v4730 = vmax.f32 %v4666, 0.0
    %v4731 = vmax.f32 %v4667, 0.0
    %v4732 = vmax.f32 %v4668, 0.0
    %v4733 = vmax.f32 %v4669, 0.0
    %v4734 = vmax.f32 %v4670, 0.0
    %v4735 = vmax.f32 %v4671, 0.0
    %v4736 = vmax.f32 %v4672, 0.0
    %v4737 = vmax.f32 %v4673, %v4675
    %v4738 = vmax.f32 %v4674, %v4676
    %v4739 = vmax.f32 %v4677, %v4679
    %v4740 = vmax.f32 %v4678, %v4680
    %v4741 = vmax.f32 %v4681, %v4683
    %v4742 = vmax.f32 %v4682, %v4684
    %v4743 = vmax.f32 %v4685, %v4687
    %v4744 = vmax.f32 %v4686, %v4688
    %v4745 = vmax.f32 %v4689, %v4691
    %v4746 = vmax.f32 %v4690, %v4692
    %v4747 = vmax.f32 %v4693, %v4695
    %v4748 = vmax.f32 %v4694, %v4696
    %v4749 = vmax.f32 %v4697, %v4699
    %v4750 = vmax.f32 %v4698, %v4700
    %v4751 = vmax.f32 %v4701, %v4703
    %v4752 = vmax.f32 %v4702, %v4704
    %v4753 = vmax.f32 %v4705, %v4707
    %v4754 = vmax.f32 %v4706, %v4708
    %v4755 = vmax.f32 %v4709, %v4711
    %v4756 = vmax.f32 %v4710, %v4712
    %v4757 = vmax.f32 %v4713, %v4715
    %v4758 = vmax.f32 %v4714, %v4716
    %v4759 = vmax.f32 %v4717, %v4719
    %v4760 = vmax.f32 %v4718, %v4720
    %v4761 = vmax.f32 %v4721, %v4723
    %v4762 = vmax.f32 %v4722, %v4724
    %v4763 = vmax.f32 %v4725, %v4727
    %v4764 = vmax.f32 %v4726, %v4728
    %v4765 = vmax.f32 %v4729, %v4731
    %v4766 = vmax.f32 %v4730, %v4732
    %v4767 = vmax.f32 %v4733, %v4735
    %v4768 = vmax.f32 %v4734, %v4736
    %4769 = vst.msk [vmem:[#allocation3] sm:$0xff] %vm3213, %v4737
    %4770 = vst.msk [vmem:[#allocation3 + $0x8] sm:$0xff] %vm3213, %v4738
    %4771 = vst.msk [vmem:[#allocation3 + $0x10] sm:$0xff] %vm3213, %v4739
    %4772 = vst.msk [vmem:[#allocation3 + $0x18] sm:$0xff] %vm3213, %v4740
    %4773 = vst.msk [vmem:[#allocation3 + $0x20] sm:$0xff] %vm3213, %v4741
    %4774 = vst.msk [vmem:[#allocation3 + $0x28] sm:$0xff] %vm3213, %v4742
    %4775 = vst.msk [vmem:[#allocation3 + $0x30] sm:$0xff] %vm3213, %v4743
    %4776 = vst.msk [vmem:[#allocation3 + $0x38] sm:$0xff] %vm3213, %v4744
    %4777 = vst.msk [vmem:[#allocation3 + $0x40] sm:$0xff] %vm3213, %v4745
    %4778 = vst.msk [vmem:[#allocation3 + $0x48] sm:$0xff] %vm3213, %v4746
    %4779 = vst.msk [vmem:[#allocation3 + $0x50] sm:$0xff] %vm3213, %v4747
    %4780 = vst.msk [vmem:[#allocation3 + $0x58] sm:$0xff] %vm3213, %v4748
    %4781 = vst.msk [vmem:[#allocation3 + $0x60] sm:$0xff] %vm3213, %v4749
    %4782 = vst.msk [vmem:[#allocation3 + $0x68] sm:$0xff] %vm3213, %v4750
    %4783 = vst.msk [vmem:[#allocation3 + $0x70] sm:$0xff] %vm3213, %v4751
    %4784 = vst.msk [vmem:[#allocation3 + $0x78] sm:$0xff] %vm3213, %v4752
    %4785 = vst.msk [vmem:[#allocation3 + $0x80] sm:$0xff] %vm3213, %v4753
    %4786 = vst.msk [vmem:[#allocation3 + $0x88] sm:$0xff] %vm3213, %v4754
    %4787 = vst.msk [vmem:[#allocation3 + $0x90] sm:$0xff] %vm3213, %v4755
    %4788 = vst.msk [vmem:[#allocation3 + $0x98] sm:$0xff] %vm3213, %v4756
    %4789 = vst.msk [vmem:[#allocation3 + $0xa0] sm:$0xff] %vm3213, %v4757
    %4790 = vst.msk [vmem:[#allocation3 + $0xa8] sm:$0xff] %vm3213, %v4758
    %4791 = vst.msk [vmem:[#allocation3 + $0xb0] sm:$0xff] %vm3213, %v4759
    %4792 = vst.msk [vmem:[#allocation3 + $0xb8] sm:$0xff] %vm3213, %v4760
    %4793 = vst.msk [vmem:[#allocation3 + $0xc0] sm:$0xff] %vm3213, %v4761
    %4794 = vst.msk [vmem:[#allocation3 + $0xc8] sm:$0xff] %vm3213, %v4762
    %4795 = vst.msk [vmem:[#allocation3 + $0xd0] sm:$0xff] %vm3213, %v4763
    %4796 = vst.msk [vmem:[#allocation3 + $0xd8] sm:$0xff] %vm3213, %v4764
    %4797 = vst.msk [vmem:[#allocation3 + $0xe0] sm:$0xff] %vm3213, %v4765
    %4798 = vst.msk [vmem:[#allocation3 + $0xe8] sm:$0xff] %vm3213, %v4766
    %4799 = vst.msk [vmem:[#allocation3 + $0xf0] sm:$0xff] %vm3213, %v4767
    %4800 = vst.msk [vmem:[#allocation3 + $0xf8] sm:$0xff] %vm3213, %v4768
    %v4801 = vld [vmem:[#allocation3] ss:$2 sm:$0xff]
    %s4802 = scalar_lea.vmem [#allocation3], 16
    %v4803 = vld [vmem:[%s4802] ss:$2 sm:$0xff]
    %s4804 = scalar_lea.vmem [#allocation3], 32
    %v4805 = vld [vmem:[%s4804] ss:$2 sm:$0xff]
    %s4806 = scalar_lea.vmem [#allocation3], 48
    %v4807 = vld [vmem:[%s4806] ss:$2 sm:$0xff]
    %s4808 = scalar_lea.vmem [#allocation3], 64
    %v4809 = vld [vmem:[%s4808] ss:$2 sm:$0xff]
    %s4810 = scalar_lea.vmem [#allocation3], 80
    %v4811 = vld [vmem:[%s4810] ss:$2 sm:$0xff]
    %s4812 = scalar_lea.vmem [#allocation3], 96
    %v4813 = vld [vmem:[%s4812] ss:$2 sm:$0xff]
    %s4814 = scalar_lea.vmem [#allocation3], 112
    %v4815 = vld [vmem:[%s4814] ss:$2 sm:$0xff]
    %s4816 = scalar_lea.vmem [#allocation3], 128
    %v4817 = vld [vmem:[%s4816] ss:$2 sm:$0xff]
    %s4818 = scalar_lea.vmem [#allocation3], 144
    %v4819 = vld [vmem:[%s4818] ss:$2 sm:$0xff]
    %s4820 = scalar_lea.vmem [#allocation3], 160
    %v4821 = vld [vmem:[%s4820] ss:$2 sm:$0xff]
    %s4822 = scalar_lea.vmem [#allocation3], 176
    %v4823 = vld [vmem:[%s4822] ss:$2 sm:$0xff]
    %s4824 = scalar_lea.vmem [#allocation3], 192
    %v4825 = vld [vmem:[%s4824] ss:$2 sm:$0xff]
    %s4826 = scalar_lea.vmem [#allocation3], 208
    %v4827 = vld [vmem:[%s4826] ss:$2 sm:$0xff]
    %s4828 = scalar_lea.vmem [#allocation3], 224
    %v4829 = vld [vmem:[%s4828] ss:$2 sm:$0xff]
    %s4830 = scalar_lea.vmem [#allocation3], 240
    %v4831 = vld [vmem:[%s4830] ss:$2 sm:$0xff]
    %s4832 = scalar_lea.vmem [#allocation3], 1
    %v4833 = vld [vmem:[%s4832] ss:$2 sm:$0xff]
    %s4834 = scalar_lea.vmem [#allocation3], 17
    %v4835 = vld [vmem:[%s4834] ss:$2 sm:$0xff]
    %s4836 = scalar_lea.vmem [#allocation3], 33
    %v4837 = vld [vmem:[%s4836] ss:$2 sm:$0xff]
    %s4838 = scalar_lea.vmem [#allocation3], 49
    %v4839 = vld [vmem:[%s4838] ss:$2 sm:$0xff]
    %s4840 = scalar_lea.vmem [#allocation3], 65
    %v4841 = vld [vmem:[%s4840] ss:$2 sm:$0xff]
    %s4842 = scalar_lea.vmem [#allocation3], 81
    %v4843 = vld [vmem:[%s4842] ss:$2 sm:$0xff]
    %s4844 = scalar_lea.vmem [#allocation3], 97
    %v4845 = vld [vmem:[%s4844] ss:$2 sm:$0xff]
    %s4846 = scalar_lea.vmem [#allocation3], 113
    %v4847 = vld [vmem:[%s4846] ss:$2 sm:$0xff]
    %s4848 = scalar_lea.vmem [#allocation3], 129
    %v4849 = vld [vmem:[%s4848] ss:$2 sm:$0xff]
    %s4850 = scalar_lea.vmem [#allocation3], 145
    %v4851 = vld [vmem:[%s4850] ss:$2 sm:$0xff]
    %s4852 = scalar_lea.vmem [#allocation3], 161
    %v4853 = vld [vmem:[%s4852] ss:$2 sm:$0xff]
    %s4854 = scalar_lea.vmem [#allocation3], 177
    %v4855 = vld [vmem:[%s4854] ss:$2 sm:$0xff]
    %s4856 = scalar_lea.vmem [#allocation3], 193
    %v4857 = vld [vmem:[%s4856] ss:$2 sm:$0xff]
    %s4858 = scalar_lea.vmem [#allocation3], 209
    %v4859 = vld [vmem:[%s4858] ss:$2 sm:$0xff]
    %s4860 = scalar_lea.vmem [#allocation3], 225
    %v4861 = vld [vmem:[%s4860] ss:$2 sm:$0xff]
    %s4862 = scalar_lea.vmem [#allocation3], 241
    %v4863 = vld [vmem:[%s4862] ss:$2 sm:$0xff]
    %v4864 = vmax.f32 %v4801, %v4833
    %v4865 = vmax.f32 %v4803, %v4835
    %v4866 = vmax.f32 %v4805, %v4837
    %v4867 = vmax.f32 %v4807, %v4839
    %v4868 = vmax.f32 %v4809, %v4841
    %v4869 = vmax.f32 %v4811, %v4843
    %v4870 = vmax.f32 %v4813, %v4845
    %v4871 = vmax.f32 %v4815, %v4847
    %v4872 = vmax.f32 %v4817, %v4849
    %v4873 = vmax.f32 %v4819, %v4851
    %v4874 = vmax.f32 %v4821, %v4853
    %v4875 = vmax.f32 %v4823, %v4855
    %v4876 = vmax.f32 %v4825, %v4857
    %v4877 = vmax.f32 %v4827, %v4859
    %v4878 = vmax.f32 %v4829, %v4861
    %v4879 = vmax.f32 %v4831, %v4863
    %4880 = vst.msk [vmem:[#allocation4] sm:$0xff] %vm3213, 0.0
    %4881 = vst.msk [vmem:[#allocation4 + $0x8] sm:$0xff] %vm3213, 0.0
    %vm4882 = vcmask 90112
    %4883 = vst.msk [vmem:[#allocation4 + $0x10] sm:$0x1] %vm4882, 0.0
    %4884 = vst.msk [vmem:[#allocation4 + $0x18] sm:$0xff] %vm3213, 0.0
    %4885 = vst.msk [vmem:[#allocation4 + $0x20] sm:$0xff] %vm3213, 0.0
    %4886 = vst.msk [vmem:[#allocation4 + $0x28] sm:$0x1] %vm4882, 0.0
    %4887 = vst.msk [vmem:[#allocation4 + $0x30] sm:$0xff] %vm3213, 0.0
    %4888 = vst.msk [vmem:[#allocation4 + $0x38] sm:$0xff] %vm3213, 0.0
    %4889 = vst.msk [vmem:[#allocation4 + $0x40] sm:$0x1] %vm4882, 0.0
    %4890 = vst.msk [vmem:[#allocation4 + $0x48] sm:$0xff] %vm3213, 0.0
    %4891 = vst.msk [vmem:[#allocation4 + $0x50] sm:$0xff] %vm3213, 0.0
    %4892 = vst.msk [vmem:[#allocation4 + $0x58] sm:$0x1] %vm4882, 0.0
    %4893 = vst.msk [vmem:[#allocation4 + $0x60] sm:$0xff] %vm3213, 0.0
    %4894 = vst.msk [vmem:[#allocation4 + $0x68] sm:$0xff] %vm3213, 0.0
    %4895 = vst.msk [vmem:[#allocation4 + $0x70] sm:$0x1] %vm4882, 0.0
    %4896 = vst.msk [vmem:[#allocation4 + $0x78] sm:$0xff] %vm3213, 0.0
    %4897 = vst.msk [vmem:[#allocation4 + $0x80] sm:$0xff] %vm3213, 0.0
    %4898 = vst.msk [vmem:[#allocation4 + $0x88] sm:$0x1] %vm4882, 0.0
    %4899 = vst.msk [vmem:[#allocation4 + $0x90] sm:$0xff] %vm3213, 0.0
    %4900 = vst.msk [vmem:[#allocation4 + $0x98] sm:$0xff] %vm3213, 0.0
    %4901 = vst.msk [vmem:[#allocation4 + $0xa0] sm:$0x1] %vm4882, 0.0
    %4902 = vst.msk [vmem:[#allocation4 + $0xa8] sm:$0xff] %vm3213, 0.0
    %4903 = vst.msk [vmem:[#allocation4 + $0xb0] sm:$0xff] %vm3213, 0.0
    %4904 = vst.msk [vmem:[#allocation4 + $0xb8] sm:$0x1] %vm4882, 0.0
    %4905 = vst.msk [vmem:[#allocation4 + $0xc0] sm:$0xff] %vm3213, 0.0
    %4906 = vst.msk [vmem:[#allocation4 + $0xc8] sm:$0xff] %vm3213, 0.0
    %4907 = vst.msk [vmem:[#allocation4 + $0xd0] sm:$0x1] %vm4882, 0.0
    %4908 = vst.msk [vmem:[#allocation4 + $0xd8] sm:$0xff] %vm3213, 0.0
    %4909 = vst.msk [vmem:[#allocation4 + $0xe0] sm:$0xff] %vm3213, 0.0
    %4910 = vst.msk [vmem:[#allocation4 + $0xe8] sm:$0x1] %vm4882, 0.0
    %4911 = vst.msk [vmem:[#allocation4 + $0xf0] sm:$0xff] %vm3213, 0.0
    %4912 = vst.msk [vmem:[#allocation4 + $0xf8] sm:$0xff] %vm3213, 0.0
    %4913 = vst.msk [vmem:[#allocation4 + $0x100] sm:$0x1] %vm4882, 0.0
    %4914 = vst.msk [vmem:[#allocation4 + $0x108] sm:$0xff] %vm3213, 0.0
    %4915 = vst.msk [vmem:[#allocation4 + $0x110] sm:$0xff] %vm3213, 0.0
    %4916 = vst.msk [vmem:[#allocation4 + $0x118] sm:$0x1] %vm4882, 0.0
    %4917 = vst.msk [vmem:[#allocation4 + $0x120] sm:$0xff] %vm3213, 0.0
    %4918 = vst.msk [vmem:[#allocation4 + $0x128] sm:$0xff] %vm3213, 0.0
    %4919 = vst.msk [vmem:[#allocation4 + $0x130] sm:$0x1] %vm4882, 0.0
    %4920 = vst.msk [vmem:[#allocation4 + $0x138] sm:$0xff] %vm3213, 0.0
    %4921 = vst.msk [vmem:[#allocation4 + $0x140] sm:$0xff] %vm3213, 0.0
    %4922 = vst.msk [vmem:[#allocation4 + $0x148] sm:$0x1] %vm4882, 0.0
    %4923 = vst.msk [vmem:[#allocation4 + $0x150] sm:$0xff] %vm3213, 0.0
    %4924 = vst.msk [vmem:[#allocation4 + $0x158] sm:$0xff] %vm3213, 0.0
    %4925 = vst.msk [vmem:[#allocation4 + $0x160] sm:$0x1] %vm4882, 0.0
    %4926 = vst.msk [vmem:[#allocation4 + $0x168] sm:$0xff] %vm3213, 0.0
    %4927 = vst.msk [vmem:[#allocation4 + $0x170] sm:$0xff] %vm3213, 0.0
    %4928 = vst.msk [vmem:[#allocation4 + $0x178] sm:$0x1] %vm4882, 0.0
    %4929 = vst.msk [vmem:[#allocation4 + $0x180] sm:$0xff] %vm3213, 0.0
    %4930 = vst.msk [vmem:[#allocation4 + $0x188] sm:$0xff] %vm3213, 0.0
    %4931 = vst.msk [vmem:[#allocation4 + $0x190] sm:$0x1] %vm4882, 0.0
    %4932 = vst.msk [vmem:[#allocation4 + $0x198] sm:$0xff] %vm3213, 0.0
    %4933 = vst.msk [vmem:[#allocation4 + $0x1a0] sm:$0xff] %vm3213, 0.0
    %4934 = vst.msk [vmem:[#allocation4 + $0x1a8] sm:$0x1] %vm4882, 0.0
    %4935 = vst.msk [vmem:[#allocation4 + $0x1b0] sm:$0xff] %vm3213, 0.0
    %4936 = vst.msk [vmem:[#allocation4 + $0x1b8] sm:$0xff] %vm3213, 0.0
    %4937 = vst.msk [vmem:[#allocation4 + $0x1c0] sm:$0x1] %vm4882, 0.0
    %4938 = vst.msk [vmem:[#allocation4 + $0x1c8] sm:$0xff] %vm3213, 0.0
    %4939 = vst.msk [vmem:[#allocation4 + $0x1d0] sm:$0xff] %vm3213, 0.0
    %4940 = vst.msk [vmem:[#allocation4 + $0x1d8] sm:$0x1] %vm4882, 0.0
    %s4941 = scalar_lea.vmem [#allocation4], 24
    %4942 = vst.msk [vmem:[%s4941 + $0x8] sm:$0xff] %vm3213, %v4864
    %4943 = vst.msk [vmem:[%s4941 + $0x20] sm:$0xff] %vm3213, %v4865
    %4944 = vst.msk [vmem:[%s4941 + $0x38] sm:$0xff] %vm3213, %v4866
    %4945 = vst.msk [vmem:[%s4941 + $0x50] sm:$0xff] %vm3213, %v4867
    %4946 = vst.msk [vmem:[%s4941 + $0x68] sm:$0xff] %vm3213, %v4868
    %4947 = vst.msk [vmem:[%s4941 + $0x80] sm:$0xff] %vm3213, %v4869
    %4948 = vst.msk [vmem:[%s4941 + $0x98] sm:$0xff] %vm3213, %v4870
    %4949 = vst.msk [vmem:[%s4941 + $0xb0] sm:$0xff] %vm3213, %v4871
    %4950 = vst.msk [vmem:[%s4941 + $0xf8] sm:$0xff] %vm3213, %v4872
    %4951 = vst.msk [vmem:[%s4941 + $0x110] sm:$0xff] %vm3213, %v4873
    %4952 = vst.msk [vmem:[%s4941 + $0x128] sm:$0xff] %vm3213, %v4874
    %4953 = vst.msk [vmem:[%s4941 + $0x140] sm:$0xff] %vm3213, %v4875
    %4954 = vst.msk [vmem:[%s4941 + $0x158] sm:$0xff] %vm3213, %v4876
    %4955 = vst.msk [vmem:[%s4941 + $0x170] sm:$0xff] %vm3213, %v4877
    %4956 = vst.msk [vmem:[%s4941 + $0x188] sm:$0xff] %vm3213, %v4878
    %4957 = vst.msk [vmem:[%s4941 + $0x1a0] sm:$0xff] %vm3213, %v4879
    %v4958 = vld [vmem:[#allocation4 + $0x7] sm:$0xff]
    %v4959 = vld [vmem:[#allocation4 + $0x1f] sm:$0xff]
    %v4960 = vld [vmem:[#allocation4 + $0x37] sm:$0xff]
    %v4961 = vld [vmem:[#allocation4 + $0x4f] sm:$0xff]
    %v4962 = vld [vmem:[#allocation4 + $0x67] sm:$0xff]
    %v4963 = vld [vmem:[#allocation4 + $0x7f] sm:$0xff]
    %v4964 = vld [vmem:[#allocation4 + $0x97] sm:$0xff]
    %v4965 = vld [vmem:[#allocation4 + $0xaf] sm:$0xff]
    %v4966 = vld [vmem:[#allocation4 + $0xf7] sm:$0xff]
    %v4967 = vld [vmem:[#allocation4 + $0x10f] sm:$0xff]
    %v4968 = vld [vmem:[#allocation4 + $0x127] sm:$0xff]
    %v4969 = vld [vmem:[#allocation4 + $0x13f] sm:$0xff]
    %v4970 = vld [vmem:[#allocation4 + $0x157] sm:$0xff]
    %v4971 = vld [vmem:[#allocation4 + $0x16f] sm:$0xff]
    %v4972 = vld [vmem:[#allocation4 + $0x187] sm:$0xff]
    %v4973 = vld [vmem:[#allocation4 + $0x19f] sm:$0xff]
    %v4974 = vld [vmem:[#allocation4 + $0x8] sm:$0xff]
    %v4975 = vld [vmem:[#allocation4 + $0x20] sm:$0xff]
    %v4976 = vld [vmem:[#allocation4 + $0x38] sm:$0xff]
    %v4977 = vld [vmem:[#allocation4 + $0x50] sm:$0xff]
    %v4978 = vld [vmem:[#allocation4 + $0x68] sm:$0xff]
    %v4979 = vld [vmem:[#allocation4 + $0x80] sm:$0xff]
    %v4980 = vld [vmem:[#allocation4 + $0x98] sm:$0xff]
    %v4981 = vld [vmem:[#allocation4 + $0xb0] sm:$0xff]
    %v4982 = vld [vmem:[#allocation4 + $0xf8] sm:$0xff]
    %v4983 = vld [vmem:[#allocation4 + $0x110] sm:$0xff]
    %v4984 = vld [vmem:[#allocation4 + $0x128] sm:$0xff]
    %v4985 = vld [vmem:[#allocation4 + $0x140] sm:$0xff]
    %v4986 = vld [vmem:[#allocation4 + $0x158] sm:$0xff]
    %v4987 = vld [vmem:[#allocation4 + $0x170] sm:$0xff]
    %v4988 = vld [vmem:[#allocation4 + $0x188] sm:$0xff]
    %v4989 = vld [vmem:[#allocation4 + $0x1a0] sm:$0xff]
    %v4990 = vld [vmem:[#allocation4 + $0x9] sm:$0xff]
    %v4991 = vld [vmem:[#allocation4 + $0x21] sm:$0xff]
    %v4992 = vld [vmem:[#allocation4 + $0x39] sm:$0xff]
    %v4993 = vld [vmem:[#allocation4 + $0x51] sm:$0xff]
    %v4994 = vld [vmem:[#allocation4 + $0x69] sm:$0xff]
    %v4995 = vld [vmem:[#allocation4 + $0x81] sm:$0xff]
    %v4996 = vld [vmem:[#allocation4 + $0x99] sm:$0xff]
    %v4997 = vld [vmem:[#allocation4 + $0xb1] sm:$0xff]
    %v4998 = vld [vmem:[#allocation4 + $0xf9] sm:$0xff]
    %v4999 = vld [vmem:[#allocation4 + $0x111] sm:$0xff]
    %v5000 = vld [vmem:[#allocation4 + $0x129] sm:$0xff]
    %v5001 = vld [vmem:[#allocation4 + $0x141] sm:$0xff]
    %v5002 = vld [vmem:[#allocation4 + $0x159] sm:$0xff]
    %v5003 = vld [vmem:[#allocation4 + $0x171] sm:$0xff]
    %v5004 = vld [vmem:[#allocation4 + $0x189] sm:$0xff]
    %v5005 = vld [vmem:[#allocation4 + $0x1a1] sm:$0xff]
    %v5006 = vld [vmem:[%s4941 + $0x7] sm:$0xff]
    %v5007 = vld [vmem:[%s4941 + $0x1f] sm:$0xff]
    %v5008 = vld [vmem:[%s4941 + $0x37] sm:$0xff]
    %v5009 = vld [vmem:[%s4941 + $0x4f] sm:$0xff]
    %v5010 = vld [vmem:[%s4941 + $0x67] sm:$0xff]
    %v5011 = vld [vmem:[%s4941 + $0x7f] sm:$0xff]
    %v5012 = vld [vmem:[%s4941 + $0x97] sm:$0xff]
    %v5013 = vld [vmem:[%s4941 + $0xaf] sm:$0xff]
    %v5014 = vld [vmem:[%s4941 + $0xf7] sm:$0xff]
    %v5015 = vld [vmem:[%s4941 + $0x10f] sm:$0xff]
    %v5016 = vld [vmem:[%s4941 + $0x127] sm:$0xff]
    %v5017 = vld [vmem:[%s4941 + $0x13f] sm:$0xff]
    %v5018 = vld [vmem:[%s4941 + $0x157] sm:$0xff]
    %v5019 = vld [vmem:[%s4941 + $0x16f] sm:$0xff]
    %v5020 = vld [vmem:[%s4941 + $0x187] sm:$0xff]
    %v5021 = vld [vmem:[%s4941 + $0x19f] sm:$0xff]
    %v5022 = vld [vmem:[%s4941 + $0x8] sm:$0xff]
    %v5023 = vld [vmem:[%s4941 + $0x20] sm:$0xff]
    %v5024 = vld [vmem:[%s4941 + $0x38] sm:$0xff]
    %v5025 = vld [vmem:[%s4941 + $0x50] sm:$0xff]
    %v5026 = vld [vmem:[%s4941 + $0x68] sm:$0xff]
    %v5027 = vld [vmem:[%s4941 + $0x80] sm:$0xff]
    %v5028 = vld [vmem:[%s4941 + $0x98] sm:$0xff]
    %v5029 = vld [vmem:[%s4941 + $0xb0] sm:$0xff]
    %v5030 = vld [vmem:[%s4941 + $0xf8] sm:$0xff]
    %v5031 = vld [vmem:[%s4941 + $0x110] sm:$0xff]
    %v5032 = vld [vmem:[%s4941 + $0x128] sm:$0xff]
    %v5033 = vld [vmem:[%s4941 + $0x140] sm:$0xff]
    %v5034 = vld [vmem:[%s4941 + $0x158] sm:$0xff]
    %v5035 = vld [vmem:[%s4941 + $0x170] sm:$0xff]
    %v5036 = vld [vmem:[%s4941 + $0x188] sm:$0xff]
    %v5037 = vld [vmem:[%s4941 + $0x1a0] sm:$0xff]
    %v5038 = vld [vmem:[%s4941 + $0x9] sm:$0xff]
    %v5039 = vld [vmem:[%s4941 + $0x21] sm:$0xff]
    %v5040 = vld [vmem:[%s4941 + $0x39] sm:$0xff]
    %v5041 = vld [vmem:[%s4941 + $0x51] sm:$0xff]
    %v5042 = vld [vmem:[%s4941 + $0x69] sm:$0xff]
    %v5043 = vld [vmem:[%s4941 + $0x81] sm:$0xff]
    %v5044 = vld [vmem:[%s4941 + $0x99] sm:$0xff]
    %v5045 = vld [vmem:[%s4941 + $0xb1] sm:$0xff]
    %v5046 = vld [vmem:[%s4941 + $0xf9] sm:$0xff]
    %v5047 = vld [vmem:[%s4941 + $0x111] sm:$0xff]
    %v5048 = vld [vmem:[%s4941 + $0x129] sm:$0xff]
    %v5049 = vld [vmem:[%s4941 + $0x141] sm:$0xff]
    %v5050 = vld [vmem:[%s4941 + $0x159] sm:$0xff]
    %v5051 = vld [vmem:[%s4941 + $0x171] sm:$0xff]
    %v5052 = vld [vmem:[%s4941 + $0x189] sm:$0xff]
    %v5053 = vld [vmem:[%s4941 + $0x1a1] sm:$0xff]
    %s5054 = scalar_lea.vmem [#allocation4], 48
    %v5055 = vld [vmem:[%s5054 + $0x7] sm:$0xff]
    %v5056 = vld [vmem:[%s5054 + $0x1f] sm:$0xff]
    %v5057 = vld [vmem:[%s5054 + $0x37] sm:$0xff]
    %v5058 = vld [vmem:[%s5054 + $0x4f] sm:$0xff]
    %v5059 = vld [vmem:[%s5054 + $0x67] sm:$0xff]
    %v5060 = vld [vmem:[%s5054 + $0x7f] sm:$0xff]
    %v5061 = vld [vmem:[%s5054 + $0x97] sm:$0xff]
    %v5062 = vld [vmem:[%s5054 + $0xaf] sm:$0xff]
    %v5063 = vld [vmem:[%s5054 + $0xf7] sm:$0xff]
    %v5064 = vld [vmem:[%s5054 + $0x10f] sm:$0xff]
    %v5065 = vld [vmem:[%s5054 + $0x127] sm:$0xff]
    %v5066 = vld [vmem:[%s5054 + $0x13f] sm:$0xff]
    %v5067 = vld [vmem:[%s5054 + $0x157] sm:$0xff]
    %v5068 = vld [vmem:[%s5054 + $0x16f] sm:$0xff]
    %v5069 = vld [vmem:[%s5054 + $0x187] sm:$0xff]
    %v5070 = vld [vmem:[%s5054 + $0x19f] sm:$0xff]
    %v5071 = vld [vmem:[%s5054 + $0x8] sm:$0xff]
    %v5072 = vld [vmem:[%s5054 + $0x20] sm:$0xff]
    %v5073 = vld [vmem:[%s5054 + $0x38] sm:$0xff]
    %v5074 = vld [vmem:[%s5054 + $0x50] sm:$0xff]
    %v5075 = vld [vmem:[%s5054 + $0x68] sm:$0xff]
    %v5076 = vld [vmem:[%s5054 + $0x80] sm:$0xff]
    %v5077 = vld [vmem:[%s5054 + $0x98] sm:$0xff]
    %v5078 = vld [vmem:[%s5054 + $0xb0] sm:$0xff]
    %v5079 = vld [vmem:[%s5054 + $0xf8] sm:$0xff]
    %v5080 = vld [vmem:[%s5054 + $0x110] sm:$0xff]
    %v5081 = vld [vmem:[%s5054 + $0x128] sm:$0xff]
    %v5082 = vld [vmem:[%s5054 + $0x140] sm:$0xff]
    %v5083 = vld [vmem:[%s5054 + $0x158] sm:$0xff]
    %v5084 = vld [vmem:[%s5054 + $0x170] sm:$0xff]
    %v5085 = vld [vmem:[%s5054 + $0x188] sm:$0xff]
    %v5086 = vld [vmem:[%s5054 + $0x1a0] sm:$0xff]
    %v5087 = vld [vmem:[%s5054 + $0x9] sm:$0xff]
    %v5088 = vld [vmem:[%s5054 + $0x21] sm:$0xff]
    %v5089 = vld [vmem:[%s5054 + $0x39] sm:$0xff]
    %v5090 = vld [vmem:[%s5054 + $0x51] sm:$0xff]
    %v5091 = vld [vmem:[%s5054 + $0x69] sm:$0xff]
    %v5092 = vld [vmem:[%s5054 + $0x81] sm:$0xff]
    %v5093 = vld [vmem:[%s5054 + $0x99] sm:$0xff]
    %v5094 = vld [vmem:[%s5054 + $0xb1] sm:$0xff]
    %v5095 = vld [vmem:[%s5054 + $0xf9] sm:$0xff]
    %v5096 = vld [vmem:[%s5054 + $0x111] sm:$0xff]
    %v5097 = vld [vmem:[%s5054 + $0x129] sm:$0xff]
    %v5098 = vld [vmem:[%s5054 + $0x141] sm:$0xff]
    %v5099 = vld [vmem:[%s5054 + $0x159] sm:$0xff]
    %v5100 = vld [vmem:[%s5054 + $0x171] sm:$0xff]
    %v5101 = vld [vmem:[%s5054 + $0x189] sm:$0xff]
    %v5102 = vld [vmem:[%s5054 + $0x1a1] sm:$0xff]
    %5119 = vrot.lane.b32.xlu0 %v4974, 12
    %v5120 = vpop.permute.xlu0 %5119
    %5121 = vrot.lane.b32.xlu0 %v4975, 12
    %v5122 = vpop.permute.xlu0 %5121
    %5123 = vrot.lane.b32.xlu0 %v4976, 12
    %v5124 = vpop.permute.xlu0 %5123
    %5125 = vrot.lane.b32.xlu0 %v4977, 12
    %v5126 = vpop.permute.xlu0 %5125
    %5127 = vrot.lane.b32.xlu0 %v4978, 12
    %v5128 = vpop.permute.xlu0 %5127
    %5129 = vrot.lane.b32.xlu0 %v4979, 12
    %v5130 = vpop.permute.xlu0 %5129
    %5131 = vrot.lane.b32.xlu0 %v4980, 12
    %v5132 = vpop.permute.xlu0 %5131
    %5133 = vrot.lane.b32.xlu0 %v4981, 12
    %v5134 = vpop.permute.xlu0 %5133
    %5135 = vrot.lane.b32.xlu0 %v4982, 12
    %v5136 = vpop.permute.xlu0 %5135
    %5137 = vrot.lane.b32.xlu0 %v4983, 12
    %v5138 = vpop.permute.xlu0 %5137
    %5139 = vrot.lane.b32.xlu0 %v4984, 12
    %v5140 = vpop.permute.xlu0 %5139
    %5141 = vrot.lane.b32.xlu0 %v4985, 12
    %v5142 = vpop.permute.xlu0 %5141
    %5143 = vrot.lane.b32.xlu0 %v4986, 12
    %v5144 = vpop.permute.xlu0 %5143
    %5145 = vrot.lane.b32.xlu0 %v4987, 12
    %v5146 = vpop.permute.xlu0 %5145
    %5147 = vrot.lane.b32.xlu0 %v4988, 12
    %v5148 = vpop.permute.xlu0 %5147
    %5149 = vrot.lane.b32.xlu0 %v4989, 12
    %v5150 = vpop.permute.xlu0 %5149
    %5183 = vrot.lane.b32.xlu0 %v4990, 24
    %v5184 = vpop.permute.xlu0 %5183
    %5185 = vrot.lane.b32.xlu0 %v4991, 24
    %v5186 = vpop.permute.xlu0 %5185
    %5187 = vrot.lane.b32.xlu0 %v4992, 24
    %v5188 = vpop.permute.xlu0 %5187
    %5189 = vrot.lane.b32.xlu0 %v4993, 24
    %v5190 = vpop.permute.xlu0 %5189
    %5191 = vrot.lane.b32.xlu0 %v4994, 24
    %v5192 = vpop.permute.xlu0 %5191
    %5193 = vrot.lane.b32.xlu0 %v4995, 24
    %v5194 = vpop.permute.xlu0 %5193
    %5195 = vrot.lane.b32.xlu0 %v4996, 24
    %v5196 = vpop.permute.xlu0 %5195
    %5197 = vrot.lane.b32.xlu0 %v4997, 24
    %v5198 = vpop.permute.xlu0 %5197
    %5199 = vrot.lane.b32.xlu0 %v4998, 24
    %v5200 = vpop.permute.xlu0 %5199
    %5201 = vrot.lane.b32.xlu0 %v4999, 24
    %v5202 = vpop.permute.xlu0 %5201
    %5203 = vrot.lane.b32.xlu0 %v5000, 24
    %v5204 = vpop.permute.xlu0 %5203
    %5205 = vrot.lane.b32.xlu0 %v5001, 24
    %v5206 = vpop.permute.xlu0 %5205
    %5207 = vrot.lane.b32.xlu0 %v5002, 24
    %v5208 = vpop.permute.xlu0 %5207
    %5209 = vrot.lane.b32.xlu0 %v5003, 24
    %v5210 = vpop.permute.xlu0 %5209
    %5211 = vrot.lane.b32.xlu0 %v5004, 24
    %v5212 = vpop.permute.xlu0 %5211
    %5213 = vrot.lane.b32.xlu0 %v5005, 24
    %v5214 = vpop.permute.xlu0 %5213
    %5247 = vrot.lane.b32.xlu0 %v5006, 36
    %v5248 = vpop.permute.xlu0 %5247
    %5249 = vrot.lane.b32.xlu0 %v5007, 36
    %v5250 = vpop.permute.xlu0 %5249
    %5251 = vrot.lane.b32.xlu0 %v5008, 36
    %v5252 = vpop.permute.xlu0 %5251
    %5253 = vrot.lane.b32.xlu0 %v5009, 36
    %v5254 = vpop.permute.xlu0 %5253
    %5255 = vrot.lane.b32.xlu0 %v5010, 36
    %v5256 = vpop.permute.xlu0 %5255
    %5257 = vrot.lane.b32.xlu0 %v5011, 36
    %v5258 = vpop.permute.xlu0 %5257
    %5259 = vrot.lane.b32.xlu0 %v5012, 36
    %v5260 = vpop.permute.xlu0 %5259
    %5261 = vrot.lane.b32.xlu0 %v5013, 36
    %v5262 = vpop.permute.xlu0 %5261
    %5263 = vrot.lane.b32.xlu0 %v5014, 36
    %v5264 = vpop.permute.xlu0 %5263
    %5265 = vrot.lane.b32.xlu0 %v5015, 36
    %v5266 = vpop.permute.xlu0 %5265
    %5267 = vrot.lane.b32.xlu0 %v5016, 36
    %v5268 = vpop.permute.xlu0 %5267
    %5269 = vrot.lane.b32.xlu0 %v5017, 36
    %v5270 = vpop.permute.xlu0 %5269
    %5271 = vrot.lane.b32.xlu0 %v5018, 36
    %v5272 = vpop.permute.xlu0 %5271
    %5273 = vrot.lane.b32.xlu0 %v5019, 36
    %v5274 = vpop.permute.xlu0 %5273
    %5275 = vrot.lane.b32.xlu0 %v5020, 36
    %v5276 = vpop.permute.xlu0 %5275
    %5277 = vrot.lane.b32.xlu0 %v5021, 36
    %v5278 = vpop.permute.xlu0 %5277
    %5311 = vrot.lane.b32.xlu0 %v5022, 48
    %v5312 = vpop.permute.xlu0 %5311
    %5313 = vrot.lane.b32.xlu0 %v5023, 48
    %v5314 = vpop.permute.xlu0 %5313
    %5315 = vrot.lane.b32.xlu0 %v5024, 48
    %v5316 = vpop.permute.xlu0 %5315
    %5317 = vrot.lane.b32.xlu0 %v5025, 48
    %v5318 = vpop.permute.xlu0 %5317
    %5319 = vrot.lane.b32.xlu0 %v5026, 48
    %v5320 = vpop.permute.xlu0 %5319
    %5321 = vrot.lane.b32.xlu0 %v5027, 48
    %v5322 = vpop.permute.xlu0 %5321
    %5323 = vrot.lane.b32.xlu0 %v5028, 48
    %v5324 = vpop.permute.xlu0 %5323
    %5325 = vrot.lane.b32.xlu0 %v5029, 48
    %v5326 = vpop.permute.xlu0 %5325
    %5327 = vrot.lane.b32.xlu0 %v5030, 48
    %v5328 = vpop.permute.xlu0 %5327
    %5329 = vrot.lane.b32.xlu0 %v5031, 48
    %v5330 = vpop.permute.xlu0 %5329
    %5331 = vrot.lane.b32.xlu0 %v5032, 48
    %v5332 = vpop.permute.xlu0 %5331
    %5333 = vrot.lane.b32.xlu0 %v5033, 48
    %v5334 = vpop.permute.xlu0 %5333
    %5335 = vrot.lane.b32.xlu0 %v5034, 48
    %v5336 = vpop.permute.xlu0 %5335
    %5337 = vrot.lane.b32.xlu0 %v5035, 48
    %v5338 = vpop.permute.xlu0 %5337
    %5339 = vrot.lane.b32.xlu0 %v5036, 48
    %v5340 = vpop.permute.xlu0 %5339
    %5341 = vrot.lane.b32.xlu0 %v5037, 48
    %v5342 = vpop.permute.xlu0 %5341
    %5375 = vrot.lane.b32.xlu0 %v5038, 60
    %v5376 = vpop.permute.xlu0 %5375
    %5377 = vrot.lane.b32.xlu0 %v5039, 60
    %v5378 = vpop.permute.xlu0 %5377
    %5379 = vrot.lane.b32.xlu0 %v5040, 60
    %v5380 = vpop.permute.xlu0 %5379
    %5381 = vrot.lane.b32.xlu0 %v5041, 60
    %v5382 = vpop.permute.xlu0 %5381
    %5383 = vrot.lane.b32.xlu0 %v5042, 60
    %v5384 = vpop.permute.xlu0 %5383
    %5385 = vrot.lane.b32.xlu0 %v5043, 60
    %v5386 = vpop.permute.xlu0 %5385
    %5387 = vrot.lane.b32.xlu0 %v5044, 60
    %v5388 = vpop.permute.xlu0 %5387
    %5389 = vrot.lane.b32.xlu0 %v5045, 60
    %v5390 = vpop.permute.xlu0 %5389
    %5391 = vrot.lane.b32.xlu0 %v5046, 60
    %v5392 = vpop.permute.xlu0 %5391
    %5393 = vrot.lane.b32.xlu0 %v5047, 60
    %v5394 = vpop.permute.xlu0 %5393
    %5395 = vrot.lane.b32.xlu0 %v5048, 60
    %v5396 = vpop.permute.xlu0 %5395
    %5397 = vrot.lane.b32.xlu0 %v5049, 60
    %v5398 = vpop.permute.xlu0 %5397
    %5399 = vrot.lane.b32.xlu0 %v5050, 60
    %v5400 = vpop.permute.xlu0 %5399
    %5401 = vrot.lane.b32.xlu0 %v5051, 60
    %v5402 = vpop.permute.xlu0 %5401
    %5403 = vrot.lane.b32.xlu0 %v5052, 60
    %v5404 = vpop.permute.xlu0 %5403
    %5405 = vrot.lane.b32.xlu0 %v5053, 60
    %v5406 = vpop.permute.xlu0 %5405
    %5439 = vrot.lane.b32.xlu0 %v5055, 72
    %v5440 = vpop.permute.xlu0 %5439
    %5441 = vrot.lane.b32.xlu0 %v5056, 72
    %v5442 = vpop.permute.xlu0 %5441
    %5443 = vrot.lane.b32.xlu0 %v5057, 72
    %v5444 = vpop.permute.xlu0 %5443
    %5445 = vrot.lane.b32.xlu0 %v5058, 72
    %v5446 = vpop.permute.xlu0 %5445
    %5447 = vrot.lane.b32.xlu0 %v5059, 72
    %v5448 = vpop.permute.xlu0 %5447
    %5449 = vrot.lane.b32.xlu0 %v5060, 72
    %v5450 = vpop.permute.xlu0 %5449
    %5451 = vrot.lane.b32.xlu0 %v5061, 72
    %v5452 = vpop.permute.xlu0 %5451
    %5453 = vrot.lane.b32.xlu0 %v5062, 72
    %v5454 = vpop.permute.xlu0 %5453
    %5455 = vrot.lane.b32.xlu0 %v5063, 72
    %v5456 = vpop.permute.xlu0 %5455
    %5457 = vrot.lane.b32.xlu0 %v5064, 72
    %v5458 = vpop.permute.xlu0 %5457
    %5459 = vrot.lane.b32.xlu0 %v5065, 72
    %v5460 = vpop.permute.xlu0 %5459
    %5461 = vrot.lane.b32.xlu0 %v5066, 72
    %v5462 = vpop.permute.xlu0 %5461
    %5463 = vrot.lane.b32.xlu0 %v5067, 72
    %v5464 = vpop.permute.xlu0 %5463
    %5465 = vrot.lane.b32.xlu0 %v5068, 72
    %v5466 = vpop.permute.xlu0 %5465
    %5467 = vrot.lane.b32.xlu0 %v5069, 72
    %v5468 = vpop.permute.xlu0 %5467
    %5469 = vrot.lane.b32.xlu0 %v5070, 72
    %v5470 = vpop.permute.xlu0 %5469
    %5503 = vrot.lane.b32.xlu0 %v5071, 84
    %v5504 = vpop.permute.xlu0 %5503
    %5505 = vrot.lane.b32.xlu0 %v5072, 84
    %v5506 = vpop.permute.xlu0 %5505
    %5507 = vrot.lane.b32.xlu0 %v5073, 84
    %v5508 = vpop.permute.xlu0 %5507
    %5509 = vrot.lane.b32.xlu0 %v5074, 84
    %v5510 = vpop.permute.xlu0 %5509
    %5511 = vrot.lane.b32.xlu0 %v5075, 84
    %v5512 = vpop.permute.xlu0 %5511
    %5513 = vrot.lane.b32.xlu0 %v5076, 84
    %v5514 = vpop.permute.xlu0 %5513
    %5515 = vrot.lane.b32.xlu0 %v5077, 84
    %v5516 = vpop.permute.xlu0 %5515
    %5517 = vrot.lane.b32.xlu0 %v5078, 84
    %v5518 = vpop.permute.xlu0 %5517
    %5519 = vrot.lane.b32.xlu0 %v5079, 84
    %v5520 = vpop.permute.xlu0 %5519
    %5521 = vrot.lane.b32.xlu0 %v5080, 84
    %v5522 = vpop.permute.xlu0 %5521
    %5523 = vrot.lane.b32.xlu0 %v5081, 84
    %v5524 = vpop.permute.xlu0 %5523
    %5525 = vrot.lane.b32.xlu0 %v5082, 84
    %v5526 = vpop.permute.xlu0 %5525
    %5527 = vrot.lane.b32.xlu0 %v5083, 84
    %v5528 = vpop.permute.xlu0 %5527
    %5529 = vrot.lane.b32.xlu0 %v5084, 84
    %v5530 = vpop.permute.xlu0 %5529
    %5531 = vrot.lane.b32.xlu0 %v5085, 84
    %v5532 = vpop.permute.xlu0 %5531
    %5533 = vrot.lane.b32.xlu0 %v5086, 84
    %v5534 = vpop.permute.xlu0 %5533
    %5567 = vrot.lane.b32.xlu0 %v5087, 96
    %v5568 = vpop.permute.xlu0 %5567
    %5569 = vrot.lane.b32.xlu0 %v5088, 96
    %v5570 = vpop.permute.xlu0 %5569
    %5571 = vrot.lane.b32.xlu0 %v5089, 96
    %v5572 = vpop.permute.xlu0 %5571
    %5573 = vrot.lane.b32.xlu0 %v5090, 96
    %v5574 = vpop.permute.xlu0 %5573
    %5575 = vrot.lane.b32.xlu0 %v5091, 96
    %v5576 = vpop.permute.xlu0 %5575
    %5577 = vrot.lane.b32.xlu0 %v5092, 96
    %v5578 = vpop.permute.xlu0 %5577
    %5579 = vrot.lane.b32.xlu0 %v5093, 96
    %v5580 = vpop.permute.xlu0 %5579
    %5581 = vrot.lane.b32.xlu0 %v5094, 96
    %v5582 = vpop.permute.xlu0 %5581
    %5583 = vrot.lane.b32.xlu0 %v5095, 96
    %v5584 = vpop.permute.xlu0 %5583
    %5585 = vrot.lane.b32.xlu0 %v5096, 96
    %v5586 = vpop.permute.xlu0 %5585
    %5587 = vrot.lane.b32.xlu0 %v5097, 96
    %v5588 = vpop.permute.xlu0 %5587
    %5589 = vrot.lane.b32.xlu0 %v5098, 96
    %v5590 = vpop.permute.xlu0 %5589
    %5591 = vrot.lane.b32.xlu0 %v5099, 96
    %v5592 = vpop.permute.xlu0 %5591
    %5593 = vrot.lane.b32.xlu0 %v5100, 96
    %v5594 = vpop.permute.xlu0 %5593
    %5595 = vrot.lane.b32.xlu0 %v5101, 96
    %v5596 = vpop.permute.xlu0 %5595
    %5597 = vrot.lane.b32.xlu0 %v5102, 96
    %v5598 = vpop.permute.xlu0 %5597
    %v5615 = vsel %vm3213, %v4958, %v5120
    %v5616 = vsel %vm3213, %v4959, %v5122
    %v5617 = vsel %vm3213, %v4960, %v5124
    %v5618 = vsel %vm3213, %v4961, %v5126
    %v5619 = vsel %vm3213, %v4962, %v5128
    %v5620 = vsel %vm3213, %v4963, %v5130
    %v5621 = vsel %vm3213, %v4964, %v5132
    %v5622 = vsel %vm3213, %v4965, %v5134
    %v5623 = vsel %vm3213, %v4966, %v5136
    %v5624 = vsel %vm3213, %v4967, %v5138
    %v5625 = vsel %vm3213, %v4968, %v5140
    %v5626 = vsel %vm3213, %v4969, %v5142
    %v5627 = vsel %vm3213, %v4970, %v5144
    %v5628 = vsel %vm3213, %v4971, %v5146
    %v5629 = vsel %vm3213, %v4972, %v5148
    %v5630 = vsel %vm3213, %v4973, %v5150
    %v5631 = vsel %vm3473, %v5615, %v5184
    %v5632 = vsel %vm3473, %v5616, %v5186
    %v5633 = vsel %vm3473, %v5617, %v5188
    %v5634 = vsel %vm3473, %v5618, %v5190
    %v5635 = vsel %vm3473, %v5619, %v5192
    %v5636 = vsel %vm3473, %v5620, %v5194
    %v5637 = vsel %vm3473, %v5621, %v5196
    %v5638 = vsel %vm3473, %v5622, %v5198
    %v5639 = vsel %vm3473, %v5623, %v5200
    %v5640 = vsel %vm3473, %v5624, %v5202
    %v5641 = vsel %vm3473, %v5625, %v5204
    %v5642 = vsel %vm3473, %v5626, %v5206
    %v5643 = vsel %vm3473, %v5627, %v5208
    %v5644 = vsel %vm3473, %v5628, %v5210
    %v5645 = vsel %vm3473, %v5629, %v5212
    %v5646 = vsel %vm3473, %v5630, %v5214
    %vm5647 = vcmask 293888
    %v5648 = vsel %vm5647, %v5631, %v5248
    %v5649 = vsel %vm5647, %v5632, %v5250
    %v5650 = vsel %vm5647, %v5633, %v5252
    %v5651 = vsel %vm5647, %v5634, %v5254
    %v5652 = vsel %vm5647, %v5635, %v5256
    %v5653 = vsel %vm5647, %v5636, %v5258
    %v5654 = vsel %vm5647, %v5637, %v5260
    %v5655 = vsel %vm5647, %v5638, %v5262
    %v5656 = vsel %vm5647, %v5639, %v5264
    %v5657 = vsel %vm5647, %v5640, %v5266
    %v5658 = vsel %vm5647, %v5641, %v5268
    %v5659 = vsel %vm5647, %v5642, %v5270
    %v5660 = vsel %vm5647, %v5643, %v5272
    %v5661 = vsel %vm5647, %v5644, %v5274
    %v5662 = vsel %vm5647, %v5645, %v5276
    %v5663 = vsel %vm5647, %v5646, %v5278
    %vm5664 = vcmask 392192
    %v5665 = vsel %vm5664, %v5648, %v5312
    %v5666 = vsel %vm5664, %v5649, %v5314
    %v5667 = vsel %vm5664, %v5650, %v5316
    %v5668 = vsel %vm5664, %v5651, %v5318
    %v5669 = vsel %vm5664, %v5652, %v5320
    %v5670 = vsel %vm5664, %v5653, %v5322
    %v5671 = vsel %vm5664, %v5654, %v5324
    %v5672 = vsel %vm5664, %v5655, %v5326
    %v5673 = vsel %vm5664, %v5656, %v5328
    %v5674 = vsel %vm5664, %v5657, %v5330
    %v5675 = vsel %vm5664, %v5658, %v5332
    %v5676 = vsel %vm5664, %v5659, %v5334
    %v5677 = vsel %vm5664, %v5660, %v5336
    %v5678 = vsel %vm5664, %v5661, %v5338
    %v5679 = vsel %vm5664, %v5662, %v5340
    %v5680 = vsel %vm5664, %v5663, %v5342
    %vm5681 = vcmask 490496
    %v5682 = vsel %vm5681, %v5665, %v5376
    %v5683 = vsel %vm5681, %v5666, %v5378
    %v5684 = vsel %vm5681, %v5667, %v5380
    %v5685 = vsel %vm5681, %v5668, %v5382
    %v5686 = vsel %vm5681, %v5669, %v5384
    %v5687 = vsel %vm5681, %v5670, %v5386
    %v5688 = vsel %vm5681, %v5671, %v5388
    %v5689 = vsel %vm5681, %v5672, %v5390
    %v5690 = vsel %vm5681, %v5673, %v5392
    %v5691 = vsel %vm5681, %v5674, %v5394
    %v5692 = vsel %vm5681, %v5675, %v5396
    %v5693 = vsel %vm5681, %v5676, %v5398
    %v5694 = vsel %vm5681, %v5677, %v5400
    %v5695 = vsel %vm5681, %v5678, %v5402
    %v5696 = vsel %vm5681, %v5679, %v5404
    %v5697 = vsel %vm5681, %v5680, %v5406
    %vm5698 = vcmask 588800
    %v5699 = vsel %vm5698, %v5682, %v5440
    %v5700 = vsel %vm5698, %v5683, %v5442
    %v5701 = vsel %vm5698, %v5684, %v5444
    %v5702 = vsel %vm5698, %v5685, %v5446
    %v5703 = vsel %vm5698, %v5686, %v5448
    %v5704 = vsel %vm5698, %v5687, %v5450
    %v5705 = vsel %vm5698, %v5688, %v5452
    %v5706 = vsel %vm5698, %v5689, %v5454
    %v5707 = vsel %vm5698, %v5690, %v5456
    %v5708 = vsel %vm5698, %v5691, %v5458
    %v5709 = vsel %vm5698, %v5692, %v5460
    %v5710 = vsel %vm5698, %v5693, %v5462
    %v5711 = vsel %vm5698, %v5694, %v5464
    %v5712 = vsel %vm5698, %v5695, %v5466
    %v5713 = vsel %vm5698, %v5696, %v5468
    %v5714 = vsel %vm5698, %v5697, %v5470
    %vm5715 = vcmask 687104
    %v5716 = vsel %vm5715, %v5699, %v5504
    %v5717 = vsel %vm5715, %v5700, %v5506
    %v5718 = vsel %vm5715, %v5701, %v5508
    %v5719 = vsel %vm5715, %v5702, %v5510
    %v5720 = vsel %vm5715, %v5703, %v5512
    %v5721 = vsel %vm5715, %v5704, %v5514
    %v5722 = vsel %vm5715, %v5705, %v5516
    %v5723 = vsel %vm5715, %v5706, %v5518
    %v5724 = vsel %vm5715, %v5707, %v5520
    %v5725 = vsel %vm5715, %v5708, %v5522
    %v5726 = vsel %vm5715, %v5709, %v5524
    %v5727 = vsel %vm5715, %v5710, %v5526
    %v5728 = vsel %vm5715, %v5711, %v5528
    %v5729 = vsel %vm5715, %v5712, %v5530
    %v5730 = vsel %vm5715, %v5713, %v5532
    %v5731 = vsel %vm5715, %v5714, %v5534
    %vm5732 = vcmask 785408
    %v5733 = vsel %vm5732, %v5716, %v5568
    %v5734 = vsel %vm5732, %v5717, %v5570
    %v5735 = vsel %vm5732, %v5718, %v5572
    %v5736 = vsel %vm5732, %v5719, %v5574
    %v5737 = vsel %vm5732, %v5720, %v5576
    %v5738 = vsel %vm5732, %v5721, %v5578
    %v5739 = vsel %vm5732, %v5722, %v5580
    %v5740 = vsel %vm5732, %v5723, %v5582
    %v5741 = vsel %vm5732, %v5724, %v5584
    %v5742 = vsel %vm5732, %v5725, %v5586
    %v5743 = vsel %vm5732, %v5726, %v5588
    %v5744 = vsel %vm5732, %v5727, %v5590
    %v5745 = vsel %vm5732, %v5728, %v5592
    %v5746 = vsel %vm5732, %v5729, %v5594
    %v5747 = vsel %vm5732, %v5730, %v5596
    %v5748 = vsel %vm5732, %v5731, %v5598
    %v5749 = vld [vmem:[%s5] sm:$0xff]
    %v5750 = vld [vmem:[%s5 + $0x8] sm:$0xff]
    %v5751 = vld [vmem:[%s5 + $0x10] sm:$0xff]
    %v5752 = vld [vmem:[%s5 + $0x18] sm:$0xff]
    %v5753 = vld [vmem:[%s5 + $0x20] sm:$0xff]
    %v5754 = vld [vmem:[%s5 + $0x28] sm:$0xff]
    %v5755 = vld [vmem:[%s5 + $0x30] sm:$0xff]
    %v5756 = vld [vmem:[%s5 + $0x38] sm:$0xff]
    %v5757 = vld [vmem:[%s5 + $0x40] sm:$0xff]
    %v5758 = vld [vmem:[%s5 + $0x48] sm:$0xff]
    %v5759 = vld [vmem:[%s5 + $0x50] sm:$0xff]
    %v5760 = vld [vmem:[%s5 + $0x58] sm:$0xff]
    %v5761 = vld [vmem:[%s5 + $0x60] sm:$0xff]
    %v5762 = vld [vmem:[%s5 + $0x68] sm:$0xf]
    %v5763 = vld [vmem:[#allocation11] sm:$0x1]
    %v5765 = vlaneseq
    %v5766 = vshrl.u32 %v5765, 7
    %v5767 = vsub.s32 0, %v5766
    %v5768 = vrot.slane %v5763, %v5767
    %vm5770 = vcmask 883712
    %v5772 = vsel %vm5770, %v5733, 0
    %v5775 = vsel %vm5770, %v5734, 0
    %v5778 = vsel %vm5770, %v5735, 0
    %v5781 = vsel %vm5770, %v5736, 0
    %v5784 = vsel %vm5770, %v5737, 0
    %v5787 = vsel %vm5770, %v5738, 0
    %v5790 = vsel %vm5770, %v5739, 0
    %v5793 = vsel %vm5770, %v5740, 0
    %v5796 = vsel %vm5770, %v5741, 0
    %v5799 = vsel %vm5770, %v5742, 0
    %v5802 = vsel %vm5770, %v5743, 0
    %v5805 = vsel %vm5770, %v5744, 0
    %v5808 = vsel %vm5770, %v5745, 0
    %v5811 = vsel %vm5770, %v5746, 0
    %v5814 = vsel %vm5770, %v5747, 0
    %v5817 = vsel %vm5770, %v5748, 0
    %vm5819 = vcmask 1043456
    %v5821 = vsel %vm5819, %v5762, 0
    %5823 = vmatprep.subr.mxu0 0.0
    %5824 = vmatpush1.msra.mxu0 0.0
    %5825 = vmatprep.subr.mxu0 0.0
    %5826 = vmatpush1.msra.mxu0 0.0
    %5827 = vmatprep.subr.mxu0 0.0
    %5828 = vmatpush1.msra.mxu0 %v5821
    %5829 = vmatprep.subr.mxu0 0.0
    %5830 = vmatpush1.msra.mxu0 %v5761
    %5831 = vmatprep.subr.mxu0 0.0
    %5832 = vmatpush1.msra.mxu0 %v5760
    %5833 = vmatprep.subr.mxu0 0.0
    %5834 = vmatpush1.msra.mxu0 %v5759
    %5835 = vmatprep.subr.mxu0 0.0
    %5836 = vmatpush1.msra.mxu0 %v5758
    %5837 = vmatprep.subr.mxu0 0.0
    %5838 = vmatpush1.msra.mxu0 %v5757
    %5839 = vmatprep.subr.mxu0 0.0
    %5840 = vmatpush1.msra.mxu0 %v5756
    %5841 = vmatprep.subr.mxu0 0.0
    %5842 = vmatpush1.msra.mxu0 %v5755
    %5843 = vmatprep.subr.mxu0 0.0
    %5844 = vmatpush1.msra.mxu0 %v5754
    %5845 = vmatprep.subr.mxu0 0.0
    %5846 = vmatpush1.msra.mxu0 %v5753
    %5847 = vmatprep.subr.mxu0 0.0
    %5848 = vmatpush1.msra.mxu0 %v5752
    %5849 = vmatprep.subr.mxu0 0.0
    %5850 = vmatpush1.msra.mxu0 %v5751
    %5851 = vmatprep.subr.mxu0 0.0
    %5852 = vmatpush1.msra.mxu0 %v5750
    %5853 = vmatprep.subr.mxu0 0.0
    %5854 = vmatpush1.msra.mxu0 %v5749
    %5855 = vmatprep.subr.mxu0 0.0
    %5856 = vmatpush2.msra.mxu0 0.0
    %5857 = vmatprep.subr.mxu0 0.0
    %5858 = vmatpush2.msra.mxu0 0.0
    %5859 = vmatprep.subr.mxu0 0.0
    %5860 = vmatpush2.msra.mxu0 0.0
    %5861 = vmatprep.subr.mxu0 0.0
    %5862 = vmatpush2.msra.mxu0 0.0
    %5863 = vmatprep.subr.mxu0 0.0
    %5864 = vmatpush2.msra.mxu0 0.0
    %5865 = vmatprep.subr.mxu0 0.0
    %5866 = vmatpush2.msra.mxu0 0.0
    %5867 = vmatprep.subr.mxu0 0.0
    %5868 = vmatpush2.msra.mxu0 0.0
    %5869 = vmatprep.subr.mxu0 0.0
    %5870 = vmatpush2.msra.mxu0 0.0
    %5871 = vmatprep.subr.mxu0 0.0
    %5872 = vmatpush2.msra.mxu0 0.0
    %5873 = vmatprep.subr.mxu0 0.0
    %5874 = vmatpush2.msra.mxu0 0.0
    %5875 = vmatprep.subr.mxu0 0.0
    %5876 = vmatpush2.msra.mxu0 0.0
    %5877 = vmatprep.subr.mxu0 0.0
    %5878 = vmatpush2.msra.mxu0 0.0
    %5879 = vmatprep.subr.mxu0 0.0
    %5880 = vmatpush2.msra.mxu0 0.0
    %5881 = vmatprep.subr.mxu0 0.0
    %5882 = vmatpush2.msra.mxu0 0.0
    %5883 = vmatprep.subr.mxu0 0.0
    %5884 = vmatpush2.msra.mxu0 0.0
    %5885 = vmatprep.subr.mxu0 0.0
    %5886 = vmatpush2.msra.mxu0 0.0
    %5887 = vmatprep.mubr.f32.mxu0 0.0
    %5888 = vmatmul.mubr.f32.gmra.mxu0 %v5772
    %v5889 = vpop.f32.mrf.mxu0
    %v5890 = vadd.f32 %v5768, %v5889
    %v5891 = vpop.f32.mrf.mxu0
    %5892 = vmatprep.mubr.f32.mxu0 0.0
    %5893 = vmatmul.mubr.f32.gmra.mxu0 %v5775
    %v5894 = vpop.f32.mrf.mxu0
    %v5895 = vadd.f32 %v5768, %v5894
    %v5896 = vpop.f32.mrf.mxu0
    %5897 = vmatprep.mubr.f32.mxu0 0.0
    %5898 = vmatmul.mubr.f32.gmra.mxu0 %v5778
    %v5899 = vpop.f32.mrf.mxu0
    %v5900 = vadd.f32 %v5768, %v5899
    %v5901 = vpop.f32.mrf.mxu0
    %5902 = vmatprep.mubr.f32.mxu0 0.0
    %5903 = vmatmul.mubr.f32.gmra.mxu0 %v5781
    %v5904 = vpop.f32.mrf.mxu0
    %v5905 = vadd.f32 %v5768, %v5904
    %v5906 = vpop.f32.mrf.mxu0
    %5907 = vmatprep.mubr.f32.mxu0 0.0
    %5908 = vmatmul.mubr.f32.gmra.mxu0 %v5784
    %v5909 = vpop.f32.mrf.mxu0
    %v5910 = vadd.f32 %v5768, %v5909
    %v5911 = vpop.f32.mrf.mxu0
    %5912 = vmatprep.mubr.f32.mxu0 0.0
    %5913 = vmatmul.mubr.f32.gmra.mxu0 %v5787
    %v5914 = vpop.f32.mrf.mxu0
    %v5915 = vadd.f32 %v5768, %v5914
    %v5916 = vpop.f32.mrf.mxu0
    %5917 = vmatprep.mubr.f32.mxu0 0.0
    %5918 = vmatmul.mubr.f32.gmra.mxu0 %v5790
    %v5919 = vpop.f32.mrf.mxu0
    %v5920 = vadd.f32 %v5768, %v5919
    %v5921 = vpop.f32.mrf.mxu0
    %5922 = vmatprep.mubr.f32.mxu0 0.0
    %5923 = vmatmul.mubr.f32.gmra.mxu0 %v5793
    %v5924 = vpop.f32.mrf.mxu0
    %v5925 = vadd.f32 %v5768, %v5924
    %v5926 = vpop.f32.mrf.mxu0
    %5927 = vmatprep.mubr.f32.mxu0 0.0
    %5928 = vmatmul.mubr.f32.gmra.mxu0 %v5796
    %v5929 = vpop.f32.mrf.mxu0
    %v5930 = vadd.f32 %v5768, %v5929
    %v5931 = vpop.f32.mrf.mxu0
    %5932 = vmatprep.mubr.f32.mxu0 0.0
    %5933 = vmatmul.mubr.f32.gmra.mxu0 %v5799
    %v5934 = vpop.f32.mrf.mxu0
    %v5935 = vadd.f32 %v5768, %v5934
    %v5936 = vpop.f32.mrf.mxu0
    %5937 = vmatprep.mubr.f32.mxu0 0.0
    %5938 = vmatmul.mubr.f32.gmra.mxu0 %v5802
    %v5939 = vpop.f32.mrf.mxu0
    %v5940 = vadd.f32 %v5768, %v5939
    %v5941 = vpop.f32.mrf.mxu0
    %5942 = vmatprep.mubr.f32.mxu0 0.0
    %5943 = vmatmul.mubr.f32.gmra.mxu0 %v5805
    %v5944 = vpop.f32.mrf.mxu0
    %v5945 = vadd.f32 %v5768, %v5944
    %v5946 = vpop.f32.mrf.mxu0
    %5947 = vmatprep.mubr.f32.mxu0 0.0
    %5948 = vmatmul.mubr.f32.gmra.mxu0 %v5808
    %v5949 = vpop.f32.mrf.mxu0
    %v5950 = vadd.f32 %v5768, %v5949
    %v5951 = vpop.f32.mrf.mxu0
    %5952 = vmatprep.mubr.f32.mxu0 0.0
    %5953 = vmatmul.mubr.f32.gmra.mxu0 %v5811
    %v5954 = vpop.f32.mrf.mxu0
    %v5955 = vadd.f32 %v5768, %v5954
    %v5956 = vpop.f32.mrf.mxu0
    %5957 = vmatprep.mubr.f32.mxu0 0.0
    %5958 = vmatmul.mubr.f32.gmra.mxu0 %v5814
    %v5959 = vpop.f32.mrf.mxu0
    %v5960 = vadd.f32 %v5768, %v5959
    %v5961 = vpop.f32.mrf.mxu0
    %5962 = vmatprep.mubr.f32.mxu0 0.0
    %5963 = vmatmul.mubr.f32.gmra.mxu0 %v5817
    %v5964 = vpop.f32.mrf.mxu0
    %v5965 = vadd.f32 %v5768, %v5964
    %v5966 = vpop.f32.mrf.mxu0
    %5967 = vdwg.mxu0
    %v5968 = vmax.f32 %v5890, 0.0
    %v5969 = vmax.f32 %v5895, 0.0
    %v5970 = vmax.f32 %v5900, 0.0
    %v5971 = vmax.f32 %v5905, 0.0
    %v5972 = vmax.f32 %v5910, 0.0
    %v5973 = vmax.f32 %v5915, 0.0
    %v5974 = vmax.f32 %v5920, 0.0
    %v5975 = vmax.f32 %v5925, 0.0
    %v5976 = vmax.f32 %v5930, 0.0
    %v5977 = vmax.f32 %v5935, 0.0
    %v5978 = vmax.f32 %v5940, 0.0
    %v5979 = vmax.f32 %v5945, 0.0
    %v5980 = vmax.f32 %v5950, 0.0
    %v5981 = vmax.f32 %v5955, 0.0
    %v5982 = vmax.f32 %v5960, 0.0
    %v5983 = vmax.f32 %v5965, 0.0
    %vm5984 = vcmask 162816
    %5985 = vst.msk [vmem:[#allocation5] sm:$0xff] %vm5984, 0.0
    %5986 = vst.msk [vmem:[#allocation5 + $0x8] sm:$0xff] %vm5984, 0.0
    %vm5987 = vcmask 155648
    %5988 = vst.msk [vmem:[#allocation5 + $0x10] sm:$0x1] %vm5987, 0.0
    %5989 = vst.msk [vmem:[#allocation5 + $0x18] sm:$0xff] %vm5984, 0.0
    %5990 = vst.msk [vmem:[#allocation5 + $0x20] sm:$0xff] %vm5984, 0.0
    %5991 = vst.msk [vmem:[#allocation5 + $0x28] sm:$0x1] %vm5987, 0.0
    %5992 = vst.msk [vmem:[#allocation5 + $0x30] sm:$0xff] %vm5984, 0.0
    %5993 = vst.msk [vmem:[#allocation5 + $0x38] sm:$0xff] %vm5984, 0.0
    %5994 = vst.msk [vmem:[#allocation5 + $0x40] sm:$0x1] %vm5987, 0.0
    %5995 = vst.msk [vmem:[#allocation5 + $0x48] sm:$0xff] %vm5984, 0.0
    %5996 = vst.msk [vmem:[#allocation5 + $0x50] sm:$0xff] %vm5984, 0.0
    %5997 = vst.msk [vmem:[#allocation5 + $0x58] sm:$0x1] %vm5987, 0.0
    %5998 = vst.msk [vmem:[#allocation5 + $0x60] sm:$0xff] %vm5984, 0.0
    %5999 = vst.msk [vmem:[#allocation5 + $0x68] sm:$0xff] %vm5984, 0.0
    %6000 = vst.msk [vmem:[#allocation5 + $0x70] sm:$0x1] %vm5987, 0.0
    %6001 = vst.msk [vmem:[#allocation5 + $0x78] sm:$0xff] %vm5984, 0.0
    %6002 = vst.msk [vmem:[#allocation5 + $0x80] sm:$0xff] %vm5984, 0.0
    %6003 = vst.msk [vmem:[#allocation5 + $0x88] sm:$0x1] %vm5987, 0.0
    %6004 = vst.msk [vmem:[#allocation5 + $0x90] sm:$0xff] %vm5984, 0.0
    %6005 = vst.msk [vmem:[#allocation5 + $0x98] sm:$0xff] %vm5984, 0.0
    %6006 = vst.msk [vmem:[#allocation5 + $0xa0] sm:$0x1] %vm5987, 0.0
    %6007 = vst.msk [vmem:[#allocation5 + $0xa8] sm:$0xff] %vm5984, 0.0
    %6008 = vst.msk [vmem:[#allocation5 + $0xb0] sm:$0xff] %vm5984, 0.0
    %6009 = vst.msk [vmem:[#allocation5 + $0xb8] sm:$0x1] %vm5987, 0.0
    %6010 = vst.msk [vmem:[#allocation5 + $0xc0] sm:$0xff] %vm5984, 0.0
    %6011 = vst.msk [vmem:[#allocation5 + $0xc8] sm:$0xff] %vm5984, 0.0
    %6012 = vst.msk [vmem:[#allocation5 + $0xd0] sm:$0x1] %vm5987, 0.0
    %6013 = vst.msk [vmem:[#allocation5 + $0xd8] sm:$0xff] %vm5984, 0.0
    %6014 = vst.msk [vmem:[#allocation5 + $0xe0] sm:$0xff] %vm5984, 0.0
    %6015 = vst.msk [vmem:[#allocation5 + $0xe8] sm:$0x1] %vm5987, 0.0
    %6016 = vst.msk [vmem:[#allocation5 + $0xf0] sm:$0xff] %vm5984, 0.0
    %6017 = vst.msk [vmem:[#allocation5 + $0xf8] sm:$0xff] %vm5984, 0.0
    %6018 = vst.msk [vmem:[#allocation5 + $0x100] sm:$0x1] %vm5987, 0.0
    %6019 = vst.msk [vmem:[#allocation5 + $0x108] sm:$0xff] %vm5984, 0.0
    %6020 = vst.msk [vmem:[#allocation5 + $0x110] sm:$0xff] %vm5984, 0.0
    %6021 = vst.msk [vmem:[#allocation5 + $0x118] sm:$0x1] %vm5987, 0.0
    %6022 = vst.msk [vmem:[#allocation5 + $0x120] sm:$0xff] %vm5984, 0.0
    %6023 = vst.msk [vmem:[#allocation5 + $0x128] sm:$0xff] %vm5984, 0.0
    %6024 = vst.msk [vmem:[#allocation5 + $0x130] sm:$0x1] %vm5987, 0.0
    %6025 = vst.msk [vmem:[#allocation5 + $0x138] sm:$0xff] %vm5984, 0.0
    %6026 = vst.msk [vmem:[#allocation5 + $0x140] sm:$0xff] %vm5984, 0.0
    %6027 = vst.msk [vmem:[#allocation5 + $0x148] sm:$0x1] %vm5987, 0.0
    %6028 = vst.msk [vmem:[#allocation5 + $0x150] sm:$0xff] %vm5984, 0.0
    %6029 = vst.msk [vmem:[#allocation5 + $0x158] sm:$0xff] %vm5984, 0.0
    %6030 = vst.msk [vmem:[#allocation5 + $0x160] sm:$0x1] %vm5987, 0.0
    %6031 = vst.msk [vmem:[#allocation5 + $0x168] sm:$0xff] %vm5984, 0.0
    %6032 = vst.msk [vmem:[#allocation5 + $0x170] sm:$0xff] %vm5984, 0.0
    %6033 = vst.msk [vmem:[#allocation5 + $0x178] sm:$0x1] %vm5987, 0.0
    %6034 = vst.msk [vmem:[#allocation5 + $0x180] sm:$0xff] %vm5984, 0.0
    %6035 = vst.msk [vmem:[#allocation5 + $0x188] sm:$0xff] %vm5984, 0.0
    %6036 = vst.msk [vmem:[#allocation5 + $0x190] sm:$0x1] %vm5987, 0.0
    %6037 = vst.msk [vmem:[#allocation5 + $0x198] sm:$0xff] %vm5984, 0.0
    %6038 = vst.msk [vmem:[#allocation5 + $0x1a0] sm:$0xff] %vm5984, 0.0
    %6039 = vst.msk [vmem:[#allocation5 + $0x1a8] sm:$0x1] %vm5987, 0.0
    %6040 = vst.msk [vmem:[#allocation5 + $0x1b0] sm:$0xff] %vm5984, 0.0
    %6041 = vst.msk [vmem:[#allocation5 + $0x1b8] sm:$0xff] %vm5984, 0.0
    %6042 = vst.msk [vmem:[#allocation5 + $0x1c0] sm:$0x1] %vm5987, 0.0
    %6043 = vst.msk [vmem:[#allocation5 + $0x1c8] sm:$0xff] %vm5984, 0.0
    %6044 = vst.msk [vmem:[#allocation5 + $0x1d0] sm:$0xff] %vm5984, 0.0
    %6045 = vst.msk [vmem:[#allocation5 + $0x1d8] sm:$0x1] %vm5987, 0.0
    %s6046 = scalar_lea.vmem [#allocation5], 24
    %6047 = vst.msk [vmem:[%s6046 + $0x8] sm:$0xff] %vm5984, %v5968
    %6048 = vst.msk [vmem:[%s6046 + $0x20] sm:$0xff] %vm5984, %v5969
    %6049 = vst.msk [vmem:[%s6046 + $0x38] sm:$0xff] %vm5984, %v5970
    %6050 = vst.msk [vmem:[%s6046 + $0x50] sm:$0xff] %vm5984, %v5971
    %6051 = vst.msk [vmem:[%s6046 + $0x68] sm:$0xff] %vm5984, %v5972
    %6052 = vst.msk [vmem:[%s6046 + $0x80] sm:$0xff] %vm5984, %v5973
    %6053 = vst.msk [vmem:[%s6046 + $0x98] sm:$0xff] %vm5984, %v5974
    %6054 = vst.msk [vmem:[%s6046 + $0xb0] sm:$0xff] %vm5984, %v5975
    %6055 = vst.msk [vmem:[%s6046 + $0xf8] sm:$0xff] %vm5984, %v5976
    %6056 = vst.msk [vmem:[%s6046 + $0x110] sm:$0xff] %vm5984, %v5977
    %6057 = vst.msk [vmem:[%s6046 + $0x128] sm:$0xff] %vm5984, %v5978
    %6058 = vst.msk [vmem:[%s6046 + $0x140] sm:$0xff] %vm5984, %v5979
    %6059 = vst.msk [vmem:[%s6046 + $0x158] sm:$0xff] %vm5984, %v5980
    %6060 = vst.msk [vmem:[%s6046 + $0x170] sm:$0xff] %vm5984, %v5981
    %6061 = vst.msk [vmem:[%s6046 + $0x188] sm:$0xff] %vm5984, %v5982
    %6062 = vst.msk [vmem:[%s6046 + $0x1a0] sm:$0xff] %vm5984, %v5983
    %v6063 = vld [vmem:[#allocation5 + $0x7] sm:$0xff]
    %v6064 = vld [vmem:[#allocation5 + $0x1f] sm:$0xff]
    %v6065 = vld [vmem:[#allocation5 + $0x37] sm:$0xff]
    %v6066 = vld [vmem:[#allocation5 + $0x4f] sm:$0xff]
    %v6067 = vld [vmem:[#allocation5 + $0x67] sm:$0xff]
    %v6068 = vld [vmem:[#allocation5 + $0x7f] sm:$0xff]
    %v6069 = vld [vmem:[#allocation5 + $0x97] sm:$0xff]
    %v6070 = vld [vmem:[#allocation5 + $0xaf] sm:$0xff]
    %v6071 = vld [vmem:[#allocation5 + $0xf7] sm:$0xff]
    %v6072 = vld [vmem:[#allocation5 + $0x10f] sm:$0xff]
    %v6073 = vld [vmem:[#allocation5 + $0x127] sm:$0xff]
    %v6074 = vld [vmem:[#allocation5 + $0x13f] sm:$0xff]
    %v6075 = vld [vmem:[#allocation5 + $0x157] sm:$0xff]
    %v6076 = vld [vmem:[#allocation5 + $0x16f] sm:$0xff]
    %v6077 = vld [vmem:[#allocation5 + $0x187] sm:$0xff]
    %v6078 = vld [vmem:[#allocation5 + $0x19f] sm:$0xff]
    %v6079 = vld [vmem:[#allocation5 + $0x8] sm:$0xff]
    %v6080 = vld [vmem:[#allocation5 + $0x20] sm:$0xff]
    %v6081 = vld [vmem:[#allocation5 + $0x38] sm:$0xff]
    %v6082 = vld [vmem:[#allocation5 + $0x50] sm:$0xff]
    %v6083 = vld [vmem:[#allocation5 + $0x68] sm:$0xff]
    %v6084 = vld [vmem:[#allocation5 + $0x80] sm:$0xff]
    %v6085 = vld [vmem:[#allocation5 + $0x98] sm:$0xff]
    %v6086 = vld [vmem:[#allocation5 + $0xb0] sm:$0xff]
    %v6087 = vld [vmem:[#allocation5 + $0xf8] sm:$0xff]
    %v6088 = vld [vmem:[#allocation5 + $0x110] sm:$0xff]
    %v6089 = vld [vmem:[#allocation5 + $0x128] sm:$0xff]
    %v6090 = vld [vmem:[#allocation5 + $0x140] sm:$0xff]
    %v6091 = vld [vmem:[#allocation5 + $0x158] sm:$0xff]
    %v6092 = vld [vmem:[#allocation5 + $0x170] sm:$0xff]
    %v6093 = vld [vmem:[#allocation5 + $0x188] sm:$0xff]
    %v6094 = vld [vmem:[#allocation5 + $0x1a0] sm:$0xff]
    %v6095 = vld [vmem:[#allocation5 + $0x9] sm:$0xff]
    %v6096 = vld [vmem:[#allocation5 + $0x21] sm:$0xff]
    %v6097 = vld [vmem:[#allocation5 + $0x39] sm:$0xff]
    %v6098 = vld [vmem:[#allocation5 + $0x51] sm:$0xff]
    %v6099 = vld [vmem:[#allocation5 + $0x69] sm:$0xff]
    %v6100 = vld [vmem:[#allocation5 + $0x81] sm:$0xff]
    %v6101 = vld [vmem:[#allocation5 + $0x99] sm:$0xff]
    %v6102 = vld [vmem:[#allocation5 + $0xb1] sm:$0xff]
    %v6103 = vld [vmem:[#allocation5 + $0xf9] sm:$0xff]
    %v6104 = vld [vmem:[#allocation5 + $0x111] sm:$0xff]
    %v6105 = vld [vmem:[#allocation5 + $0x129] sm:$0xff]
    %v6106 = vld [vmem:[#allocation5 + $0x141] sm:$0xff]
    %v6107 = vld [vmem:[#allocation5 + $0x159] sm:$0xff]
    %v6108 = vld [vmem:[#allocation5 + $0x171] sm:$0xff]
    %v6109 = vld [vmem:[#allocation5 + $0x189] sm:$0xff]
    %v6110 = vld [vmem:[#allocation5 + $0x1a1] sm:$0xff]
    %v6111 = vld [vmem:[%s6046 + $0x7] sm:$0xff]
    %v6112 = vld [vmem:[%s6046 + $0x1f] sm:$0xff]
    %v6113 = vld [vmem:[%s6046 + $0x37] sm:$0xff]
    %v6114 = vld [vmem:[%s6046 + $0x4f] sm:$0xff]
    %v6115 = vld [vmem:[%s6046 + $0x67] sm:$0xff]
    %v6116 = vld [vmem:[%s6046 + $0x7f] sm:$0xff]
    %v6117 = vld [vmem:[%s6046 + $0x97] sm:$0xff]
    %v6118 = vld [vmem:[%s6046 + $0xaf] sm:$0xff]
    %v6119 = vld [vmem:[%s6046 + $0xf7] sm:$0xff]
    %v6120 = vld [vmem:[%s6046 + $0x10f] sm:$0xff]
    %v6121 = vld [vmem:[%s6046 + $0x127] sm:$0xff]
    %v6122 = vld [vmem:[%s6046 + $0x13f] sm:$0xff]
    %v6123 = vld [vmem:[%s6046 + $0x157] sm:$0xff]
    %v6124 = vld [vmem:[%s6046 + $0x16f] sm:$0xff]
    %v6125 = vld [vmem:[%s6046 + $0x187] sm:$0xff]
    %v6126 = vld [vmem:[%s6046 + $0x19f] sm:$0xff]
    %v6127 = vld [vmem:[%s6046 + $0x8] sm:$0xff]
    %v6128 = vld [vmem:[%s6046 + $0x20] sm:$0xff]
    %v6129 = vld [vmem:[%s6046 + $0x38] sm:$0xff]
    %v6130 = vld [vmem:[%s6046 + $0x50] sm:$0xff]
    %v6131 = vld [vmem:[%s6046 + $0x68] sm:$0xff]
    %v6132 = vld [vmem:[%s6046 + $0x80] sm:$0xff]
    %v6133 = vld [vmem:[%s6046 + $0x98] sm:$0xff]
    %v6134 = vld [vmem:[%s6046 + $0xb0] sm:$0xff]
    %v6135 = vld [vmem:[%s6046 + $0xf8] sm:$0xff]
    %v6136 = vld [vmem:[%s6046 + $0x110] sm:$0xff]
    %v6137 = vld [vmem:[%s6046 + $0x128] sm:$0xff]
    %v6138 = vld [vmem:[%s6046 + $0x140] sm:$0xff]
    %v6139 = vld [vmem:[%s6046 + $0x158] sm:$0xff]
    %v6140 = vld [vmem:[%s6046 + $0x170] sm:$0xff]
    %v6141 = vld [vmem:[%s6046 + $0x188] sm:$0xff]
    %v6142 = vld [vmem:[%s6046 + $0x1a0] sm:$0xff]
    %v6143 = vld [vmem:[%s6046 + $0x9] sm:$0xff]
    %v6144 = vld [vmem:[%s6046 + $0x21] sm:$0xff]
    %v6145 = vld [vmem:[%s6046 + $0x39] sm:$0xff]
    %v6146 = vld [vmem:[%s6046 + $0x51] sm:$0xff]
    %v6147 = vld [vmem:[%s6046 + $0x69] sm:$0xff]
    %v6148 = vld [vmem:[%s6046 + $0x81] sm:$0xff]
    %v6149 = vld [vmem:[%s6046 + $0x99] sm:$0xff]
    %v6150 = vld [vmem:[%s6046 + $0xb1] sm:$0xff]
    %v6151 = vld [vmem:[%s6046 + $0xf9] sm:$0xff]
    %v6152 = vld [vmem:[%s6046 + $0x111] sm:$0xff]
    %v6153 = vld [vmem:[%s6046 + $0x129] sm:$0xff]
    %v6154 = vld [vmem:[%s6046 + $0x141] sm:$0xff]
    %v6155 = vld [vmem:[%s6046 + $0x159] sm:$0xff]
    %v6156 = vld [vmem:[%s6046 + $0x171] sm:$0xff]
    %v6157 = vld [vmem:[%s6046 + $0x189] sm:$0xff]
    %v6158 = vld [vmem:[%s6046 + $0x1a1] sm:$0xff]
    %s6159 = scalar_lea.vmem [#allocation5], 48
    %v6160 = vld [vmem:[%s6159 + $0x7] sm:$0xff]
    %v6161 = vld [vmem:[%s6159 + $0x1f] sm:$0xff]
    %v6162 = vld [vmem:[%s6159 + $0x37] sm:$0xff]
    %v6163 = vld [vmem:[%s6159 + $0x4f] sm:$0xff]
    %v6164 = vld [vmem:[%s6159 + $0x67] sm:$0xff]
    %v6165 = vld [vmem:[%s6159 + $0x7f] sm:$0xff]
    %v6166 = vld [vmem:[%s6159 + $0x97] sm:$0xff]
    %v6167 = vld [vmem:[%s6159 + $0xaf] sm:$0xff]
    %v6168 = vld [vmem:[%s6159 + $0xf7] sm:$0xff]
    %v6169 = vld [vmem:[%s6159 + $0x10f] sm:$0xff]
    %v6170 = vld [vmem:[%s6159 + $0x127] sm:$0xff]
    %v6171 = vld [vmem:[%s6159 + $0x13f] sm:$0xff]
    %v6172 = vld [vmem:[%s6159 + $0x157] sm:$0xff]
    %v6173 = vld [vmem:[%s6159 + $0x16f] sm:$0xff]
    %v6174 = vld [vmem:[%s6159 + $0x187] sm:$0xff]
    %v6175 = vld [vmem:[%s6159 + $0x19f] sm:$0xff]
    %v6176 = vld [vmem:[%s6159 + $0x8] sm:$0xff]
    %v6177 = vld [vmem:[%s6159 + $0x20] sm:$0xff]
    %v6178 = vld [vmem:[%s6159 + $0x38] sm:$0xff]
    %v6179 = vld [vmem:[%s6159 + $0x50] sm:$0xff]
    %v6180 = vld [vmem:[%s6159 + $0x68] sm:$0xff]
    %v6181 = vld [vmem:[%s6159 + $0x80] sm:$0xff]
    %v6182 = vld [vmem:[%s6159 + $0x98] sm:$0xff]
    %v6183 = vld [vmem:[%s6159 + $0xb0] sm:$0xff]
    %v6184 = vld [vmem:[%s6159 + $0xf8] sm:$0xff]
    %v6185 = vld [vmem:[%s6159 + $0x110] sm:$0xff]
    %v6186 = vld [vmem:[%s6159 + $0x128] sm:$0xff]
    %v6187 = vld [vmem:[%s6159 + $0x140] sm:$0xff]
    %v6188 = vld [vmem:[%s6159 + $0x158] sm:$0xff]
    %v6189 = vld [vmem:[%s6159 + $0x170] sm:$0xff]
    %v6190 = vld [vmem:[%s6159 + $0x188] sm:$0xff]
    %v6191 = vld [vmem:[%s6159 + $0x1a0] sm:$0xff]
    %v6192 = vld [vmem:[%s6159 + $0x9] sm:$0xff]
    %v6193 = vld [vmem:[%s6159 + $0x21] sm:$0xff]
    %v6194 = vld [vmem:[%s6159 + $0x39] sm:$0xff]
    %v6195 = vld [vmem:[%s6159 + $0x51] sm:$0xff]
    %v6196 = vld [vmem:[%s6159 + $0x69] sm:$0xff]
    %v6197 = vld [vmem:[%s6159 + $0x81] sm:$0xff]
    %v6198 = vld [vmem:[%s6159 + $0x99] sm:$0xff]
    %v6199 = vld [vmem:[%s6159 + $0xb1] sm:$0xff]
    %v6200 = vld [vmem:[%s6159 + $0xf9] sm:$0xff]
    %v6201 = vld [vmem:[%s6159 + $0x111] sm:$0xff]
    %v6202 = vld [vmem:[%s6159 + $0x129] sm:$0xff]
    %v6203 = vld [vmem:[%s6159 + $0x141] sm:$0xff]
    %v6204 = vld [vmem:[%s6159 + $0x159] sm:$0xff]
    %v6205 = vld [vmem:[%s6159 + $0x171] sm:$0xff]
    %v6206 = vld [vmem:[%s6159 + $0x189] sm:$0xff]
    %v6207 = vld [vmem:[%s6159 + $0x1a1] sm:$0xff]
    %6224 = vrot.lane.b32.xlu0 %v6079, 20
    %v6225 = vpop.permute.xlu0 %6224
    %6226 = vrot.lane.b32.xlu0 %v6080, 20
    %v6227 = vpop.permute.xlu0 %6226
    %6228 = vrot.lane.b32.xlu0 %v6081, 20
    %v6229 = vpop.permute.xlu0 %6228
    %6230 = vrot.lane.b32.xlu0 %v6082, 20
    %v6231 = vpop.permute.xlu0 %6230
    %6232 = vrot.lane.b32.xlu0 %v6083, 20
    %v6233 = vpop.permute.xlu0 %6232
    %6234 = vrot.lane.b32.xlu0 %v6084, 20
    %v6235 = vpop.permute.xlu0 %6234
    %6236 = vrot.lane.b32.xlu0 %v6085, 20
    %v6237 = vpop.permute.xlu0 %6236
    %6238 = vrot.lane.b32.xlu0 %v6086, 20
    %v6239 = vpop.permute.xlu0 %6238
    %6240 = vrot.lane.b32.xlu0 %v6087, 20
    %v6241 = vpop.permute.xlu0 %6240
    %6242 = vrot.lane.b32.xlu0 %v6088, 20
    %v6243 = vpop.permute.xlu0 %6242
    %6244 = vrot.lane.b32.xlu0 %v6089, 20
    %v6245 = vpop.permute.xlu0 %6244
    %6246 = vrot.lane.b32.xlu0 %v6090, 20
    %v6247 = vpop.permute.xlu0 %6246
    %6248 = vrot.lane.b32.xlu0 %v6091, 20
    %v6249 = vpop.permute.xlu0 %6248
    %6250 = vrot.lane.b32.xlu0 %v6092, 20
    %v6251 = vpop.permute.xlu0 %6250
    %6252 = vrot.lane.b32.xlu0 %v6093, 20
    %v6253 = vpop.permute.xlu0 %6252
    %6254 = vrot.lane.b32.xlu0 %v6094, 20
    %v6255 = vpop.permute.xlu0 %6254
    %6288 = vrot.lane.b32.xlu0 %v6095, 40
    %v6289 = vpop.permute.xlu0 %6288
    %6290 = vrot.lane.b32.xlu0 %v6096, 40
    %v6291 = vpop.permute.xlu0 %6290
    %6292 = vrot.lane.b32.xlu0 %v6097, 40
    %v6293 = vpop.permute.xlu0 %6292
    %6294 = vrot.lane.b32.xlu0 %v6098, 40
    %v6295 = vpop.permute.xlu0 %6294
    %6296 = vrot.lane.b32.xlu0 %v6099, 40
    %v6297 = vpop.permute.xlu0 %6296
    %6298 = vrot.lane.b32.xlu0 %v6100, 40
    %v6299 = vpop.permute.xlu0 %6298
    %6300 = vrot.lane.b32.xlu0 %v6101, 40
    %v6301 = vpop.permute.xlu0 %6300
    %6302 = vrot.lane.b32.xlu0 %v6102, 40
    %v6303 = vpop.permute.xlu0 %6302
    %6304 = vrot.lane.b32.xlu0 %v6103, 40
    %v6305 = vpop.permute.xlu0 %6304
    %6306 = vrot.lane.b32.xlu0 %v6104, 40
    %v6307 = vpop.permute.xlu0 %6306
    %6308 = vrot.lane.b32.xlu0 %v6105, 40
    %v6309 = vpop.permute.xlu0 %6308
    %6310 = vrot.lane.b32.xlu0 %v6106, 40
    %v6311 = vpop.permute.xlu0 %6310
    %6312 = vrot.lane.b32.xlu0 %v6107, 40
    %v6313 = vpop.permute.xlu0 %6312
    %6314 = vrot.lane.b32.xlu0 %v6108, 40
    %v6315 = vpop.permute.xlu0 %6314
    %6316 = vrot.lane.b32.xlu0 %v6109, 40
    %v6317 = vpop.permute.xlu0 %6316
    %6318 = vrot.lane.b32.xlu0 %v6110, 40
    %v6319 = vpop.permute.xlu0 %6318
    %6352 = vrot.lane.b32.xlu0 %v6111, 60
    %v6353 = vpop.permute.xlu0 %6352
    %6354 = vrot.lane.b32.xlu0 %v6112, 60
    %v6355 = vpop.permute.xlu0 %6354
    %6356 = vrot.lane.b32.xlu0 %v6113, 60
    %v6357 = vpop.permute.xlu0 %6356
    %6358 = vrot.lane.b32.xlu0 %v6114, 60
    %v6359 = vpop.permute.xlu0 %6358
    %6360 = vrot.lane.b32.xlu0 %v6115, 60
    %v6361 = vpop.permute.xlu0 %6360
    %6362 = vrot.lane.b32.xlu0 %v6116, 60
    %v6363 = vpop.permute.xlu0 %6362
    %6364 = vrot.lane.b32.xlu0 %v6117, 60
    %v6365 = vpop.permute.xlu0 %6364
    %6366 = vrot.lane.b32.xlu0 %v6118, 60
    %v6367 = vpop.permute.xlu0 %6366
    %6368 = vrot.lane.b32.xlu0 %v6119, 60
    %v6369 = vpop.permute.xlu0 %6368
    %6370 = vrot.lane.b32.xlu0 %v6120, 60
    %v6371 = vpop.permute.xlu0 %6370
    %6372 = vrot.lane.b32.xlu0 %v6121, 60
    %v6373 = vpop.permute.xlu0 %6372
    %6374 = vrot.lane.b32.xlu0 %v6122, 60
    %v6375 = vpop.permute.xlu0 %6374
    %6376 = vrot.lane.b32.xlu0 %v6123, 60
    %v6377 = vpop.permute.xlu0 %6376
    %6378 = vrot.lane.b32.xlu0 %v6124, 60
    %v6379 = vpop.permute.xlu0 %6378
    %6380 = vrot.lane.b32.xlu0 %v6125, 60
    %v6381 = vpop.permute.xlu0 %6380
    %6382 = vrot.lane.b32.xlu0 %v6126, 60
    %v6383 = vpop.permute.xlu0 %6382
    %6416 = vrot.lane.b32.xlu0 %v6127, 80
    %v6417 = vpop.permute.xlu0 %6416
    %6418 = vrot.lane.b32.xlu0 %v6128, 80
    %v6419 = vpop.permute.xlu0 %6418
    %6420 = vrot.lane.b32.xlu0 %v6129, 80
    %v6421 = vpop.permute.xlu0 %6420
    %6422 = vrot.lane.b32.xlu0 %v6130, 80
    %v6423 = vpop.permute.xlu0 %6422
    %6424 = vrot.lane.b32.xlu0 %v6131, 80
    %v6425 = vpop.permute.xlu0 %6424
    %6426 = vrot.lane.b32.xlu0 %v6132, 80
    %v6427 = vpop.permute.xlu0 %6426
    %6428 = vrot.lane.b32.xlu0 %v6133, 80
    %v6429 = vpop.permute.xlu0 %6428
    %6430 = vrot.lane.b32.xlu0 %v6134, 80
    %v6431 = vpop.permute.xlu0 %6430
    %6432 = vrot.lane.b32.xlu0 %v6135, 80
    %v6433 = vpop.permute.xlu0 %6432
    %6434 = vrot.lane.b32.xlu0 %v6136, 80
    %v6435 = vpop.permute.xlu0 %6434
    %6436 = vrot.lane.b32.xlu0 %v6137, 80
    %v6437 = vpop.permute.xlu0 %6436
    %6438 = vrot.lane.b32.xlu0 %v6138, 80
    %v6439 = vpop.permute.xlu0 %6438
    %6440 = vrot.lane.b32.xlu0 %v6139, 80
    %v6441 = vpop.permute.xlu0 %6440
    %6442 = vrot.lane.b32.xlu0 %v6140, 80
    %v6443 = vpop.permute.xlu0 %6442
    %6444 = vrot.lane.b32.xlu0 %v6141, 80
    %v6445 = vpop.permute.xlu0 %6444
    %6446 = vrot.lane.b32.xlu0 %v6142, 80
    %v6447 = vpop.permute.xlu0 %6446
    %6480 = vrot.lane.b32.xlu0 %v6143, 100
    %v6481 = vpop.permute.xlu0 %6480
    %6482 = vrot.lane.b32.xlu0 %v6144, 100
    %v6483 = vpop.permute.xlu0 %6482
    %6484 = vrot.lane.b32.xlu0 %v6145, 100
    %v6485 = vpop.permute.xlu0 %6484
    %6486 = vrot.lane.b32.xlu0 %v6146, 100
    %v6487 = vpop.permute.xlu0 %6486
    %6488 = vrot.lane.b32.xlu0 %v6147, 100
    %v6489 = vpop.permute.xlu0 %6488
    %6490 = vrot.lane.b32.xlu0 %v6148, 100
    %v6491 = vpop.permute.xlu0 %6490
    %6492 = vrot.lane.b32.xlu0 %v6149, 100
    %v6493 = vpop.permute.xlu0 %6492
    %6494 = vrot.lane.b32.xlu0 %v6150, 100
    %v6495 = vpop.permute.xlu0 %6494
    %6496 = vrot.lane.b32.xlu0 %v6151, 100
    %v6497 = vpop.permute.xlu0 %6496
    %6498 = vrot.lane.b32.xlu0 %v6152, 100
    %v6499 = vpop.permute.xlu0 %6498
    %6500 = vrot.lane.b32.xlu0 %v6153, 100
    %v6501 = vpop.permute.xlu0 %6500
    %6502 = vrot.lane.b32.xlu0 %v6154, 100
    %v6503 = vpop.permute.xlu0 %6502
    %6504 = vrot.lane.b32.xlu0 %v6155, 100
    %v6505 = vpop.permute.xlu0 %6504
    %6506 = vrot.lane.b32.xlu0 %v6156, 100
    %v6507 = vpop.permute.xlu0 %6506
    %6508 = vrot.lane.b32.xlu0 %v6157, 100
    %v6509 = vpop.permute.xlu0 %6508
    %6510 = vrot.lane.b32.xlu0 %v6158, 100
    %v6511 = vpop.permute.xlu0 %6510
    %6544 = vrot.lane.b32.xlu0 %v6160, 120
    %v6545 = vpop.permute.xlu0 %6544
    %6546 = vrot.lane.b32.xlu0 %v6161, 120
    %v6547 = vpop.permute.xlu0 %6546
    %6548 = vrot.lane.b32.xlu0 %v6162, 120
    %v6549 = vpop.permute.xlu0 %6548
    %6550 = vrot.lane.b32.xlu0 %v6163, 120
    %v6551 = vpop.permute.xlu0 %6550
    %6552 = vrot.lane.b32.xlu0 %v6164, 120
    %v6553 = vpop.permute.xlu0 %6552
    %6554 = vrot.lane.b32.xlu0 %v6165, 120
    %v6555 = vpop.permute.xlu0 %6554
    %6556 = vrot.lane.b32.xlu0 %v6166, 120
    %v6557 = vpop.permute.xlu0 %6556
    %6558 = vrot.lane.b32.xlu0 %v6167, 120
    %v6559 = vpop.permute.xlu0 %6558
    %6560 = vrot.lane.b32.xlu0 %v6168, 120
    %v6561 = vpop.permute.xlu0 %6560
    %6562 = vrot.lane.b32.xlu0 %v6169, 120
    %v6563 = vpop.permute.xlu0 %6562
    %6564 = vrot.lane.b32.xlu0 %v6170, 120
    %v6565 = vpop.permute.xlu0 %6564
    %6566 = vrot.lane.b32.xlu0 %v6171, 120
    %v6567 = vpop.permute.xlu0 %6566
    %6568 = vrot.lane.b32.xlu0 %v6172, 120
    %v6569 = vpop.permute.xlu0 %6568
    %6570 = vrot.lane.b32.xlu0 %v6173, 120
    %v6571 = vpop.permute.xlu0 %6570
    %6572 = vrot.lane.b32.xlu0 %v6174, 120
    %v6573 = vpop.permute.xlu0 %6572
    %6574 = vrot.lane.b32.xlu0 %v6175, 120
    %v6575 = vpop.permute.xlu0 %6574
    %6608 = vrot.lane.b32.xlu0 %v6176, 12
    %v6609 = vpop.permute.xlu0 %6608
    %6610 = vrot.lane.b32.xlu0 %v6177, 12
    %v6611 = vpop.permute.xlu0 %6610
    %6612 = vrot.lane.b32.xlu0 %v6178, 12
    %v6613 = vpop.permute.xlu0 %6612
    %6614 = vrot.lane.b32.xlu0 %v6179, 12
    %v6615 = vpop.permute.xlu0 %6614
    %6616 = vrot.lane.b32.xlu0 %v6180, 12
    %v6617 = vpop.permute.xlu0 %6616
    %6618 = vrot.lane.b32.xlu0 %v6181, 12
    %v6619 = vpop.permute.xlu0 %6618
    %6620 = vrot.lane.b32.xlu0 %v6182, 12
    %v6621 = vpop.permute.xlu0 %6620
    %6622 = vrot.lane.b32.xlu0 %v6183, 12
    %v6623 = vpop.permute.xlu0 %6622
    %6624 = vrot.lane.b32.xlu0 %v6184, 12
    %v6625 = vpop.permute.xlu0 %6624
    %6626 = vrot.lane.b32.xlu0 %v6185, 12
    %v6627 = vpop.permute.xlu0 %6626
    %6628 = vrot.lane.b32.xlu0 %v6186, 12
    %v6629 = vpop.permute.xlu0 %6628
    %6630 = vrot.lane.b32.xlu0 %v6187, 12
    %v6631 = vpop.permute.xlu0 %6630
    %6632 = vrot.lane.b32.xlu0 %v6188, 12
    %v6633 = vpop.permute.xlu0 %6632
    %6634 = vrot.lane.b32.xlu0 %v6189, 12
    %v6635 = vpop.permute.xlu0 %6634
    %6636 = vrot.lane.b32.xlu0 %v6190, 12
    %v6637 = vpop.permute.xlu0 %6636
    %6638 = vrot.lane.b32.xlu0 %v6191, 12
    %v6639 = vpop.permute.xlu0 %6638
    %6672 = vrot.lane.b32.xlu0 %v6192, 32
    %v6673 = vpop.permute.xlu0 %6672
    %6674 = vrot.lane.b32.xlu0 %v6193, 32
    %v6675 = vpop.permute.xlu0 %6674
    %6676 = vrot.lane.b32.xlu0 %v6194, 32
    %v6677 = vpop.permute.xlu0 %6676
    %6678 = vrot.lane.b32.xlu0 %v6195, 32
    %v6679 = vpop.permute.xlu0 %6678
    %6680 = vrot.lane.b32.xlu0 %v6196, 32
    %v6681 = vpop.permute.xlu0 %6680
    %6682 = vrot.lane.b32.xlu0 %v6197, 32
    %v6683 = vpop.permute.xlu0 %6682
    %6684 = vrot.lane.b32.xlu0 %v6198, 32
    %v6685 = vpop.permute.xlu0 %6684
    %6686 = vrot.lane.b32.xlu0 %v6199, 32
    %v6687 = vpop.permute.xlu0 %6686
    %6688 = vrot.lane.b32.xlu0 %v6200, 32
    %v6689 = vpop.permute.xlu0 %6688
    %6690 = vrot.lane.b32.xlu0 %v6201, 32
    %v6691 = vpop.permute.xlu0 %6690
    %6692 = vrot.lane.b32.xlu0 %v6202, 32
    %v6693 = vpop.permute.xlu0 %6692
    %6694 = vrot.lane.b32.xlu0 %v6203, 32
    %v6695 = vpop.permute.xlu0 %6694
    %6696 = vrot.lane.b32.xlu0 %v6204, 32
    %v6697 = vpop.permute.xlu0 %6696
    %6698 = vrot.lane.b32.xlu0 %v6205, 32
    %v6699 = vpop.permute.xlu0 %6698
    %6700 = vrot.lane.b32.xlu0 %v6206, 32
    %v6701 = vpop.permute.xlu0 %6700
    %6702 = vrot.lane.b32.xlu0 %v6207, 32
    %v6703 = vpop.permute.xlu0 %6702
    %v6720 = vsel %vm5984, %v6063, %v6225
    %v6721 = vsel %vm5984, %v6064, %v6227
    %v6722 = vsel %vm5984, %v6065, %v6229
    %v6723 = vsel %vm5984, %v6066, %v6231
    %v6724 = vsel %vm5984, %v6067, %v6233
    %v6725 = vsel %vm5984, %v6068, %v6235
    %v6726 = vsel %vm5984, %v6069, %v6237
    %v6727 = vsel %vm5984, %v6070, %v6239
    %v6728 = vsel %vm5984, %v6071, %v6241
    %v6729 = vsel %vm5984, %v6072, %v6243
    %v6730 = vsel %vm5984, %v6073, %v6245
    %v6731 = vsel %vm5984, %v6074, %v6247
    %v6732 = vsel %vm5984, %v6075, %v6249
    %v6733 = vsel %vm5984, %v6076, %v6251
    %v6734 = vsel %vm5984, %v6077, %v6253
    %v6735 = vsel %vm5984, %v6078, %v6255
    %vm6736 = vcmask 326656
    %v6737 = vsel %vm6736, %v6720, %v6289
    %v6738 = vsel %vm6736, %v6721, %v6291
    %v6739 = vsel %vm6736, %v6722, %v6293
    %v6740 = vsel %vm6736, %v6723, %v6295
    %v6741 = vsel %vm6736, %v6724, %v6297
    %v6742 = vsel %vm6736, %v6725, %v6299
    %v6743 = vsel %vm6736, %v6726, %v6301
    %v6744 = vsel %vm6736, %v6727, %v6303
    %v6745 = vsel %vm6736, %v6728, %v6305
    %v6746 = vsel %vm6736, %v6729, %v6307
    %v6747 = vsel %vm6736, %v6730, %v6309
    %v6748 = vsel %vm6736, %v6731, %v6311
    %v6749 = vsel %vm6736, %v6732, %v6313
    %v6750 = vsel %vm6736, %v6733, %v6315
    %v6751 = vsel %vm6736, %v6734, %v6317
    %v6752 = vsel %vm6736, %v6735, %v6319
    %v6753 = vsel %vm5681, %v6737, %v6353
    %v6754 = vsel %vm5681, %v6738, %v6355
    %v6755 = vsel %vm5681, %v6739, %v6357
    %v6756 = vsel %vm5681, %v6740, %v6359
    %v6757 = vsel %vm5681, %v6741, %v6361
    %v6758 = vsel %vm5681, %v6742, %v6363
    %v6759 = vsel %vm5681, %v6743, %v6365
    %v6760 = vsel %vm5681, %v6744, %v6367
    %v6761 = vsel %vm5681, %v6745, %v6369
    %v6762 = vsel %vm5681, %v6746, %v6371
    %v6763 = vsel %vm5681, %v6747, %v6373
    %v6764 = vsel %vm5681, %v6748, %v6375
    %v6765 = vsel %vm5681, %v6749, %v6377
    %v6766 = vsel %vm5681, %v6750, %v6379
    %v6767 = vsel %vm5681, %v6751, %v6381
    %v6768 = vsel %vm5681, %v6752, %v6383
    %vm6769 = vcmask 654336
    %v6770 = vsel %vm6769, %v6753, %v6417
    %v6771 = vsel %vm6769, %v6754, %v6419
    %v6772 = vsel %vm6769, %v6755, %v6421
    %v6773 = vsel %vm6769, %v6756, %v6423
    %v6774 = vsel %vm6769, %v6757, %v6425
    %v6775 = vsel %vm6769, %v6758, %v6427
    %v6776 = vsel %vm6769, %v6759, %v6429
    %v6777 = vsel %vm6769, %v6760, %v6431
    %v6778 = vsel %vm6769, %v6761, %v6433
    %v6779 = vsel %vm6769, %v6762, %v6435
    %v6780 = vsel %vm6769, %v6763, %v6437
    %v6781 = vsel %vm6769, %v6764, %v6439
    %v6782 = vsel %vm6769, %v6765, %v6441
    %v6783 = vsel %vm6769, %v6766, %v6443
    %v6784 = vsel %vm6769, %v6767, %v6445
    %v6785 = vsel %vm6769, %v6768, %v6447
    %vm6786 = vcmask 818176
    %v6787 = vsel %vm6786, %v6770, %v6481
    %v6788 = vsel %vm6786, %v6771, %v6483
    %v6789 = vsel %vm6786, %v6772, %v6485
    %v6790 = vsel %vm6786, %v6773, %v6487
    %v6791 = vsel %vm6786, %v6774, %v6489
    %v6792 = vsel %vm6786, %v6775, %v6491
    %v6793 = vsel %vm6786, %v6776, %v6493
    %v6794 = vsel %vm6786, %v6777, %v6495
    %v6795 = vsel %vm6786, %v6778, %v6497
    %v6796 = vsel %vm6786, %v6779, %v6499
    %v6797 = vsel %vm6786, %v6780, %v6501
    %v6798 = vsel %vm6786, %v6781, %v6503
    %v6799 = vsel %vm6786, %v6782, %v6505
    %v6800 = vsel %vm6786, %v6783, %v6507
    %v6801 = vsel %vm6786, %v6784, %v6509
    %v6802 = vsel %vm6786, %v6785, %v6511
    %vm6803 = vcmask 982016
    %v6804 = vsel %vm6803, %v6787, %v6545
    %v6805 = vsel %vm6803, %v6788, %v6547
    %v6806 = vsel %vm6803, %v6789, %v6549
    %v6807 = vsel %vm6803, %v6790, %v6551
    %v6808 = vsel %vm6803, %v6791, %v6553
    %v6809 = vsel %vm6803, %v6792, %v6555
    %v6810 = vsel %vm6803, %v6793, %v6557
    %v6811 = vsel %vm6803, %v6794, %v6559
    %v6812 = vsel %vm6803, %v6795, %v6561
    %v6813 = vsel %vm6803, %v6796, %v6563
    %v6814 = vsel %vm6803, %v6797, %v6565
    %v6815 = vsel %vm6803, %v6798, %v6567
    %v6816 = vsel %vm6803, %v6799, %v6569
    %v6817 = vsel %vm6803, %v6800, %v6571
    %v6818 = vsel %vm6803, %v6801, %v6573
    %v6819 = vsel %vm6803, %v6802, %v6575
    %v6820 = vsel %vm3213, %v6545, %v6609
    %v6821 = vsel %vm3213, %v6547, %v6611
    %v6822 = vsel %vm3213, %v6549, %v6613
    %v6823 = vsel %vm3213, %v6551, %v6615
    %v6824 = vsel %vm3213, %v6553, %v6617
    %v6825 = vsel %vm3213, %v6555, %v6619
    %v6826 = vsel %vm3213, %v6557, %v6621
    %v6827 = vsel %vm3213, %v6559, %v6623
    %v6828 = vsel %vm3213, %v6561, %v6625
    %v6829 = vsel %vm3213, %v6563, %v6627
    %v6830 = vsel %vm3213, %v6565, %v6629
    %v6831 = vsel %vm3213, %v6567, %v6631
    %v6832 = vsel %vm3213, %v6569, %v6633
    %v6833 = vsel %vm3213, %v6571, %v6635
    %v6834 = vsel %vm3213, %v6573, %v6637
    %v6835 = vsel %vm3213, %v6575, %v6639
    %vm6836 = vcmask 261120
    %v6837 = vsel %vm6836, %v6820, %v6673
    %v6838 = vsel %vm6836, %v6821, %v6675
    %v6839 = vsel %vm6836, %v6822, %v6677
    %v6840 = vsel %vm6836, %v6823, %v6679
    %v6841 = vsel %vm6836, %v6824, %v6681
    %v6842 = vsel %vm6836, %v6825, %v6683
    %v6843 = vsel %vm6836, %v6826, %v6685
    %v6844 = vsel %vm6836, %v6827, %v6687
    %v6845 = vsel %vm6836, %v6828, %v6689
    %v6846 = vsel %vm6836, %v6829, %v6691
    %v6847 = vsel %vm6836, %v6830, %v6693
    %v6848 = vsel %vm6836, %v6831, %v6695
    %v6849 = vsel %vm6836, %v6832, %v6697
    %v6850 = vsel %vm6836, %v6833, %v6699
    %v6851 = vsel %vm6836, %v6834, %v6701
    %v6852 = vsel %vm6836, %v6835, %v6703
    %v6853 = vld [vmem:[%s7] sm:$0xff]
    %v6854 = vld [vmem:[%s7 + $0x8] sm:$0xff]
    %v6855 = vld [vmem:[%s7 + $0x10] sm:$0xff]
    %v6856 = vld [vmem:[%s7 + $0x18] sm:$0xff]
    %v6857 = vld [vmem:[%s7 + $0x20] sm:$0xff]
    %v6858 = vld [vmem:[%s7 + $0x28] sm:$0xff]
    %v6859 = vld [vmem:[%s7 + $0x30] sm:$0xff]
    %v6860 = vld [vmem:[%s7 + $0x38] sm:$0xff]
    %v6861 = vld [vmem:[%s7 + $0x40] sm:$0xff]
    %v6862 = vld [vmem:[%s7 + $0x48] sm:$0xff]
    %v6863 = vld [vmem:[%s7 + $0x50] sm:$0xff]
    %v6864 = vld [vmem:[%s7 + $0x58] sm:$0xff]
    %v6865 = vld [vmem:[%s7 + $0x60] sm:$0xff]
    %v6866 = vld [vmem:[%s7 + $0x68] sm:$0xff]
    %v6867 = vld [vmem:[%s7 + $0x70] sm:$0xff]
    %v6868 = vld [vmem:[%s7 + $0x78] sm:$0xff]
    %v6869 = vld [vmem:[%s7 + $0x80] sm:$0xff]
    %v6870 = vld [vmem:[%s7 + $0x88] sm:$0xff]
    %v6871 = vld [vmem:[%s7 + $0x90] sm:$0xff]
    %v6872 = vld [vmem:[%s7 + $0x98] sm:$0xff]
    %v6873 = vld [vmem:[%s7 + $0xa0] sm:$0xff]
    %v6874 = vld [vmem:[%s7 + $0xa8] sm:$0xff]
    %v6875 = vld [vmem:[%s7 + $0xb0] sm:$0xf]
    %v6876 = vld [vmem:[#allocation13] sm:$0x1]
    %v6878 = vlaneseq
    %v6879 = vshrl.u32 %v6878, 7
    %v6880 = vsub.s32 0, %v6879
    %v6881 = vrot.slane %v6876, %v6880
    %vm6883 = vcmask 424960
    %v6885 = vsel %vm6883, %v6837, 0
    %v6888 = vsel %vm6883, %v6838, 0
    %v6891 = vsel %vm6883, %v6839, 0
    %v6894 = vsel %vm6883, %v6840, 0
    %v6897 = vsel %vm6883, %v6841, 0
    %v6900 = vsel %vm6883, %v6842, 0
    %v6903 = vsel %vm6883, %v6843, 0
    %v6906 = vsel %vm6883, %v6844, 0
    %v6909 = vsel %vm6883, %v6845, 0
    %v6912 = vsel %vm6883, %v6846, 0
    %v6915 = vsel %vm6883, %v6847, 0
    %v6918 = vsel %vm6883, %v6848, 0
    %v6921 = vsel %vm6883, %v6849, 0
    %v6924 = vsel %vm6883, %v6850, 0
    %v6927 = vsel %vm6883, %v6851, 0
    %v6930 = vsel %vm6883, %v6852, 0
    %v6933 = vsel %vm5819, %v6875, 0
    %6935 = vmatprep.subr.mxu0 0.0
    %6936 = vmatpush1.msra.mxu0 %v6868
    %6937 = vmatprep.subr.mxu0 0.0
    %6938 = vmatpush1.msra.mxu0 %v6867
    %6939 = vmatprep.subr.mxu0 0.0
    %6940 = vmatpush1.msra.mxu0 %v6866
    %6941 = vmatprep.subr.mxu0 0.0
    %6942 = vmatpush1.msra.mxu0 %v6865
    %6943 = vmatprep.subr.mxu0 0.0
    %6944 = vmatpush1.msra.mxu0 %v6864
    %6945 = vmatprep.subr.mxu0 0.0
    %6946 = vmatpush1.msra.mxu0 %v6863
    %6947 = vmatprep.subr.mxu0 0.0
    %6948 = vmatpush1.msra.mxu0 %v6862
    %6949 = vmatprep.subr.mxu0 0.0
    %6950 = vmatpush1.msra.mxu0 %v6861
    %6951 = vmatprep.subr.mxu0 0.0
    %6952 = vmatpush1.msra.mxu0 %v6860
    %6953 = vmatprep.subr.mxu0 0.0
    %6954 = vmatpush1.msra.mxu0 %v6859
    %6955 = vmatprep.subr.mxu0 0.0
    %6956 = vmatpush1.msra.mxu0 %v6858
    %6957 = vmatprep.subr.mxu0 0.0
    %6958 = vmatpush1.msra.mxu0 %v6857
    %6959 = vmatprep.subr.mxu0 0.0
    %6960 = vmatpush1.msra.mxu0 %v6856
    %6961 = vmatprep.subr.mxu0 0.0
    %6962 = vmatpush1.msra.mxu0 %v6855
    %6963 = vmatprep.subr.mxu0 0.0
    %6964 = vmatpush1.msra.mxu0 %v6854
    %6965 = vmatprep.subr.mxu0 0.0
    %6966 = vmatpush1.msra.mxu0 %v6853
    %6967 = vmatprep.subr.mxu0 0.0
    %6968 = vmatpush2.msra.mxu0 0.0
    %6969 = vmatprep.subr.mxu0 0.0
    %6970 = vmatpush2.msra.mxu0 0.0
    %6971 = vmatprep.subr.mxu0 0.0
    %6972 = vmatpush2.msra.mxu0 0.0
    %6973 = vmatprep.subr.mxu0 0.0
    %6974 = vmatpush2.msra.mxu0 0.0
    %6975 = vmatprep.subr.mxu0 0.0
    %6976 = vmatpush2.msra.mxu0 0.0
    %6977 = vmatprep.subr.mxu0 0.0
    %6978 = vmatpush2.msra.mxu0 0.0
    %6979 = vmatprep.subr.mxu0 0.0
    %6980 = vmatpush2.msra.mxu0 0.0
    %6981 = vmatprep.subr.mxu0 0.0
    %6982 = vmatpush2.msra.mxu0 0.0
    %6983 = vmatprep.subr.mxu0 0.0
    %6984 = vmatpush2.msra.mxu0 0.0
    %6985 = vmatprep.subr.mxu0 0.0
    %6986 = vmatpush2.msra.mxu0 %v6933
    %6987 = vmatprep.subr.mxu0 0.0
    %6988 = vmatpush2.msra.mxu0 %v6874
    %6989 = vmatprep.subr.mxu0 0.0
    %6990 = vmatpush2.msra.mxu0 %v6873
    %6991 = vmatprep.subr.mxu0 0.0
    %6992 = vmatpush2.msra.mxu0 %v6872
    %6993 = vmatprep.subr.mxu0 0.0
    %6994 = vmatpush2.msra.mxu0 %v6871
    %6995 = vmatprep.subr.mxu0 0.0
    %6996 = vmatpush2.msra.mxu0 %v6870
    %6997 = vmatprep.subr.mxu0 0.0
    %6998 = vmatpush2.msra.mxu0 %v6869
    %6999 = vmatprep.mubr.f32.mxu0 %v6885
    %7000 = vmatmul.mubr.f32.gmra.mxu0 %v6804
    %v7001 = vpop.f32.mrf.mxu0
    %v7002 = vadd.f32 %v6881, %v7001
    %v7003 = vpop.f32.mrf.mxu0
    %7004 = vmatprep.mubr.f32.mxu0 %v6888
    %7005 = vmatmul.mubr.f32.gmra.mxu0 %v6805
    %v7006 = vpop.f32.mrf.mxu0
    %v7007 = vadd.f32 %v6881, %v7006
    %v7008 = vpop.f32.mrf.mxu0
    %7009 = vmatprep.mubr.f32.mxu0 %v6891
    %7010 = vmatmul.mubr.f32.gmra.mxu0 %v6806
    %v7011 = vpop.f32.mrf.mxu0
    %v7012 = vadd.f32 %v6881, %v7011
    %v7013 = vpop.f32.mrf.mxu0
    %7014 = vmatprep.mubr.f32.mxu0 %v6894
    %7015 = vmatmul.mubr.f32.gmra.mxu0 %v6807
    %v7016 = vpop.f32.mrf.mxu0
    %v7017 = vadd.f32 %v6881, %v7016
    %v7018 = vpop.f32.mrf.mxu0
    %7019 = vmatprep.mubr.f32.mxu0 %v6897
    %7020 = vmatmul.mubr.f32.gmra.mxu0 %v6808
    %v7021 = vpop.f32.mrf.mxu0
    %v7022 = vadd.f32 %v6881, %v7021
    %v7023 = vpop.f32.mrf.mxu0
    %7024 = vmatprep.mubr.f32.mxu0 %v6900
    %7025 = vmatmul.mubr.f32.gmra.mxu0 %v6809
    %v7026 = vpop.f32.mrf.mxu0
    %v7027 = vadd.f32 %v6881, %v7026
    %v7028 = vpop.f32.mrf.mxu0
    %7029 = vmatprep.mubr.f32.mxu0 %v6903
    %7030 = vmatmul.mubr.f32.gmra.mxu0 %v6810
    %v7031 = vpop.f32.mrf.mxu0
    %v7032 = vadd.f32 %v6881, %v7031
    %v7033 = vpop.f32.mrf.mxu0
    %7034 = vmatprep.mubr.f32.mxu0 %v6906
    %7035 = vmatmul.mubr.f32.gmra.mxu0 %v6811
    %v7036 = vpop.f32.mrf.mxu0
    %v7037 = vadd.f32 %v6881, %v7036
    %v7038 = vpop.f32.mrf.mxu0
    %7039 = vmatprep.mubr.f32.mxu0 %v6909
    %7040 = vmatmul.mubr.f32.gmra.mxu0 %v6812
    %v7041 = vpop.f32.mrf.mxu0
    %v7042 = vadd.f32 %v6881, %v7041
    %v7043 = vpop.f32.mrf.mxu0
    %7044 = vmatprep.mubr.f32.mxu0 %v6912
    %7045 = vmatmul.mubr.f32.gmra.mxu0 %v6813
    %v7046 = vpop.f32.mrf.mxu0
    %v7047 = vadd.f32 %v6881, %v7046
    %v7048 = vpop.f32.mrf.mxu0
    %7049 = vmatprep.mubr.f32.mxu0 %v6915
    %7050 = vmatmul.mubr.f32.gmra.mxu0 %v6814
    %v7051 = vpop.f32.mrf.mxu0
    %v7052 = vadd.f32 %v6881, %v7051
    %v7053 = vpop.f32.mrf.mxu0
    %7054 = vmatprep.mubr.f32.mxu0 %v6918
    %7055 = vmatmul.mubr.f32.gmra.mxu0 %v6815
    %v7056 = vpop.f32.mrf.mxu0
    %v7057 = vadd.f32 %v6881, %v7056
    %v7058 = vpop.f32.mrf.mxu0
    %7059 = vmatprep.mubr.f32.mxu0 %v6921
    %7060 = vmatmul.mubr.f32.gmra.mxu0 %v6816
    %v7061 = vpop.f32.mrf.mxu0
    %v7062 = vadd.f32 %v6881, %v7061
    %v7063 = vpop.f32.mrf.mxu0
    %7064 = vmatprep.mubr.f32.mxu0 %v6924
    %7065 = vmatmul.mubr.f32.gmra.mxu0 %v6817
    %v7066 = vpop.f32.mrf.mxu0
    %v7067 = vadd.f32 %v6881, %v7066
    %v7068 = vpop.f32.mrf.mxu0
    %7069 = vmatprep.mubr.f32.mxu0 %v6927
    %7070 = vmatmul.mubr.f32.gmra.mxu0 %v6818
    %v7071 = vpop.f32.mrf.mxu0
    %v7072 = vadd.f32 %v6881, %v7071
    %v7073 = vpop.f32.mrf.mxu0
    %7074 = vmatprep.mubr.f32.mxu0 %v6930
    %7075 = vmatmul.mubr.f32.gmra.mxu0 %v6819
    %v7076 = vpop.f32.mrf.mxu0
    %v7077 = vadd.f32 %v6881, %v7076
    %v7078 = vpop.f32.mrf.mxu0
    %7079 = vdwg.mxu0
    %v7080 = vsel %vm6836, %v7002, 0.0
    %v7081 = vsel %vm6836, %v7007, 0.0
    %v7082 = vadd.f32 %v7080, %v7081
    %v7083 = vsel %vm6836, %v7012, 0.0
    %v7084 = vadd.f32 %v7082, %v7083
    %v7085 = vsel %vm6836, %v7017, 0.0
    %v7086 = vadd.f32 %v7084, %v7085
    %v7087 = vsel %vm6836, %v7022, 0.0
    %v7088 = vadd.f32 %v7086, %v7087
    %v7089 = vsel %vm6836, %v7027, 0.0
    %v7090 = vadd.f32 %v7088, %v7089
    %v7091 = vsel %vm6836, %v7032, 0.0
    %v7092 = vadd.f32 %v7090, %v7091
    %v7093 = vsel %vm6836, %v7037, 0.0
    %v7094 = vadd.f32 %v7092, %v7093
    %v7095 = vsel %vm6836, %v7042, 0.0
    %v7096 = vadd.f32 %v7094, %v7095
    %v7097 = vsel %vm6836, %v7047, 0.0
    %v7098 = vadd.f32 %v7096, %v7097
    %v7099 = vsel %vm6836, %v7052, 0.0
    %v7100 = vadd.f32 %v7098, %v7099
    %v7101 = vsel %vm6836, %v7057, 0.0
    %v7102 = vadd.f32 %v7100, %v7101
    %v7103 = vsel %vm6836, %v7062, 0.0
    %v7104 = vadd.f32 %v7102, %v7103
    %v7105 = vsel %vm6836, %v7067, 0.0
    %v7106 = vadd.f32 %v7104, %v7105
    %v7107 = vsel %vm6836, %v7072, 0.0
    %v7108 = vadd.f32 %v7106, %v7107
    %v7109 = vsel %vm6836, %v7077, 0.0
    %v7110 = vadd.f32 %v7108, %v7109
    %v7111 = vrot.slane %v7110, 4
    %v7112 = vadd.f32 %v7110, %v7111
    %v7113 = vrot.slane %v7112, 2
    %v7114 = vadd.f32 %v7112, %v7113
    %v7115 = vrot.slane %v7114, 1
    %v7116 = vadd.f32 %v7114, %v7115
    %v7117 = vrcp.pop 128.0
    %v7118 = vmul.f32 %v7116, %v7117
    %v7119 = vsub.f32 %v7002, %v7118
    %v7120 = vsub.f32 %v7007, %v7118
    %v7121 = vsub.f32 %v7012, %v7118
    %v7122 = vsub.f32 %v7017, %v7118
    %v7123 = vsub.f32 %v7022, %v7118
    %v7124 = vsub.f32 %v7027, %v7118
    %v7125 = vsub.f32 %v7032, %v7118
    %v7126 = vsub.f32 %v7037, %v7118
    %v7127 = vsub.f32 %v7042, %v7118
    %v7128 = vsub.f32 %v7047, %v7118
    %v7129 = vsub.f32 %v7052, %v7118
    %v7130 = vsub.f32 %v7057, %v7118
    %v7131 = vsub.f32 %v7062, %v7118
    %v7132 = vsub.f32 %v7067, %v7118
    %v7133 = vsub.f32 %v7072, %v7118
    %v7134 = vsub.f32 %v7077, %v7118
    %v7135 = vmul.f32 %v7119, %v7119
    %v7136 = vmul.f32 %v7120, %v7120
    %v7137 = vmul.f32 %v7121, %v7121
    %v7138 = vmul.f32 %v7122, %v7122
    %v7139 = vmul.f32 %v7123, %v7123
    %v7140 = vmul.f32 %v7124, %v7124
    %v7141 = vmul.f32 %v7125, %v7125
    %v7142 = vmul.f32 %v7126, %v7126
    %v7143 = vmul.f32 %v7127, %v7127
    %v7144 = vmul.f32 %v7128, %v7128
    %v7145 = vmul.f32 %v7129, %v7129
    %v7146 = vmul.f32 %v7130, %v7130
    %v7147 = vmul.f32 %v7131, %v7131
    %v7148 = vmul.f32 %v7132, %v7132
    %v7149 = vmul.f32 %v7133, %v7133
    %v7150 = vmul.f32 %v7134, %v7134
    %v7151 = vsel %vm6836, %v7135, 0.0
    %v7152 = vsel %vm6836, %v7136, 0.0
    %v7153 = vadd.f32 %v7151, %v7152
    %v7154 = vsel %vm6836, %v7137, 0.0
    %v7155 = vadd.f32 %v7153, %v7154
    %v7156 = vsel %vm6836, %v7138, 0.0
    %v7157 = vadd.f32 %v7155, %v7156
    %v7158 = vsel %vm6836, %v7139, 0.0
    %v7159 = vadd.f32 %v7157, %v7158
    %v7160 = vsel %vm6836, %v7140, 0.0
    %v7161 = vadd.f32 %v7159, %v7160
    %v7162 = vsel %vm6836, %v7141, 0.0
    %v7163 = vadd.f32 %v7161, %v7162
    %v7164 = vsel %vm6836, %v7142, 0.0
    %v7165 = vadd.f32 %v7163, %v7164
    %v7166 = vsel %vm6836, %v7143, 0.0
    %v7167 = vadd.f32 %v7165, %v7166
    %v7168 = vsel %vm6836, %v7144, 0.0
    %v7169 = vadd.f32 %v7167, %v7168
    %v7170 = vsel %vm6836, %v7145, 0.0
    %v7171 = vadd.f32 %v7169, %v7170
    %v7172 = vsel %vm6836, %v7146, 0.0
    %v7173 = vadd.f32 %v7171, %v7172
    %v7174 = vsel %vm6836, %v7147, 0.0
    %v7175 = vadd.f32 %v7173, %v7174
    %v7176 = vsel %vm6836, %v7148, 0.0
    %v7177 = vadd.f32 %v7175, %v7176
    %v7178 = vsel %vm6836, %v7149, 0.0
    %v7179 = vadd.f32 %v7177, %v7178
    %v7180 = vsel %vm6836, %v7150, 0.0
    %v7181 = vadd.f32 %v7179, %v7180
    %v7182 = vrot.slane %v7181, 4
    %v7183 = vadd.f32 %v7181, %v7182
    %v7184 = vrot.slane %v7183, 2
    %v7185 = vadd.f32 %v7183, %v7184
    %v7186 = vrot.slane %v7185, 1
    %v7187 = vadd.f32 %v7185, %v7186
    %v7188 = vmul.f32 %v7187, %v7117
    %v7189 = vld [vmem:[#allocation14] sm:$0x1]
    %v7190 = vadd.f32 %v7188, 1e-05
    %v7191 = vrsqrt.pop %v7190
    %v7192 = vmul.f32 %v7189, %v7191
    %v7194 = vlaneseq
    %v7195 = vshrl.u32 %v7194, 7
    %v7196 = vsub.s32 0, %v7195
    %v7197 = vrot.slane %v7192, %v7196
    %v7199 = vmul.f32 %v7119, %v7197
    %v7200 = vmul.f32 %v7120, %v7197
    %v7201 = vmul.f32 %v7121, %v7197
    %v7202 = vmul.f32 %v7122, %v7197
    %v7203 = vmul.f32 %v7123, %v7197
    %v7204 = vmul.f32 %v7124, %v7197
    %v7205 = vmul.f32 %v7125, %v7197
    %v7206 = vmul.f32 %v7126, %v7197
    %v7207 = vmul.f32 %v7127, %v7197
    %v7208 = vmul.f32 %v7128, %v7197
    %v7209 = vmul.f32 %v7129, %v7197
    %v7210 = vmul.f32 %v7130, %v7197
    %v7211 = vmul.f32 %v7131, %v7197
    %v7212 = vmul.f32 %v7132, %v7197
    %v7213 = vmul.f32 %v7133, %v7197
    %v7214 = vmul.f32 %v7134, %v7197
    %v7215 = vld [vmem:[#allocation16] sm:$0x1]
    %v7217 = vlaneseq
    %v7218 = vshrl.u32 %v7217, 7
    %v7219 = vsub.s32 0, %v7218
    %v7220 = vrot.slane %v7215, %v7219
    %v7222 = vadd.f32 %v7199, %v7220
    %v7223 = vadd.f32 %v7200, %v7220
    %v7224 = vadd.f32 %v7201, %v7220
    %v7225 = vadd.f32 %v7202, %v7220
    %v7226 = vadd.f32 %v7203, %v7220
    %v7227 = vadd.f32 %v7204, %v7220
    %v7228 = vadd.f32 %v7205, %v7220
    %v7229 = vadd.f32 %v7206, %v7220
    %v7230 = vadd.f32 %v7207, %v7220
    %v7231 = vadd.f32 %v7208, %v7220
    %v7232 = vadd.f32 %v7209, %v7220
    %v7233 = vadd.f32 %v7210, %v7220
    %v7234 = vadd.f32 %v7211, %v7220
    %v7235 = vadd.f32 %v7212, %v7220
    %v7236 = vadd.f32 %v7213, %v7220
    %v7237 = vadd.f32 %v7214, %v7220
    %v7238 = vmax.f32 %v7222, 0.0
    %v7239 = vmax.f32 %v7223, 0.0
    %v7240 = vmax.f32 %v7224, 0.0
    %v7241 = vmax.f32 %v7225, 0.0
    %v7242 = vmax.f32 %v7226, 0.0
    %v7243 = vmax.f32 %v7227, 0.0
    %v7244 = vmax.f32 %v7228, 0.0
    %v7245 = vmax.f32 %v7229, 0.0
    %v7246 = vmax.f32 %v7230, 0.0
    %v7247 = vmax.f32 %v7231, 0.0
    %v7248 = vmax.f32 %v7232, 0.0
    %v7249 = vmax.f32 %v7233, 0.0
    %v7250 = vmax.f32 %v7234, 0.0
    %v7251 = vmax.f32 %v7235, 0.0
    %v7252 = vmax.f32 %v7236, 0.0
    %v7253 = vmax.f32 %v7237, 0.0
    %7254 = vst.msk [vmem:[%s11] sm:$0xff] %vm6836, %v7238
    %7255 = vst.msk [vmem:[%s11 + $0x8] sm:$0xff] %vm6836, %v7239
    %7256 = vst.msk [vmem:[%s11 + $0x10] sm:$0xff] %vm6836, %v7240
    %7257 = vst.msk [vmem:[%s11 + $0x18] sm:$0xff] %vm6836, %v7241
    %7258 = vst.msk [vmem:[%s11 + $0x20] sm:$0xff] %vm6836, %v7242
    %7259 = vst.msk [vmem:[%s11 + $0x28] sm:$0xff] %vm6836, %v7243
    %7260 = vst.msk [vmem:[%s11 + $0x30] sm:$0xff] %vm6836, %v7244
    %7261 = vst.msk [vmem:[%s11 + $0x38] sm:$0xff] %vm6836, %v7245
    %7262 = vst.msk [vmem:[%s11 + $0x40] sm:$0xff] %vm6836, %v7246
    %7263 = vst.msk [vmem:[%s11 + $0x48] sm:$0xff] %vm6836, %v7247
    %7264 = vst.msk [vmem:[%s11 + $0x50] sm:$0xff] %vm6836, %v7248
    %7265 = vst.msk [vmem:[%s11 + $0x58] sm:$0xff] %vm6836, %v7249
    %7266 = vst.msk [vmem:[%s11 + $0x60] sm:$0xff] %vm6836, %v7250
    %7267 = vst.msk [vmem:[%s11 + $0x68] sm:$0xff] %vm6836, %v7251
    %7268 = vst.msk [vmem:[%s11 + $0x70] sm:$0xff] %vm6836, %v7252
    %7269 = vst.msk [vmem:[%s11 + $0x78] sm:$0xff] %vm6836, %v7253
    // Predicated region
    $region74: #{convnet_forward.2} parent=1 // pred_check
      _
    $region75: #{convnet_forward.2} parent=1 // pred_check_branch
      %7271 = sbr.rel (0) target = $region77
    $region76: #{convnet_forward.2} parent=1 // pred_region
      _
    $region77: #{convnet_forward.2} parent=1 // pred_fallthru
      _
    // Predicated region
    $region78: #{convnet_forward.2} parent=1 // pred_check
      _
    $region79: #{convnet_forward.2} parent=1 // pred_check_branch
      %7273 = sbr.rel (0) target = $region81
    $region80: #{convnet_forward.2} parent=1 // pred_region
      _
    $region81: #{convnet_forward.2} parent=1 // pred_fallthru
      _
    %7274 = vsyncpa [#allocation7], 1
    %7275 = vsyncpa [#allocation9], 1
    %7276 = vsyncpa [#allocation12], 1
    %7277 = vsyncpa [#allocation15], 1

</llo_original>
